<compile_context>
chip_gen: v7x
topology: tpu7x:2x2x1
jax: 0.10.0
libtpu: 0.0.40
codegen_flags: <defaults>
</compile_context>

<pallas_src>
import functools

import jax
import jax.numpy as jnp
from jax import lax
from jax.experimental import pallas as pl
from jax.experimental.pallas import tpu as pltpu

_MASK = -1e9  # additive mask for padded softmax / log-softmax lanes


def _round_up(x, m):
    return (x + m - 1) // m * m


# ---------------------------------------------------------------------------
# Kernel: full T-step attention-decoder loop for one group of `bb` batch rows.
# ---------------------------------------------------------------------------
def _attn_decoder_seq_kernel(
        emb_seq_ref,                               # (T, bb, H) f32  pre-gathered embeddings
        enc_ref,                                   # (Lp, H)    bf16 encoder outputs (rows zero-padded)
        h0_ref,                                    # (bb, H)    f32  initial hidden (this group)
        wa_ref, ba_ref,                            # attn:    (2H, Lp) bf16, (1, Lp) f32 (-1e9 pad)
        wc_ref, bc_ref,                            # combine: (2H, H)  bf16, (1, H)  f32
        wih_ref, bih_ref,                          # GRU ih:  (H, 3H)  bf16, (1, 3H) f32  [r|z|n]
        whh_ref, bhh_ref,                          # GRU hh:  (H, 3H)  bf16, (1, 3H) f32
        wo_ref, bo_ref,                            # out:     (H, Op)  bf16, (1, Op) f32 (-1e9 pad)
        logp_ref,                                  # out (T, bb, Op) f32
        hout_ref,                                  # out (bb, H)     f32
        attnw_ref):                                # out (T, bb, Lp) f32
    T = emb_seq_ref.shape[0]
    bb, H = h0_ref.shape

    # Hoist resident operands out of the time loop (loaded once per group).
    enc = enc_ref[...]
    wa, ba = wa_ref[...], ba_ref[...]
    wc, bc = wc_ref[...], bc_ref[...]
    wih, bih = wih_ref[...], bih_ref[...]
    whh, bhh = whh_ref[...], bhh_ref[...]
    wo, bo = wo_ref[...], bo_ref[...]

    def step(t, h):                                # h: (bb, H) f32 carry
        h_bf = h.astype(jnp.bfloat16)
        # TODO(synk): training-mode dropout (Bernoulli mask / (1-p)) not implemented.
        emb_bf = emb_seq_ref[t].astype(jnp.bfloat16)               # (bb, H)

        # --- attn_weights = softmax(Linear(cat(embedded, hidden))) ----------
        eh = jnp.concatenate([emb_bf, h_bf], axis=1)               # (bb, 2H)
        scores = jnp.dot(eh, wa, preferred_element_type=jnp.float32) + ba   # (bb, Lp)
        m = jnp.max(scores, axis=1, keepdims=True)
        e = jnp.exp(scores - m)
        attn_w = e / jnp.sum(e, axis=1, keepdims=True)             # exact divide
        attnw_ref[t] = attn_w

        # --- attn_applied = attn_weights @ encoder_outputs -------------------
        attn_applied = jnp.dot(attn_w.astype(jnp.bfloat16), enc,
                               preferred_element_type=jnp.float32)  # (bb, H)

        # --- attn_combine(cat(embedded, attn_applied)) + ReLU ----------------
        ea = jnp.concatenate([emb_bf, attn_applied.astype(jnp.bfloat16)], axis=1)
        x = jnp.dot(ea, wc, preferred_element_type=jnp.float32) + bc         # (bb, H)
        x_bf = jnp.maximum(x, 0.0).astype(jnp.bfloat16)

        # --- single GRU step (PyTorch gate order r, z, n; fused 3H dots) -----
        gi = jnp.dot(x_bf, wih, preferred_element_type=jnp.float32) + bih    # (bb, 3H)
        gh = jnp.dot(h_bf, whh, preferred_element_type=jnp.float32) + bhh    # (bb, 3H)
        r = jax.nn.sigmoid(gi[:, 0:H] + gh[:, 0:H])
        z = jax.nn.sigmoid(gi[:, H:2 * H] + gh[:, H:2 * H])
        n = jnp.tanh(gi[:, 2 * H:3 * H] + r * gh[:, 2 * H:3 * H])
        h_new = (1.0 - z) * n + z * h                                        # (bb, H) f32

        # --- out Linear + log_softmax -----------------------------------------
        logits = jnp.dot(h_new.astype(jnp.bfloat16), wo,
                         preferred_element_type=jnp.float32) + bo            # (bb, Op)
        lm = jnp.max(logits, axis=1, keepdims=True)
        shifted = logits - lm
        logz = jnp.log(jnp.sum(jnp.exp(shifted), axis=1, keepdims=True))
        logp_ref[t] = shifted - logz
        return h_new

    h_fin = lax.fori_loop(0, T, step, h0_ref[...], unroll=True)
    hout_ref[...] = h_fin


# ---------------------------------------------------------------------------
# Parameter construction (PyTorch layout) and kernel-ready preparation.
# ---------------------------------------------------------------------------
def make_params(key, hidden_size, output_size, max_length):
    """Deterministic init mimicking PyTorch parameter shapes (weight = (out, in))."""
    H, O, L = hidden_size, output_size, max_length
    ks = jax.random.split(key, 11)

    def u(k, shape, fan_in):
        b = 1.0 / jnp.sqrt(jnp.asarray(fan_in, jnp.float32))
        return jax.random.uniform(k, shape, jnp.float32, -b, b)

    return {
        "embedding": jax.random.normal(ks[0], (O, H), jnp.float32),
        "attn.weight": u(ks[1], (L, 2 * H), 2 * H),
        "attn.bias": u(ks[2], (L,), 2 * H),
        "attn_combine.weight": u(ks[3], (H, 2 * H), 2 * H),
        "attn_combine.bias": u(ks[4], (H,), 2 * H),
        "gru.weight_ih": u(ks[5], (3 * H, H), H),     # rows [r | z | n]
        "gru.bias_ih": u(ks[6], (3 * H,), H),
        "gru.weight_hh": u(ks[7], (3 * H, H), H),
        "gru.bias_hh": u(ks[8], (3 * H,), H),
        "out.weight": u(ks[9], (O, H), H),
        "out.bias": u(ks[10], (O,), H),
    }


def prepare_params(p, hidden_size, output_size, max_length):
    """Transpose / lane-pad / bf16-cast parameters for the kernel."""
    H, O, L = hidden_size, output_size, max_length
    Lp, Op = _round_up(L, 128), _round_up(O, 128)
    bf = jnp.bfloat16

    def pad_w(w, cols):          # zero-pad trailing columns
        return jnp.pad(w, ((0, 0), (0, cols - w.shape[1])))

    def pad_b(b, cols):          # mask-pad trailing bias entries
        return jnp.concatenate(
            [b, jnp.full((cols - b.shape[0],), _MASK, jnp.float32)]).reshape(1, cols)

    return {
        "emb": p["embedding"],                                   # (O, H) f32 (gathered in wrapper)
        "w_attn": pad_w(p["attn.weight"].T, Lp).astype(bf),      # (2H, Lp)
        "b_attn": pad_b(p["attn.bias"], Lp),                     # (1, Lp) f32
        "w_comb": p["attn_combine.weight"].T.astype(bf),         # (2H, H)
        "b_comb": p["attn_combine.bias"].reshape(1, H),          # (1, H) f32
        "w_ih": p["gru.weight_ih"].T.astype(bf),                 # (H, 3H) gate cols [r|z|n]
        "b_ih": p["gru.bias_ih"].reshape(1, 3 * H),              # (1, 3H) f32
        "w_hh": p["gru.weight_hh"].T.astype(bf),                 # (H, 3H)
        "b_hh": p["gru.bias_hh"].reshape(1, 3 * H),              # (1, 3H) f32
        "w_out": pad_w(p["out.weight"].T, Op).astype(bf),        # (H, Op)
        "b_out": pad_b(p["out.bias"], Op),                       # (1, Op) f32
    }


# ---------------------------------------------------------------------------
# Wrapper: one pallas_call for the whole decode.
# ---------------------------------------------------------------------------
@functools.partial(jax.jit, static_argnames=("block_b",))
def attn_decoder_decode(prep, tokens, h0, encoder_outputs, *, block_b=None):
    """T sequential applications of AttnDecoderRNN.forward (GRU, eval-mode) for
    B independent decode streams sharing one encoder memory.

    tokens: (T, B) int32; h0: (B, H) f32; encoder_outputs: (L, H) f32.
    Returns (log_probs (T, B, V), final_hidden (B, H), attn_weights (T, B, L)).
    Use block_b=B (G=1) on single-TC v5e/v6e; block_b=B//2 (G=2) on v7x.
    """
    T, B = tokens.shape
    H = h0.shape[-1]
    L = encoder_outputs.shape[0]
    V = prep["emb"].shape[0]
    Lp = prep["w_attn"].shape[1]
    Op = prep["w_out"].shape[1]
    if block_b is None:
        block_b = B
    assert B % block_b == 0, "batch must be a multiple of block_b"
    assert Lp == _round_up(L, 128), "encoder length mismatch vs prepared params"
    G = B // block_b

    enc = jnp.pad(encoder_outputs, ((0, Lp - L), (0, 0))).astype(jnp.bfloat16)
    # Pre-gather the embedding rows (tokens known up front): (T, B, H) f32.
    emb_seq = jnp.take(prep["emb"], tokens, axis=0)

    c2 = lambda g: (0, 0)
    in_specs = [
        pl.BlockSpec((T, block_b, H), lambda g: (0, g, 0)),     # embeddings (per group)
        pl.BlockSpec((Lp, H), c2),                              # encoder outputs (resident)
        pl.BlockSpec((block_b, H), lambda g: (g, 0)),           # h0 (per group)
        pl.BlockSpec((2 * H, Lp), c2), pl.BlockSpec((1, Lp), c2),
        pl.BlockSpec((2 * H, H), c2), pl.BlockSpec((1, H), c2),
        pl.BlockSpec((H, 3 * H), c2), pl.BlockSpec((1, 3 * H), c2),
        pl.BlockSpec((H, 3 * H), c2), pl.BlockSpec((1, 3 * H), c2),
        pl.BlockSpec((H, Op), c2), pl.BlockSpec((1, Op), c2),
    ]
    out_specs = (
        pl.BlockSpec((T, block_b, Op), lambda g: (0, g, 0)),    # log-probs (whole seq per group)
        pl.BlockSpec((block_b, H), lambda g: (g, 0)),           # final hidden
        pl.BlockSpec((T, block_b, Lp), lambda g: (0, g, 0)),    # attention weights
    )
    out_shapes = (
        jax.ShapeDtypeStruct((T, B, Op), jnp.float32),
        jax.ShapeDtypeStruct((B, H), jnp.float32),
        jax.ShapeDtypeStruct((T, B, Lp), jnp.float32),
    )
    grid_spec = pltpu.PrefetchScalarGridSpec(
        num_scalar_prefetch=0, grid=(G,),
        in_specs=in_specs, out_specs=out_specs)

    logp, h_fin, attn_w = pl.pallas_call(
        _attn_decoder_seq_kernel,
        out_shape=out_shapes,
        grid_spec=grid_spec,
        compiler_params=pltpu.CompilerParams(
            dimension_semantics=("parallel",)),
    )(emb_seq, enc, h0,
      prep["w_attn"], prep["b_attn"], prep["w_comb"], prep["b_comb"],
      prep["w_ih"], prep["b_ih"], prep["w_hh"], prep["b_hh"],
      prep["w_out"], prep["b_out"])

    return logp[:, :, :V], h_fin, attn_w[:, :, :L]


# ---------------------------------------------------------------------------
# Pure-JAX reference (same bf16 weights / fused math) for validation.
# ---------------------------------------------------------------------------
def reference_decode(prep, tokens, h0, encoder_outputs):
    L = encoder_outputs.shape[0]
    V = prep["emb"].shape[0]
    Lp = prep["w_attn"].shape[1]
    H = h0.shape[-1]
    enc = jnp.pad(encoder_outputs, ((0, Lp - L), (0, 0))).astype(jnp.bfloat16)
    emb_seq = jnp.take(prep["emb"], tokens, axis=0)   # (T, B, H) f32

    def step(h, emb_t):
        emb_bf = emb_t.astype(jnp.bfloat16)
        h_bf = h.astype(jnp.bfloat16)
        eh = jnp.concatenate([emb_bf, h_bf], axis=1)
        scores = (jnp.dot(eh, prep["w_attn"], preferred_element_type=jnp.float32)
                  + prep["b_attn"])
        m = jnp.max(scores, axis=1, keepdims=True)
        e = jnp.exp(scores - m)
        attn_w = e / jnp.sum(e, axis=1, keepdims=True)
        attn_applied = jnp.dot(attn_w.astype(jnp.bfloat16), enc,
                               preferred_element_type=jnp.float32)
        ea = jnp.concatenate([emb_bf, attn_applied.astype(jnp.bfloat16)], axis=1)
        x = (jnp.dot(ea, prep["w_comb"], preferred_element_type=jnp.float32)
             + prep["b_comb"])
        x_bf = jnp.maximum(x, 0.0).astype(jnp.bfloat16)
        gi = jnp.dot(x_bf, prep["w_ih"], preferred_element_type=jnp.float32) + prep["b_ih"]
        gh = jnp.dot(h_bf, prep["w_hh"], preferred_element_type=jnp.float32) + prep["b_hh"]
        r = jax.nn.sigmoid(gi[:, 0:H] + gh[:, 0:H])
        z = jax.nn.sigmoid(gi[:, H:2 * H] + gh[:, H:2 * H])
        n = jnp.tanh(gi[:, 2 * H:3 * H] + r * gh[:, 2 * H:3 * H])
        h_new = (1.0 - z) * n + z * h
        logits = (jnp.dot(h_new.astype(jnp.bfloat16), prep["w_out"],
                          preferred_element_type=jnp.float32) + prep["b_out"])
        return h_new, (jax.nn.log_softmax(logits, axis=-1), attn_w)

    h_fin, (logps, attns) = jax.lax.scan(step, h0, emb_seq)
    return logps[:, :, :V], h_fin, attns[:, :, :L]


if __name__ == "__main__":
    hidden_size = 32
    output_size = 64      # vocab
    max_length = 64
    batch = 16            # 2 groups of 8 -> "parallel" grid axis of 2 (v7x-friendly)
    steps = 12            # decode steps run inside one kernel call

    key = jax.random.PRNGKey(0)
    kp, kh, ke, kt = jax.random.split(key, 4)
    params = make_params(kp, hidden_size, output_size, max_length)
    prep = prepare_params(params, hidden_size, output_size, max_length)

    tokens = jax.random.randint(kt, (steps, batch), 0, output_size, dtype=jnp.int32)
    h0 = jax.random.normal(kh, (batch, hidden_size), jnp.float32)
    encoder_outputs = jax.random.normal(ke, (max_length, hidden_size), jnp.float32)

    logp, h_fin, attn_w = attn_decoder_decode(
        prep, tokens, h0, encoder_outputs, block_b=8)
    jax.block_until_ready((logp, h_fin, attn_w))

    assert logp.shape == (steps, batch, output_size)
    assert h_fin.shape == (batch, hidden_size)
    assert attn_w.shape == (steps, batch, max_length)
    # sanity: softmax rows / exp(log_softmax) rows sum to ~1
    assert float(jnp.max(jnp.abs(jnp.sum(attn_w, axis=-1) - 1.0))) < 5e-3
    assert float(jnp.max(jnp.abs(jnp.sum(jnp.exp(logp), axis=-1) - 1.0))) < 5e-3

    # correctness vs pure-JAX reference using the same bf16 weights / math
    r_logp, r_h, r_attn = reference_decode(prep, tokens, h0, encoder_outputs)
    assert float(jnp.max(jnp.abs(logp - r_logp))) < 2e-2
    assert float(jnp.max(jnp.abs(h_fin - r_h))) < 2e-2
    assert float(jnp.max(jnp.abs(attn_w - r_attn))) < 2e-2

    print("KERNEL_OK")
</pallas_src>

<mosaic_0001>
module attributes {stable_mosaic.version = 11 : i64} {
  func.func @_attn_decoder_seq_kernel(%arg0: i32, %arg1: memref<12x8x32xf32, #tpu.memory_space<vmem>>, %arg2: memref<128x32xbf16, #tpu.memory_space<vmem>>, %arg3: memref<8x32xf32, #tpu.memory_space<vmem>>, %arg4: memref<64x128xbf16, #tpu.memory_space<vmem>>, %arg5: memref<1x128xf32, #tpu.memory_space<vmem>>, %arg6: memref<64x32xbf16, #tpu.memory_space<vmem>>, %arg7: memref<1x32xf32, #tpu.memory_space<vmem>>, %arg8: memref<32x96xbf16, #tpu.memory_space<vmem>>, %arg9: memref<1x96xf32, #tpu.memory_space<vmem>>, %arg10: memref<32x96xbf16, #tpu.memory_space<vmem>>, %arg11: memref<1x96xf32, #tpu.memory_space<vmem>>, %arg12: memref<32x128xbf16, #tpu.memory_space<vmem>>, %arg13: memref<1x128xf32, #tpu.memory_space<vmem>>, %arg14: memref<12x8x128xf32, #tpu.memory_space<vmem>>, %arg15: memref<8x32xf32, #tpu.memory_space<vmem>>, %arg16: memref<12x8x128xf32, #tpu.memory_space<vmem>>) attributes {dimension_semantics = [#tpu.dimension_semantics<parallel>], iteration_bounds = array<i64: 2>, scalar_prefetch = 0 : i64, scratch_operands = 0 : i64, tpu.core_type = #tpu.core_type<tc>, window_params = [{transform_indices = @transform_0, window_bounds = array<i64: 12, 8, 32>}, {pipeline_mode = #tpu.pipeline_mode<synchronous>, transform_indices = @transform_1, window_bounds = array<i64: 128, 32>}, {transform_indices = @transform_2, window_bounds = array<i64: 8, 32>}, {pipeline_mode = #tpu.pipeline_mode<synchronous>, transform_indices = @transform_3, window_bounds = array<i64: 64, 128>}, {pipeline_mode = #tpu.pipeline_mode<synchronous>, transform_indices = @transform_4, window_bounds = array<i64: 1, 128>}, {pipeline_mode = #tpu.pipeline_mode<synchronous>, transform_indices = @transform_5, window_bounds = array<i64: 64, 32>}, {pipeline_mode = #tpu.pipeline_mode<synchronous>, transform_indices = @transform_6, window_bounds = array<i64: 1, 32>}, {pipeline_mode = #tpu.pipeline_mode<synchronous>, transform_indices = @transform_7, window_bounds = array<i64: 32, 96>}, {pipeline_mode = #tpu.pipeline_mode<synchronous>, transform_indices = @transform_8, window_bounds = array<i64: 1, 96>}, {pipeline_mode = #tpu.pipeline_mode<synchronous>, transform_indices = @transform_9, window_bounds = array<i64: 32, 96>}, {pipeline_mode = #tpu.pipeline_mode<synchronous>, transform_indices = @transform_10, window_bounds = array<i64: 1, 96>}, {pipeline_mode = #tpu.pipeline_mode<synchronous>, transform_indices = @transform_11, window_bounds = array<i64: 32, 128>}, {pipeline_mode = #tpu.pipeline_mode<synchronous>, transform_indices = @transform_12, window_bounds = array<i64: 1, 128>}, {transform_indices = @transform_13, window_bounds = array<i64: 12, 8, 128>}, {transform_indices = @transform_14, window_bounds = array<i64: 8, 32>}, {transform_indices = @transform_15, window_bounds = array<i64: 12, 8, 128>}]} {
    %c0 = arith.constant 0 : index
    %c0_0 = arith.constant 0 : index
    %0 = vector.load %arg2[%c0, %c0_0] : memref<128x32xbf16, #tpu.memory_space<vmem>>, vector<128x32xbf16>
    %c0_1 = arith.constant 0 : index
    %c0_2 = arith.constant 0 : index
    %1 = vector.load %arg4[%c0_1, %c0_2] : memref<64x128xbf16, #tpu.memory_space<vmem>>, vector<64x128xbf16>
    %c0_3 = arith.constant 0 : index
    %c0_4 = arith.constant 0 : index
    %2 = vector.load %arg5[%c0_3, %c0_4] : memref<1x128xf32, #tpu.memory_space<vmem>>, vector<1x128xf32>
    %c0_5 = arith.constant 0 : index
    %c0_6 = arith.constant 0 : index
    %3 = vector.load %arg6[%c0_5, %c0_6] : memref<64x32xbf16, #tpu.memory_space<vmem>>, vector<64x32xbf16>
    %c0_7 = arith.constant 0 : index
    %c0_8 = arith.constant 0 : index
    %4 = vector.load %arg7[%c0_7, %c0_8] : memref<1x32xf32, #tpu.memory_space<vmem>>, vector<1x32xf32>
    %c0_9 = arith.constant 0 : index
    %c0_10 = arith.constant 0 : index
    %5 = vector.load %arg8[%c0_9, %c0_10] : memref<32x96xbf16, #tpu.memory_space<vmem>>, vector<32x96xbf16>
    %c0_11 = arith.constant 0 : index
    %c0_12 = arith.constant 0 : index
    %6 = vector.load %arg9[%c0_11, %c0_12] : memref<1x96xf32, #tpu.memory_space<vmem>>, vector<1x96xf32>
    %c0_13 = arith.constant 0 : index
    %c0_14 = arith.constant 0 : index
    %7 = vector.load %arg10[%c0_13, %c0_14] : memref<32x96xbf16, #tpu.memory_space<vmem>>, vector<32x96xbf16>
    %c0_15 = arith.constant 0 : index
    %c0_16 = arith.constant 0 : index
    %8 = vector.load %arg11[%c0_15, %c0_16] : memref<1x96xf32, #tpu.memory_space<vmem>>, vector<1x96xf32>
    %c0_17 = arith.constant 0 : index
    %c0_18 = arith.constant 0 : index
    %9 = vector.load %arg12[%c0_17, %c0_18] : memref<32x128xbf16, #tpu.memory_space<vmem>>, vector<32x128xbf16>
    %c0_19 = arith.constant 0 : index
    %c0_20 = arith.constant 0 : index
    %10 = vector.load %arg13[%c0_19, %c0_20] : memref<1x128xf32, #tpu.memory_space<vmem>>, vector<1x128xf32>
    %c0_21 = arith.constant 0 : index
    %c0_22 = arith.constant 0 : index
    %11 = vector.load %arg3[%c0_21, %c0_22] : memref<8x32xf32, #tpu.memory_space<vmem>>, vector<8x32xf32>
    %c0_i32 = arith.constant 0 : i32
    %12 = arith.truncf %11 : vector<8x32xf32> to vector<8x32xbf16>
    %13 = arith.index_cast %c0_i32 : i32 to index
    %c0_23 = arith.constant 0 : index
    %c0_24 = arith.constant 0 : index
    %14 = vector.load %arg1[%13, %c0_23, %c0_24] : memref<12x8x32xf32, #tpu.memory_space<vmem>>, vector<1x8x32xf32>
    %15 = vector.shape_cast %14 : vector<1x8x32xf32> to vector<8x32xf32>
    %16 = arith.truncf %15 : vector<8x32xf32> to vector<8x32xbf16>
    %17 = tpu.concatenate %16, %12 in 1 : vector<8x32xbf16>, vector<8x32xbf16> -> vector<8x64xbf16>
    %cst = arith.constant dense<0.000000e+00> : vector<8x128xf32>
    %18 = tpu.matmul %17, %1, %cst {dimension_numbers = #tpu.dot_dimension_numbers<[1], [0], [0], [1], [0, 0, 1, 1], [], []>} : vector<8x64xbf16>, vector<64x128xbf16>, vector<8x128xf32> -> vector<8x128xf32>
    %19 = vector.broadcast %2 : vector<1x128xf32> to vector<8x128xf32>
    %20 = arith.addf %18, %19 : vector<8x128xf32>
    %cst_25 = arith.constant dense<0xFF800000> : vector<8xf32>
    %21 = vector.multi_reduction <maximumf>, %20, %cst_25 [1] : vector<8x128xf32> to vector<8xf32>
    %22 = vector.shape_cast %21 : vector<8xf32> to vector<8x1xf32>
    %23 = vector.broadcast %22 : vector<8x1xf32> to vector<8x128xf32>
    %24 = arith.subf %20, %23 : vector<8x128xf32>
    %25 = math.exp %24 : vector<8x128xf32>
    %cst_26 = arith.constant dense<0.000000e+00> : vector<8xf32>
    %26 = vector.multi_reduction <add>, %25, %cst_26 [1] : vector<8x128xf32> to vector<8xf32>
    %27 = vector.shape_cast %26 : vector<8xf32> to vector<8x1xf32>
    %28 = vector.broadcast %27 : vector<8x1xf32> to vector<8x128xf32>
    %29 = arith.divf %25, %28 : vector<8x128xf32>
    %30 = arith.index_cast %c0_i32 : i32 to index
    %c0_27 = arith.constant 0 : index
    %c0_28 = arith.constant 0 : index
    %31 = vector.load %arg16[%30, %c0_27, %c0_28] : memref<12x8x128xf32, #tpu.memory_space<vmem>>, vector<1x8x128xf32>
    %32 = vector.shape_cast %31 : vector<1x8x128xf32> to vector<8x128xf32>
    %33 = vector.shape_cast %29 : vector<8x128xf32> to vector<1x8x128xf32>
    tpu.vector_store %arg16[%30, %c0_27, %c0_28], %33 {strides = array<i32>} : memref<12x8x128xf32, #tpu.memory_space<vmem>>, vector<1x8x128xf32>,
    %34 = arith.truncf %29 : vector<8x128xf32> to vector<8x128xbf16>
    %cst_29 = arith.constant dense<0.000000e+00> : vector<8x32xf32>
    %35 = tpu.matmul %34, %0, %cst_29 {dimension_numbers = #tpu.dot_dimension_numbers<[1], [0], [0], [1], [0, 0, 1, 1], [], []>} : vector<8x128xbf16>, vector<128x32xbf16>, vector<8x32xf32> -> vector<8x32xf32>
    %36 = arith.truncf %35 : vector<8x32xf32> to vector<8x32xbf16>
    %37 = tpu.concatenate %16, %36 in 1 : vector<8x32xbf16>, vector<8x32xbf16> -> vector<8x64xbf16>
    %cst_30 = arith.constant dense<0.000000e+00> : vector<8x32xf32>
    %38 = tpu.matmul %37, %3, %cst_30 {dimension_numbers = #tpu.dot_dimension_numbers<[1], [0], [0], [1], [0, 0, 1, 1], [], []>} : vector<8x64xbf16>, vector<64x32xbf16>, vector<8x32xf32> -> vector<8x32xf32>
    %39 = vector.broadcast %4 : vector<1x32xf32> to vector<8x32xf32>
    %40 = arith.addf %38, %39 : vector<8x32xf32>
    %cst_31 = arith.constant 0.000000e+00 : f32
    %41 = vector.broadcast %cst_31 : f32 to vector<8x32xf32>
    %42 = arith.maximumf %40, %41 : vector<8x32xf32>
    %43 = arith.truncf %42 : vector<8x32xf32> to vector<8x32xbf16>
    %cst_32 = arith.constant dense<0.000000e+00> : vector<8x96xf32>
    %44 = tpu.matmul %43, %5, %cst_32 {dimension_numbers = #tpu.dot_dimension_numbers<[1], [0], [0], [1], [0, 0, 1, 1], [], []>} : vector<8x32xbf16>, vector<32x96xbf16>, vector<8x96xf32> -> vector<8x96xf32>
    %45 = vector.broadcast %6 : vector<1x96xf32> to vector<8x96xf32>
    %46 = arith.addf %44, %45 : vector<8x96xf32>
    %cst_33 = arith.constant dense<0.000000e+00> : vector<8x96xf32>
    %47 = tpu.matmul %12, %7, %cst_33 {dimension_numbers = #tpu.dot_dimension_numbers<[1], [0], [0], [1], [0, 0, 1, 1], [], []>} : vector<8x32xbf16>, vector<32x96xbf16>, vector<8x96xf32> -> vector<8x96xf32>
    %48 = vector.broadcast %8 : vector<1x96xf32> to vector<8x96xf32>
    %49 = arith.addf %47, %48 : vector<8x96xf32>
    %50 = vector.extract_strided_slice %46 {offsets = [0, 0], sizes = [8, 32], strides = [1, 1]} : vector<8x96xf32> to vector<8x32xf32>
    %51 = vector.extract_strided_slice %49 {offsets = [0, 0], sizes = [8, 32], strides = [1, 1]} : vector<8x96xf32> to vector<8x32xf32>
    %52 = arith.addf %50, %51 : vector<8x32xf32>
    %53 = arith.negf %52 : vector<8x32xf32>
    %54 = math.exp %53 : vector<8x32xf32>
    %cst_34 = arith.constant 1.000000e+00 : f32
    %55 = vector.broadcast %cst_34 : f32 to vector<8x32xf32>
    %56 = arith.addf %55, %54 : vector<8x32xf32>
    %57 = arith.divf %55, %56 : vector<8x32xf32>
    %58 = vector.extract_strided_slice %46 {offsets = [0, 32], sizes = [8, 32], strides = [1, 1]} : vector<8x96xf32> to vector<8x32xf32>
    %59 = vector.extract_strided_slice %49 {offsets = [0, 32], sizes = [8, 32], strides = [1, 1]} : vector<8x96xf32> to vector<8x32xf32>
    %60 = arith.addf %58, %59 : vector<8x32xf32>
    %61 = arith.negf %60 : vector<8x32xf32>
    %62 = math.exp %61 : vector<8x32xf32>
    %cst_35 = arith.constant 1.000000e+00 : f32
    %63 = vector.broadcast %cst_35 : f32 to vector<8x32xf32>
    %64 = arith.addf %63, %62 : vector<8x32xf32>
    %65 = arith.divf %63, %64 : vector<8x32xf32>
    %66 = vector.extract_strided_slice %46 {offsets = [0, 64], sizes = [8, 32], strides = [1, 1]} : vector<8x96xf32> to vector<8x32xf32>
    %67 = vector.extract_strided_slice %49 {offsets = [0, 64], sizes = [8, 32], strides = [1, 1]} : vector<8x96xf32> to vector<8x32xf32>
    %68 = arith.mulf %57, %67 : vector<8x32xf32>
    %69 = arith.addf %66, %68 : vector<8x32xf32>
    %70 = math.tanh %69 : vector<8x32xf32>
    %cst_36 = arith.constant 1.000000e+00 : f32
    %71 = vector.broadcast %cst_36 : f32 to vector<8x32xf32>
    %72 = arith.subf %71, %65 : vector<8x32xf32>
    %73 = arith.mulf %72, %70 : vector<8x32xf32>
    %74 = arith.mulf %65, %11 : vector<8x32xf32>
    %75 = arith.addf %73, %74 : vector<8x32xf32>
    %76 = arith.truncf %75 : vector<8x32xf32> to vector<8x32xbf16>
    %cst_37 = arith.constant dense<0.000000e+00> : vector<8x128xf32>
    %77 = tpu.matmul %76, %9, %cst_37 {dimension_numbers = #tpu.dot_dimension_numbers<[1], [0], [0], [1], [0, 0, 1, 1], [], []>} : vector<8x32xbf16>, vector<32x128xbf16>, vector<8x128xf32> -> vector<8x128xf32>
    %78 = vector.broadcast %10 : vector<1x128xf32> to vector<8x128xf32>
    %79 = arith.addf %77, %78 : vector<8x128xf32>
    %cst_38 = arith.constant dense<0xFF800000> : vector<8xf32>
    %80 = vector.multi_reduction <maximumf>, %79, %cst_38 [1] : vector<8x128xf32> to vector<8xf32>
    %81 = vector.shape_cast %80 : vector<8xf32> to vector<8x1xf32>
    %82 = vector.broadcast %81 : vector<8x1xf32> to vector<8x128xf32>
    %83 = arith.subf %79, %82 : vector<8x128xf32>
    %84 = math.exp %83 : vector<8x128xf32>
    %cst_39 = arith.constant dense<0.000000e+00> : vector<8xf32>
    %85 = vector.multi_reduction <add>, %84, %cst_39 [1] : vector<8x128xf32> to vector<8xf32>
    %86 = vector.shape_cast %85 : vector<8xf32> to vector<8x1xf32>
    %87 = math.log %86 : vector<8x1xf32>
    %88 = vector.broadcast %87 : vector<8x1xf32> to vector<8x128xf32>
    %89 = arith.subf %83, %88 : vector<8x128xf32>
    %90 = arith.index_cast %c0_i32 : i32 to index
    %c0_40 = arith.constant 0 : index
    %c0_41 = arith.constant 0 : index
    %91 = vector.load %arg14[%90, %c0_40, %c0_41] : memref<12x8x128xf32, #tpu.memory_space<vmem>>, vector<1x8x128xf32>
    %92 = vector.shape_cast %91 : vector<1x8x128xf32> to vector<8x128xf32>
    %93 = vector.shape_cast %89 : vector<8x128xf32> to vector<1x8x128xf32>
    tpu.vector_store %arg14[%90, %c0_40, %c0_41], %93 {strides = array<i32>} : memref<12x8x128xf32, #tpu.memory_space<vmem>>, vector<1x8x128xf32>,
    %c1_i32 = arith.constant 1 : i32
    %94 = arith.truncf %75 : vector<8x32xf32> to vector<8x32xbf16>
    %95 = arith.index_cast %c1_i32 : i32 to index
    %c0_42 = arith.constant 0 : index
    %c0_43 = arith.constant 0 : index
    %96 = vector.load %arg1[%95, %c0_42, %c0_43] : memref<12x8x32xf32, #tpu.memory_space<vmem>>, vector<1x8x32xf32>
    %97 = vector.shape_cast %96 : vector<1x8x32xf32> to vector<8x32xf32>
    %98 = arith.truncf %97 : vector<8x32xf32> to vector<8x32xbf16>
    %99 = tpu.concatenate %98, %94 in 1 : vector<8x32xbf16>, vector<8x32xbf16> -> vector<8x64xbf16>
    %cst_44 = arith.constant dense<0.000000e+00> : vector<8x128xf32>
    %100 = tpu.matmul %99, %1, %cst_44 {dimension_numbers = #tpu.dot_dimension_numbers<[1], [0], [0], [1], [0, 0, 1, 1], [], []>} : vector<8x64xbf16>, vector<64x128xbf16>, vector<8x128xf32> -> vector<8x128xf32>
    %101 = vector.broadcast %2 : vector<1x128xf32> to vector<8x128xf32>
    %102 = arith.addf %100, %101 : vector<8x128xf32>
    %cst_45 = arith.constant dense<0xFF800000> : vector<8xf32>
    %103 = vector.multi_reduction <maximumf>, %102, %cst_45 [1] : vector<8x128xf32> to vector<8xf32>
    %104 = vector.shape_cast %103 : vector<8xf32> to vector<8x1xf32>
    %105 = vector.broadcast %104 : vector<8x1xf32> to vector<8x128xf32>
    %106 = arith.subf %102, %105 : vector<8x128xf32>
    %107 = math.exp %106 : vector<8x128xf32>
    %cst_46 = arith.constant dense<0.000000e+00> : vector<8xf32>
    %108 = vector.multi_reduction <add>, %107, %cst_46 [1] : vector<8x128xf32> to vector<8xf32>
    %109 = vector.shape_cast %108 : vector<8xf32> to vector<8x1xf32>
    %110 = vector.broadcast %109 : vector<8x1xf32> to vector<8x128xf32>
    %111 = arith.divf %107, %110 : vector<8x128xf32>
    %112 = arith.index_cast %c1_i32 : i32 to index
    %c0_47 = arith.constant 0 : index
    %c0_48 = arith.constant 0 : index
    %113 = vector.load %arg16[%112, %c0_47, %c0_48] : memref<12x8x128xf32, #tpu.memory_space<vmem>>, vector<1x8x128xf32>
    %114 = vector.shape_cast %113 : vector<1x8x128xf32> to vector<8x128xf32>
    %115 = vector.shape_cast %111 : vector<8x128xf32> to vector<1x8x128xf32>
    tpu.vector_store %arg16[%112, %c0_47, %c0_48], %115 {strides = array<i32>} : memref<12x8x128xf32, #tpu.memory_space<vmem>>, vector<1x8x128xf32>,
    %116 = arith.truncf %111 : vector<8x128xf32> to vector<8x128xbf16>
    %cst_49 = arith.constant dense<0.000000e+00> : vector<8x32xf32>
    %117 = tpu.matmul %116, %0, %cst_49 {dimension_numbers = #tpu.dot_dimension_numbers<[1], [0], [0], [1], [0, 0, 1, 1], [], []>} : vector<8x128xbf16>, vector<128x32xbf16>, vector<8x32xf32> -> vector<8x32xf32>
    %118 = arith.truncf %117 : vector<8x32xf32> to vector<8x32xbf16>
    %119 = tpu.concatenate %98, %118 in 1 : vector<8x32xbf16>, vector<8x32xbf16> -> vector<8x64xbf16>
    %cst_50 = arith.constant dense<0.000000e+00> : vector<8x32xf32>
    %120 = tpu.matmul %119, %3, %cst_50 {dimension_numbers = #tpu.dot_dimension_numbers<[1], [0], [0], [1], [0, 0, 1, 1], [], []>} : vector<8x64xbf16>, vector<64x32xbf16>, vector<8x32xf32> -> vector<8x32xf32>
    %121 = vector.broadcast %4 : vector<1x32xf32> to vector<8x32xf32>
    %122 = arith.addf %120, %121 : vector<8x32xf32>
    %cst_51 = arith.constant 0.000000e+00 : f32
    %123 = vector.broadcast %cst_51 : f32 to vector<8x32xf32>
    %124 = arith.maximumf %122, %123 : vector<8x32xf32>
    %125 = arith.truncf %124 : vector<8x32xf32> to vector<8x32xbf16>
    %cst_52 = arith.constant dense<0.000000e+00> : vector<8x96xf32>
    %126 = tpu.matmul %125, %5, %cst_52 {dimension_numbers = #tpu.dot_dimension_numbers<[1], [0], [0], [1], [0, 0, 1, 1], [], []>} : vector<8x32xbf16>, vector<32x96xbf16>, vector<8x96xf32> -> vector<8x96xf32>
    %127 = vector.broadcast %6 : vector<1x96xf32> to vector<8x96xf32>
    %128 = arith.addf %126, %127 : vector<8x96xf32>
    %cst_53 = arith.constant dense<0.000000e+00> : vector<8x96xf32>
    %129 = tpu.matmul %94, %7, %cst_53 {dimension_numbers = #tpu.dot_dimension_numbers<[1], [0], [0], [1], [0, 0, 1, 1], [], []>} : vector<8x32xbf16>, vector<32x96xbf16>, vector<8x96xf32> -> vector<8x96xf32>
    %130 = vector.broadcast %8 : vector<1x96xf32> to vector<8x96xf32>
    %131 = arith.addf %129, %130 : vector<8x96xf32>
    %132 = vector.extract_strided_slice %128 {offsets = [0, 0], sizes = [8, 32], strides = [1, 1]} : vector<8x96xf32> to vector<8x32xf32>
    %133 = vector.extract_strided_slice %131 {offsets = [0, 0], sizes = [8, 32], strides = [1, 1]} : vector<8x96xf32> to vector<8x32xf32>
    %134 = arith.addf %132, %133 : vector<8x32xf32>
    %135 = arith.negf %134 : vector<8x32xf32>
    %136 = math.exp %135 : vector<8x32xf32>
    %cst_54 = arith.constant 1.000000e+00 : f32
    %137 = vector.broadcast %cst_54 : f32 to vector<8x32xf32>
    %138 = arith.addf %137, %136 : vector<8x32xf32>
    %139 = arith.divf %137, %138 : vector<8x32xf32>
    %140 = vector.extract_strided_slice %128 {offsets = [0, 32], sizes = [8, 32], strides = [1, 1]} : vector<8x96xf32> to vector<8x32xf32>
    %141 = vector.extract_strided_slice %131 {offsets = [0, 32], sizes = [8, 32], strides = [1, 1]} : vector<8x96xf32> to vector<8x32xf32>
    %142 = arith.addf %140, %141 : vector<8x32xf32>
    %143 = arith.negf %142 : vector<8x32xf32>
    %144 = math.exp %143 : vector<8x32xf32>
    %cst_55 = arith.constant 1.000000e+00 : f32
    %145 = vector.broadcast %cst_55 : f32 to vector<8x32xf32>
    %146 = arith.addf %145, %144 : vector<8x32xf32>
    %147 = arith.divf %145, %146 : vector<8x32xf32>
    %148 = vector.extract_strided_slice %128 {offsets = [0, 64], sizes = [8, 32], strides = [1, 1]} : vector<8x96xf32> to vector<8x32xf32>
    %149 = vector.extract_strided_slice %131 {offsets = [0, 64], sizes = [8, 32], strides = [1, 1]} : vector<8x96xf32> to vector<8x32xf32>
    %150 = arith.mulf %139, %149 : vector<8x32xf32>
    %151 = arith.addf %148, %150 : vector<8x32xf32>
    %152 = math.tanh %151 : vector<8x32xf32>
    %cst_56 = arith.constant 1.000000e+00 : f32
    %153 = vector.broadcast %cst_56 : f32 to vector<8x32xf32>
    %154 = arith.subf %153, %147 : vector<8x32xf32>
    %155 = arith.mulf %154, %152 : vector<8x32xf32>
    %156 = arith.mulf %147, %75 : vector<8x32xf32>
    %157 = arith.addf %155, %156 : vector<8x32xf32>
    %158 = arith.truncf %157 : vector<8x32xf32> to vector<8x32xbf16>
    %cst_57 = arith.constant dense<0.000000e+00> : vector<8x128xf32>
    %159 = tpu.matmul %158, %9, %cst_57 {dimension_numbers = #tpu.dot_dimension_numbers<[1], [0], [0], [1], [0, 0, 1, 1], [], []>} : vector<8x32xbf16>, vector<32x128xbf16>, vector<8x128xf32> -> vector<8x128xf32>
    %160 = vector.broadcast %10 : vector<1x128xf32> to vector<8x128xf32>
    %161 = arith.addf %159, %160 : vector<8x128xf32>
    %cst_58 = arith.constant dense<0xFF800000> : vector<8xf32>
    %162 = vector.multi_reduction <maximumf>, %161, %cst_58 [1] : vector<8x128xf32> to vector<8xf32>
    %163 = vector.shape_cast %162 : vector<8xf32> to vector<8x1xf32>
    %164 = vector.broadcast %163 : vector<8x1xf32> to vector<8x128xf32>
    %165 = arith.subf %161, %164 : vector<8x128xf32>
    %166 = math.exp %165 : vector<8x128xf32>
    %cst_59 = arith.constant dense<0.000000e+00> : vector<8xf32>
    %167 = vector.multi_reduction <add>, %166, %cst_59 [1] : vector<8x128xf32> to vector<8xf32>
    %168 = vector.shape_cast %167 : vector<8xf32> to vector<8x1xf32>
    %169 = math.log %168 : vector<8x1xf32>
    %170 = vector.broadcast %169 : vector<8x1xf32> to vector<8x128xf32>
    %171 = arith.subf %165, %170 : vector<8x128xf32>
    %172 = arith.index_cast %c1_i32 : i32 to index
    %c0_60 = arith.constant 0 : index
    %c0_61 = arith.constant 0 : index
    %173 = vector.load %arg14[%172, %c0_60, %c0_61] : memref<12x8x128xf32, #tpu.memory_space<vmem>>, vector<1x8x128xf32>
    %174 = vector.shape_cast %173 : vector<1x8x128xf32> to vector<8x128xf32>
    %175 = vector.shape_cast %171 : vector<8x128xf32> to vector<1x8x128xf32>
    tpu.vector_store %arg14[%172, %c0_60, %c0_61], %175 {strides = array<i32>} : memref<12x8x128xf32, #tpu.memory_space<vmem>>, vector<1x8x128xf32>,
    %c2_i32 = arith.constant 2 : i32
    %176 = arith.truncf %157 : vector<8x32xf32> to vector<8x32xbf16>
    %177 = arith.index_cast %c2_i32 : i32 to index
    %c0_62 = arith.constant 0 : index
    %c0_63 = arith.constant 0 : index
    %178 = vector.load %arg1[%177, %c0_62, %c0_63] : memref<12x8x32xf32, #tpu.memory_space<vmem>>, vector<1x8x32xf32>
    %179 = vector.shape_cast %178 : vector<1x8x32xf32> to vector<8x32xf32>
    %180 = arith.truncf %179 : vector<8x32xf32> to vector<8x32xbf16>
    %181 = tpu.concatenate %180, %176 in 1 : vector<8x32xbf16>, vector<8x32xbf16> -> vector<8x64xbf16>
    %cst_64 = arith.constant dense<0.000000e+00> : vector<8x128xf32>
    %182 = tpu.matmul %181, %1, %cst_64 {dimension_numbers = #tpu.dot_dimension_numbers<[1], [0], [0], [1], [0, 0, 1, 1], [], []>} : vector<8x64xbf16>, vector<64x128xbf16>, vector<8x128xf32> -> vector<8x128xf32>
    %183 = vector.broadcast %2 : vector<1x128xf32> to vector<8x128xf32>
    %184 = arith.addf %182, %183 : vector<8x128xf32>
    %cst_65 = arith.constant dense<0xFF800000> : vector<8xf32>
    %185 = vector.multi_reduction <maximumf>, %184, %cst_65 [1] : vector<8x128xf32> to vector<8xf32>
    %186 = vector.shape_cast %185 : vector<8xf32> to vector<8x1xf32>
    %187 = vector.broadcast %186 : vector<8x1xf32> to vector<8x128xf32>
    %188 = arith.subf %184, %187 : vector<8x128xf32>
    %189 = math.exp %188 : vector<8x128xf32>
    %cst_66 = arith.constant dense<0.000000e+00> : vector<8xf32>
    %190 = vector.multi_reduction <add>, %189, %cst_66 [1] : vector<8x128xf32> to vector<8xf32>
    %191 = vector.shape_cast %190 : vector<8xf32> to vector<8x1xf32>
    %192 = vector.broadcast %191 : vector<8x1xf32> to vector<8x128xf32>
    %193 = arith.divf %189, %192 : vector<8x128xf32>
    %194 = arith.index_cast %c2_i32 : i32 to index
    %c0_67 = arith.constant 0 : index
    %c0_68 = arith.constant 0 : index
    %195 = vector.load %arg16[%194, %c0_67, %c0_68] : memref<12x8x128xf32, #tpu.memory_space<vmem>>, vector<1x8x128xf32>
    %196 = vector.shape_cast %195 : vector<1x8x128xf32> to vector<8x128xf32>
    %197 = vector.shape_cast %193 : vector<8x128xf32> to vector<1x8x128xf32>
    tpu.vector_store %arg16[%194, %c0_67, %c0_68], %197 {strides = array<i32>} : memref<12x8x128xf32, #tpu.memory_space<vmem>>, vector<1x8x128xf32>,
    %198 = arith.truncf %193 : vector<8x128xf32> to vector<8x128xbf16>
    %cst_69 = arith.constant dense<0.000000e+00> : vector<8x32xf32>
    %199 = tpu.matmul %198, %0, %cst_69 {dimension_numbers = #tpu.dot_dimension_numbers<[1], [0], [0], [1], [0, 0, 1, 1], [], []>} : vector<8x128xbf16>, vector<128x32xbf16>, vector<8x32xf32> -> vector<8x32xf32>
    %200 = arith.truncf %199 : vector<8x32xf32> to vector<8x32xbf16>
    %201 = tpu.concatenate %180, %200 in 1 : vector<8x32xbf16>, vector<8x32xbf16> -> vector<8x64xbf16>
    %cst_70 = arith.constant dense<0.000000e+00> : vector<8x32xf32>
    %202 = tpu.matmul %201, %3, %cst_70 {dimension_numbers = #tpu.dot_dimension_numbers<[1], [0], [0], [1], [0, 0, 1, 1], [], []>} : vector<8x64xbf16>, vector<64x32xbf16>, vector<8x32xf32> -> vector<8x32xf32>
    %203 = vector.broadcast %4 : vector<1x32xf32> to vector<8x32xf32>
    %204 = arith.addf %202, %203 : vector<8x32xf32>
    %cst_71 = arith.constant 0.000000e+00 : f32
    %205 = vector.broadcast %cst_71 : f32 to vector<8x32xf32>
    %206 = arith.maximumf %204, %205 : vector<8x32xf32>
    %207 = arith.truncf %206 : vector<8x32xf32> to vector<8x32xbf16>
    %cst_72 = arith.constant dense<0.000000e+00> : vector<8x96xf32>
    %208 = tpu.matmul %207, %5, %cst_72 {dimension_numbers = #tpu.dot_dimension_numbers<[1], [0], [0], [1], [0, 0, 1, 1], [], []>} : vector<8x32xbf16>, vector<32x96xbf16>, vector<8x96xf32> -> vector<8x96xf32>
    %209 = vector.broadcast %6 : vector<1x96xf32> to vector<8x96xf32>
    %210 = arith.addf %208, %209 : vector<8x96xf32>
    %cst_73 = arith.constant dense<0.000000e+00> : vector<8x96xf32>
    %211 = tpu.matmul %176, %7, %cst_73 {dimension_numbers = #tpu.dot_dimension_numbers<[1], [0], [0], [1], [0, 0, 1, 1], [], []>} : vector<8x32xbf16>, vector<32x96xbf16>, vector<8x96xf32> -> vector<8x96xf32>
    %212 = vector.broadcast %8 : vector<1x96xf32> to vector<8x96xf32>
    %213 = arith.addf %211, %212 : vector<8x96xf32>
    %214 = vector.extract_strided_slice %210 {offsets = [0, 0], sizes = [8, 32], strides = [1, 1]} : vector<8x96xf32> to vector<8x32xf32>
    %215 = vector.extract_strided_slice %213 {offsets = [0, 0], sizes = [8, 32], strides = [1, 1]} : vector<8x96xf32> to vector<8x32xf32>
    %216 = arith.addf %214, %215 : vector<8x32xf32>
    %217 = arith.negf %216 : vector<8x32xf32>
    %218 = math.exp %217 : vector<8x32xf32>
    %cst_74 = arith.constant 1.000000e+00 : f32
    %219 = vector.broadcast %cst_74 : f32 to vector<8x32xf32>
    %220 = arith.addf %219, %218 : vector<8x32xf32>
    %221 = arith.divf %219, %220 : vector<8x32xf32>
    %222 = vector.extract_strided_slice %210 {offsets = [0, 32], sizes = [8, 32], strides = [1, 1]} : vector<8x96xf32> to vector<8x32xf32>
    %223 = vector.extract_strided_slice %213 {offsets = [0, 32], sizes = [8, 32], strides = [1, 1]} : vector<8x96xf32> to vector<8x32xf32>
    %224 = arith.addf %222, %223 : vector<8x32xf32>
    %225 = arith.negf %224 : vector<8x32xf32>
    %226 = math.exp %225 : vector<8x32xf32>
    %cst_75 = arith.constant 1.000000e+00 : f32
    %227 = vector.broadcast %cst_75 : f32 to vector<8x32xf32>
    %228 = arith.addf %227, %226 : vector<8x32xf32>
    %229 = arith.divf %227, %228 : vector<8x32xf32>
    %230 = vector.extract_strided_slice %210 {offsets = [0, 64], sizes = [8, 32], strides = [1, 1]} : vector<8x96xf32> to vector<8x32xf32>
    %231 = vector.extract_strided_slice %213 {offsets = [0, 64], sizes = [8, 32], strides = [1, 1]} : vector<8x96xf32> to vector<8x32xf32>
    %232 = arith.mulf %221, %231 : vector<8x32xf32>
    %233 = arith.addf %230, %232 : vector<8x32xf32>
    %234 = math.tanh %233 : vector<8x32xf32>
    %cst_76 = arith.constant 1.000000e+00 : f32
    %235 = vector.broadcast %cst_76 : f32 to vector<8x32xf32>
    %236 = arith.subf %235, %229 : vector<8x32xf32>
    %237 = arith.mulf %236, %234 : vector<8x32xf32>
    %238 = arith.mulf %229, %157 : vector<8x32xf32>
    %239 = arith.addf %237, %238 : vector<8x32xf32>
    %240 = arith.truncf %239 : vector<8x32xf32> to vector<8x32xbf16>
    %cst_77 = arith.constant dense<0.000000e+00> : vector<8x128xf32>
    %241 = tpu.matmul %240, %9, %cst_77 {dimension_numbers = #tpu.dot_dimension_numbers<[1], [0], [0], [1], [0, 0, 1, 1], [], []>} : vector<8x32xbf16>, vector<32x128xbf16>, vector<8x128xf32> -> vector<8x128xf32>
    %242 = vector.broadcast %10 : vector<1x128xf32> to vector<8x128xf32>
    %243 = arith.addf %241, %242 : vector<8x128xf32>
    %cst_78 = arith.constant dense<0xFF800000> : vector<8xf32>
    %244 = vector.multi_reduction <maximumf>, %243, %cst_78 [1] : vector<8x128xf32> to vector<8xf32>
    %245 = vector.shape_cast %244 : vector<8xf32> to vector<8x1xf32>
    %246 = vector.broadcast %245 : vector<8x1xf32> to vector<8x128xf32>
    %247 = arith.subf %243, %246 : vector<8x128xf32>
    %248 = math.exp %247 : vector<8x128xf32>
    %cst_79 = arith.constant dense<0.000000e+00> : vector<8xf32>
    %249 = vector.multi_reduction <add>, %248, %cst_79 [1] : vector<8x128xf32> to vector<8xf32>
    %250 = vector.shape_cast %249 : vector<8xf32> to vector<8x1xf32>
    %251 = math.log %250 : vector<8x1xf32>
    %252 = vector.broadcast %251 : vector<8x1xf32> to vector<8x128xf32>
    %253 = arith.subf %247, %252 : vector<8x128xf32>
    %254 = arith.index_cast %c2_i32 : i32 to index
    %c0_80 = arith.constant 0 : index
    %c0_81 = arith.constant 0 : index
    %255 = vector.load %arg14[%254, %c0_80, %c0_81] : memref<12x8x128xf32, #tpu.memory_space<vmem>>, vector<1x8x128xf32>
    %256 = vector.shape_cast %255 : vector<1x8x128xf32> to vector<8x128xf32>
    %257 = vector.shape_cast %253 : vector<8x128xf32> to vector<1x8x128xf32>
    tpu.vector_store %arg14[%254, %c0_80, %c0_81], %257 {strides = array<i32>} : memref<12x8x128xf32, #tpu.memory_space<vmem>>, vector<1x8x128xf32>,
    %c3_i32 = arith.constant 3 : i32
    %258 = arith.truncf %239 : vector<8x32xf32> to vector<8x32xbf16>
    %259 = arith.index_cast %c3_i32 : i32 to index
    %c0_82 = arith.constant 0 : index
    %c0_83 = arith.constant 0 : index
    %260 = vector.load %arg1[%259, %c0_82, %c0_83] : memref<12x8x32xf32, #tpu.memory_space<vmem>>, vector<1x8x32xf32>
    %261 = vector.shape_cast %260 : vector<1x8x32xf32> to vector<8x32xf32>
    %262 = arith.truncf %261 : vector<8x32xf32> to vector<8x32xbf16>
    %263 = tpu.concatenate %262, %258 in 1 : vector<8x32xbf16>, vector<8x32xbf16> -> vector<8x64xbf16>
    %cst_84 = arith.constant dense<0.000000e+00> : vector<8x128xf32>
    %264 = tpu.matmul %263, %1, %cst_84 {dimension_numbers = #tpu.dot_dimension_numbers<[1], [0], [0], [1], [0, 0, 1, 1], [], []>} : vector<8x64xbf16>, vector<64x128xbf16>, vector<8x128xf32> -> vector<8x128xf32>
    %265 = vector.broadcast %2 : vector<1x128xf32> to vector<8x128xf32>
    %266 = arith.addf %264, %265 : vector<8x128xf32>
    %cst_85 = arith.constant dense<0xFF800000> : vector<8xf32>
    %267 = vector.multi_reduction <maximumf>, %266, %cst_85 [1] : vector<8x128xf32> to vector<8xf32>
    %268 = vector.shape_cast %267 : vector<8xf32> to vector<8x1xf32>
    %269 = vector.broadcast %268 : vector<8x1xf32> to vector<8x128xf32>
    %270 = arith.subf %266, %269 : vector<8x128xf32>
    %271 = math.exp %270 : vector<8x128xf32>
    %cst_86 = arith.constant dense<0.000000e+00> : vector<8xf32>
    %272 = vector.multi_reduction <add>, %271, %cst_86 [1] : vector<8x128xf32> to vector<8xf32>
    %273 = vector.shape_cast %272 : vector<8xf32> to vector<8x1xf32>
    %274 = vector.broadcast %273 : vector<8x1xf32> to vector<8x128xf32>
    %275 = arith.divf %271, %274 : vector<8x128xf32>
    %276 = arith.index_cast %c3_i32 : i32 to index
    %c0_87 = arith.constant 0 : index
    %c0_88 = arith.constant 0 : index
    %277 = vector.load %arg16[%276, %c0_87, %c0_88] : memref<12x8x128xf32, #tpu.memory_space<vmem>>, vector<1x8x128xf32>
    %278 = vector.shape_cast %277 : vector<1x8x128xf32> to vector<8x128xf32>
    %279 = vector.shape_cast %275 : vector<8x128xf32> to vector<1x8x128xf32>
    tpu.vector_store %arg16[%276, %c0_87, %c0_88], %279 {strides = array<i32>} : memref<12x8x128xf32, #tpu.memory_space<vmem>>, vector<1x8x128xf32>,
    %280 = arith.truncf %275 : vector<8x128xf32> to vector<8x128xbf16>
    %cst_89 = arith.constant dense<0.000000e+00> : vector<8x32xf32>
    %281 = tpu.matmul %280, %0, %cst_89 {dimension_numbers = #tpu.dot_dimension_numbers<[1], [0], [0], [1], [0, 0, 1, 1], [], []>} : vector<8x128xbf16>, vector<128x32xbf16>, vector<8x32xf32> -> vector<8x32xf32>
    %282 = arith.truncf %281 : vector<8x32xf32> to vector<8x32xbf16>
    %283 = tpu.concatenate %262, %282 in 1 : vector<8x32xbf16>, vector<8x32xbf16> -> vector<8x64xbf16>
    %cst_90 = arith.constant dense<0.000000e+00> : vector<8x32xf32>
    %284 = tpu.matmul %283, %3, %cst_90 {dimension_numbers = #tpu.dot_dimension_numbers<[1], [0], [0], [1], [0, 0, 1, 1], [], []>} : vector<8x64xbf16>, vector<64x32xbf16>, vector<8x32xf32> -> vector<8x32xf32>
    %285 = vector.broadcast %4 : vector<1x32xf32> to vector<8x32xf32>
    %286 = arith.addf %284, %285 : vector<8x32xf32>
    %cst_91 = arith.constant 0.000000e+00 : f32
    %287 = vector.broadcast %cst_91 : f32 to vector<8x32xf32>
    %288 = arith.maximumf %286, %287 : vector<8x32xf32>
    %289 = arith.truncf %288 : vector<8x32xf32> to vector<8x32xbf16>
    %cst_92 = arith.constant dense<0.000000e+00> : vector<8x96xf32>
    %290 = tpu.matmul %289, %5, %cst_92 {dimension_numbers = #tpu.dot_dimension_numbers<[1], [0], [0], [1], [0, 0, 1, 1], [], []>} : vector<8x32xbf16>, vector<32x96xbf16>, vector<8x96xf32> -> vector<8x96xf32>
    %291 = vector.broadcast %6 : vector<1x96xf32> to vector<8x96xf32>
    %292 = arith.addf %290, %291 : vector<8x96xf32>
    %cst_93 = arith.constant dense<0.000000e+00> : vector<8x96xf32>
    %293 = tpu.matmul %258, %7, %cst_93 {dimension_numbers = #tpu.dot_dimension_numbers<[1], [0], [0], [1], [0, 0, 1, 1], [], []>} : vector<8x32xbf16>, vector<32x96xbf16>, vector<8x96xf32> -> vector<8x96xf32>
    %294 = vector.broadcast %8 : vector<1x96xf32> to vector<8x96xf32>
    %295 = arith.addf %293, %294 : vector<8x96xf32>
    %296 = vector.extract_strided_slice %292 {offsets = [0, 0], sizes = [8, 32], strides = [1, 1]} : vector<8x96xf32> to vector<8x32xf32>
    %297 = vector.extract_strided_slice %295 {offsets = [0, 0], sizes = [8, 32], strides = [1, 1]} : vector<8x96xf32> to vector<8x32xf32>
    %298 = arith.addf %296, %297 : vector<8x32xf32>
    %299 = arith.negf %298 : vector<8x32xf32>
    %300 = math.exp %299 : vector<8x32xf32>
    %cst_94 = arith.constant 1.000000e+00 : f32
    %301 = vector.broadcast %cst_94 : f32 to vector<8x32xf32>
    %302 = arith.addf %301, %300 : vector<8x32xf32>
    %303 = arith.divf %301, %302 : vector<8x32xf32>
    %304 = vector.extract_strided_slice %292 {offsets = [0, 32], sizes = [8, 32], strides = [1, 1]} : vector<8x96xf32> to vector<8x32xf32>
    %305 = vector.extract_strided_slice %295 {offsets = [0, 32], sizes = [8, 32], strides = [1, 1]} : vector<8x96xf32> to vector<8x32xf32>
    %306 = arith.addf %304, %305 : vector<8x32xf32>
    %307 = arith.negf %306 : vector<8x32xf32>
    %308 = math.exp %307 : vector<8x32xf32>
    %cst_95 = arith.constant 1.000000e+00 : f32
    %309 = vector.broadcast %cst_95 : f32 to vector<8x32xf32>
    %310 = arith.addf %309, %308 : vector<8x32xf32>
    %311 = arith.divf %309, %310 : vector<8x32xf32>
    %312 = vector.extract_strided_slice %292 {offsets = [0, 64], sizes = [8, 32], strides = [1, 1]} : vector<8x96xf32> to vector<8x32xf32>
    %313 = vector.extract_strided_slice %295 {offsets = [0, 64], sizes = [8, 32], strides = [1, 1]} : vector<8x96xf32> to vector<8x32xf32>
    %314 = arith.mulf %303, %313 : vector<8x32xf32>
    %315 = arith.addf %312, %314 : vector<8x32xf32>
    %316 = math.tanh %315 : vector<8x32xf32>
    %cst_96 = arith.constant 1.000000e+00 : f32
    %317 = vector.broadcast %cst_96 : f32 to vector<8x32xf32>
    %318 = arith.subf %317, %311 : vector<8x32xf32>
    %319 = arith.mulf %318, %316 : vector<8x32xf32>
    %320 = arith.mulf %311, %239 : vector<8x32xf32>
    %321 = arith.addf %319, %320 : vector<8x32xf32>
    %322 = arith.truncf %321 : vector<8x32xf32> to vector<8x32xbf16>
    %cst_97 = arith.constant dense<0.000000e+00> : vector<8x128xf32>
    %323 = tpu.matmul %322, %9, %cst_97 {dimension_numbers = #tpu.dot_dimension_numbers<[1], [0], [0], [1], [0, 0, 1, 1], [], []>} : vector<8x32xbf16>, vector<32x128xbf16>, vector<8x128xf32> -> vector<8x128xf32>
    %324 = vector.broadcast %10 : vector<1x128xf32> to vector<8x128xf32>
    %325 = arith.addf %323, %324 : vector<8x128xf32>
    %cst_98 = arith.constant dense<0xFF800000> : vector<8xf32>
    %326 = vector.multi_reduction <maximumf>, %325, %cst_98 [1] : vector<8x128xf32> to vector<8xf32>
    %327 = vector.shape_cast %326 : vector<8xf32> to vector<8x1xf32>
    %328 = vector.broadcast %327 : vector<8x1xf32> to vector<8x128xf32>
    %329 = arith.subf %325, %328 : vector<8x128xf32>
    %330 = math.exp %329 : vector<8x128xf32>
    %cst_99 = arith.constant dense<0.000000e+00> : vector<8xf32>
    %331 = vector.multi_reduction <add>, %330, %cst_99 [1] : vector<8x128xf32> to vector<8xf32>
    %332 = vector.shape_cast %331 : vector<8xf32> to vector<8x1xf32>
    %333 = math.log %332 : vector<8x1xf32>
    %334 = vector.broadcast %333 : vector<8x1xf32> to vector<8x128xf32>
    %335 = arith.subf %329, %334 : vector<8x128xf32>
    %336 = arith.index_cast %c3_i32 : i32 to index
    %c0_100 = arith.constant 0 : index
    %c0_101 = arith.constant 0 : index
    %337 = vector.load %arg14[%336, %c0_100, %c0_101] : memref<12x8x128xf32, #tpu.memory_space<vmem>>, vector<1x8x128xf32>
    %338 = vector.shape_cast %337 : vector<1x8x128xf32> to vector<8x128xf32>
    %339 = vector.shape_cast %335 : vector<8x128xf32> to vector<1x8x128xf32>
    tpu.vector_store %arg14[%336, %c0_100, %c0_101], %339 {strides = array<i32>} : memref<12x8x128xf32, #tpu.memory_space<vmem>>, vector<1x8x128xf32>,
    %c4_i32 = arith.constant 4 : i32
    %340 = arith.truncf %321 : vector<8x32xf32> to vector<8x32xbf16>
    %341 = arith.index_cast %c4_i32 : i32 to index
    %c0_102 = arith.constant 0 : index
    %c0_103 = arith.constant 0 : index
    %342 = vector.load %arg1[%341, %c0_102, %c0_103] : memref<12x8x32xf32, #tpu.memory_space<vmem>>, vector<1x8x32xf32>
    %343 = vector.shape_cast %342 : vector<1x8x32xf32> to vector<8x32xf32>
    %344 = arith.truncf %343 : vector<8x32xf32> to vector<8x32xbf16>
    %345 = tpu.concatenate %344, %340 in 1 : vector<8x32xbf16>, vector<8x32xbf16> -> vector<8x64xbf16>
    %cst_104 = arith.constant dense<0.000000e+00> : vector<8x128xf32>
    %346 = tpu.matmul %345, %1, %cst_104 {dimension_numbers = #tpu.dot_dimension_numbers<[1], [0], [0], [1], [0, 0, 1, 1], [], []>} : vector<8x64xbf16>, vector<64x128xbf16>, vector<8x128xf32> -> vector<8x128xf32>
    %347 = vector.broadcast %2 : vector<1x128xf32> to vector<8x128xf32>
    %348 = arith.addf %346, %347 : vector<8x128xf32>
    %cst_105 = arith.constant dense<0xFF800000> : vector<8xf32>
    %349 = vector.multi_reduction <maximumf>, %348, %cst_105 [1] : vector<8x128xf32> to vector<8xf32>
    %350 = vector.shape_cast %349 : vector<8xf32> to vector<8x1xf32>
    %351 = vector.broadcast %350 : vector<8x1xf32> to vector<8x128xf32>
    %352 = arith.subf %348, %351 : vector<8x128xf32>
    %353 = math.exp %352 : vector<8x128xf32>
    %cst_106 = arith.constant dense<0.000000e+00> : vector<8xf32>
    %354 = vector.multi_reduction <add>, %353, %cst_106 [1] : vector<8x128xf32> to vector<8xf32>
    %355 = vector.shape_cast %354 : vector<8xf32> to vector<8x1xf32>
    %356 = vector.broadcast %355 : vector<8x1xf32> to vector<8x128xf32>
    %357 = arith.divf %353, %356 : vector<8x128xf32>
    %358 = arith.index_cast %c4_i32 : i32 to index
    %c0_107 = arith.constant 0 : index
    %c0_108 = arith.constant 0 : index
    %359 = vector.load %arg16[%358, %c0_107, %c0_108] : memref<12x8x128xf32, #tpu.memory_space<vmem>>, vector<1x8x128xf32>
    %360 = vector.shape_cast %359 : vector<1x8x128xf32> to vector<8x128xf32>
    %361 = vector.shape_cast %357 : vector<8x128xf32> to vector<1x8x128xf32>
    tpu.vector_store %arg16[%358, %c0_107, %c0_108], %361 {strides = array<i32>} : memref<12x8x128xf32, #tpu.memory_space<vmem>>, vector<1x8x128xf32>,
    %362 = arith.truncf %357 : vector<8x128xf32> to vector<8x128xbf16>
    %cst_109 = arith.constant dense<0.000000e+00> : vector<8x32xf32>
    %363 = tpu.matmul %362, %0, %cst_109 {dimension_numbers = #tpu.dot_dimension_numbers<[1], [0], [0], [1], [0, 0, 1, 1], [], []>} : vector<8x128xbf16>, vector<128x32xbf16>, vector<8x32xf32> -> vector<8x32xf32>
    %364 = arith.truncf %363 : vector<8x32xf32> to vector<8x32xbf16>
    %365 = tpu.concatenate %344, %364 in 1 : vector<8x32xbf16>, vector<8x32xbf16> -> vector<8x64xbf16>
    %cst_110 = arith.constant dense<0.000000e+00> : vector<8x32xf32>
    %366 = tpu.matmul %365, %3, %cst_110 {dimension_numbers = #tpu.dot_dimension_numbers<[1], [0], [0], [1], [0, 0, 1, 1], [], []>} : vector<8x64xbf16>, vector<64x32xbf16>, vector<8x32xf32> -> vector<8x32xf32>
    %367 = vector.broadcast %4 : vector<1x32xf32> to vector<8x32xf32>
    %368 = arith.addf %366, %367 : vector<8x32xf32>
    %cst_111 = arith.constant 0.000000e+00 : f32
    %369 = vector.broadcast %cst_111 : f32 to vector<8x32xf32>
    %370 = arith.maximumf %368, %369 : vector<8x32xf32>
    %371 = arith.truncf %370 : vector<8x32xf32> to vector<8x32xbf16>
    %cst_112 = arith.constant dense<0.000000e+00> : vector<8x96xf32>
    %372 = tpu.matmul %371, %5, %cst_112 {dimension_numbers = #tpu.dot_dimension_numbers<[1], [0], [0], [1], [0, 0, 1, 1], [], []>} : vector<8x32xbf16>, vector<32x96xbf16>, vector<8x96xf32> -> vector<8x96xf32>
    %373 = vector.broadcast %6 : vector<1x96xf32> to vector<8x96xf32>
    %374 = arith.addf %372, %373 : vector<8x96xf32>
    %cst_113 = arith.constant dense<0.000000e+00> : vector<8x96xf32>
    %375 = tpu.matmul %340, %7, %cst_113 {dimension_numbers = #tpu.dot_dimension_numbers<[1], [0], [0], [1], [0, 0, 1, 1], [], []>} : vector<8x32xbf16>, vector<32x96xbf16>, vector<8x96xf32> -> vector<8x96xf32>
    %376 = vector.broadcast %8 : vector<1x96xf32> to vector<8x96xf32>
    %377 = arith.addf %375, %376 : vector<8x96xf32>
    %378 = vector.extract_strided_slice %374 {offsets = [0, 0], sizes = [8, 32], strides = [1, 1]} : vector<8x96xf32> to vector<8x32xf32>
    %379 = vector.extract_strided_slice %377 {offsets = [0, 0], sizes = [8, 32], strides = [1, 1]} : vector<8x96xf32> to vector<8x32xf32>
    %380 = arith.addf %378, %379 : vector<8x32xf32>
    %381 = arith.negf %380 : vector<8x32xf32>
    %382 = math.exp %381 : vector<8x32xf32>
    %cst_114 = arith.constant 1.000000e+00 : f32
    %383 = vector.broadcast %cst_114 : f32 to vector<8x32xf32>
    %384 = arith.addf %383, %382 : vector<8x32xf32>
    %385 = arith.divf %383, %384 : vector<8x32xf32>
    %386 = vector.extract_strided_slice %374 {offsets = [0, 32], sizes = [8, 32], strides = [1, 1]} : vector<8x96xf32> to vector<8x32xf32>
    %387 = vector.extract_strided_slice %377 {offsets = [0, 32], sizes = [8, 32], strides = [1, 1]} : vector<8x96xf32> to vector<8x32xf32>
    %388 = arith.addf %386, %387 : vector<8x32xf32>
    %389 = arith.negf %388 : vector<8x32xf32>
    %390 = math.exp %389 : vector<8x32xf32>
    %cst_115 = arith.constant 1.000000e+00 : f32
    %391 = vector.broadcast %cst_115 : f32 to vector<8x32xf32>
    %392 = arith.addf %391, %390 : vector<8x32xf32>
    %393 = arith.divf %391, %392 : vector<8x32xf32>
    %394 = vector.extract_strided_slice %374 {offsets = [0, 64], sizes = [8, 32], strides = [1, 1]} : vector<8x96xf32> to vector<8x32xf32>
    %395 = vector.extract_strided_slice %377 {offsets = [0, 64], sizes = [8, 32], strides = [1, 1]} : vector<8x96xf32> to vector<8x32xf32>
    %396 = arith.mulf %385, %395 : vector<8x32xf32>
    %397 = arith.addf %394, %396 : vector<8x32xf32>
    %398 = math.tanh %397 : vector<8x32xf32>
    %cst_116 = arith.constant 1.000000e+00 : f32
    %399 = vector.broadcast %cst_116 : f32 to vector<8x32xf32>
    %400 = arith.subf %399, %393 : vector<8x32xf32>
    %401 = arith.mulf %400, %398 : vector<8x32xf32>
    %402 = arith.mulf %393, %321 : vector<8x32xf32>
    %403 = arith.addf %401, %402 : vector<8x32xf32>
    %404 = arith.truncf %403 : vector<8x32xf32> to vector<8x32xbf16>
    %cst_117 = arith.constant dense<0.000000e+00> : vector<8x128xf32>
    %405 = tpu.matmul %404, %9, %cst_117 {dimension_numbers = #tpu.dot_dimension_numbers<[1], [0], [0], [1], [0, 0, 1, 1], [], []>} : vector<8x32xbf16>, vector<32x128xbf16>, vector<8x128xf32> -> vector<8x128xf32>
    %406 = vector.broadcast %10 : vector<1x128xf32> to vector<8x128xf32>
    %407 = arith.addf %405, %406 : vector<8x128xf32>
    %cst_118 = arith.constant dense<0xFF800000> : vector<8xf32>
    %408 = vector.multi_reduction <maximumf>, %407, %cst_118 [1] : vector<8x128xf32> to vector<8xf32>
    %409 = vector.shape_cast %408 : vector<8xf32> to vector<8x1xf32>
    %410 = vector.broadcast %409 : vector<8x1xf32> to vector<8x128xf32>
    %411 = arith.subf %407, %410 : vector<8x128xf32>
    %412 = math.exp %411 : vector<8x128xf32>
    %cst_119 = arith.constant dense<0.000000e+00> : vector<8xf32>
    %413 = vector.multi_reduction <add>, %412, %cst_119 [1] : vector<8x128xf32> to vector<8xf32>
    %414 = vector.shape_cast %413 : vector<8xf32> to vector<8x1xf32>
    %415 = math.log %414 : vector<8x1xf32>
    %416 = vector.broadcast %415 : vector<8x1xf32> to vector<8x128xf32>
    %417 = arith.subf %411, %416 : vector<8x128xf32>
    %418 = arith.index_cast %c4_i32 : i32 to index
    %c0_120 = arith.constant 0 : index
    %c0_121 = arith.constant 0 : index
    %419 = vector.load %arg14[%418, %c0_120, %c0_121] : memref<12x8x128xf32, #tpu.memory_space<vmem>>, vector<1x8x128xf32>
    %420 = vector.shape_cast %419 : vector<1x8x128xf32> to vector<8x128xf32>
    %421 = vector.shape_cast %417 : vector<8x128xf32> to vector<1x8x128xf32>
    tpu.vector_store %arg14[%418, %c0_120, %c0_121], %421 {strides = array<i32>} : memref<12x8x128xf32, #tpu.memory_space<vmem>>, vector<1x8x128xf32>,
    %c5_i32 = arith.constant 5 : i32
    %422 = arith.truncf %403 : vector<8x32xf32> to vector<8x32xbf16>
    %423 = arith.index_cast %c5_i32 : i32 to index
    %c0_122 = arith.constant 0 : index
    %c0_123 = arith.constant 0 : index
    %424 = vector.load %arg1[%423, %c0_122, %c0_123] : memref<12x8x32xf32, #tpu.memory_space<vmem>>, vector<1x8x32xf32>
    %425 = vector.shape_cast %424 : vector<1x8x32xf32> to vector<8x32xf32>
    %426 = arith.truncf %425 : vector<8x32xf32> to vector<8x32xbf16>
    %427 = tpu.concatenate %426, %422 in 1 : vector<8x32xbf16>, vector<8x32xbf16> -> vector<8x64xbf16>
    %cst_124 = arith.constant dense<0.000000e+00> : vector<8x128xf32>
    %428 = tpu.matmul %427, %1, %cst_124 {dimension_numbers = #tpu.dot_dimension_numbers<[1], [0], [0], [1], [0, 0, 1, 1], [], []>} : vector<8x64xbf16>, vector<64x128xbf16>, vector<8x128xf32> -> vector<8x128xf32>
    %429 = vector.broadcast %2 : vector<1x128xf32> to vector<8x128xf32>
    %430 = arith.addf %428, %429 : vector<8x128xf32>
    %cst_125 = arith.constant dense<0xFF800000> : vector<8xf32>
    %431 = vector.multi_reduction <maximumf>, %430, %cst_125 [1] : vector<8x128xf32> to vector<8xf32>
    %432 = vector.shape_cast %431 : vector<8xf32> to vector<8x1xf32>
    %433 = vector.broadcast %432 : vector<8x1xf32> to vector<8x128xf32>
    %434 = arith.subf %430, %433 : vector<8x128xf32>
    %435 = math.exp %434 : vector<8x128xf32>
    %cst_126 = arith.constant dense<0.000000e+00> : vector<8xf32>
    %436 = vector.multi_reduction <add>, %435, %cst_126 [1] : vector<8x128xf32> to vector<8xf32>
    %437 = vector.shape_cast %436 : vector<8xf32> to vector<8x1xf32>
    %438 = vector.broadcast %437 : vector<8x1xf32> to vector<8x128xf32>
    %439 = arith.divf %435, %438 : vector<8x128xf32>
    %440 = arith.index_cast %c5_i32 : i32 to index
    %c0_127 = arith.constant 0 : index
    %c0_128 = arith.constant 0 : index
    %441 = vector.load %arg16[%440, %c0_127, %c0_128] : memref<12x8x128xf32, #tpu.memory_space<vmem>>, vector<1x8x128xf32>
    %442 = vector.shape_cast %441 : vector<1x8x128xf32> to vector<8x128xf32>
    %443 = vector.shape_cast %439 : vector<8x128xf32> to vector<1x8x128xf32>
    tpu.vector_store %arg16[%440, %c0_127, %c0_128], %443 {strides = array<i32>} : memref<12x8x128xf32, #tpu.memory_space<vmem>>, vector<1x8x128xf32>,
    %444 = arith.truncf %439 : vector<8x128xf32> to vector<8x128xbf16>
    %cst_129 = arith.constant dense<0.000000e+00> : vector<8x32xf32>
    %445 = tpu.matmul %444, %0, %cst_129 {dimension_numbers = #tpu.dot_dimension_numbers<[1], [0], [0], [1], [0, 0, 1, 1], [], []>} : vector<8x128xbf16>, vector<128x32xbf16>, vector<8x32xf32> -> vector<8x32xf32>
    %446 = arith.truncf %445 : vector<8x32xf32> to vector<8x32xbf16>
    %447 = tpu.concatenate %426, %446 in 1 : vector<8x32xbf16>, vector<8x32xbf16> -> vector<8x64xbf16>
    %cst_130 = arith.constant dense<0.000000e+00> : vector<8x32xf32>
    %448 = tpu.matmul %447, %3, %cst_130 {dimension_numbers = #tpu.dot_dimension_numbers<[1], [0], [0], [1], [0, 0, 1, 1], [], []>} : vector<8x64xbf16>, vector<64x32xbf16>, vector<8x32xf32> -> vector<8x32xf32>
    %449 = vector.broadcast %4 : vector<1x32xf32> to vector<8x32xf32>
    %450 = arith.addf %448, %449 : vector<8x32xf32>
    %cst_131 = arith.constant 0.000000e+00 : f32
    %451 = vector.broadcast %cst_131 : f32 to vector<8x32xf32>
    %452 = arith.maximumf %450, %451 : vector<8x32xf32>
    %453 = arith.truncf %452 : vector<8x32xf32> to vector<8x32xbf16>
    %cst_132 = arith.constant dense<0.000000e+00> : vector<8x96xf32>
    %454 = tpu.matmul %453, %5, %cst_132 {dimension_numbers = #tpu.dot_dimension_numbers<[1], [0], [0], [1], [0, 0, 1, 1], [], []>} : vector<8x32xbf16>, vector<32x96xbf16>, vector<8x96xf32> -> vector<8x96xf32>
    %455 = vector.broadcast %6 : vector<1x96xf32> to vector<8x96xf32>
    %456 = arith.addf %454, %455 : vector<8x96xf32>
    %cst_133 = arith.constant dense<0.000000e+00> : vector<8x96xf32>
    %457 = tpu.matmul %422, %7, %cst_133 {dimension_numbers = #tpu.dot_dimension_numbers<[1], [0], [0], [1], [0, 0, 1, 1], [], []>} : vector<8x32xbf16>, vector<32x96xbf16>, vector<8x96xf32> -> vector<8x96xf32>
    %458 = vector.broadcast %8 : vector<1x96xf32> to vector<8x96xf32>
    %459 = arith.addf %457, %458 : vector<8x96xf32>
    %460 = vector.extract_strided_slice %456 {offsets = [0, 0], sizes = [8, 32], strides = [1, 1]} : vector<8x96xf32> to vector<8x32xf32>
    %461 = vector.extract_strided_slice %459 {offsets = [0, 0], sizes = [8, 32], strides = [1, 1]} : vector<8x96xf32> to vector<8x32xf32>
    %462 = arith.addf %460, %461 : vector<8x32xf32>
    %463 = arith.negf %462 : vector<8x32xf32>
    %464 = math.exp %463 : vector<8x32xf32>
    %cst_134 = arith.constant 1.000000e+00 : f32
    %465 = vector.broadcast %cst_134 : f32 to vector<8x32xf32>
    %466 = arith.addf %465, %464 : vector<8x32xf32>
    %467 = arith.divf %465, %466 : vector<8x32xf32>
    %468 = vector.extract_strided_slice %456 {offsets = [0, 32], sizes = [8, 32], strides = [1, 1]} : vector<8x96xf32> to vector<8x32xf32>
    %469 = vector.extract_strided_slice %459 {offsets = [0, 32], sizes = [8, 32], strides = [1, 1]} : vector<8x96xf32> to vector<8x32xf32>
    %470 = arith.addf %468, %469 : vector<8x32xf32>
    %471 = arith.negf %470 : vector<8x32xf32>
    %472 = math.exp %471 : vector<8x32xf32>
    %cst_135 = arith.constant 1.000000e+00 : f32
    %473 = vector.broadcast %cst_135 : f32 to vector<8x32xf32>
    %474 = arith.addf %473, %472 : vector<8x32xf32>
    %475 = arith.divf %473, %474 : vector<8x32xf32>
    %476 = vector.extract_strided_slice %456 {offsets = [0, 64], sizes = [8, 32], strides = [1, 1]} : vector<8x96xf32> to vector<8x32xf32>
    %477 = vector.extract_strided_slice %459 {offsets = [0, 64], sizes = [8, 32], strides = [1, 1]} : vector<8x96xf32> to vector<8x32xf32>
    %478 = arith.mulf %467, %477 : vector<8x32xf32>
    %479 = arith.addf %476, %478 : vector<8x32xf32>
    %480 = math.tanh %479 : vector<8x32xf32>
    %cst_136 = arith.constant 1.000000e+00 : f32
    %481 = vector.broadcast %cst_136 : f32 to vector<8x32xf32>
    %482 = arith.subf %481, %475 : vector<8x32xf32>
    %483 = arith.mulf %482, %480 : vector<8x32xf32>
    %484 = arith.mulf %475, %403 : vector<8x32xf32>
    %485 = arith.addf %483, %484 : vector<8x32xf32>
    %486 = arith.truncf %485 : vector<8x32xf32> to vector<8x32xbf16>
    %cst_137 = arith.constant dense<0.000000e+00> : vector<8x128xf32>
    %487 = tpu.matmul %486, %9, %cst_137 {dimension_numbers = #tpu.dot_dimension_numbers<[1], [0], [0], [1], [0, 0, 1, 1], [], []>} : vector<8x32xbf16>, vector<32x128xbf16>, vector<8x128xf32> -> vector<8x128xf32>
    %488 = vector.broadcast %10 : vector<1x128xf32> to vector<8x128xf32>
    %489 = arith.addf %487, %488 : vector<8x128xf32>
    %cst_138 = arith.constant dense<0xFF800000> : vector<8xf32>
    %490 = vector.multi_reduction <maximumf>, %489, %cst_138 [1] : vector<8x128xf32> to vector<8xf32>
    %491 = vector.shape_cast %490 : vector<8xf32> to vector<8x1xf32>
    %492 = vector.broadcast %491 : vector<8x1xf32> to vector<8x128xf32>
    %493 = arith.subf %489, %492 : vector<8x128xf32>
    %494 = math.exp %493 : vector<8x128xf32>
    %cst_139 = arith.constant dense<0.000000e+00> : vector<8xf32>
    %495 = vector.multi_reduction <add>, %494, %cst_139 [1] : vector<8x128xf32> to vector<8xf32>
    %496 = vector.shape_cast %495 : vector<8xf32> to vector<8x1xf32>
    %497 = math.log %496 : vector<8x1xf32>
    %498 = vector.broadcast %497 : vector<8x1xf32> to vector<8x128xf32>
    %499 = arith.subf %493, %498 : vector<8x128xf32>
    %500 = arith.index_cast %c5_i32 : i32 to index
    %c0_140 = arith.constant 0 : index
    %c0_141 = arith.constant 0 : index
    %501 = vector.load %arg14[%500, %c0_140, %c0_141] : memref<12x8x128xf32, #tpu.memory_space<vmem>>, vector<1x8x128xf32>
    %502 = vector.shape_cast %501 : vector<1x8x128xf32> to vector<8x128xf32>
    %503 = vector.shape_cast %499 : vector<8x128xf32> to vector<1x8x128xf32>
    tpu.vector_store %arg14[%500, %c0_140, %c0_141], %503 {strides = array<i32>} : memref<12x8x128xf32, #tpu.memory_space<vmem>>, vector<1x8x128xf32>,
    %c6_i32 = arith.constant 6 : i32
    %504 = arith.truncf %485 : vector<8x32xf32> to vector<8x32xbf16>
    %505 = arith.index_cast %c6_i32 : i32 to index
    %c0_142 = arith.constant 0 : index
    %c0_143 = arith.constant 0 : index
    %506 = vector.load %arg1[%505, %c0_142, %c0_143] : memref<12x8x32xf32, #tpu.memory_space<vmem>>, vector<1x8x32xf32>
    %507 = vector.shape_cast %506 : vector<1x8x32xf32> to vector<8x32xf32>
    %508 = arith.truncf %507 : vector<8x32xf32> to vector<8x32xbf16>
    %509 = tpu.concatenate %508, %504 in 1 : vector<8x32xbf16>, vector<8x32xbf16> -> vector<8x64xbf16>
    %cst_144 = arith.constant dense<0.000000e+00> : vector<8x128xf32>
    %510 = tpu.matmul %509, %1, %cst_144 {dimension_numbers = #tpu.dot_dimension_numbers<[1], [0], [0], [1], [0, 0, 1, 1], [], []>} : vector<8x64xbf16>, vector<64x128xbf16>, vector<8x128xf32> -> vector<8x128xf32>
    %511 = vector.broadcast %2 : vector<1x128xf32> to vector<8x128xf32>
    %512 = arith.addf %510, %511 : vector<8x128xf32>
    %cst_145 = arith.constant dense<0xFF800000> : vector<8xf32>
    %513 = vector.multi_reduction <maximumf>, %512, %cst_145 [1] : vector<8x128xf32> to vector<8xf32>
    %514 = vector.shape_cast %513 : vector<8xf32> to vector<8x1xf32>
    %515 = vector.broadcast %514 : vector<8x1xf32> to vector<8x128xf32>
    %516 = arith.subf %512, %515 : vector<8x128xf32>
    %517 = math.exp %516 : vector<8x128xf32>
    %cst_146 = arith.constant dense<0.000000e+00> : vector<8xf32>
    %518 = vector.multi_reduction <add>, %517, %cst_146 [1] : vector<8x128xf32> to vector<8xf32>
    %519 = vector.shape_cast %518 : vector<8xf32> to vector<8x1xf32>
    %520 = vector.broadcast %519 : vector<8x1xf32> to vector<8x128xf32>
    %521 = arith.divf %517, %520 : vector<8x128xf32>
    %522 = arith.index_cast %c6_i32 : i32 to index
    %c0_147 = arith.constant 0 : index
    %c0_148 = arith.constant 0 : index
    %523 = vector.load %arg16[%522, %c0_147, %c0_148] : memref<12x8x128xf32, #tpu.memory_space<vmem>>, vector<1x8x128xf32>
    %524 = vector.shape_cast %523 : vector<1x8x128xf32> to vector<8x128xf32>
    %525 = vector.shape_cast %521 : vector<8x128xf32> to vector<1x8x128xf32>
    tpu.vector_store %arg16[%522, %c0_147, %c0_148], %525 {strides = array<i32>} : memref<12x8x128xf32, #tpu.memory_space<vmem>>, vector<1x8x128xf32>,
    %526 = arith.truncf %521 : vector<8x128xf32> to vector<8x128xbf16>
    %cst_149 = arith.constant dense<0.000000e+00> : vector<8x32xf32>
    %527 = tpu.matmul %526, %0, %cst_149 {dimension_numbers = #tpu.dot_dimension_numbers<[1], [0], [0], [1], [0, 0, 1, 1], [], []>} : vector<8x128xbf16>, vector<128x32xbf16>, vector<8x32xf32> -> vector<8x32xf32>
    %528 = arith.truncf %527 : vector<8x32xf32> to vector<8x32xbf16>
    %529 = tpu.concatenate %508, %528 in 1 : vector<8x32xbf16>, vector<8x32xbf16> -> vector<8x64xbf16>
    %cst_150 = arith.constant dense<0.000000e+00> : vector<8x32xf32>
    %530 = tpu.matmul %529, %3, %cst_150 {dimension_numbers = #tpu.dot_dimension_numbers<[1], [0], [0], [1], [0, 0, 1, 1], [], []>} : vector<8x64xbf16>, vector<64x32xbf16>, vector<8x32xf32> -> vector<8x32xf32>
    %531 = vector.broadcast %4 : vector<1x32xf32> to vector<8x32xf32>
    %532 = arith.addf %530, %531 : vector<8x32xf32>
    %cst_151 = arith.constant 0.000000e+00 : f32
    %533 = vector.broadcast %cst_151 : f32 to vector<8x32xf32>
    %534 = arith.maximumf %532, %533 : vector<8x32xf32>
    %535 = arith.truncf %534 : vector<8x32xf32> to vector<8x32xbf16>
    %cst_152 = arith.constant dense<0.000000e+00> : vector<8x96xf32>
    %536 = tpu.matmul %535, %5, %cst_152 {dimension_numbers = #tpu.dot_dimension_numbers<[1], [0], [0], [1], [0, 0, 1, 1], [], []>} : vector<8x32xbf16>, vector<32x96xbf16>, vector<8x96xf32> -> vector<8x96xf32>
    %537 = vector.broadcast %6 : vector<1x96xf32> to vector<8x96xf32>
    %538 = arith.addf %536, %537 : vector<8x96xf32>
    %cst_153 = arith.constant dense<0.000000e+00> : vector<8x96xf32>
    %539 = tpu.matmul %504, %7, %cst_153 {dimension_numbers = #tpu.dot_dimension_numbers<[1], [0], [0], [1], [0, 0, 1, 1], [], []>} : vector<8x32xbf16>, vector<32x96xbf16>, vector<8x96xf32> -> vector<8x96xf32>
    %540 = vector.broadcast %8 : vector<1x96xf32> to vector<8x96xf32>
    %541 = arith.addf %539, %540 : vector<8x96xf32>
    %542 = vector.extract_strided_slice %538 {offsets = [0, 0], sizes = [8, 32], strides = [1, 1]} : vector<8x96xf32> to vector<8x32xf32>
    %543 = vector.extract_strided_slice %541 {offsets = [0, 0], sizes = [8, 32], strides = [1, 1]} : vector<8x96xf32> to vector<8x32xf32>
    %544 = arith.addf %542, %543 : vector<8x32xf32>
    %545 = arith.negf %544 : vector<8x32xf32>
    %546 = math.exp %545 : vector<8x32xf32>
    %cst_154 = arith.constant 1.000000e+00 : f32
    %547 = vector.broadcast %cst_154 : f32 to vector<8x32xf32>
    %548 = arith.addf %547, %546 : vector<8x32xf32>
    %549 = arith.divf %547, %548 : vector<8x32xf32>
    %550 = vector.extract_strided_slice %538 {offsets = [0, 32], sizes = [8, 32], strides = [1, 1]} : vector<8x96xf32> to vector<8x32xf32>
    %551 = vector.extract_strided_slice %541 {offsets = [0, 32], sizes = [8, 32], strides = [1, 1]} : vector<8x96xf32> to vector<8x32xf32>
    %552 = arith.addf %550, %551 : vector<8x32xf32>
    %553 = arith.negf %552 : vector<8x32xf32>
    %554 = math.exp %553 : vector<8x32xf32>
    %cst_155 = arith.constant 1.000000e+00 : f32
    %555 = vector.broadcast %cst_155 : f32 to vector<8x32xf32>
    %556 = arith.addf %555, %554 : vector<8x32xf32>
    %557 = arith.divf %555, %556 : vector<8x32xf32>
    %558 = vector.extract_strided_slice %538 {offsets = [0, 64], sizes = [8, 32], strides = [1, 1]} : vector<8x96xf32> to vector<8x32xf32>
    %559 = vector.extract_strided_slice %541 {offsets = [0, 64], sizes = [8, 32], strides = [1, 1]} : vector<8x96xf32> to vector<8x32xf32>
    %560 = arith.mulf %549, %559 : vector<8x32xf32>
    %561 = arith.addf %558, %560 : vector<8x32xf32>
    %562 = math.tanh %561 : vector<8x32xf32>
    %cst_156 = arith.constant 1.000000e+00 : f32
    %563 = vector.broadcast %cst_156 : f32 to vector<8x32xf32>
    %564 = arith.subf %563, %557 : vector<8x32xf32>
    %565 = arith.mulf %564, %562 : vector<8x32xf32>
    %566 = arith.mulf %557, %485 : vector<8x32xf32>
    %567 = arith.addf %565, %566 : vector<8x32xf32>
    %568 = arith.truncf %567 : vector<8x32xf32> to vector<8x32xbf16>
    %cst_157 = arith.constant dense<0.000000e+00> : vector<8x128xf32>
    %569 = tpu.matmul %568, %9, %cst_157 {dimension_numbers = #tpu.dot_dimension_numbers<[1], [0], [0], [1], [0, 0, 1, 1], [], []>} : vector<8x32xbf16>, vector<32x128xbf16>, vector<8x128xf32> -> vector<8x128xf32>
    %570 = vector.broadcast %10 : vector<1x128xf32> to vector<8x128xf32>
    %571 = arith.addf %569, %570 : vector<8x128xf32>
    %cst_158 = arith.constant dense<0xFF800000> : vector<8xf32>
    %572 = vector.multi_reduction <maximumf>, %571, %cst_158 [1] : vector<8x128xf32> to vector<8xf32>
    %573 = vector.shape_cast %572 : vector<8xf32> to vector<8x1xf32>
    %574 = vector.broadcast %573 : vector<8x1xf32> to vector<8x128xf32>
    %575 = arith.subf %571, %574 : vector<8x128xf32>
    %576 = math.exp %575 : vector<8x128xf32>
    %cst_159 = arith.constant dense<0.000000e+00> : vector<8xf32>
    %577 = vector.multi_reduction <add>, %576, %cst_159 [1] : vector<8x128xf32> to vector<8xf32>
    %578 = vector.shape_cast %577 : vector<8xf32> to vector<8x1xf32>
    %579 = math.log %578 : vector<8x1xf32>
    %580 = vector.broadcast %579 : vector<8x1xf32> to vector<8x128xf32>
    %581 = arith.subf %575, %580 : vector<8x128xf32>
    %582 = arith.index_cast %c6_i32 : i32 to index
    %c0_160 = arith.constant 0 : index
    %c0_161 = arith.constant 0 : index
    %583 = vector.load %arg14[%582, %c0_160, %c0_161] : memref<12x8x128xf32, #tpu.memory_space<vmem>>, vector<1x8x128xf32>
    %584 = vector.shape_cast %583 : vector<1x8x128xf32> to vector<8x128xf32>
    %585 = vector.shape_cast %581 : vector<8x128xf32> to vector<1x8x128xf32>
    tpu.vector_store %arg14[%582, %c0_160, %c0_161], %585 {strides = array<i32>} : memref<12x8x128xf32, #tpu.memory_space<vmem>>, vector<1x8x128xf32>,
    %c7_i32 = arith.constant 7 : i32
    %586 = arith.truncf %567 : vector<8x32xf32> to vector<8x32xbf16>
    %587 = arith.index_cast %c7_i32 : i32 to index
    %c0_162 = arith.constant 0 : index
    %c0_163 = arith.constant 0 : index
    %588 = vector.load %arg1[%587, %c0_162, %c0_163] : memref<12x8x32xf32, #tpu.memory_space<vmem>>, vector<1x8x32xf32>
    %589 = vector.shape_cast %588 : vector<1x8x32xf32> to vector<8x32xf32>
    %590 = arith.truncf %589 : vector<8x32xf32> to vector<8x32xbf16>
    %591 = tpu.concatenate %590, %586 in 1 : vector<8x32xbf16>, vector<8x32xbf16> -> vector<8x64xbf16>
    %cst_164 = arith.constant dense<0.000000e+00> : vector<8x128xf32>
    %592 = tpu.matmul %591, %1, %cst_164 {dimension_numbers = #tpu.dot_dimension_numbers<[1], [0], [0], [1], [0, 0, 1, 1], [], []>} : vector<8x64xbf16>, vector<64x128xbf16>, vector<8x128xf32> -> vector<8x128xf32>
    %593 = vector.broadcast %2 : vector<1x128xf32> to vector<8x128xf32>
    %594 = arith.addf %592, %593 : vector<8x128xf32>
    %cst_165 = arith.constant dense<0xFF800000> : vector<8xf32>
    %595 = vector.multi_reduction <maximumf>, %594, %cst_165 [1] : vector<8x128xf32> to vector<8xf32>
    %596 = vector.shape_cast %595 : vector<8xf32> to vector<8x1xf32>
    %597 = vector.broadcast %596 : vector<8x1xf32> to vector<8x128xf32>
    %598 = arith.subf %594, %597 : vector<8x128xf32>
    %599 = math.exp %598 : vector<8x128xf32>
    %cst_166 = arith.constant dense<0.000000e+00> : vector<8xf32>
    %600 = vector.multi_reduction <add>, %599, %cst_166 [1] : vector<8x128xf32> to vector<8xf32>
    %601 = vector.shape_cast %600 : vector<8xf32> to vector<8x1xf32>
    %602 = vector.broadcast %601 : vector<8x1xf32> to vector<8x128xf32>
    %603 = arith.divf %599, %602 : vector<8x128xf32>
    %604 = arith.index_cast %c7_i32 : i32 to index
    %c0_167 = arith.constant 0 : index
    %c0_168 = arith.constant 0 : index
    %605 = vector.load %arg16[%604, %c0_167, %c0_168] : memref<12x8x128xf32, #tpu.memory_space<vmem>>, vector<1x8x128xf32>
    %606 = vector.shape_cast %605 : vector<1x8x128xf32> to vector<8x128xf32>
    %607 = vector.shape_cast %603 : vector<8x128xf32> to vector<1x8x128xf32>
    tpu.vector_store %arg16[%604, %c0_167, %c0_168], %607 {strides = array<i32>} : memref<12x8x128xf32, #tpu.memory_space<vmem>>, vector<1x8x128xf32>,
    %608 = arith.truncf %603 : vector<8x128xf32> to vector<8x128xbf16>
    %cst_169 = arith.constant dense<0.000000e+00> : vector<8x32xf32>
    %609 = tpu.matmul %608, %0, %cst_169 {dimension_numbers = #tpu.dot_dimension_numbers<[1], [0], [0], [1], [0, 0, 1, 1], [], []>} : vector<8x128xbf16>, vector<128x32xbf16>, vector<8x32xf32> -> vector<8x32xf32>
    %610 = arith.truncf %609 : vector<8x32xf32> to vector<8x32xbf16>
    %611 = tpu.concatenate %590, %610 in 1 : vector<8x32xbf16>, vector<8x32xbf16> -> vector<8x64xbf16>
    %cst_170 = arith.constant dense<0.000000e+00> : vector<8x32xf32>
    %612 = tpu.matmul %611, %3, %cst_170 {dimension_numbers = #tpu.dot_dimension_numbers<[1], [0], [0], [1], [0, 0, 1, 1], [], []>} : vector<8x64xbf16>, vector<64x32xbf16>, vector<8x32xf32> -> vector<8x32xf32>
    %613 = vector.broadcast %4 : vector<1x32xf32> to vector<8x32xf32>
    %614 = arith.addf %612, %613 : vector<8x32xf32>
    %cst_171 = arith.constant 0.000000e+00 : f32
    %615 = vector.broadcast %cst_171 : f32 to vector<8x32xf32>
    %616 = arith.maximumf %614, %615 : vector<8x32xf32>
    %617 = arith.truncf %616 : vector<8x32xf32> to vector<8x32xbf16>
    %cst_172 = arith.constant dense<0.000000e+00> : vector<8x96xf32>
    %618 = tpu.matmul %617, %5, %cst_172 {dimension_numbers = #tpu.dot_dimension_numbers<[1], [0], [0], [1], [0, 0, 1, 1], [], []>} : vector<8x32xbf16>, vector<32x96xbf16>, vector<8x96xf32> -> vector<8x96xf32>
    %619 = vector.broadcast %6 : vector<1x96xf32> to vector<8x96xf32>
    %620 = arith.addf %618, %619 : vector<8x96xf32>
    %cst_173 = arith.constant dense<0.000000e+00> : vector<8x96xf32>
    %621 = tpu.matmul %586, %7, %cst_173 {dimension_numbers = #tpu.dot_dimension_numbers<[1], [0], [0], [1], [0, 0, 1, 1], [], []>} : vector<8x32xbf16>, vector<32x96xbf16>, vector<8x96xf32> -> vector<8x96xf32>
    %622 = vector.broadcast %8 : vector<1x96xf32> to vector<8x96xf32>
    %623 = arith.addf %621, %622 : vector<8x96xf32>
    %624 = vector.extract_strided_slice %620 {offsets = [0, 0], sizes = [8, 32], strides = [1, 1]} : vector<8x96xf32> to vector<8x32xf32>
    %625 = vector.extract_strided_slice %623 {offsets = [0, 0], sizes = [8, 32], strides = [1, 1]} : vector<8x96xf32> to vector<8x32xf32>
    %626 = arith.addf %624, %625 : vector<8x32xf32>
    %627 = arith.negf %626 : vector<8x32xf32>
    %628 = math.exp %627 : vector<8x32xf32>
    %cst_174 = arith.constant 1.000000e+00 : f32
    %629 = vector.broadcast %cst_174 : f32 to vector<8x32xf32>
    %630 = arith.addf %629, %628 : vector<8x32xf32>
    %631 = arith.divf %629, %630 : vector<8x32xf32>
    %632 = vector.extract_strided_slice %620 {offsets = [0, 32], sizes = [8, 32], strides = [1, 1]} : vector<8x96xf32> to vector<8x32xf32>
    %633 = vector.extract_strided_slice %623 {offsets = [0, 32], sizes = [8, 32], strides = [1, 1]} : vector<8x96xf32> to vector<8x32xf32>
    %634 = arith.addf %632, %633 : vector<8x32xf32>
    %635 = arith.negf %634 : vector<8x32xf32>
    %636 = math.exp %635 : vector<8x32xf32>
    %cst_175 = arith.constant 1.000000e+00 : f32
    %637 = vector.broadcast %cst_175 : f32 to vector<8x32xf32>
    %638 = arith.addf %637, %636 : vector<8x32xf32>
    %639 = arith.divf %637, %638 : vector<8x32xf32>
    %640 = vector.extract_strided_slice %620 {offsets = [0, 64], sizes = [8, 32], strides = [1, 1]} : vector<8x96xf32> to vector<8x32xf32>
    %641 = vector.extract_strided_slice %623 {offsets = [0, 64], sizes = [8, 32], strides = [1, 1]} : vector<8x96xf32> to vector<8x32xf32>
    %642 = arith.mulf %631, %641 : vector<8x32xf32>
    %643 = arith.addf %640, %642 : vector<8x32xf32>
    %644 = math.tanh %643 : vector<8x32xf32>
    %cst_176 = arith.constant 1.000000e+00 : f32
    %645 = vector.broadcast %cst_176 : f32 to vector<8x32xf32>
    %646 = arith.subf %645, %639 : vector<8x32xf32>
    %647 = arith.mulf %646, %644 : vector<8x32xf32>
    %648 = arith.mulf %639, %567 : vector<8x32xf32>
    %649 = arith.addf %647, %648 : vector<8x32xf32>
    %650 = arith.truncf %649 : vector<8x32xf32> to vector<8x32xbf16>
    %cst_177 = arith.constant dense<0.000000e+00> : vector<8x128xf32>
    %651 = tpu.matmul %650, %9, %cst_177 {dimension_numbers = #tpu.dot_dimension_numbers<[1], [0], [0], [1], [0, 0, 1, 1], [], []>} : vector<8x32xbf16>, vector<32x128xbf16>, vector<8x128xf32> -> vector<8x128xf32>
    %652 = vector.broadcast %10 : vector<1x128xf32> to vector<8x128xf32>
    %653 = arith.addf %651, %652 : vector<8x128xf32>
    %cst_178 = arith.constant dense<0xFF800000> : vector<8xf32>
    %654 = vector.multi_reduction <maximumf>, %653, %cst_178 [1] : vector<8x128xf32> to vector<8xf32>
    %655 = vector.shape_cast %654 : vector<8xf32> to vector<8x1xf32>
    %656 = vector.broadcast %655 : vector<8x1xf32> to vector<8x128xf32>
    %657 = arith.subf %653, %656 : vector<8x128xf32>
    %658 = math.exp %657 : vector<8x128xf32>
    %cst_179 = arith.constant dense<0.000000e+00> : vector<8xf32>
    %659 = vector.multi_reduction <add>, %658, %cst_179 [1] : vector<8x128xf32> to vector<8xf32>
    %660 = vector.shape_cast %659 : vector<8xf32> to vector<8x1xf32>
    %661 = math.log %660 : vector<8x1xf32>
    %662 = vector.broadcast %661 : vector<8x1xf32> to vector<8x128xf32>
    %663 = arith.subf %657, %662 : vector<8x128xf32>
    %664 = arith.index_cast %c7_i32 : i32 to index
    %c0_180 = arith.constant 0 : index
    %c0_181 = arith.constant 0 : index
    %665 = vector.load %arg14[%664, %c0_180, %c0_181] : memref<12x8x128xf32, #tpu.memory_space<vmem>>, vector<1x8x128xf32>
    %666 = vector.shape_cast %665 : vector<1x8x128xf32> to vector<8x128xf32>
    %667 = vector.shape_cast %663 : vector<8x128xf32> to vector<1x8x128xf32>
    tpu.vector_store %arg14[%664, %c0_180, %c0_181], %667 {strides = array<i32>} : memref<12x8x128xf32, #tpu.memory_space<vmem>>, vector<1x8x128xf32>,
    %c8_i32 = arith.constant 8 : i32
    %668 = arith.truncf %649 : vector<8x32xf32> to vector<8x32xbf16>
    %669 = arith.index_cast %c8_i32 : i32 to index
    %c0_182 = arith.constant 0 : index
    %c0_183 = arith.constant 0 : index
    %670 = vector.load %arg1[%669, %c0_182, %c0_183] : memref<12x8x32xf32, #tpu.memory_space<vmem>>, vector<1x8x32xf32>
    %671 = vector.shape_cast %670 : vector<1x8x32xf32> to vector<8x32xf32>
    %672 = arith.truncf %671 : vector<8x32xf32> to vector<8x32xbf16>
    %673 = tpu.concatenate %672, %668 in 1 : vector<8x32xbf16>, vector<8x32xbf16> -> vector<8x64xbf16>
    %cst_184 = arith.constant dense<0.000000e+00> : vector<8x128xf32>
    %674 = tpu.matmul %673, %1, %cst_184 {dimension_numbers = #tpu.dot_dimension_numbers<[1], [0], [0], [1], [0, 0, 1, 1], [], []>} : vector<8x64xbf16>, vector<64x128xbf16>, vector<8x128xf32> -> vector<8x128xf32>
    %675 = vector.broadcast %2 : vector<1x128xf32> to vector<8x128xf32>
    %676 = arith.addf %674, %675 : vector<8x128xf32>
    %cst_185 = arith.constant dense<0xFF800000> : vector<8xf32>
    %677 = vector.multi_reduction <maximumf>, %676, %cst_185 [1] : vector<8x128xf32> to vector<8xf32>
    %678 = vector.shape_cast %677 : vector<8xf32> to vector<8x1xf32>
    %679 = vector.broadcast %678 : vector<8x1xf32> to vector<8x128xf32>
    %680 = arith.subf %676, %679 : vector<8x128xf32>
    %681 = math.exp %680 : vector<8x128xf32>
    %cst_186 = arith.constant dense<0.000000e+00> : vector<8xf32>
    %682 = vector.multi_reduction <add>, %681, %cst_186 [1] : vector<8x128xf32> to vector<8xf32>
    %683 = vector.shape_cast %682 : vector<8xf32> to vector<8x1xf32>
    %684 = vector.broadcast %683 : vector<8x1xf32> to vector<8x128xf32>
    %685 = arith.divf %681, %684 : vector<8x128xf32>
    %686 = arith.index_cast %c8_i32 : i32 to index
    %c0_187 = arith.constant 0 : index
    %c0_188 = arith.constant 0 : index
    %687 = vector.load %arg16[%686, %c0_187, %c0_188] : memref<12x8x128xf32, #tpu.memory_space<vmem>>, vector<1x8x128xf32>
    %688 = vector.shape_cast %687 : vector<1x8x128xf32> to vector<8x128xf32>
    %689 = vector.shape_cast %685 : vector<8x128xf32> to vector<1x8x128xf32>
    tpu.vector_store %arg16[%686, %c0_187, %c0_188], %689 {strides = array<i32>} : memref<12x8x128xf32, #tpu.memory_space<vmem>>, vector<1x8x128xf32>,
    %690 = arith.truncf %685 : vector<8x128xf32> to vector<8x128xbf16>
    %cst_189 = arith.constant dense<0.000000e+00> : vector<8x32xf32>
    %691 = tpu.matmul %690, %0, %cst_189 {dimension_numbers = #tpu.dot_dimension_numbers<[1], [0], [0], [1], [0, 0, 1, 1], [], []>} : vector<8x128xbf16>, vector<128x32xbf16>, vector<8x32xf32> -> vector<8x32xf32>
    %692 = arith.truncf %691 : vector<8x32xf32> to vector<8x32xbf16>
    %693 = tpu.concatenate %672, %692 in 1 : vector<8x32xbf16>, vector<8x32xbf16> -> vector<8x64xbf16>
    %cst_190 = arith.constant dense<0.000000e+00> : vector<8x32xf32>
    %694 = tpu.matmul %693, %3, %cst_190 {dimension_numbers = #tpu.dot_dimension_numbers<[1], [0], [0], [1], [0, 0, 1, 1], [], []>} : vector<8x64xbf16>, vector<64x32xbf16>, vector<8x32xf32> -> vector<8x32xf32>
    %695 = vector.broadcast %4 : vector<1x32xf32> to vector<8x32xf32>
    %696 = arith.addf %694, %695 : vector<8x32xf32>
    %cst_191 = arith.constant 0.000000e+00 : f32
    %697 = vector.broadcast %cst_191 : f32 to vector<8x32xf32>
    %698 = arith.maximumf %696, %697 : vector<8x32xf32>
    %699 = arith.truncf %698 : vector<8x32xf32> to vector<8x32xbf16>
    %cst_192 = arith.constant dense<0.000000e+00> : vector<8x96xf32>
    %700 = tpu.matmul %699, %5, %cst_192 {dimension_numbers = #tpu.dot_dimension_numbers<[1], [0], [0], [1], [0, 0, 1, 1], [], []>} : vector<8x32xbf16>, vector<32x96xbf16>, vector<8x96xf32> -> vector<8x96xf32>
    %701 = vector.broadcast %6 : vector<1x96xf32> to vector<8x96xf32>
    %702 = arith.addf %700, %701 : vector<8x96xf32>
    %cst_193 = arith.constant dense<0.000000e+00> : vector<8x96xf32>
    %703 = tpu.matmul %668, %7, %cst_193 {dimension_numbers = #tpu.dot_dimension_numbers<[1], [0], [0], [1], [0, 0, 1, 1], [], []>} : vector<8x32xbf16>, vector<32x96xbf16>, vector<8x96xf32> -> vector<8x96xf32>
    %704 = vector.broadcast %8 : vector<1x96xf32> to vector<8x96xf32>
    %705 = arith.addf %703, %704 : vector<8x96xf32>
    %706 = vector.extract_strided_slice %702 {offsets = [0, 0], sizes = [8, 32], strides = [1, 1]} : vector<8x96xf32> to vector<8x32xf32>
    %707 = vector.extract_strided_slice %705 {offsets = [0, 0], sizes = [8, 32], strides = [1, 1]} : vector<8x96xf32> to vector<8x32xf32>
    %708 = arith.addf %706, %707 : vector<8x32xf32>
    %709 = arith.negf %708 : vector<8x32xf32>
    %710 = math.exp %709 : vector<8x32xf32>
    %cst_194 = arith.constant 1.000000e+00 : f32
    %711 = vector.broadcast %cst_194 : f32 to vector<8x32xf32>
    %712 = arith.addf %711, %710 : vector<8x32xf32>
    %713 = arith.divf %711, %712 : vector<8x32xf32>
    %714 = vector.extract_strided_slice %702 {offsets = [0, 32], sizes = [8, 32], strides = [1, 1]} : vector<8x96xf32> to vector<8x32xf32>
    %715 = vector.extract_strided_slice %705 {offsets = [0, 32], sizes = [8, 32], strides = [1, 1]} : vector<8x96xf32> to vector<8x32xf32>
    %716 = arith.addf %714, %715 : vector<8x32xf32>
    %717 = arith.negf %716 : vector<8x32xf32>
    %718 = math.exp %717 : vector<8x32xf32>
    %cst_195 = arith.constant 1.000000e+00 : f32
    %719 = vector.broadcast %cst_195 : f32 to vector<8x32xf32>
    %720 = arith.addf %719, %718 : vector<8x32xf32>
    %721 = arith.divf %719, %720 : vector<8x32xf32>
    %722 = vector.extract_strided_slice %702 {offsets = [0, 64], sizes = [8, 32], strides = [1, 1]} : vector<8x96xf32> to vector<8x32xf32>
    %723 = vector.extract_strided_slice %705 {offsets = [0, 64], sizes = [8, 32], strides = [1, 1]} : vector<8x96xf32> to vector<8x32xf32>
    %724 = arith.mulf %713, %723 : vector<8x32xf32>
    %725 = arith.addf %722, %724 : vector<8x32xf32>
    %726 = math.tanh %725 : vector<8x32xf32>
    %cst_196 = arith.constant 1.000000e+00 : f32
    %727 = vector.broadcast %cst_196 : f32 to vector<8x32xf32>
    %728 = arith.subf %727, %721 : vector<8x32xf32>
    %729 = arith.mulf %728, %726 : vector<8x32xf32>
    %730 = arith.mulf %721, %649 : vector<8x32xf32>
    %731 = arith.addf %729, %730 : vector<8x32xf32>
    %732 = arith.truncf %731 : vector<8x32xf32> to vector<8x32xbf16>
    %cst_197 = arith.constant dense<0.000000e+00> : vector<8x128xf32>
    %733 = tpu.matmul %732, %9, %cst_197 {dimension_numbers = #tpu.dot_dimension_numbers<[1], [0], [0], [1], [0, 0, 1, 1], [], []>} : vector<8x32xbf16>, vector<32x128xbf16>, vector<8x128xf32> -> vector<8x128xf32>
    %734 = vector.broadcast %10 : vector<1x128xf32> to vector<8x128xf32>
    %735 = arith.addf %733, %734 : vector<8x128xf32>
    %cst_198 = arith.constant dense<0xFF800000> : vector<8xf32>
    %736 = vector.multi_reduction <maximumf>, %735, %cst_198 [1] : vector<8x128xf32> to vector<8xf32>
    %737 = vector.shape_cast %736 : vector<8xf32> to vector<8x1xf32>
    %738 = vector.broadcast %737 : vector<8x1xf32> to vector<8x128xf32>
    %739 = arith.subf %735, %738 : vector<8x128xf32>
    %740 = math.exp %739 : vector<8x128xf32>
    %cst_199 = arith.constant dense<0.000000e+00> : vector<8xf32>
    %741 = vector.multi_reduction <add>, %740, %cst_199 [1] : vector<8x128xf32> to vector<8xf32>
    %742 = vector.shape_cast %741 : vector<8xf32> to vector<8x1xf32>
    %743 = math.log %742 : vector<8x1xf32>
    %744 = vector.broadcast %743 : vector<8x1xf32> to vector<8x128xf32>
    %745 = arith.subf %739, %744 : vector<8x128xf32>
    %746 = arith.index_cast %c8_i32 : i32 to index
    %c0_200 = arith.constant 0 : index
    %c0_201 = arith.constant 0 : index
    %747 = vector.load %arg14[%746, %c0_200, %c0_201] : memref<12x8x128xf32, #tpu.memory_space<vmem>>, vector<1x8x128xf32>
    %748 = vector.shape_cast %747 : vector<1x8x128xf32> to vector<8x128xf32>
    %749 = vector.shape_cast %745 : vector<8x128xf32> to vector<1x8x128xf32>
    tpu.vector_store %arg14[%746, %c0_200, %c0_201], %749 {strides = array<i32>} : memref<12x8x128xf32, #tpu.memory_space<vmem>>, vector<1x8x128xf32>,
    %c9_i32 = arith.constant 9 : i32
    %750 = arith.truncf %731 : vector<8x32xf32> to vector<8x32xbf16>
    %751 = arith.index_cast %c9_i32 : i32 to index
    %c0_202 = arith.constant 0 : index
    %c0_203 = arith.constant 0 : index
    %752 = vector.load %arg1[%751, %c0_202, %c0_203] : memref<12x8x32xf32, #tpu.memory_space<vmem>>, vector<1x8x32xf32>
    %753 = vector.shape_cast %752 : vector<1x8x32xf32> to vector<8x32xf32>
    %754 = arith.truncf %753 : vector<8x32xf32> to vector<8x32xbf16>
    %755 = tpu.concatenate %754, %750 in 1 : vector<8x32xbf16>, vector<8x32xbf16> -> vector<8x64xbf16>
    %cst_204 = arith.constant dense<0.000000e+00> : vector<8x128xf32>
    %756 = tpu.matmul %755, %1, %cst_204 {dimension_numbers = #tpu.dot_dimension_numbers<[1], [0], [0], [1], [0, 0, 1, 1], [], []>} : vector<8x64xbf16>, vector<64x128xbf16>, vector<8x128xf32> -> vector<8x128xf32>
    %757 = vector.broadcast %2 : vector<1x128xf32> to vector<8x128xf32>
    %758 = arith.addf %756, %757 : vector<8x128xf32>
    %cst_205 = arith.constant dense<0xFF800000> : vector<8xf32>
    %759 = vector.multi_reduction <maximumf>, %758, %cst_205 [1] : vector<8x128xf32> to vector<8xf32>
    %760 = vector.shape_cast %759 : vector<8xf32> to vector<8x1xf32>
    %761 = vector.broadcast %760 : vector<8x1xf32> to vector<8x128xf32>
    %762 = arith.subf %758, %761 : vector<8x128xf32>
    %763 = math.exp %762 : vector<8x128xf32>
    %cst_206 = arith.constant dense<0.000000e+00> : vector<8xf32>
    %764 = vector.multi_reduction <add>, %763, %cst_206 [1] : vector<8x128xf32> to vector<8xf32>
    %765 = vector.shape_cast %764 : vector<8xf32> to vector<8x1xf32>
    %766 = vector.broadcast %765 : vector<8x1xf32> to vector<8x128xf32>
    %767 = arith.divf %763, %766 : vector<8x128xf32>
    %768 = arith.index_cast %c9_i32 : i32 to index
    %c0_207 = arith.constant 0 : index
    %c0_208 = arith.constant 0 : index
    %769 = vector.load %arg16[%768, %c0_207, %c0_208] : memref<12x8x128xf32, #tpu.memory_space<vmem>>, vector<1x8x128xf32>
    %770 = vector.shape_cast %769 : vector<1x8x128xf32> to vector<8x128xf32>
    %771 = vector.shape_cast %767 : vector<8x128xf32> to vector<1x8x128xf32>
    tpu.vector_store %arg16[%768, %c0_207, %c0_208], %771 {strides = array<i32>} : memref<12x8x128xf32, #tpu.memory_space<vmem>>, vector<1x8x128xf32>,
    %772 = arith.truncf %767 : vector<8x128xf32> to vector<8x128xbf16>
    %cst_209 = arith.constant dense<0.000000e+00> : vector<8x32xf32>
    %773 = tpu.matmul %772, %0, %cst_209 {dimension_numbers = #tpu.dot_dimension_numbers<[1], [0], [0], [1], [0, 0, 1, 1], [], []>} : vector<8x128xbf16>, vector<128x32xbf16>, vector<8x32xf32> -> vector<8x32xf32>
    %774 = arith.truncf %773 : vector<8x32xf32> to vector<8x32xbf16>
    %775 = tpu.concatenate %754, %774 in 1 : vector<8x32xbf16>, vector<8x32xbf16> -> vector<8x64xbf16>
    %cst_210 = arith.constant dense<0.000000e+00> : vector<8x32xf32>
    %776 = tpu.matmul %775, %3, %cst_210 {dimension_numbers = #tpu.dot_dimension_numbers<[1], [0], [0], [1], [0, 0, 1, 1], [], []>} : vector<8x64xbf16>, vector<64x32xbf16>, vector<8x32xf32> -> vector<8x32xf32>
    %777 = vector.broadcast %4 : vector<1x32xf32> to vector<8x32xf32>
    %778 = arith.addf %776, %777 : vector<8x32xf32>
    %cst_211 = arith.constant 0.000000e+00 : f32
    %779 = vector.broadcast %cst_211 : f32 to vector<8x32xf32>
    %780 = arith.maximumf %778, %779 : vector<8x32xf32>
    %781 = arith.truncf %780 : vector<8x32xf32> to vector<8x32xbf16>
    %cst_212 = arith.constant dense<0.000000e+00> : vector<8x96xf32>
    %782 = tpu.matmul %781, %5, %cst_212 {dimension_numbers = #tpu.dot_dimension_numbers<[1], [0], [0], [1], [0, 0, 1, 1], [], []>} : vector<8x32xbf16>, vector<32x96xbf16>, vector<8x96xf32> -> vector<8x96xf32>
    %783 = vector.broadcast %6 : vector<1x96xf32> to vector<8x96xf32>
    %784 = arith.addf %782, %783 : vector<8x96xf32>
    %cst_213 = arith.constant dense<0.000000e+00> : vector<8x96xf32>
    %785 = tpu.matmul %750, %7, %cst_213 {dimension_numbers = #tpu.dot_dimension_numbers<[1], [0], [0], [1], [0, 0, 1, 1], [], []>} : vector<8x32xbf16>, vector<32x96xbf16>, vector<8x96xf32> -> vector<8x96xf32>
    %786 = vector.broadcast %8 : vector<1x96xf32> to vector<8x96xf32>
    %787 = arith.addf %785, %786 : vector<8x96xf32>
    %788 = vector.extract_strided_slice %784 {offsets = [0, 0], sizes = [8, 32], strides = [1, 1]} : vector<8x96xf32> to vector<8x32xf32>
    %789 = vector.extract_strided_slice %787 {offsets = [0, 0], sizes = [8, 32], strides = [1, 1]} : vector<8x96xf32> to vector<8x32xf32>
    %790 = arith.addf %788, %789 : vector<8x32xf32>
    %791 = arith.negf %790 : vector<8x32xf32>
    %792 = math.exp %791 : vector<8x32xf32>
    %cst_214 = arith.constant 1.000000e+00 : f32
    %793 = vector.broadcast %cst_214 : f32 to vector<8x32xf32>
    %794 = arith.addf %793, %792 : vector<8x32xf32>
    %795 = arith.divf %793, %794 : vector<8x32xf32>
    %796 = vector.extract_strided_slice %784 {offsets = [0, 32], sizes = [8, 32], strides = [1, 1]} : vector<8x96xf32> to vector<8x32xf32>
    %797 = vector.extract_strided_slice %787 {offsets = [0, 32], sizes = [8, 32], strides = [1, 1]} : vector<8x96xf32> to vector<8x32xf32>
    %798 = arith.addf %796, %797 : vector<8x32xf32>
    %799 = arith.negf %798 : vector<8x32xf32>
    %800 = math.exp %799 : vector<8x32xf32>
    %cst_215 = arith.constant 1.000000e+00 : f32
    %801 = vector.broadcast %cst_215 : f32 to vector<8x32xf32>
    %802 = arith.addf %801, %800 : vector<8x32xf32>
    %803 = arith.divf %801, %802 : vector<8x32xf32>
    %804 = vector.extract_strided_slice %784 {offsets = [0, 64], sizes = [8, 32], strides = [1, 1]} : vector<8x96xf32> to vector<8x32xf32>
    %805 = vector.extract_strided_slice %787 {offsets = [0, 64], sizes = [8, 32], strides = [1, 1]} : vector<8x96xf32> to vector<8x32xf32>
    %806 = arith.mulf %795, %805 : vector<8x32xf32>
    %807 = arith.addf %804, %806 : vector<8x32xf32>
    %808 = math.tanh %807 : vector<8x32xf32>
    %cst_216 = arith.constant 1.000000e+00 : f32
    %809 = vector.broadcast %cst_216 : f32 to vector<8x32xf32>
    %810 = arith.subf %809, %803 : vector<8x32xf32>
    %811 = arith.mulf %810, %808 : vector<8x32xf32>
    %812 = arith.mulf %803, %731 : vector<8x32xf32>
    %813 = arith.addf %811, %812 : vector<8x32xf32>
    %814 = arith.truncf %813 : vector<8x32xf32> to vector<8x32xbf16>
    %cst_217 = arith.constant dense<0.000000e+00> : vector<8x128xf32>
    %815 = tpu.matmul %814, %9, %cst_217 {dimension_numbers = #tpu.dot_dimension_numbers<[1], [0], [0], [1], [0, 0, 1, 1], [], []>} : vector<8x32xbf16>, vector<32x128xbf16>, vector<8x128xf32> -> vector<8x128xf32>
    %816 = vector.broadcast %10 : vector<1x128xf32> to vector<8x128xf32>
    %817 = arith.addf %815, %816 : vector<8x128xf32>
    %cst_218 = arith.constant dense<0xFF800000> : vector<8xf32>
    %818 = vector.multi_reduction <maximumf>, %817, %cst_218 [1] : vector<8x128xf32> to vector<8xf32>
    %819 = vector.shape_cast %818 : vector<8xf32> to vector<8x1xf32>
    %820 = vector.broadcast %819 : vector<8x1xf32> to vector<8x128xf32>
    %821 = arith.subf %817, %820 : vector<8x128xf32>
    %822 = math.exp %821 : vector<8x128xf32>
    %cst_219 = arith.constant dense<0.000000e+00> : vector<8xf32>
    %823 = vector.multi_reduction <add>, %822, %cst_219 [1] : vector<8x128xf32> to vector<8xf32>
    %824 = vector.shape_cast %823 : vector<8xf32> to vector<8x1xf32>
    %825 = math.log %824 : vector<8x1xf32>
    %826 = vector.broadcast %825 : vector<8x1xf32> to vector<8x128xf32>
    %827 = arith.subf %821, %826 : vector<8x128xf32>
    %828 = arith.index_cast %c9_i32 : i32 to index
    %c0_220 = arith.constant 0 : index
    %c0_221 = arith.constant 0 : index
    %829 = vector.load %arg14[%828, %c0_220, %c0_221] : memref<12x8x128xf32, #tpu.memory_space<vmem>>, vector<1x8x128xf32>
    %830 = vector.shape_cast %829 : vector<1x8x128xf32> to vector<8x128xf32>
    %831 = vector.shape_cast %827 : vector<8x128xf32> to vector<1x8x128xf32>
    tpu.vector_store %arg14[%828, %c0_220, %c0_221], %831 {strides = array<i32>} : memref<12x8x128xf32, #tpu.memory_space<vmem>>, vector<1x8x128xf32>,
    %c10_i32 = arith.constant 10 : i32
    %832 = arith.truncf %813 : vector<8x32xf32> to vector<8x32xbf16>
    %833 = arith.index_cast %c10_i32 : i32 to index
    %c0_222 = arith.constant 0 : index
    %c0_223 = arith.constant 0 : index
    %834 = vector.load %arg1[%833, %c0_222, %c0_223] : memref<12x8x32xf32, #tpu.memory_space<vmem>>, vector<1x8x32xf32>
    %835 = vector.shape_cast %834 : vector<1x8x32xf32> to vector<8x32xf32>
    %836 = arith.truncf %835 : vector<8x32xf32> to vector<8x32xbf16>
    %837 = tpu.concatenate %836, %832 in 1 : vector<8x32xbf16>, vector<8x32xbf16> -> vector<8x64xbf16>
    %cst_224 = arith.constant dense<0.000000e+00> : vector<8x128xf32>
    %838 = tpu.matmul %837, %1, %cst_224 {dimension_numbers = #tpu.dot_dimension_numbers<[1], [0], [0], [1], [0, 0, 1, 1], [], []>} : vector<8x64xbf16>, vector<64x128xbf16>, vector<8x128xf32> -> vector<8x128xf32>
    %839 = vector.broadcast %2 : vector<1x128xf32> to vector<8x128xf32>
    %840 = arith.addf %838, %839 : vector<8x128xf32>
    %cst_225 = arith.constant dense<0xFF800000> : vector<8xf32>
    %841 = vector.multi_reduction <maximumf>, %840, %cst_225 [1] : vector<8x128xf32> to vector<8xf32>
    %842 = vector.shape_cast %841 : vector<8xf32> to vector<8x1xf32>
    %843 = vector.broadcast %842 : vector<8x1xf32> to vector<8x128xf32>
    %844 = arith.subf %840, %843 : vector<8x128xf32>
    %845 = math.exp %844 : vector<8x128xf32>
    %cst_226 = arith.constant dense<0.000000e+00> : vector<8xf32>
    %846 = vector.multi_reduction <add>, %845, %cst_226 [1] : vector<8x128xf32> to vector<8xf32>
    %847 = vector.shape_cast %846 : vector<8xf32> to vector<8x1xf32>
    %848 = vector.broadcast %847 : vector<8x1xf32> to vector<8x128xf32>
    %849 = arith.divf %845, %848 : vector<8x128xf32>
    %850 = arith.index_cast %c10_i32 : i32 to index
    %c0_227 = arith.constant 0 : index
    %c0_228 = arith.constant 0 : index
    %851 = vector.load %arg16[%850, %c0_227, %c0_228] : memref<12x8x128xf32, #tpu.memory_space<vmem>>, vector<1x8x128xf32>
    %852 = vector.shape_cast %851 : vector<1x8x128xf32> to vector<8x128xf32>
    %853 = vector.shape_cast %849 : vector<8x128xf32> to vector<1x8x128xf32>
    tpu.vector_store %arg16[%850, %c0_227, %c0_228], %853 {strides = array<i32>} : memref<12x8x128xf32, #tpu.memory_space<vmem>>, vector<1x8x128xf32>,
    %854 = arith.truncf %849 : vector<8x128xf32> to vector<8x128xbf16>
    %cst_229 = arith.constant dense<0.000000e+00> : vector<8x32xf32>
    %855 = tpu.matmul %854, %0, %cst_229 {dimension_numbers = #tpu.dot_dimension_numbers<[1], [0], [0], [1], [0, 0, 1, 1], [], []>} : vector<8x128xbf16>, vector<128x32xbf16>, vector<8x32xf32> -> vector<8x32xf32>
    %856 = arith.truncf %855 : vector<8x32xf32> to vector<8x32xbf16>
    %857 = tpu.concatenate %836, %856 in 1 : vector<8x32xbf16>, vector<8x32xbf16> -> vector<8x64xbf16>
    %cst_230 = arith.constant dense<0.000000e+00> : vector<8x32xf32>
    %858 = tpu.matmul %857, %3, %cst_230 {dimension_numbers = #tpu.dot_dimension_numbers<[1], [0], [0], [1], [0, 0, 1, 1], [], []>} : vector<8x64xbf16>, vector<64x32xbf16>, vector<8x32xf32> -> vector<8x32xf32>
    %859 = vector.broadcast %4 : vector<1x32xf32> to vector<8x32xf32>
    %860 = arith.addf %858, %859 : vector<8x32xf32>
    %cst_231 = arith.constant 0.000000e+00 : f32
    %861 = vector.broadcast %cst_231 : f32 to vector<8x32xf32>
    %862 = arith.maximumf %860, %861 : vector<8x32xf32>
    %863 = arith.truncf %862 : vector<8x32xf32> to vector<8x32xbf16>
    %cst_232 = arith.constant dense<0.000000e+00> : vector<8x96xf32>
    %864 = tpu.matmul %863, %5, %cst_232 {dimension_numbers = #tpu.dot_dimension_numbers<[1], [0], [0], [1], [0, 0, 1, 1], [], []>} : vector<8x32xbf16>, vector<32x96xbf16>, vector<8x96xf32> -> vector<8x96xf32>
    %865 = vector.broadcast %6 : vector<1x96xf32> to vector<8x96xf32>
    %866 = arith.addf %864, %865 : vector<8x96xf32>
    %cst_233 = arith.constant dense<0.000000e+00> : vector<8x96xf32>
    %867 = tpu.matmul %832, %7, %cst_233 {dimension_numbers = #tpu.dot_dimension_numbers<[1], [0], [0], [1], [0, 0, 1, 1], [], []>} : vector<8x32xbf16>, vector<32x96xbf16>, vector<8x96xf32> -> vector<8x96xf32>
    %868 = vector.broadcast %8 : vector<1x96xf32> to vector<8x96xf32>
    %869 = arith.addf %867, %868 : vector<8x96xf32>
    %870 = vector.extract_strided_slice %866 {offsets = [0, 0], sizes = [8, 32], strides = [1, 1]} : vector<8x96xf32> to vector<8x32xf32>
    %871 = vector.extract_strided_slice %869 {offsets = [0, 0], sizes = [8, 32], strides = [1, 1]} : vector<8x96xf32> to vector<8x32xf32>
    %872 = arith.addf %870, %871 : vector<8x32xf32>
    %873 = arith.negf %872 : vector<8x32xf32>
    %874 = math.exp %873 : vector<8x32xf32>
    %cst_234 = arith.constant 1.000000e+00 : f32
    %875 = vector.broadcast %cst_234 : f32 to vector<8x32xf32>
    %876 = arith.addf %875, %874 : vector<8x32xf32>
    %877 = arith.divf %875, %876 : vector<8x32xf32>
    %878 = vector.extract_strided_slice %866 {offsets = [0, 32], sizes = [8, 32], strides = [1, 1]} : vector<8x96xf32> to vector<8x32xf32>
    %879 = vector.extract_strided_slice %869 {offsets = [0, 32], sizes = [8, 32], strides = [1, 1]} : vector<8x96xf32> to vector<8x32xf32>
    %880 = arith.addf %878, %879 : vector<8x32xf32>
    %881 = arith.negf %880 : vector<8x32xf32>
    %882 = math.exp %881 : vector<8x32xf32>
    %cst_235 = arith.constant 1.000000e+00 : f32
    %883 = vector.broadcast %cst_235 : f32 to vector<8x32xf32>
    %884 = arith.addf %883, %882 : vector<8x32xf32>
    %885 = arith.divf %883, %884 : vector<8x32xf32>
    %886 = vector.extract_strided_slice %866 {offsets = [0, 64], sizes = [8, 32], strides = [1, 1]} : vector<8x96xf32> to vector<8x32xf32>
    %887 = vector.extract_strided_slice %869 {offsets = [0, 64], sizes = [8, 32], strides = [1, 1]} : vector<8x96xf32> to vector<8x32xf32>
    %888 = arith.mulf %877, %887 : vector<8x32xf32>
    %889 = arith.addf %886, %888 : vector<8x32xf32>
    %890 = math.tanh %889 : vector<8x32xf32>
    %cst_236 = arith.constant 1.000000e+00 : f32
    %891 = vector.broadcast %cst_236 : f32 to vector<8x32xf32>
    %892 = arith.subf %891, %885 : vector<8x32xf32>
    %893 = arith.mulf %892, %890 : vector<8x32xf32>
    %894 = arith.mulf %885, %813 : vector<8x32xf32>
    %895 = arith.addf %893, %894 : vector<8x32xf32>
    %896 = arith.truncf %895 : vector<8x32xf32> to vector<8x32xbf16>
    %cst_237 = arith.constant dense<0.000000e+00> : vector<8x128xf32>
    %897 = tpu.matmul %896, %9, %cst_237 {dimension_numbers = #tpu.dot_dimension_numbers<[1], [0], [0], [1], [0, 0, 1, 1], [], []>} : vector<8x32xbf16>, vector<32x128xbf16>, vector<8x128xf32> -> vector<8x128xf32>
    %898 = vector.broadcast %10 : vector<1x128xf32> to vector<8x128xf32>
    %899 = arith.addf %897, %898 : vector<8x128xf32>
    %cst_238 = arith.constant dense<0xFF800000> : vector<8xf32>
    %900 = vector.multi_reduction <maximumf>, %899, %cst_238 [1] : vector<8x128xf32> to vector<8xf32>
    %901 = vector.shape_cast %900 : vector<8xf32> to vector<8x1xf32>
    %902 = vector.broadcast %901 : vector<8x1xf32> to vector<8x128xf32>
    %903 = arith.subf %899, %902 : vector<8x128xf32>
    %904 = math.exp %903 : vector<8x128xf32>
    %cst_239 = arith.constant dense<0.000000e+00> : vector<8xf32>
    %905 = vector.multi_reduction <add>, %904, %cst_239 [1] : vector<8x128xf32> to vector<8xf32>
    %906 = vector.shape_cast %905 : vector<8xf32> to vector<8x1xf32>
    %907 = math.log %906 : vector<8x1xf32>
    %908 = vector.broadcast %907 : vector<8x1xf32> to vector<8x128xf32>
    %909 = arith.subf %903, %908 : vector<8x128xf32>
    %910 = arith.index_cast %c10_i32 : i32 to index
    %c0_240 = arith.constant 0 : index
    %c0_241 = arith.constant 0 : index
    %911 = vector.load %arg14[%910, %c0_240, %c0_241] : memref<12x8x128xf32, #tpu.memory_space<vmem>>, vector<1x8x128xf32>
    %912 = vector.shape_cast %911 : vector<1x8x128xf32> to vector<8x128xf32>
    %913 = vector.shape_cast %909 : vector<8x128xf32> to vector<1x8x128xf32>
    tpu.vector_store %arg14[%910, %c0_240, %c0_241], %913 {strides = array<i32>} : memref<12x8x128xf32, #tpu.memory_space<vmem>>, vector<1x8x128xf32>,
    %c11_i32 = arith.constant 11 : i32
    %914 = arith.truncf %895 : vector<8x32xf32> to vector<8x32xbf16>
    %915 = arith.index_cast %c11_i32 : i32 to index
    %c0_242 = arith.constant 0 : index
    %c0_243 = arith.constant 0 : index
    %916 = vector.load %arg1[%915, %c0_242, %c0_243] : memref<12x8x32xf32, #tpu.memory_space<vmem>>, vector<1x8x32xf32>
    %917 = vector.shape_cast %916 : vector<1x8x32xf32> to vector<8x32xf32>
    %918 = arith.truncf %917 : vector<8x32xf32> to vector<8x32xbf16>
    %919 = tpu.concatenate %918, %914 in 1 : vector<8x32xbf16>, vector<8x32xbf16> -> vector<8x64xbf16>
    %cst_244 = arith.constant dense<0.000000e+00> : vector<8x128xf32>
    %920 = tpu.matmul %919, %1, %cst_244 {dimension_numbers = #tpu.dot_dimension_numbers<[1], [0], [0], [1], [0, 0, 1, 1], [], []>} : vector<8x64xbf16>, vector<64x128xbf16>, vector<8x128xf32> -> vector<8x128xf32>
    %921 = vector.broadcast %2 : vector<1x128xf32> to vector<8x128xf32>
    %922 = arith.addf %920, %921 : vector<8x128xf32>
    %cst_245 = arith.constant dense<0xFF800000> : vector<8xf32>
    %923 = vector.multi_reduction <maximumf>, %922, %cst_245 [1] : vector<8x128xf32> to vector<8xf32>
    %924 = vector.shape_cast %923 : vector<8xf32> to vector<8x1xf32>
    %925 = vector.broadcast %924 : vector<8x1xf32> to vector<8x128xf32>
    %926 = arith.subf %922, %925 : vector<8x128xf32>
    %927 = math.exp %926 : vector<8x128xf32>
    %cst_246 = arith.constant dense<0.000000e+00> : vector<8xf32>
    %928 = vector.multi_reduction <add>, %927, %cst_246 [1] : vector<8x128xf32> to vector<8xf32>
    %929 = vector.shape_cast %928 : vector<8xf32> to vector<8x1xf32>
    %930 = vector.broadcast %929 : vector<8x1xf32> to vector<8x128xf32>
    %931 = arith.divf %927, %930 : vector<8x128xf32>
    %932 = arith.index_cast %c11_i32 : i32 to index
    %c0_247 = arith.constant 0 : index
    %c0_248 = arith.constant 0 : index
    %933 = vector.load %arg16[%932, %c0_247, %c0_248] : memref<12x8x128xf32, #tpu.memory_space<vmem>>, vector<1x8x128xf32>
    %934 = vector.shape_cast %933 : vector<1x8x128xf32> to vector<8x128xf32>
    %935 = vector.shape_cast %931 : vector<8x128xf32> to vector<1x8x128xf32>
    tpu.vector_store %arg16[%932, %c0_247, %c0_248], %935 {strides = array<i32>} : memref<12x8x128xf32, #tpu.memory_space<vmem>>, vector<1x8x128xf32>,
    %936 = arith.truncf %931 : vector<8x128xf32> to vector<8x128xbf16>
    %cst_249 = arith.constant dense<0.000000e+00> : vector<8x32xf32>
    %937 = tpu.matmul %936, %0, %cst_249 {dimension_numbers = #tpu.dot_dimension_numbers<[1], [0], [0], [1], [0, 0, 1, 1], [], []>} : vector<8x128xbf16>, vector<128x32xbf16>, vector<8x32xf32> -> vector<8x32xf32>
    %938 = arith.truncf %937 : vector<8x32xf32> to vector<8x32xbf16>
    %939 = tpu.concatenate %918, %938 in 1 : vector<8x32xbf16>, vector<8x32xbf16> -> vector<8x64xbf16>
    %cst_250 = arith.constant dense<0.000000e+00> : vector<8x32xf32>
    %940 = tpu.matmul %939, %3, %cst_250 {dimension_numbers = #tpu.dot_dimension_numbers<[1], [0], [0], [1], [0, 0, 1, 1], [], []>} : vector<8x64xbf16>, vector<64x32xbf16>, vector<8x32xf32> -> vector<8x32xf32>
    %941 = vector.broadcast %4 : vector<1x32xf32> to vector<8x32xf32>
    %942 = arith.addf %940, %941 : vector<8x32xf32>
    %cst_251 = arith.constant 0.000000e+00 : f32
    %943 = vector.broadcast %cst_251 : f32 to vector<8x32xf32>
    %944 = arith.maximumf %942, %943 : vector<8x32xf32>
    %945 = arith.truncf %944 : vector<8x32xf32> to vector<8x32xbf16>
    %cst_252 = arith.constant dense<0.000000e+00> : vector<8x96xf32>
    %946 = tpu.matmul %945, %5, %cst_252 {dimension_numbers = #tpu.dot_dimension_numbers<[1], [0], [0], [1], [0, 0, 1, 1], [], []>} : vector<8x32xbf16>, vector<32x96xbf16>, vector<8x96xf32> -> vector<8x96xf32>
    %947 = vector.broadcast %6 : vector<1x96xf32> to vector<8x96xf32>
    %948 = arith.addf %946, %947 : vector<8x96xf32>
    %cst_253 = arith.constant dense<0.000000e+00> : vector<8x96xf32>
    %949 = tpu.matmul %914, %7, %cst_253 {dimension_numbers = #tpu.dot_dimension_numbers<[1], [0], [0], [1], [0, 0, 1, 1], [], []>} : vector<8x32xbf16>, vector<32x96xbf16>, vector<8x96xf32> -> vector<8x96xf32>
    %950 = vector.broadcast %8 : vector<1x96xf32> to vector<8x96xf32>
    %951 = arith.addf %949, %950 : vector<8x96xf32>
    %952 = vector.extract_strided_slice %948 {offsets = [0, 0], sizes = [8, 32], strides = [1, 1]} : vector<8x96xf32> to vector<8x32xf32>
    %953 = vector.extract_strided_slice %951 {offsets = [0, 0], sizes = [8, 32], strides = [1, 1]} : vector<8x96xf32> to vector<8x32xf32>
    %954 = arith.addf %952, %953 : vector<8x32xf32>
    %955 = arith.negf %954 : vector<8x32xf32>
    %956 = math.exp %955 : vector<8x32xf32>
    %cst_254 = arith.constant 1.000000e+00 : f32
    %957 = vector.broadcast %cst_254 : f32 to vector<8x32xf32>
    %958 = arith.addf %957, %956 : vector<8x32xf32>
    %959 = arith.divf %957, %958 : vector<8x32xf32>
    %960 = vector.extract_strided_slice %948 {offsets = [0, 32], sizes = [8, 32], strides = [1, 1]} : vector<8x96xf32> to vector<8x32xf32>
    %961 = vector.extract_strided_slice %951 {offsets = [0, 32], sizes = [8, 32], strides = [1, 1]} : vector<8x96xf32> to vector<8x32xf32>
    %962 = arith.addf %960, %961 : vector<8x32xf32>
    %963 = arith.negf %962 : vector<8x32xf32>
    %964 = math.exp %963 : vector<8x32xf32>
    %cst_255 = arith.constant 1.000000e+00 : f32
    %965 = vector.broadcast %cst_255 : f32 to vector<8x32xf32>
    %966 = arith.addf %965, %964 : vector<8x32xf32>
    %967 = arith.divf %965, %966 : vector<8x32xf32>
    %968 = vector.extract_strided_slice %948 {offsets = [0, 64], sizes = [8, 32], strides = [1, 1]} : vector<8x96xf32> to vector<8x32xf32>
    %969 = vector.extract_strided_slice %951 {offsets = [0, 64], sizes = [8, 32], strides = [1, 1]} : vector<8x96xf32> to vector<8x32xf32>
    %970 = arith.mulf %959, %969 : vector<8x32xf32>
    %971 = arith.addf %968, %970 : vector<8x32xf32>
    %972 = math.tanh %971 : vector<8x32xf32>
    %cst_256 = arith.constant 1.000000e+00 : f32
    %973 = vector.broadcast %cst_256 : f32 to vector<8x32xf32>
    %974 = arith.subf %973, %967 : vector<8x32xf32>
    %975 = arith.mulf %974, %972 : vector<8x32xf32>
    %976 = arith.mulf %967, %895 : vector<8x32xf32>
    %977 = arith.addf %975, %976 : vector<8x32xf32>
    %978 = arith.truncf %977 : vector<8x32xf32> to vector<8x32xbf16>
    %cst_257 = arith.constant dense<0.000000e+00> : vector<8x128xf32>
    %979 = tpu.matmul %978, %9, %cst_257 {dimension_numbers = #tpu.dot_dimension_numbers<[1], [0], [0], [1], [0, 0, 1, 1], [], []>} : vector<8x32xbf16>, vector<32x128xbf16>, vector<8x128xf32> -> vector<8x128xf32>
    %980 = vector.broadcast %10 : vector<1x128xf32> to vector<8x128xf32>
    %981 = arith.addf %979, %980 : vector<8x128xf32>
    %cst_258 = arith.constant dense<0xFF800000> : vector<8xf32>
    %982 = vector.multi_reduction <maximumf>, %981, %cst_258 [1] : vector<8x128xf32> to vector<8xf32>
    %983 = vector.shape_cast %982 : vector<8xf32> to vector<8x1xf32>
    %984 = vector.broadcast %983 : vector<8x1xf32> to vector<8x128xf32>
    %985 = arith.subf %981, %984 : vector<8x128xf32>
    %986 = math.exp %985 : vector<8x128xf32>
    %cst_259 = arith.constant dense<0.000000e+00> : vector<8xf32>
    %987 = vector.multi_reduction <add>, %986, %cst_259 [1] : vector<8x128xf32> to vector<8xf32>
    %988 = vector.shape_cast %987 : vector<8xf32> to vector<8x1xf32>
    %989 = math.log %988 : vector<8x1xf32>
    %990 = vector.broadcast %989 : vector<8x1xf32> to vector<8x128xf32>
    %991 = arith.subf %985, %990 : vector<8x128xf32>
    %992 = arith.index_cast %c11_i32 : i32 to index
    %c0_260 = arith.constant 0 : index
    %c0_261 = arith.constant 0 : index
    %993 = vector.load %arg14[%992, %c0_260, %c0_261] : memref<12x8x128xf32, #tpu.memory_space<vmem>>, vector<1x8x128xf32>
    %994 = vector.shape_cast %993 : vector<1x8x128xf32> to vector<8x128xf32>
    %995 = vector.shape_cast %991 : vector<8x128xf32> to vector<1x8x128xf32>
    tpu.vector_store %arg14[%992, %c0_260, %c0_261], %995 {strides = array<i32>} : memref<12x8x128xf32, #tpu.memory_space<vmem>>, vector<1x8x128xf32>,
    %c12_i32 = arith.constant 12 : i32
    %c0_262 = arith.constant 0 : index
    %c0_263 = arith.constant 0 : index
    %996 = vector.load %arg15[%c0_262, %c0_263] : memref<8x32xf32, #tpu.memory_space<vmem>>, vector<8x32xf32>
    tpu.vector_store %arg15[%c0_262, %c0_263], %977 {strides = array<i32>} : memref<8x32xf32, #tpu.memory_space<vmem>>, vector<8x32xf32>,
    return
  }
  func.func @transform_0(%arg0: i32) -> (i32, i32, i32) {
    %c0_i32 = arith.constant 0 : i32
    %c0_i32_0 = arith.constant 0 : i32
    %c0_i32_1 = arith.constant 0 : i32
    return %c0_i32, %arg0, %c0_i32_0 : i32, i32, i32
  }
  func.func @transform_1(%arg0: i32) -> (i32, i32) {
    %c0_i32 = arith.constant 0 : i32
    %c0_i32_0 = arith.constant 0 : i32
    %c0_i32_1 = arith.constant 0 : i32
    return %c0_i32, %c0_i32_0 : i32, i32
  }
  func.func @transform_2(%arg0: i32) -> (i32, i32) {
    %c0_i32 = arith.constant 0 : i32
    %c0_i32_0 = arith.constant 0 : i32
    return %arg0, %c0_i32 : i32, i32
  }
  func.func @transform_3(%arg0: i32) -> (i32, i32) {
    %c0_i32 = arith.constant 0 : i32
    %c0_i32_0 = arith.constant 0 : i32
    %c0_i32_1 = arith.constant 0 : i32
    return %c0_i32, %c0_i32_0 : i32, i32
  }
  func.func @transform_4(%arg0: i32) -> (i32, i32) {
    %c0_i32 = arith.constant 0 : i32
    %c0_i32_0 = arith.constant 0 : i32
    %c0_i32_1 = arith.constant 0 : i32
    return %c0_i32, %c0_i32_0 : i32, i32
  }
  func.func @transform_5(%arg0: i32) -> (i32, i32) {
    %c0_i32 = arith.constant 0 : i32
    %c0_i32_0 = arith.constant 0 : i32
    %c0_i32_1 = arith.constant 0 : i32
    return %c0_i32, %c0_i32_0 : i32, i32
  }
  func.func @transform_6(%arg0: i32) -> (i32, i32) {
    %c0_i32 = arith.constant 0 : i32
    %c0_i32_0 = arith.constant 0 : i32
    %c0_i32_1 = arith.constant 0 : i32
    return %c0_i32, %c0_i32_0 : i32, i32
  }
  func.func @transform_7(%arg0: i32) -> (i32, i32) {
    %c0_i32 = arith.constant 0 : i32
    %c0_i32_0 = arith.constant 0 : i32
    %c0_i32_1 = arith.constant 0 : i32
    return %c0_i32, %c0_i32_0 : i32, i32
  }
  func.func @transform_8(%arg0: i32) -> (i32, i32) {
    %c0_i32 = arith.constant 0 : i32
    %c0_i32_0 = arith.constant 0 : i32
    %c0_i32_1 = arith.constant 0 : i32
    return %c0_i32, %c0_i32_0 : i32, i32
  }
  func.func @transform_9(%arg0: i32) -> (i32, i32) {
    %c0_i32 = arith.constant 0 : i32
    %c0_i32_0 = arith.constant 0 : i32
    %c0_i32_1 = arith.constant 0 : i32
    return %c0_i32, %c0_i32_0 : i32, i32
  }
  func.func @transform_10(%arg0: i32) -> (i32, i32) {
    %c0_i32 = arith.constant 0 : i32
    %c0_i32_0 = arith.constant 0 : i32
    %c0_i32_1 = arith.constant 0 : i32
    return %c0_i32, %c0_i32_0 : i32, i32
  }
  func.func @transform_11(%arg0: i32) -> (i32, i32) {
    %c0_i32 = arith.constant 0 : i32
    %c0_i32_0 = arith.constant 0 : i32
    %c0_i32_1 = arith.constant 0 : i32
    return %c0_i32, %c0_i32_0 : i32, i32
  }
  func.func @transform_12(%arg0: i32) -> (i32, i32) {
    %c0_i32 = arith.constant 0 : i32
    %c0_i32_0 = arith.constant 0 : i32
    %c0_i32_1 = arith.constant 0 : i32
    return %c0_i32, %c0_i32_0 : i32, i32
  }
  func.func @transform_13(%arg0: i32) -> (i32, i32, i32) {
    %c0_i32 = arith.constant 0 : i32
    %c0_i32_0 = arith.constant 0 : i32
    %c0_i32_1 = arith.constant 0 : i32
    return %c0_i32, %arg0, %c0_i32_0 : i32, i32, i32
  }
  func.func @transform_14(%arg0: i32) -> (i32, i32) {
    %c0_i32 = arith.constant 0 : i32
    %c0_i32_0 = arith.constant 0 : i32
    return %arg0, %c0_i32 : i32, i32
  }
  func.func @transform_15(%arg0: i32) -> (i32, i32, i32) {
    %c0_i32 = arith.constant 0 : i32
    %c0_i32_0 = arith.constant 0 : i32
    %c0_i32_1 = arith.constant 0 : i32
    return %c0_i32, %arg0, %c0_i32_0 : i32, i32, i32
  }
}

</mosaic_0001>

<llo_original>
// kernel: attn_decoder_decode.1
$region0: #{attn_decoder_decode.1}
  #allocation0 [shape = 'u32[]', space=smem, size = 0x4, offset = 0x4, fixed_abs, tag = 'smem constant byte address 0x4 - core index']
  #allocation1 [shape = 'u32[144,128]{1,0:T(1,128)}', space=vmem, size = 0x12000, scoped, tag = 'internal scratch']
  %s0 = inlined_call_operand.vmem [shape: f32[12,16,32], index: 0, kind: input, shape index: {}]
  %s1 = inlined_call_operand.vmem [shape: bf16[128,32], index: 1, kind: input, shape index: {}]
  %s2 = inlined_call_operand.vmem [shape: f32[16,32], index: 2, kind: input, shape index: {}]
  %s3 = inlined_call_operand.vmem [shape: bf16[64,128], index: 3, kind: input, shape index: {}]
  %s4 = inlined_call_operand.vmem [shape: f32[1,128], index: 4, kind: input, shape index: {}]
  %s5 = inlined_call_operand.vmem [shape: bf16[64,32], index: 5, kind: input, shape index: {}]
  %s6 = inlined_call_operand.vmem [shape: f32[1,32], index: 6, kind: input, shape index: {}]
  %s7 = inlined_call_operand.vmem [shape: bf16[32,96], index: 7, kind: input, shape index: {}]
  %s8 = inlined_call_operand.vmem [shape: f32[1,96], index: 8, kind: input, shape index: {}]
  %s9 = inlined_call_operand.vmem [shape: bf16[32,96], index: 9, kind: input, shape index: {}]
  %s10 = inlined_call_operand.vmem [shape: f32[1,96], index: 10, kind: input, shape index: {}]
  %s11 = inlined_call_operand.vmem [shape: bf16[32,128], index: 11, kind: input, shape index: {}]
  %s12 = inlined_call_operand.vmem [shape: f32[1,128], index: 12, kind: input, shape index: {}]
  %s13 = inlined_call_operand.hbm [shape: f32[12,16,128], index: 13, kind: output, shape index: {0}]
  %s14 = inlined_call_operand.hbm [shape: f32[16,32], index: 14, kind: output, shape index: {1}]
  %s15 = inlined_call_operand.hbm [shape: f32[12,16,128], index: 15, kind: output, shape index: {2}]
  %16 = xla_tuple %s13, %s14, %s15
  %s17 = sld [smem:[#allocation0]]
  $region139: #{attn_decoder_decode.1} parent=0
    _
  %s19 = ssub.s32 1, %s17
  %s20 = scalar_select 0, %s19, %s17
  $region1: #{attn_decoder_decode.1} parent=0
    #allocation2 [shape = 'u8[98304]{0}', space=vmem, size = 0x18000, scoped, tag = 'input window, operand 0']
    #allocation3 [shape = 'u8[98304]{0}', space=vmem, size = 0x18000, scoped, tag = 'output window, operand 0']
    #allocation4 [shape = 's32[2]{0}', space=sflag, size = 0x8, scoped, tag = 'scoped memory for attn_decoder_decode.1']
    #allocation5 [shape = 'u8[8192]{0}', space=vmem, size = 0x2000, scoped, tag = 'output window, operand 1']
    #allocation6 [shape = 's32[2]{0}', space=sflag, size = 0x8, scoped, tag = 'scoped memory for attn_decoder_decode.1']
    #allocation7 [shape = 'u8[98304]{0}', space=vmem, size = 0x18000, scoped, tag = 'output window, operand 2']
    %21 = vsyncpa [#allocation4], 0
    %s22 = scalar_lea.sflag [#allocation4], 1
    %23 = vsyncpa %s22, 0
    %24 = vsyncpa [#allocation6], 0
    %s25 = scalar_lea.sflag [#allocation6], 1
    %26 = vsyncpa %s25, 0
    loop: start=0, step=1, limit=4
    $region2: #{attn_decoder_decode.1} parent=1 // loop_pre_header
      _
    $region3: #{attn_decoder_decode.1} parent=1 // loop_header
      %s28 = sphi 0, %s32
      %p29 = scmp.ge.s32.totalorder %s28, 4
      %s38 = sphi 0, %s40
      %s41 = sphi 0, %s38
      %s42 = sphi 0, %s41
      %s58 = sphi 0, %s42
      %s62 = sphi 0, %s62
      %s64 = sphi 0, %s62
      %s65 = sphi 0, %s64
      %s79 = sphi 0, %s65
      %s85 = sphi 0, %s87
      %s88 = sphi 0, %s85
      %s89 = sphi 0, %s88
      %s105 = sphi 0, %s89
      %s109 = sphi 0, %s109
      %s111 = sphi 0, %s109
      %s112 = sphi 0, %s111
      %s126 = sphi 0, %s112
      %s130 = sphi 0, %s130
      %s132 = sphi 0, %s130
      %s133 = sphi 0, %s132
      %s147 = sphi 0, %s133
      %s151 = sphi 0, %s151
      %s153 = sphi 0, %s151
      %s154 = sphi 0, %s153
      %s168 = sphi 0, %s154
      %s172 = sphi 0, %s172
      %s174 = sphi 0, %s172
      %s175 = sphi 0, %s174
      %s189 = sphi 0, %s175
      %s193 = sphi 0, %s193
      %s195 = sphi 0, %s193
      %s196 = sphi 0, %s195
      %s210 = sphi 0, %s196
      %s214 = sphi 0, %s214
      %s216 = sphi 0, %s214
      %s217 = sphi 0, %s216
      %s231 = sphi 0, %s217
      %s235 = sphi 0, %s235
      %s237 = sphi 0, %s235
      %s238 = sphi 0, %s237
      %s252 = sphi 0, %s238
      %s256 = sphi 0, %s256
      %s258 = sphi 0, %s256
      %s259 = sphi 0, %s258
      %s273 = sphi 0, %s259
      %s277 = sphi 0, %s277
      %s279 = sphi 0, %s277
      %s280 = sphi 0, %s279
      %s294 = sphi 0, %s280
      %s298 = sphi 0, %s298
      %s300 = sphi 0, %s298
      %s301 = sphi 0, %s300
      %s315 = sphi 0, %s301
      %s321 = sphi 0, %s323
      %s324 = sphi 0, %s321
      %s325 = sphi 0, %s324
      %s341 = sphi 0, %s325
      %s347 = sphi 0, %s349
      %s350 = sphi 0, %s347
      %s351 = sphi 0, %s350
      %s367 = sphi 0, %s351
      %s373 = sphi 0, %s375
      %s376 = sphi 0, %s373
      %s377 = sphi 0, %s376
      %s393 = sphi 0, %s377
    $region4: #{attn_decoder_decode.1} parent=1 // loop_header_branch
      %31 = sbr.rel (%p29) target = $region8
    $region5: #{attn_decoder_decode.1} parent=1 // loop_body
      %s33 = ssub.s32 %s28, 1
      %s34 = ssub.s32 %s28, 2
      %s35 = sadd.s32 %s28, 1
      %s36 = ssub.s32 %s28, %s35
      %p37 = scmp.eq.s32.totalorder %s36, 0
      %s39 = sadd.s32 %s38, 1
      %s40 = scalar_select %p37, %s38, %s39
      %p43 = pneg %p37
      %p44 = scmp.eq.s32.totalorder %s28, 1
      %p45 = por %p43, %p44
      %p46 = scmp.ne.s32.totalorder %s38, %s41
      %p47 = scmp.eq.s32.totalorder %s28, 0
      %p48 = por %p46, %p47
      %p49 = scmp.ne.s32.totalorder %s38, %s41
      %p50 = scmp.eq.s32.totalorder %s33, 1
      %p51 = por %p49, %p50
      %p52 = scmp.ne.s32.totalorder %s41, %s42
      %p53 = scmp.eq.s32.totalorder %s33, 0
      %p54 = por %p52, %p53
      %p55 = scmp.ne.s32.totalorder %s41, %s42
      %p56 = scmp.eq.s32.totalorder %s34, 1
      %p57 = por %p55, %p56
      %p59 = scmp.ne.s32.totalorder %s42, %s58
      %p60 = scmp.eq.s32.totalorder %s34, 0
      %p61 = por %p59, %p60
      %s63 = sadd.s32 %s62, 1
      %p66 = scmp.eq.s32.totalorder %s28, 1
      %p67 = scmp.ne.s32.totalorder %s62, %s64
      %p68 = scmp.eq.s32.totalorder %s28, 0
      %p69 = por %p67, %p68
      %p70 = scmp.ne.s32.totalorder %s62, %s64
      %p71 = scmp.eq.s32.totalorder %s33, 1
      %p72 = por %p70, %p71
      %p73 = scmp.ne.s32.totalorder %s64, %s65
      %p74 = scmp.eq.s32.totalorder %s33, 0
      %p75 = por %p73, %p74
      %p76 = scmp.ne.s32.totalorder %s64, %s65
      %p77 = scmp.eq.s32.totalorder %s34, 1
      %p78 = por %p76, %p77
      %p80 = scmp.ne.s32.totalorder %s65, %s79
      %p81 = scmp.eq.s32.totalorder %s34, 0
      %p82 = por %p80, %p81
      %s83 = ssub.s32 %s28, %s35
      %p84 = scmp.eq.s32.totalorder %s83, 0
      %s86 = sadd.s32 %s85, 1
      %s87 = scalar_select %p84, %s85, %s86
      %p90 = pneg %p84
      %p91 = scmp.eq.s32.totalorder %s28, 1
      %p92 = por %p90, %p91
      %p93 = scmp.ne.s32.totalorder %s85, %s88
      %p94 = scmp.eq.s32.totalorder %s28, 0
      %p95 = por %p93, %p94
      %p96 = scmp.ne.s32.totalorder %s85, %s88
      %p97 = scmp.eq.s32.totalorder %s33, 1
      %p98 = por %p96, %p97
      %p99 = scmp.ne.s32.totalorder %s88, %s89
      %p100 = scmp.eq.s32.totalorder %s33, 0
      %p101 = por %p99, %p100
      %p102 = scmp.ne.s32.totalorder %s88, %s89
      %p103 = scmp.eq.s32.totalorder %s34, 1
      %p104 = por %p102, %p103
      %p106 = scmp.ne.s32.totalorder %s89, %s105
      %p107 = scmp.eq.s32.totalorder %s34, 0
      %p108 = por %p106, %p107
      %s110 = sadd.s32 %s109, 1
      %p113 = scmp.eq.s32.totalorder %s28, 1
      %p114 = scmp.ne.s32.totalorder %s109, %s111
      %p115 = scmp.eq.s32.totalorder %s28, 0
      %p116 = por %p114, %p115
      %p117 = scmp.ne.s32.totalorder %s109, %s111
      %p118 = scmp.eq.s32.totalorder %s33, 1
      %p119 = por %p117, %p118
      %p120 = scmp.ne.s32.totalorder %s111, %s112
      %p121 = scmp.eq.s32.totalorder %s33, 0
      %p122 = por %p120, %p121
      %p123 = scmp.ne.s32.totalorder %s111, %s112
      %p124 = scmp.eq.s32.totalorder %s34, 1
      %p125 = por %p123, %p124
      %p127 = scmp.ne.s32.totalorder %s112, %s126
      %p128 = scmp.eq.s32.totalorder %s34, 0
      %p129 = por %p127, %p128
      %s131 = sadd.s32 %s130, 1
      %p134 = scmp.eq.s32.totalorder %s28, 1
      %p135 = scmp.ne.s32.totalorder %s130, %s132
      %p136 = scmp.eq.s32.totalorder %s28, 0
      %p137 = por %p135, %p136
      %p138 = scmp.ne.s32.totalorder %s130, %s132
      %p139 = scmp.eq.s32.totalorder %s33, 1
      %p140 = por %p138, %p139
      %p141 = scmp.ne.s32.totalorder %s132, %s133
      %p142 = scmp.eq.s32.totalorder %s33, 0
      %p143 = por %p141, %p142
      %p144 = scmp.ne.s32.totalorder %s132, %s133
      %p145 = scmp.eq.s32.totalorder %s34, 1
      %p146 = por %p144, %p145
      %p148 = scmp.ne.s32.totalorder %s133, %s147
      %p149 = scmp.eq.s32.totalorder %s34, 0
      %p150 = por %p148, %p149
      %s152 = sadd.s32 %s151, 1
      %p155 = scmp.eq.s32.totalorder %s28, 1
      %p156 = scmp.ne.s32.totalorder %s151, %s153
      %p157 = scmp.eq.s32.totalorder %s28, 0
      %p158 = por %p156, %p157
      %p159 = scmp.ne.s32.totalorder %s151, %s153
      %p160 = scmp.eq.s32.totalorder %s33, 1
      %p161 = por %p159, %p160
      %p162 = scmp.ne.s32.totalorder %s153, %s154
      %p163 = scmp.eq.s32.totalorder %s33, 0
      %p164 = por %p162, %p163
      %p165 = scmp.ne.s32.totalorder %s153, %s154
      %p166 = scmp.eq.s32.totalorder %s34, 1
      %p167 = por %p165, %p166
      %p169 = scmp.ne.s32.totalorder %s154, %s168
      %p170 = scmp.eq.s32.totalorder %s34, 0
      %p171 = por %p169, %p170
      %s173 = sadd.s32 %s172, 1
      %p176 = scmp.eq.s32.totalorder %s28, 1
      %p177 = scmp.ne.s32.totalorder %s172, %s174
      %p178 = scmp.eq.s32.totalorder %s28, 0
      %p179 = por %p177, %p178
      %p180 = scmp.ne.s32.totalorder %s172, %s174
      %p181 = scmp.eq.s32.totalorder %s33, 1
      %p182 = por %p180, %p181
      %p183 = scmp.ne.s32.totalorder %s174, %s175
      %p184 = scmp.eq.s32.totalorder %s33, 0
      %p185 = por %p183, %p184
      %p186 = scmp.ne.s32.totalorder %s174, %s175
      %p187 = scmp.eq.s32.totalorder %s34, 1
      %p188 = por %p186, %p187
      %p190 = scmp.ne.s32.totalorder %s175, %s189
      %p191 = scmp.eq.s32.totalorder %s34, 0
      %p192 = por %p190, %p191
      %s194 = sadd.s32 %s193, 1
      %p197 = scmp.eq.s32.totalorder %s28, 1
      %p198 = scmp.ne.s32.totalorder %s193, %s195
      %p199 = scmp.eq.s32.totalorder %s28, 0
      %p200 = por %p198, %p199
      %p201 = scmp.ne.s32.totalorder %s193, %s195
      %p202 = scmp.eq.s32.totalorder %s33, 1
      %p203 = por %p201, %p202
      %p204 = scmp.ne.s32.totalorder %s195, %s196
      %p205 = scmp.eq.s32.totalorder %s33, 0
      %p206 = por %p204, %p205
      %p207 = scmp.ne.s32.totalorder %s195, %s196
      %p208 = scmp.eq.s32.totalorder %s34, 1
      %p209 = por %p207, %p208
      %p211 = scmp.ne.s32.totalorder %s196, %s210
      %p212 = scmp.eq.s32.totalorder %s34, 0
      %p213 = por %p211, %p212
      %s215 = sadd.s32 %s214, 1
      %p218 = scmp.eq.s32.totalorder %s28, 1
      %p219 = scmp.ne.s32.totalorder %s214, %s216
      %p220 = scmp.eq.s32.totalorder %s28, 0
      %p221 = por %p219, %p220
      %p222 = scmp.ne.s32.totalorder %s214, %s216
      %p223 = scmp.eq.s32.totalorder %s33, 1
      %p224 = por %p222, %p223
      %p225 = scmp.ne.s32.totalorder %s216, %s217
      %p226 = scmp.eq.s32.totalorder %s33, 0
      %p227 = por %p225, %p226
      %p228 = scmp.ne.s32.totalorder %s216, %s217
      %p229 = scmp.eq.s32.totalorder %s34, 1
      %p230 = por %p228, %p229
      %p232 = scmp.ne.s32.totalorder %s217, %s231
      %p233 = scmp.eq.s32.totalorder %s34, 0
      %p234 = por %p232, %p233
      %s236 = sadd.s32 %s235, 1
      %p239 = scmp.eq.s32.totalorder %s28, 1
      %p240 = scmp.ne.s32.totalorder %s235, %s237
      %p241 = scmp.eq.s32.totalorder %s28, 0
      %p242 = por %p240, %p241
      %p243 = scmp.ne.s32.totalorder %s235, %s237
      %p244 = scmp.eq.s32.totalorder %s33, 1
      %p245 = por %p243, %p244
      %p246 = scmp.ne.s32.totalorder %s237, %s238
      %p247 = scmp.eq.s32.totalorder %s33, 0
      %p248 = por %p246, %p247
      %p249 = scmp.ne.s32.totalorder %s237, %s238
      %p250 = scmp.eq.s32.totalorder %s34, 1
      %p251 = por %p249, %p250
      %p253 = scmp.ne.s32.totalorder %s238, %s252
      %p254 = scmp.eq.s32.totalorder %s34, 0
      %p255 = por %p253, %p254
      %s257 = sadd.s32 %s256, 1
      %p260 = scmp.eq.s32.totalorder %s28, 1
      %p261 = scmp.ne.s32.totalorder %s256, %s258
      %p262 = scmp.eq.s32.totalorder %s28, 0
      %p263 = por %p261, %p262
      %p264 = scmp.ne.s32.totalorder %s256, %s258
      %p265 = scmp.eq.s32.totalorder %s33, 1
      %p266 = por %p264, %p265
      %p267 = scmp.ne.s32.totalorder %s258, %s259
      %p268 = scmp.eq.s32.totalorder %s33, 0
      %p269 = por %p267, %p268
      %p270 = scmp.ne.s32.totalorder %s258, %s259
      %p271 = scmp.eq.s32.totalorder %s34, 1
      %p272 = por %p270, %p271
      %p274 = scmp.ne.s32.totalorder %s259, %s273
      %p275 = scmp.eq.s32.totalorder %s34, 0
      %p276 = por %p274, %p275
      %s278 = sadd.s32 %s277, 1
      %p281 = scmp.eq.s32.totalorder %s28, 1
      %p282 = scmp.ne.s32.totalorder %s277, %s279
      %p283 = scmp.eq.s32.totalorder %s28, 0
      %p284 = por %p282, %p283
      %p285 = scmp.ne.s32.totalorder %s277, %s279
      %p286 = scmp.eq.s32.totalorder %s33, 1
      %p287 = por %p285, %p286
      %p288 = scmp.ne.s32.totalorder %s279, %s280
      %p289 = scmp.eq.s32.totalorder %s33, 0
      %p290 = por %p288, %p289
      %p291 = scmp.ne.s32.totalorder %s279, %s280
      %p292 = scmp.eq.s32.totalorder %s34, 1
      %p293 = por %p291, %p292
      %p295 = scmp.ne.s32.totalorder %s280, %s294
      %p296 = scmp.eq.s32.totalorder %s34, 0
      %p297 = por %p295, %p296
      %s299 = sadd.s32 %s298, 1
      %p302 = scmp.eq.s32.totalorder %s28, 1
      %p303 = scmp.ne.s32.totalorder %s298, %s300
      %p304 = scmp.eq.s32.totalorder %s28, 0
      %p305 = por %p303, %p304
      %p306 = scmp.ne.s32.totalorder %s298, %s300
      %p307 = scmp.eq.s32.totalorder %s33, 1
      %p308 = por %p306, %p307
      %p309 = scmp.ne.s32.totalorder %s300, %s301
      %p310 = scmp.eq.s32.totalorder %s33, 0
      %p311 = por %p309, %p310
      %p312 = scmp.ne.s32.totalorder %s300, %s301
      %p313 = scmp.eq.s32.totalorder %s34, 1
      %p314 = por %p312, %p313
      %p316 = scmp.ne.s32.totalorder %s301, %s315
      %p317 = scmp.eq.s32.totalorder %s34, 0
      %p318 = por %p316, %p317
      %s319 = ssub.s32 %s28, %s35
      %p320 = scmp.eq.s32.totalorder %s319, 0
      %s322 = sadd.s32 %s321, 1
      %s323 = scalar_select %p320, %s321, %s322
      %p326 = pneg %p320
      %p327 = scmp.eq.s32.totalorder %s28, 1
      %p328 = por %p326, %p327
      %p329 = scmp.ne.s32.totalorder %s321, %s324
      %p330 = scmp.eq.s32.totalorder %s28, 0
      %p331 = por %p329, %p330
      %p332 = scmp.ne.s32.totalorder %s321, %s324
      %p333 = scmp.eq.s32.totalorder %s33, 1
      %p334 = por %p332, %p333
      %p335 = scmp.ne.s32.totalorder %s324, %s325
      %p336 = scmp.eq.s32.totalorder %s33, 0
      %p337 = por %p335, %p336
      %p338 = scmp.ne.s32.totalorder %s324, %s325
      %p339 = scmp.eq.s32.totalorder %s34, 1
      %p340 = por %p338, %p339
      %p342 = scmp.ne.s32.totalorder %s325, %s341
      %p343 = scmp.eq.s32.totalorder %s34, 0
      %p344 = por %p342, %p343
      %s345 = ssub.s32 %s28, %s35
      %p346 = scmp.eq.s32.totalorder %s345, 0
      %s348 = sadd.s32 %s347, 1
      %s349 = scalar_select %p346, %s347, %s348
      %p352 = pneg %p346
      %p353 = scmp.eq.s32.totalorder %s28, 1
      %p354 = por %p352, %p353
      %p355 = scmp.ne.s32.totalorder %s347, %s350
      %p356 = scmp.eq.s32.totalorder %s28, 0
      %p357 = por %p355, %p356
      %p358 = scmp.ne.s32.totalorder %s347, %s350
      %p359 = scmp.eq.s32.totalorder %s33, 1
      %p360 = por %p358, %p359
      %p361 = scmp.ne.s32.totalorder %s350, %s351
      %p362 = scmp.eq.s32.totalorder %s33, 0
      %p363 = por %p361, %p362
      %p364 = scmp.ne.s32.totalorder %s350, %s351
      %p365 = scmp.eq.s32.totalorder %s34, 1
      %p366 = por %p364, %p365
      %p368 = scmp.ne.s32.totalorder %s351, %s367
      %p369 = scmp.eq.s32.totalorder %s34, 0
      %p370 = por %p368, %p369
      %s371 = ssub.s32 %s28, %s35
      %p372 = scmp.eq.s32.totalorder %s371, 0
      %s374 = sadd.s32 %s373, 1
      %s375 = scalar_select %p372, %s373, %s374
      %p378 = pneg %p372
      %p379 = scmp.eq.s32.totalorder %s28, 1
      %p380 = por %p378, %p379
      %p381 = scmp.ne.s32.totalorder %s373, %s376
      %p382 = scmp.eq.s32.totalorder %s28, 0
      %p383 = por %p381, %p382
      %p384 = scmp.ne.s32.totalorder %s373, %s376
      %p385 = scmp.eq.s32.totalorder %s33, 1
      %p386 = por %p384, %p385
      %p387 = scmp.ne.s32.totalorder %s376, %s377
      %p388 = scmp.eq.s32.totalorder %s33, 0
      %p389 = por %p387, %p388
      %p390 = scmp.ne.s32.totalorder %s376, %s377
      %p391 = scmp.eq.s32.totalorder %s34, 1
      %p392 = por %p390, %p391
      %p394 = scmp.ne.s32.totalorder %s377, %s393
      %p395 = scmp.eq.s32.totalorder %s34, 0
      %p396 = por %p394, %p395
      %p397 = scmp.le.s32.totalorder 1, %s28
      %p398 = scmp.lt.s32.totalorder %s28, 3
      %p399 = pnand %p397, %p398
      %p400 = pneg %p399
      // Predicated region
      $region9: #{attn_decoder_decode.1} parent=5 // pred_check
        _
      $region10: #{attn_decoder_decode.1} parent=5 // pred_check_branch
        %402 = sbr.rel (%p399) target = $region12
      $region11: #{attn_decoder_decode.1} parent=5 // pred_region
        %s403 = ssub.s32 %s28, 1
        // Predicated region
        $region13: #{attn_decoder_decode.1} parent=11 // pred_check
          %p404 = pneg %p75
        $region14: #{attn_decoder_decode.1} parent=11 // pred_check_branch
          %406 = sbr.rel (%p404) target = $region16
        $region15: #{attn_decoder_decode.1} parent=11 // pred_region
          _
        $region16: #{attn_decoder_decode.1} parent=11 // pred_fallthru
          _
        // Predicated region
        $region17: #{attn_decoder_decode.1} parent=11 // pred_check
          %p407 = pneg %p122
        $region18: #{attn_decoder_decode.1} parent=11 // pred_check_branch
          %409 = sbr.rel (%p407) target = $region20
        $region19: #{attn_decoder_decode.1} parent=11 // pred_region
          _
        $region20: #{attn_decoder_decode.1} parent=11 // pred_fallthru
          _
        // Predicated region
        $region21: #{attn_decoder_decode.1} parent=11 // pred_check
          %p410 = pneg %p143
        $region22: #{attn_decoder_decode.1} parent=11 // pred_check_branch
          %412 = sbr.rel (%p410) target = $region24
        $region23: #{attn_decoder_decode.1} parent=11 // pred_region
          _
        $region24: #{attn_decoder_decode.1} parent=11 // pred_fallthru
          _
        // Predicated region
        $region25: #{attn_decoder_decode.1} parent=11 // pred_check
          %p413 = pneg %p164
        $region26: #{attn_decoder_decode.1} parent=11 // pred_check_branch
          %415 = sbr.rel (%p413) target = $region28
        $region27: #{attn_decoder_decode.1} parent=11 // pred_region
          _
        $region28: #{attn_decoder_decode.1} parent=11 // pred_fallthru
          _
        // Predicated region
        $region29: #{attn_decoder_decode.1} parent=11 // pred_check
          %p416 = pneg %p185
        $region30: #{attn_decoder_decode.1} parent=11 // pred_check_branch
          %418 = sbr.rel (%p416) target = $region32
        $region31: #{attn_decoder_decode.1} parent=11 // pred_region
          _
        $region32: #{attn_decoder_decode.1} parent=11 // pred_fallthru
          _
        // Predicated region
        $region33: #{attn_decoder_decode.1} parent=11 // pred_check
          %p419 = pneg %p206
        $region34: #{attn_decoder_decode.1} parent=11 // pred_check_branch
          %421 = sbr.rel (%p419) target = $region36
        $region35: #{attn_decoder_decode.1} parent=11 // pred_region
          _
        $region36: #{attn_decoder_decode.1} parent=11 // pred_fallthru
          _
        // Predicated region
        $region37: #{attn_decoder_decode.1} parent=11 // pred_check
          %p422 = pneg %p227
        $region38: #{attn_decoder_decode.1} parent=11 // pred_check_branch
          %424 = sbr.rel (%p422) target = $region40
        $region39: #{attn_decoder_decode.1} parent=11 // pred_region
          _
        $region40: #{attn_decoder_decode.1} parent=11 // pred_fallthru
          _
        // Predicated region
        $region41: #{attn_decoder_decode.1} parent=11 // pred_check
          %p425 = pneg %p248
        $region42: #{attn_decoder_decode.1} parent=11 // pred_check_branch
          %427 = sbr.rel (%p425) target = $region44
        $region43: #{attn_decoder_decode.1} parent=11 // pred_region
          _
        $region44: #{attn_decoder_decode.1} parent=11 // pred_fallthru
          _
        // Predicated region
        $region45: #{attn_decoder_decode.1} parent=11 // pred_check
          %p428 = pneg %p269
        $region46: #{attn_decoder_decode.1} parent=11 // pred_check_branch
          %430 = sbr.rel (%p428) target = $region48
        $region47: #{attn_decoder_decode.1} parent=11 // pred_region
          _
        $region48: #{attn_decoder_decode.1} parent=11 // pred_fallthru
          _
        // Predicated region
        $region49: #{attn_decoder_decode.1} parent=11 // pred_check
          %p431 = pneg %p290
        $region50: #{attn_decoder_decode.1} parent=11 // pred_check_branch
          %433 = sbr.rel (%p431) target = $region52
        $region51: #{attn_decoder_decode.1} parent=11 // pred_region
          _
        $region52: #{attn_decoder_decode.1} parent=11 // pred_fallthru
          _
        // Predicated region
        $region53: #{attn_decoder_decode.1} parent=11 // pred_check
          %p434 = pneg %p311
        $region54: #{attn_decoder_decode.1} parent=11 // pred_check_branch
          %436 = sbr.rel (%p434) target = $region56
        $region55: #{attn_decoder_decode.1} parent=11 // pred_region
          _
        $region56: #{attn_decoder_decode.1} parent=11 // pred_fallthru
          _
      $region12: #{attn_decoder_decode.1} parent=5 // pred_fallthru
        _
      %p437 = scmp.lt.s32.totalorder %s28, 2
      // Predicated region
      $region57: #{attn_decoder_decode.1} parent=5 // pred_check
        %p438 = pneg %p437
      $region58: #{attn_decoder_decode.1} parent=5 // pred_check_branch
        %440 = sbr.rel (%p438) target = $region60
      $region59: #{attn_decoder_decode.1} parent=5 // pred_region
        // Predicated region
        $region61: #{attn_decoder_decode.1} parent=59 // pred_check
          %p441 = pneg %p48
        $region62: #{attn_decoder_decode.1} parent=59 // pred_check_branch
          %443 = sbr.rel (%p441) target = $region64
        $region63: #{attn_decoder_decode.1} parent=59 // pred_region
          %s444 = sand.u32 %s38, 1
          %s445 = sand.u32 %s38, 1
          %s446 = smul.addr %s445, 96
          %s447 = scalar_lea.vmem [#allocation2], %s446
          %s448 = smul.addr %s28, 8
          %s449 = scalar_lea.vmem %s0, %s448
          // Predicated region
          $region65: #{attn_decoder_decode.1} parent=63 // pred_check
            _
          $region66: #{attn_decoder_decode.1} parent=63 // pred_check_branch
            %451 = sbr.rel (0) target = $region68
          $region67: #{attn_decoder_decode.1} parent=63 // pred_region
            // Predicated region
            $region69: #{attn_decoder_decode.1} parent=67 // pred_check
              _
            $region70: #{attn_decoder_decode.1} parent=67 // pred_check_branch
              %453 = sbr.rel (0) target = $region72
            $region71: #{attn_decoder_decode.1} parent=67 // pred_region
              // Predicated region
              $region84: #{attn_decoder_decode.1} parent=71 // pred_check
                _
              $region85: #{attn_decoder_decode.1} parent=71 // pred_check_branch
                %490 = sbr.rel (0) target = $region87
              $region86: #{attn_decoder_decode.1} parent=71 // pred_region
                loop: start=0, step=1, limit=1
                $region88: #{attn_decoder_decode.1} parent=86 // loop_pre_header
                  _
                $region89: #{attn_decoder_decode.1} parent=86 // loop_header
                  %s492 = sphi 0, %s496
                  %p493 = scmp.ge.s32.totalorder %s492, 1
                  %s497 = sphi %s449, %s449
                  %s498 = sphi %s447, %s447
                $region90: #{attn_decoder_decode.1} parent=86 // loop_header_branch
                  %495 = sbr.rel (%p493) target = $region94
                $region91: #{attn_decoder_decode.1} parent=86 // loop_body
                  %v499 = vld [vmem:[%s497] sm:$0xff]
                  %500 = vst [vmem:[%s498] sm:$0xff] %v499
                  %v501 = vld [vmem:[%s497 + $0x10] sm:$0xff]
                  %502 = vst [vmem:[%s498 + $0x8] sm:$0xff] %v501
                  %v503 = vld [vmem:[%s497 + $0x20] sm:$0xff]
                  %504 = vst [vmem:[%s498 + $0x10] sm:$0xff] %v503
                  %v505 = vld [vmem:[%s497 + $0x30] sm:$0xff]
                  %506 = vst [vmem:[%s498 + $0x18] sm:$0xff] %v505
                  %v507 = vld [vmem:[%s497 + $0x40] sm:$0xff]
                  %508 = vst [vmem:[%s498 + $0x20] sm:$0xff] %v507
                  %v509 = vld [vmem:[%s497 + $0x50] sm:$0xff]
                  %510 = vst [vmem:[%s498 + $0x28] sm:$0xff] %v509
                  %v511 = vld [vmem:[%s497 + $0x60] sm:$0xff]
                  %512 = vst [vmem:[%s498 + $0x30] sm:$0xff] %v511
                  %v513 = vld [vmem:[%s497 + $0x70] sm:$0xff]
                  %514 = vst [vmem:[%s498 + $0x38] sm:$0xff] %v513
                  %v515 = vld [vmem:[%s497 + $0x80] sm:$0xff]
                  %516 = vst [vmem:[%s498 + $0x40] sm:$0xff] %v515
                  %v517 = vld [vmem:[%s497 + $0x90] sm:$0xff]
                  %518 = vst [vmem:[%s498 + $0x48] sm:$0xff] %v517
                  %v519 = vld [vmem:[%s497 + $0xa0] sm:$0xff]
                  %520 = vst [vmem:[%s498 + $0x50] sm:$0xff] %v519
                  %v521 = vld [vmem:[%s497 + $0xb0] sm:$0xff]
                  %522 = vst [vmem:[%s498 + $0x58] sm:$0xff] %v521
                $region92: #{attn_decoder_decode.1} parent=86 // loop_footer
                  %s496 = sadd.s32 1, %s492
                $region93: #{attn_decoder_decode.1} parent=86 // loop_footer_branch
                  %491 = sbr.rel target = $region89
                $region94: #{attn_decoder_decode.1} parent=86 // loop_exit
                  _
              $region87: #{attn_decoder_decode.1} parent=71 // pred_fallthru
                _
              // Predicated region
              $region95: #{attn_decoder_decode.1} parent=71 // pred_check
                _
              $region96: #{attn_decoder_decode.1} parent=71 // pred_check_branch
                %524 = sbr.rel target = $region98
              $region97: #{attn_decoder_decode.1} parent=71 // pred_region
                _
              $region98: #{attn_decoder_decode.1} parent=71 // pred_fallthru
                _
            $region72: #{attn_decoder_decode.1} parent=67 // pred_fallthru
              _
            // Predicated region
            $region73: #{attn_decoder_decode.1} parent=67 // pred_check
              _
            $region74: #{attn_decoder_decode.1} parent=67 // pred_check_branch
              %455 = sbr.rel target = $region76
            $region75: #{attn_decoder_decode.1} parent=67 // pred_region
              loop: start=0, step=1, limit=1
              $region77: #{attn_decoder_decode.1} parent=75 // loop_pre_header
                _
              $region78: #{attn_decoder_decode.1} parent=75 // loop_header
                %s458 = sphi 0, %s462
                %p459 = scmp.ge.s32.totalorder %s458, 1
                %s463 = sphi %s449, %s449
                %s464 = sphi %s447, %s447
              $region79: #{attn_decoder_decode.1} parent=75 // loop_header_branch
                %461 = sbr.rel (%p459) target = $region83
              $region80: #{attn_decoder_decode.1} parent=75 // loop_body
                %v465 = vld [vmem:[%s463] sm:$0xff]
                %466 = vst [vmem:[%s464] sm:$0xff] %v465
                %v467 = vld [vmem:[%s463 + $0x10] sm:$0xff]
                %468 = vst [vmem:[%s464 + $0x8] sm:$0xff] %v467
                %v469 = vld [vmem:[%s463 + $0x20] sm:$0xff]
                %470 = vst [vmem:[%s464 + $0x10] sm:$0xff] %v469
                %v471 = vld [vmem:[%s463 + $0x30] sm:$0xff]
                %472 = vst [vmem:[%s464 + $0x18] sm:$0xff] %v471
                %v473 = vld [vmem:[%s463 + $0x40] sm:$0xff]
                %474 = vst [vmem:[%s464 + $0x20] sm:$0xff] %v473
                %v475 = vld [vmem:[%s463 + $0x50] sm:$0xff]
                %476 = vst [vmem:[%s464 + $0x28] sm:$0xff] %v475
                %v477 = vld [vmem:[%s463 + $0x60] sm:$0xff]
                %478 = vst [vmem:[%s464 + $0x30] sm:$0xff] %v477
                %v479 = vld [vmem:[%s463 + $0x70] sm:$0xff]
                %480 = vst [vmem:[%s464 + $0x38] sm:$0xff] %v479
                %v481 = vld [vmem:[%s463 + $0x80] sm:$0xff]
                %482 = vst [vmem:[%s464 + $0x40] sm:$0xff] %v481
                %v483 = vld [vmem:[%s463 + $0x90] sm:$0xff]
                %484 = vst [vmem:[%s464 + $0x48] sm:$0xff] %v483
                %v485 = vld [vmem:[%s463 + $0xa0] sm:$0xff]
                %486 = vst [vmem:[%s464 + $0x50] sm:$0xff] %v485
                %v487 = vld [vmem:[%s463 + $0xb0] sm:$0xff]
                %488 = vst [vmem:[%s464 + $0x58] sm:$0xff] %v487
              $region81: #{attn_decoder_decode.1} parent=75 // loop_footer
                %s462 = sadd.s32 1, %s458
              $region82: #{attn_decoder_decode.1} parent=75 // loop_footer_branch
                %457 = sbr.rel target = $region78
              $region83: #{attn_decoder_decode.1} parent=75 // loop_exit
                _
            $region76: #{attn_decoder_decode.1} parent=67 // pred_fallthru
              _
          $region68: #{attn_decoder_decode.1} parent=63 // pred_fallthru
            _
          %525 = vnop
        $region64: #{attn_decoder_decode.1} parent=59 // pred_fallthru
          _
        // Predicated region
        $region99: #{attn_decoder_decode.1} parent=59 // pred_check
          %p526 = pneg %p95
        $region100: #{attn_decoder_decode.1} parent=59 // pred_check_branch
          %528 = sbr.rel (%p526) target = $region102
        $region101: #{attn_decoder_decode.1} parent=59 // pred_region
          %p529 = scmp.lt.s32.totalorder %s28, 1
          %s530 = scalar_select %p529, %s28, 1
          %s531 = smul.addr %s530, 8
          %s532 = scalar_lea.vmem %s2, %s531
        $region102: #{attn_decoder_decode.1} parent=59 // pred_fallthru
          _
      $region60: #{attn_decoder_decode.1} parent=5 // pred_fallthru
        _
      %p533 = scmp.le.s32.totalorder 1, %s28
      %p534 = scmp.lt.s32.totalorder %s28, 3
      %p535 = pnand %p533, %p534
      %p536 = pneg %p535
      // Predicated region
      $region103: #{attn_decoder_decode.1} parent=5 // pred_check
        _
      $region104: #{attn_decoder_decode.1} parent=5 // pred_check_branch
        %538 = sbr.rel (%p535) target = $region106
      $region105: #{attn_decoder_decode.1} parent=5 // pred_region
        %s539 = ssub.s32 %s28, 1
        %s540 = sand.u32 %s41, 1
        %s541 = sand.u32 %s41, 1
        %s542 = smul.addr %s541, 96
        %s543 = scalar_lea.vmem [#allocation2], %s542
        // Predicated region
        $region107: #{attn_decoder_decode.1} parent=105 // pred_check
          %p544 = pneg %p54
        $region108: #{attn_decoder_decode.1} parent=105 // pred_check_branch
          %546 = sbr.rel (%p544) target = $region110
        $region109: #{attn_decoder_decode.1} parent=105 // pred_region
          _
        $region110: #{attn_decoder_decode.1} parent=105 // pred_fallthru
          _
        %s547 = sand.u32 %s41, 1
        %s548 = sand.u32 %s41, 1
        %s549 = smul.addr %s548, 96
        %s550 = scalar_lea.vmem [#allocation2], %s549
        %p551 = pneg %p54
        %p552 = pneg %p51
        %p553 = pneg %p75
        %p554 = pneg %p72
        %p555 = scmp.lt.s32.totalorder %s33, 1
        %s556 = scalar_select %p555, %s33, 1
        %s557 = smul.addr %s556, 8
        %s558 = scalar_lea.vmem %s2, %s557
        %p559 = pneg %p101
        %p560 = pneg %p98
        %p561 = pneg %p122
        %p562 = pneg %p119
        %p563 = pneg %p143
        %p564 = pneg %p140
        %p565 = pneg %p164
        %p566 = pneg %p161
        %p567 = pneg %p185
        %p568 = pneg %p182
        %p569 = pneg %p206
        %p570 = pneg %p203
        %p571 = pneg %p227
        %p572 = pneg %p224
        %p573 = pneg %p248
        %p574 = pneg %p245
        %p575 = pneg %p269
        %p576 = pneg %p266
        %p577 = pneg %p290
        %p578 = pneg %p287
        %p579 = pneg %p311
        %p580 = pneg %p308
        %p581 = pneg %p337
        %p582 = pneg %p334
        %s583 = sand.u32 %s324, 1
        %s584 = scalar_lea.sflag [#allocation4], %s583
        %s585 = sand.u32 %s324, 1
        %s586 = smul.addr %s585, 96
        %s587 = scalar_lea.vmem [#allocation3], %s586
        %p588 = pneg %p363
        %p589 = pneg %p360
        %s590 = sand.u32 %s33, 1
        %s591 = scalar_lea.sflag [#allocation6], %s590
        %s592 = sand.u32 %s350, 1
        %s593 = smul.addr %s592, 8
        %s594 = scalar_lea.vmem [#allocation5], %s593
        %p595 = pneg %p389
        %p596 = pneg %p386
        %s597 = sand.u32 %s33, 1
        %s598 = scalar_lea.sflag [#allocation6], %s597
        %s599 = sand.u32 %s376, 1
        %s600 = smul.addr %s599, 96
        %s601 = scalar_lea.vmem [#allocation7], %s600
        %p602 = scmp.lt.s32.totalorder %s33, 1
        %s603 = scalar_select %p602, %s33, 1
        %s604 = smul.addr %s603, 8
        %s605 = scalar_lea.vmem %s2, %s604
        %v607 = vld [vmem:[%s1] sm:$0xf]
        %v608 = vld [vmem:[%s1 + $0x4] sm:$0xf]
        %v609 = vld [vmem:[%s1 + $0x8] sm:$0xf]
        %v610 = vld [vmem:[%s1 + $0xc] sm:$0xf]
        %v611 = vld [vmem:[%s1 + $0x10] sm:$0xf]
        %v612 = vld [vmem:[%s1 + $0x14] sm:$0xf]
        %v613 = vld [vmem:[%s1 + $0x18] sm:$0xf]
        %v614 = vld [vmem:[%s1 + $0x1c] sm:$0xf]
        %v615 = vld [vmem:[%s1 + $0x20] sm:$0xf]
        %v616 = vld [vmem:[%s1 + $0x24] sm:$0xf]
        %v617 = vld [vmem:[%s1 + $0x28] sm:$0xf]
        %v618 = vld [vmem:[%s1 + $0x2c] sm:$0xf]
        %v619 = vld [vmem:[%s1 + $0x30] sm:$0xf]
        %v620 = vld [vmem:[%s1 + $0x34] sm:$0xf]
        %v621 = vld [vmem:[%s1 + $0x38] sm:$0xf]
        %v622 = vld [vmem:[%s1 + $0x3c] sm:$0xf]
        %v623 = vld [vmem:[%s3] sm:$0xf]
        %v624 = vld [vmem:[%s3 + $0x4] sm:$0xf]
        %v625 = vld [vmem:[%s3 + $0x8] sm:$0xf]
        %v626 = vld [vmem:[%s3 + $0xc] sm:$0xf]
        %v627 = vld [vmem:[%s3 + $0x10] sm:$0xf]
        %v628 = vld [vmem:[%s3 + $0x14] sm:$0xf]
        %v629 = vld [vmem:[%s3 + $0x18] sm:$0xf]
        %v630 = vld [vmem:[%s3 + $0x1c] sm:$0xf]
        %v631 = vld [vmem:[%s4] sm:$0x1]
        %v632 = vld [vmem:[%s5] sm:$0xf]
        %v633 = vld [vmem:[%s5 + $0x4] sm:$0xf]
        %v634 = vld [vmem:[%s5 + $0x8] sm:$0xf]
        %v635 = vld [vmem:[%s5 + $0xc] sm:$0xf]
        %v636 = vld [vmem:[%s5 + $0x10] sm:$0xf]
        %v637 = vld [vmem:[%s5 + $0x14] sm:$0xf]
        %v638 = vld [vmem:[%s5 + $0x18] sm:$0xf]
        %v639 = vld [vmem:[%s5 + $0x1c] sm:$0xf]
        %v640 = vld [vmem:[%s6] sm:$0x1]
        %v641 = vld [vmem:[%s7] sm:$0xf]
        %v642 = vld [vmem:[%s7 + $0x4] sm:$0xf]
        %v643 = vld [vmem:[%s7 + $0x8] sm:$0xf]
        %v644 = vld [vmem:[%s7 + $0xc] sm:$0xf]
        %v645 = vld [vmem:[%s8] sm:$0x1]
        %v646 = vld [vmem:[%s9] sm:$0xf]
        %v647 = vld [vmem:[%s9 + $0x4] sm:$0xf]
        %v648 = vld [vmem:[%s9 + $0x8] sm:$0xf]
        %v649 = vld [vmem:[%s9 + $0xc] sm:$0xf]
        %v650 = vld [vmem:[%s10] sm:$0x1]
        %v651 = vld [vmem:[%s11] sm:$0xf]
        %v652 = vld [vmem:[%s11 + $0x4] sm:$0xf]
        %v653 = vld [vmem:[%s11 + $0x8] sm:$0xf]
        %v654 = vld [vmem:[%s11 + $0xc] sm:$0xf]
        %v655 = vld [vmem:[%s12] sm:$0x1]
        %v656 = vld [vmem:[%s605] sm:$0xff]
        %v657 = vpack.c.bf16 %v656, %v656
        %v658 = vld [vmem:[%s543] sm:$0xff]
        %v659 = vpack.c.bf16 %v658, %v658
        %661 = vrot.lane.b32.xlu0 %v657, 32
        %v662 = vpop.permute.xlu0 %661
        %vm663 = vcmask 261120
        %v666 = vsel %vm663, %v659, %v662
        %v668 = vlaneseq
        %v669 = vshrl.u32 %v668, 7
        %v670 = vsub.s32 0, %v669
        %v671 = vrot.slane %v631, %v670
        %v681 = vunpack.c.l.b16 %v623
        %v682 = vunpack.c.l.b16 %v624
        %v683 = vunpack.c.l.b16 %v625
        %v684 = vunpack.c.l.b16 %v626
        %v685 = vunpack.c.l.b16 %v627
        %v686 = vunpack.c.l.b16 %v628
        %v687 = vunpack.c.l.b16 %v629
        %v688 = vunpack.c.l.b16 %v630
        %v689 = vpack.c.b16 %v682, %v681
        %v690 = vpack.c.b16 %v684, %v683
        %v691 = vpack.c.b16 %v686, %v685
        %v692 = vpack.c.b16 %v688, %v687
        %vm697 = vcmask 523264
        %v698 = vsel %vm697, %v666, 0
        %700 = vmatprep.subr.bf16.mxu0 0
        %701 = vmatpush1.bf16.msra.mxu0 %v689
        %702 = vmatprep.subr.bf16.mxu0 0
        %703 = vmatpush1.bf16.msra.mxu0 %v690
        %704 = vmatprep.subr.bf16.mxu0 0
        %705 = vmatpush1.bf16.msra.mxu0 %v691
        %706 = vmatprep.subr.bf16.mxu0 0
        %707 = vmatpush1.bf16.msra.mxu0 %v692
        %708 = vmatprep.subr.bf16.mxu0 0
        %709 = vmatpush1.bf16.msra.mxu0 0
        %710 = vmatprep.subr.bf16.mxu0 0
        %711 = vmatpush1.bf16.msra.mxu0 0
        %712 = vmatprep.subr.bf16.mxu0 0
        %713 = vmatpush1.bf16.msra.mxu0 0
        %714 = vmatprep.subr.bf16.mxu0 0
        %715 = vmatpush1.bf16.msra.mxu0 0
        %716 = vmatprep.subr.bf16.mxu0 0
        %717 = vmatpush1.bf16.msra.mxu0 0
        %718 = vmatprep.subr.bf16.mxu0 0
        %719 = vmatpush1.bf16.msra.mxu0 0
        %720 = vmatprep.subr.bf16.mxu0 0
        %721 = vmatpush1.bf16.msra.mxu0 0
        %722 = vmatprep.subr.bf16.mxu0 0
        %723 = vmatpush1.bf16.msra.mxu0 0
        %724 = vmatprep.subr.bf16.mxu0 0
        %725 = vmatpush1.bf16.msra.mxu0 0
        %726 = vmatprep.subr.bf16.mxu0 0
        %727 = vmatpush1.bf16.msra.mxu0 0
        %728 = vmatprep.subr.bf16.mxu0 0
        %729 = vmatpush1.bf16.msra.mxu0 0
        %730 = vmatprep.subr.bf16.mxu0 0
        %731 = vmatpush1.bf16.msra.mxu0 0
        %732 = vmatprep.mubr.bf16.mxu0 0
        %733 = vmatmul.mubr.bf16.gmra.mrb[0].mxu0 %v698
        %v734 = vpop.f32.mrb[0].mxu0
        %v735 = vadd.f32 %v671, %v734
        %v736 = vpop.f32.mrb[0].mxu0
        %v737 = vpop.f32.mrb[0].mxu0
        %v738 = vpop.f32.mrb[0].mxu0
        %739 = vdwg.mxu0
        %740 = vmax.xlane.f32.xlu0 %v735
        %v741 = vpop.xlane.xlu0 %740
        %v742 = vsub.f32 %v735, %v741
        %v743 = vmul.f32 %v742, 1.442695
        %v744 = vpow.pop %v743
        %745 = vadd.xlane.f32.xlu0 %v744
        %v746 = vpop.xlane.xlu0 %745
        %v747 = vrcp.pop %v746
        %v748 = vmul.f32 %v744, %v747
        %749 = vst [vmem:[%s601] sm:$0xff] %v748
        %v750 = vpack.c.bf16 %v748, %v748
        %v767 = vunpack.c.l.b16 %v607
        %v768 = vunpack.c.l.b16 %v608
        %v769 = vunpack.c.l.b16 %v609
        %v770 = vunpack.c.l.b16 %v610
        %v771 = vunpack.c.l.b16 %v611
        %v772 = vunpack.c.l.b16 %v612
        %v773 = vunpack.c.l.b16 %v613
        %v774 = vunpack.c.l.b16 %v614
        %v775 = vunpack.c.l.b16 %v615
        %v776 = vunpack.c.l.b16 %v616
        %v777 = vunpack.c.l.b16 %v617
        %v778 = vunpack.c.l.b16 %v618
        %v779 = vunpack.c.l.b16 %v619
        %v780 = vunpack.c.l.b16 %v620
        %v781 = vunpack.c.l.b16 %v621
        %v782 = vunpack.c.l.b16 %v622
        %v783 = vpack.c.b16 %v768, %v767
        %v784 = vpack.c.b16 %v770, %v769
        %v785 = vpack.c.b16 %v772, %v771
        %v786 = vpack.c.b16 %v774, %v773
        %v787 = vpack.c.b16 %v776, %v775
        %v788 = vpack.c.b16 %v778, %v777
        %v789 = vpack.c.b16 %v780, %v779
        %v790 = vpack.c.b16 %v782, %v781
        %799 = vmatprep.subr.bf16.mxu0 0
        %800 = vmatpush1.bf16.msra.mxu0 %v783
        %801 = vmatprep.subr.bf16.mxu0 0
        %802 = vmatpush1.bf16.msra.mxu0 %v784
        %803 = vmatprep.subr.bf16.mxu0 0
        %804 = vmatpush1.bf16.msra.mxu0 %v785
        %805 = vmatprep.subr.bf16.mxu0 0
        %806 = vmatpush1.bf16.msra.mxu0 %v786
        %807 = vmatprep.subr.bf16.mxu0 0
        %808 = vmatpush1.bf16.msra.mxu0 %v787
        %809 = vmatprep.subr.bf16.mxu0 0
        %810 = vmatpush1.bf16.msra.mxu0 %v788
        %811 = vmatprep.subr.bf16.mxu0 0
        %812 = vmatpush1.bf16.msra.mxu0 %v789
        %813 = vmatprep.subr.bf16.mxu0 0
        %814 = vmatpush1.bf16.msra.mxu0 %v790
        %815 = vmatprep.subr.bf16.mxu0 0
        %816 = vmatpush1.bf16.msra.mxu0 0
        %817 = vmatprep.subr.bf16.mxu0 0
        %818 = vmatpush1.bf16.msra.mxu0 0
        %819 = vmatprep.subr.bf16.mxu0 0
        %820 = vmatpush1.bf16.msra.mxu0 0
        %821 = vmatprep.subr.bf16.mxu0 0
        %822 = vmatpush1.bf16.msra.mxu0 0
        %823 = vmatprep.subr.bf16.mxu0 0
        %824 = vmatpush1.bf16.msra.mxu0 0
        %825 = vmatprep.subr.bf16.mxu0 0
        %826 = vmatpush1.bf16.msra.mxu0 0
        %827 = vmatprep.subr.bf16.mxu0 0
        %828 = vmatpush1.bf16.msra.mxu0 0
        %829 = vmatprep.subr.bf16.mxu0 0
        %830 = vmatpush1.bf16.msra.mxu0 0
        %831 = vmatprep.mubr.bf16.mxu0 0
        %832 = vmatmul.mubr.bf16.gmra.mrb[0].mxu0 %v750
        %v833 = vpop.f32.mrb[0].mxu0
        %v834 = vadd.f32 0.0, %v833
        %v835 = vpop.f32.mrb[0].mxu0
        %v836 = vpop.f32.mrb[0].mxu0
        %v837 = vpop.f32.mrb[0].mxu0
        %838 = vdwg.mxu0
        %v839 = vpack.c.bf16 %v834, %v834
        %841 = vrot.lane.b32.xlu0 %v839, 32
        %v842 = vpop.permute.xlu0 %841
        %v844 = vsel %vm663, %v659, %v842
        %v846 = vlaneseq
        %v847 = vshrl.u32 %v846, 7
        %v848 = vsub.s32 0, %v847
        %v849 = vrot.slane %v640, %v848
        %v859 = vunpack.c.l.b16 %v632
        %v860 = vunpack.c.l.b16 %v633
        %v861 = vunpack.c.l.b16 %v634
        %v862 = vunpack.c.l.b16 %v635
        %v863 = vunpack.c.l.b16 %v636
        %v864 = vunpack.c.l.b16 %v637
        %v865 = vunpack.c.l.b16 %v638
        %v866 = vunpack.c.l.b16 %v639
        %v867 = vpack.c.b16 %v860, %v859
        %v868 = vpack.c.b16 %v862, %v861
        %v869 = vpack.c.b16 %v864, %v863
        %v870 = vpack.c.b16 %v866, %v865
        %v875 = vsel %vm697, %v844, 0
        %877 = vmatprep.subr.bf16.mxu0 0
        %878 = vmatpush1.bf16.msra.mxu0 %v867
        %879 = vmatprep.subr.bf16.mxu0 0
        %880 = vmatpush1.bf16.msra.mxu0 %v868
        %881 = vmatprep.subr.bf16.mxu0 0
        %882 = vmatpush1.bf16.msra.mxu0 %v869
        %883 = vmatprep.subr.bf16.mxu0 0
        %884 = vmatpush1.bf16.msra.mxu0 %v870
        %885 = vmatprep.subr.bf16.mxu0 0
        %886 = vmatpush1.bf16.msra.mxu0 0
        %887 = vmatprep.subr.bf16.mxu0 0
        %888 = vmatpush1.bf16.msra.mxu0 0
        %889 = vmatprep.subr.bf16.mxu0 0
        %890 = vmatpush1.bf16.msra.mxu0 0
        %891 = vmatprep.subr.bf16.mxu0 0
        %892 = vmatpush1.bf16.msra.mxu0 0
        %893 = vmatprep.subr.bf16.mxu0 0
        %894 = vmatpush1.bf16.msra.mxu0 0
        %895 = vmatprep.subr.bf16.mxu0 0
        %896 = vmatpush1.bf16.msra.mxu0 0
        %897 = vmatprep.subr.bf16.mxu0 0
        %898 = vmatpush1.bf16.msra.mxu0 0
        %899 = vmatprep.subr.bf16.mxu0 0
        %900 = vmatpush1.bf16.msra.mxu0 0
        %901 = vmatprep.subr.bf16.mxu0 0
        %902 = vmatpush1.bf16.msra.mxu0 0
        %903 = vmatprep.subr.bf16.mxu0 0
        %904 = vmatpush1.bf16.msra.mxu0 0
        %905 = vmatprep.subr.bf16.mxu0 0
        %906 = vmatpush1.bf16.msra.mxu0 0
        %907 = vmatprep.subr.bf16.mxu0 0
        %908 = vmatpush1.bf16.msra.mxu0 0
        %909 = vmatprep.mubr.bf16.mxu0 0
        %910 = vmatmul.mubr.bf16.gmra.mrb[0].mxu0 %v875
        %v911 = vpop.f32.mrb[0].mxu0
        %v912 = vadd.f32 %v849, %v911
        %v913 = vpop.f32.mrb[0].mxu0
        %v914 = vpop.f32.mrb[0].mxu0
        %v915 = vpop.f32.mrb[0].mxu0
        %916 = vdwg.mxu0
        %v917 = vmax.f32 %v912, 0.0
        %v918 = vpack.c.bf16 %v917, %v917
        %v920 = vlaneseq
        %v921 = vshrl.u32 %v920, 7
        %v922 = vsub.s32 0, %v921
        %v923 = vrot.slane %v645, %v922
        %v929 = vunpack.c.l.b16 %v641
        %v930 = vunpack.c.l.b16 %v642
        %v931 = vunpack.c.l.b16 %v643
        %v932 = vunpack.c.l.b16 %v644
        %v933 = vpack.c.b16 %v930, %v929
        %v934 = vpack.c.b16 %v932, %v931
        %v938 = vsel %vm663, %v918, 0
        %940 = vmatprep.subr.bf16.mxu0 0
        %941 = vmatpush1.bf16.msra.mxu0 %v933
        %942 = vmatprep.subr.bf16.mxu0 0
        %943 = vmatpush1.bf16.msra.mxu0 %v934
        %944 = vmatprep.subr.bf16.mxu0 0
        %945 = vmatpush1.bf16.msra.mxu0 0
        %946 = vmatprep.subr.bf16.mxu0 0
        %947 = vmatpush1.bf16.msra.mxu0 0
        %948 = vmatprep.subr.bf16.mxu0 0
        %949 = vmatpush1.bf16.msra.mxu0 0
        %950 = vmatprep.subr.bf16.mxu0 0
        %951 = vmatpush1.bf16.msra.mxu0 0
        %952 = vmatprep.subr.bf16.mxu0 0
        %953 = vmatpush1.bf16.msra.mxu0 0
        %954 = vmatprep.subr.bf16.mxu0 0
        %955 = vmatpush1.bf16.msra.mxu0 0
        %956 = vmatprep.subr.bf16.mxu0 0
        %957 = vmatpush1.bf16.msra.mxu0 0
        %958 = vmatprep.subr.bf16.mxu0 0
        %959 = vmatpush1.bf16.msra.mxu0 0
        %960 = vmatprep.subr.bf16.mxu0 0
        %961 = vmatpush1.bf16.msra.mxu0 0
        %962 = vmatprep.subr.bf16.mxu0 0
        %963 = vmatpush1.bf16.msra.mxu0 0
        %964 = vmatprep.subr.bf16.mxu0 0
        %965 = vmatpush1.bf16.msra.mxu0 0
        %966 = vmatprep.subr.bf16.mxu0 0
        %967 = vmatpush1.bf16.msra.mxu0 0
        %968 = vmatprep.subr.bf16.mxu0 0
        %969 = vmatpush1.bf16.msra.mxu0 0
        %970 = vmatprep.subr.bf16.mxu0 0
        %971 = vmatpush1.bf16.msra.mxu0 0
        %972 = vmatprep.mubr.bf16.mxu0 0
        %973 = vmatmul.mubr.bf16.gmra.mrb[0].mxu0 %v938
        %v974 = vpop.f32.mrb[0].mxu0
        %v975 = vadd.f32 %v923, %v974
        %v976 = vpop.f32.mrb[0].mxu0
        %v977 = vpop.f32.mrb[0].mxu0
        %v978 = vpop.f32.mrb[0].mxu0
        %979 = vdwg.mxu0
        %v981 = vlaneseq
        %v982 = vshrl.u32 %v981, 7
        %v983 = vsub.s32 0, %v982
        %v984 = vrot.slane %v650, %v983
        %v990 = vunpack.c.l.b16 %v646
        %v991 = vunpack.c.l.b16 %v647
        %v992 = vunpack.c.l.b16 %v648
        %v993 = vunpack.c.l.b16 %v649
        %v994 = vpack.c.b16 %v991, %v990
        %v995 = vpack.c.b16 %v993, %v992
        %v999 = vsel %vm663, %v657, 0
        %1001 = vmatprep.subr.bf16.mxu0 0
        %1002 = vmatpush1.bf16.msra.mxu0 %v994
        %1003 = vmatprep.subr.bf16.mxu0 0
        %1004 = vmatpush1.bf16.msra.mxu0 %v995
        %1005 = vmatprep.subr.bf16.mxu0 0
        %1006 = vmatpush1.bf16.msra.mxu0 0
        %1007 = vmatprep.subr.bf16.mxu0 0
        %1008 = vmatpush1.bf16.msra.mxu0 0
        %1009 = vmatprep.subr.bf16.mxu0 0
        %1010 = vmatpush1.bf16.msra.mxu0 0
        %1011 = vmatprep.subr.bf16.mxu0 0
        %1012 = vmatpush1.bf16.msra.mxu0 0
        %1013 = vmatprep.subr.bf16.mxu0 0
        %1014 = vmatpush1.bf16.msra.mxu0 0
        %1015 = vmatprep.subr.bf16.mxu0 0
        %1016 = vmatpush1.bf16.msra.mxu0 0
        %1017 = vmatprep.subr.bf16.mxu0 0
        %1018 = vmatpush1.bf16.msra.mxu0 0
        %1019 = vmatprep.subr.bf16.mxu0 0
        %1020 = vmatpush1.bf16.msra.mxu0 0
        %1021 = vmatprep.subr.bf16.mxu0 0
        %1022 = vmatpush1.bf16.msra.mxu0 0
        %1023 = vmatprep.subr.bf16.mxu0 0
        %1024 = vmatpush1.bf16.msra.mxu0 0
        %1025 = vmatprep.subr.bf16.mxu0 0
        %1026 = vmatpush1.bf16.msra.mxu0 0
        %1027 = vmatprep.subr.bf16.mxu0 0
        %1028 = vmatpush1.bf16.msra.mxu0 0
        %1029 = vmatprep.subr.bf16.mxu0 0
        %1030 = vmatpush1.bf16.msra.mxu0 0
        %1031 = vmatprep.subr.bf16.mxu0 0
        %1032 = vmatpush1.bf16.msra.mxu0 0
        %1033 = vmatprep.mubr.bf16.mxu0 0
        %1034 = vmatmul.mubr.bf16.gmra.mrb[0].mxu0 %v999
        %v1035 = vpop.f32.mrb[0].mxu0
        %v1036 = vadd.f32 %v984, %v1035
        %v1037 = vpop.f32.mrb[0].mxu0
        %v1038 = vpop.f32.mrb[0].mxu0
        %v1039 = vpop.f32.mrb[0].mxu0
        %1040 = vdwg.mxu0
        %v1041 = vadd.f32 %v975, %v1036
        %v1042 = vxor.u32 %v1041, 2147483648
        %v1043 = vmul.f32 %v1042, 1.442695
        %v1044 = vpow.pop %v1043
        %v1045 = vadd.f32 %v1044, 1.0
        %v1046 = vrcp.pop %v1045
        %v1047 = vmul.f32 1.0, %v1046
        %1049 = vrot.lane.b32.xlu0 %v1036, 64
        %v1050 = vpop.permute.xlu0 %1049
        %v1052 = vmul.f32 %v1047, %v1050
        %1054 = vrot.lane.b32.xlu0 %v1052, 64
        %v1055 = vpop.permute.xlu0 %1054
        %v1057 = vadd.f32 %v975, %v1055
        %v1058 = vtanh.pop %v1057
        %v1059 = vsub.f32 1.0, %v1047
        %1061 = vrot.lane.b32.xlu0 %v1058, 96
        %v1062 = vpop.permute.xlu0 %1061
        %v1064 = vmul.f32 %v1059, %v1062
        %1066 = vrot.lane.b32.xlu0 %v656, 32
        %v1067 = vpop.permute.xlu0 %1066
        %v1069 = vmul.f32 %v1047, %v1067
        %v1070 = vadd.f32 %v1064, %v1069
        %v1071 = vpack.c.bf16 %v1070, %v1070
        %v1073 = vlaneseq
        %v1074 = vshrl.u32 %v1073, 7
        %v1075 = vsub.s32 0, %v1074
        %v1076 = vrot.slane %v655, %v1075
        %1079 = vrot.lane.b32.xlu0 %v1071, 96
        %v1080 = vpop.permute.xlu0 %1079
        %v1085 = vunpack.c.l.b16 %v651
        %v1086 = vunpack.c.l.b16 %v652
        %v1087 = vunpack.c.l.b16 %v653
        %v1088 = vunpack.c.l.b16 %v654
        %v1089 = vpack.c.b16 %v1086, %v1085
        %v1090 = vpack.c.b16 %v1088, %v1087
        %v1094 = vsel %vm663, %v1080, 0
        %1096 = vmatprep.subr.bf16.mxu0 0
        %1097 = vmatpush1.bf16.msra.mxu0 %v1089
        %1098 = vmatprep.subr.bf16.mxu0 0
        %1099 = vmatpush1.bf16.msra.mxu0 %v1090
        %1100 = vmatprep.subr.bf16.mxu0 0
        %1101 = vmatpush1.bf16.msra.mxu0 0
        %1102 = vmatprep.subr.bf16.mxu0 0
        %1103 = vmatpush1.bf16.msra.mxu0 0
        %1104 = vmatprep.subr.bf16.mxu0 0
        %1105 = vmatpush1.bf16.msra.mxu0 0
        %1106 = vmatprep.subr.bf16.mxu0 0
        %1107 = vmatpush1.bf16.msra.mxu0 0
        %1108 = vmatprep.subr.bf16.mxu0 0
        %1109 = vmatpush1.bf16.msra.mxu0 0
        %1110 = vmatprep.subr.bf16.mxu0 0
        %1111 = vmatpush1.bf16.msra.mxu0 0
        %1112 = vmatprep.subr.bf16.mxu0 0
        %1113 = vmatpush1.bf16.msra.mxu0 0
        %1114 = vmatprep.subr.bf16.mxu0 0
        %1115 = vmatpush1.bf16.msra.mxu0 0
        %1116 = vmatprep.subr.bf16.mxu0 0
        %1117 = vmatpush1.bf16.msra.mxu0 0
        %1118 = vmatprep.subr.bf16.mxu0 0
        %1119 = vmatpush1.bf16.msra.mxu0 0
        %1120 = vmatprep.subr.bf16.mxu0 0
        %1121 = vmatpush1.bf16.msra.mxu0 0
        %1122 = vmatprep.subr.bf16.mxu0 0
        %1123 = vmatpush1.bf16.msra.mxu0 0
        %1124 = vmatprep.subr.bf16.mxu0 0
        %1125 = vmatpush1.bf16.msra.mxu0 0
        %1126 = vmatprep.subr.bf16.mxu0 0
        %1127 = vmatpush1.bf16.msra.mxu0 0
        %1128 = vmatprep.mubr.bf16.mxu0 0
        %1129 = vmatmul.mubr.bf16.gmra.mrb[0].mxu0 %v1094
        %v1130 = vpop.f32.mrb[0].mxu0
        %v1131 = vadd.f32 %v1076, %v1130
        %v1132 = vpop.f32.mrb[0].mxu0
        %v1133 = vpop.f32.mrb[0].mxu0
        %v1134 = vpop.f32.mrb[0].mxu0
        %1135 = vdwg.mxu0
        %1136 = vmax.xlane.f32.xlu0 %v1131
        %v1137 = vpop.xlane.xlu0 %1136
        %v1138 = vsub.f32 %v1131, %v1137
        %v1139 = vmul.f32 %v1138, 1.442695
        %v1140 = vpow.pop %v1139
        %1141 = vadd.xlane.f32.xlu0 %v1140
        %v1142 = vpop.xlane.xlu0 %1141
        %v1143 = vlog2.pop %v1142
        %v1144 = vmul.f32 %v1143, 0.6931472
        %v1145 = vsub.f32 %v1138, %v1144
        %1146 = vst [vmem:[%s587] sm:$0xff] %v1145
        %s1147 = scalar_lea.vmem %s543, 8 [#allocation2]
        %v1148 = vld [vmem:[%s1147] sm:$0xff]
        %v1149 = vpack.c.bf16 %v1148, %v1148
        %v1152 = vsel %vm663, %v1149, %v1071
        %v1153 = vsel %vm697, %v1152, 0
        %1155 = vmatprep.subr.bf16.mxu0 0
        %1156 = vmatpush1.bf16.msra.mxu0 %v689
        %1157 = vmatprep.subr.bf16.mxu0 0
        %1158 = vmatpush1.bf16.msra.mxu0 %v690
        %1159 = vmatprep.subr.bf16.mxu0 0
        %1160 = vmatpush1.bf16.msra.mxu0 %v691
        %1161 = vmatprep.subr.bf16.mxu0 0
        %1162 = vmatpush1.bf16.msra.mxu0 %v692
        %1163 = vmatprep.subr.bf16.mxu0 0
        %1164 = vmatpush1.bf16.msra.mxu0 0
        %1165 = vmatprep.subr.bf16.mxu0 0
        %1166 = vmatpush1.bf16.msra.mxu0 0
        %1167 = vmatprep.subr.bf16.mxu0 0
        %1168 = vmatpush1.bf16.msra.mxu0 0
        %1169 = vmatprep.subr.bf16.mxu0 0
        %1170 = vmatpush1.bf16.msra.mxu0 0
        %1171 = vmatprep.subr.bf16.mxu0 0
        %1172 = vmatpush1.bf16.msra.mxu0 0
        %1173 = vmatprep.subr.bf16.mxu0 0
        %1174 = vmatpush1.bf16.msra.mxu0 0
        %1175 = vmatprep.subr.bf16.mxu0 0
        %1176 = vmatpush1.bf16.msra.mxu0 0
        %1177 = vmatprep.subr.bf16.mxu0 0
        %1178 = vmatpush1.bf16.msra.mxu0 0
        %1179 = vmatprep.subr.bf16.mxu0 0
        %1180 = vmatpush1.bf16.msra.mxu0 0
        %1181 = vmatprep.subr.bf16.mxu0 0
        %1182 = vmatpush1.bf16.msra.mxu0 0
        %1183 = vmatprep.subr.bf16.mxu0 0
        %1184 = vmatpush1.bf16.msra.mxu0 0
        %1185 = vmatprep.subr.bf16.mxu0 0
        %1186 = vmatpush1.bf16.msra.mxu0 0
        %1187 = vmatprep.mubr.bf16.mxu0 0
        %1188 = vmatmul.mubr.bf16.gmra.mrb[0].mxu0 %v1153
        %v1189 = vpop.f32.mrb[0].mxu0
        %v1190 = vadd.f32 %v671, %v1189
        %v1191 = vpop.f32.mrb[0].mxu0
        %v1192 = vpop.f32.mrb[0].mxu0
        %v1193 = vpop.f32.mrb[0].mxu0
        %1194 = vdwg.mxu0
        %1195 = vmax.xlane.f32.xlu0 %v1190
        %v1196 = vpop.xlane.xlu0 %1195
        %v1197 = vsub.f32 %v1190, %v1196
        %v1198 = vmul.f32 %v1197, 1.442695
        %v1199 = vpow.pop %v1198
        %1200 = vadd.xlane.f32.xlu0 %v1199
        %v1201 = vpop.xlane.xlu0 %1200
        %v1202 = vrcp.pop %v1201
        %v1203 = vmul.f32 %v1199, %v1202
        %s1204 = scalar_lea.vmem %s601, 8 [#allocation7]
        %1205 = vst [vmem:[%s1204] sm:$0xff] %v1203
        %v1206 = vpack.c.bf16 %v1203, %v1203
        %1207 = vmatprep.subr.bf16.mxu0 0
        %1208 = vmatpush1.bf16.msra.mxu0 %v783
        %1209 = vmatprep.subr.bf16.mxu0 0
        %1210 = vmatpush1.bf16.msra.mxu0 %v784
        %1211 = vmatprep.subr.bf16.mxu0 0
        %1212 = vmatpush1.bf16.msra.mxu0 %v785
        %1213 = vmatprep.subr.bf16.mxu0 0
        %1214 = vmatpush1.bf16.msra.mxu0 %v786
        %1215 = vmatprep.subr.bf16.mxu0 0
        %1216 = vmatpush1.bf16.msra.mxu0 %v787
        %1217 = vmatprep.subr.bf16.mxu0 0
        %1218 = vmatpush1.bf16.msra.mxu0 %v788
        %1219 = vmatprep.subr.bf16.mxu0 0
        %1220 = vmatpush1.bf16.msra.mxu0 %v789
        %1221 = vmatprep.subr.bf16.mxu0 0
        %1222 = vmatpush1.bf16.msra.mxu0 %v790
        %1223 = vmatprep.subr.bf16.mxu0 0
        %1224 = vmatpush1.bf16.msra.mxu0 0
        %1225 = vmatprep.subr.bf16.mxu0 0
        %1226 = vmatpush1.bf16.msra.mxu0 0
        %1227 = vmatprep.subr.bf16.mxu0 0
        %1228 = vmatpush1.bf16.msra.mxu0 0
        %1229 = vmatprep.subr.bf16.mxu0 0
        %1230 = vmatpush1.bf16.msra.mxu0 0
        %1231 = vmatprep.subr.bf16.mxu0 0
        %1232 = vmatpush1.bf16.msra.mxu0 0
        %1233 = vmatprep.subr.bf16.mxu0 0
        %1234 = vmatpush1.bf16.msra.mxu0 0
        %1235 = vmatprep.subr.bf16.mxu0 0
        %1236 = vmatpush1.bf16.msra.mxu0 0
        %1237 = vmatprep.subr.bf16.mxu0 0
        %1238 = vmatpush1.bf16.msra.mxu0 0
        %1239 = vmatprep.mubr.bf16.mxu0 0
        %1240 = vmatmul.mubr.bf16.gmra.mrb[0].mxu0 %v1206
        %v1241 = vpop.f32.mrb[0].mxu0
        %v1242 = vadd.f32 0.0, %v1241
        %v1243 = vpop.f32.mrb[0].mxu0
        %v1244 = vpop.f32.mrb[0].mxu0
        %v1245 = vpop.f32.mrb[0].mxu0
        %1246 = vdwg.mxu0
        %v1247 = vpack.c.bf16 %v1242, %v1242
        %1249 = vrot.lane.b32.xlu0 %v1247, 32
        %v1250 = vpop.permute.xlu0 %1249
        %v1252 = vsel %vm663, %v1149, %v1250
        %v1253 = vsel %vm697, %v1252, 0
        %1255 = vmatprep.subr.bf16.mxu0 0
        %1256 = vmatpush1.bf16.msra.mxu0 %v867
        %1257 = vmatprep.subr.bf16.mxu0 0
        %1258 = vmatpush1.bf16.msra.mxu0 %v868
        %1259 = vmatprep.subr.bf16.mxu0 0
        %1260 = vmatpush1.bf16.msra.mxu0 %v869
        %1261 = vmatprep.subr.bf16.mxu0 0
        %1262 = vmatpush1.bf16.msra.mxu0 %v870
        %1263 = vmatprep.subr.bf16.mxu0 0
        %1264 = vmatpush1.bf16.msra.mxu0 0
        %1265 = vmatprep.subr.bf16.mxu0 0
        %1266 = vmatpush1.bf16.msra.mxu0 0
        %1267 = vmatprep.subr.bf16.mxu0 0
        %1268 = vmatpush1.bf16.msra.mxu0 0
        %1269 = vmatprep.subr.bf16.mxu0 0
        %1270 = vmatpush1.bf16.msra.mxu0 0
        %1271 = vmatprep.subr.bf16.mxu0 0
        %1272 = vmatpush1.bf16.msra.mxu0 0
        %1273 = vmatprep.subr.bf16.mxu0 0
        %1274 = vmatpush1.bf16.msra.mxu0 0
        %1275 = vmatprep.subr.bf16.mxu0 0
        %1276 = vmatpush1.bf16.msra.mxu0 0
        %1277 = vmatprep.subr.bf16.mxu0 0
        %1278 = vmatpush1.bf16.msra.mxu0 0
        %1279 = vmatprep.subr.bf16.mxu0 0
        %1280 = vmatpush1.bf16.msra.mxu0 0
        %1281 = vmatprep.subr.bf16.mxu0 0
        %1282 = vmatpush1.bf16.msra.mxu0 0
        %1283 = vmatprep.subr.bf16.mxu0 0
        %1284 = vmatpush1.bf16.msra.mxu0 0
        %1285 = vmatprep.subr.bf16.mxu0 0
        %1286 = vmatpush1.bf16.msra.mxu0 0
        %1287 = vmatprep.mubr.bf16.mxu0 0
        %1288 = vmatmul.mubr.bf16.gmra.mrb[0].mxu0 %v1253
        %v1289 = vpop.f32.mrb[0].mxu0
        %v1290 = vadd.f32 %v849, %v1289
        %v1291 = vpop.f32.mrb[0].mxu0
        %v1292 = vpop.f32.mrb[0].mxu0
        %v1293 = vpop.f32.mrb[0].mxu0
        %1294 = vdwg.mxu0
        %v1295 = vmax.f32 %v1290, 0.0
        %v1296 = vpack.c.bf16 %v1295, %v1295
        %v1298 = vsel %vm663, %v1296, 0
        %1300 = vmatprep.subr.bf16.mxu0 0
        %1301 = vmatpush1.bf16.msra.mxu0 %v933
        %1302 = vmatprep.subr.bf16.mxu0 0
        %1303 = vmatpush1.bf16.msra.mxu0 %v934
        %1304 = vmatprep.subr.bf16.mxu0 0
        %1305 = vmatpush1.bf16.msra.mxu0 0
        %1306 = vmatprep.subr.bf16.mxu0 0
        %1307 = vmatpush1.bf16.msra.mxu0 0
        %1308 = vmatprep.subr.bf16.mxu0 0
        %1309 = vmatpush1.bf16.msra.mxu0 0
        %1310 = vmatprep.subr.bf16.mxu0 0
        %1311 = vmatpush1.bf16.msra.mxu0 0
        %1312 = vmatprep.subr.bf16.mxu0 0
        %1313 = vmatpush1.bf16.msra.mxu0 0
        %1314 = vmatprep.subr.bf16.mxu0 0
        %1315 = vmatpush1.bf16.msra.mxu0 0
        %1316 = vmatprep.subr.bf16.mxu0 0
        %1317 = vmatpush1.bf16.msra.mxu0 0
        %1318 = vmatprep.subr.bf16.mxu0 0
        %1319 = vmatpush1.bf16.msra.mxu0 0
        %1320 = vmatprep.subr.bf16.mxu0 0
        %1321 = vmatpush1.bf16.msra.mxu0 0
        %1322 = vmatprep.subr.bf16.mxu0 0
        %1323 = vmatpush1.bf16.msra.mxu0 0
        %1324 = vmatprep.subr.bf16.mxu0 0
        %1325 = vmatpush1.bf16.msra.mxu0 0
        %1326 = vmatprep.subr.bf16.mxu0 0
        %1327 = vmatpush1.bf16.msra.mxu0 0
        %1328 = vmatprep.subr.bf16.mxu0 0
        %1329 = vmatpush1.bf16.msra.mxu0 0
        %1330 = vmatprep.subr.bf16.mxu0 0
        %1331 = vmatpush1.bf16.msra.mxu0 0
        %1332 = vmatprep.mubr.bf16.mxu0 0
        %1333 = vmatmul.mubr.bf16.gmra.mrb[0].mxu0 %v1298
        %v1334 = vpop.f32.mrb[0].mxu0
        %v1335 = vadd.f32 %v923, %v1334
        %v1336 = vpop.f32.mrb[0].mxu0
        %v1337 = vpop.f32.mrb[0].mxu0
        %v1338 = vpop.f32.mrb[0].mxu0
        %1339 = vdwg.mxu0
        %1340 = vmatprep.subr.bf16.mxu0 0
        %1341 = vmatpush1.bf16.msra.mxu0 %v994
        %1342 = vmatprep.subr.bf16.mxu0 0
        %1343 = vmatpush1.bf16.msra.mxu0 %v995
        %1344 = vmatprep.subr.bf16.mxu0 0
        %1345 = vmatpush1.bf16.msra.mxu0 0
        %1346 = vmatprep.subr.bf16.mxu0 0
        %1347 = vmatpush1.bf16.msra.mxu0 0
        %1348 = vmatprep.subr.bf16.mxu0 0
        %1349 = vmatpush1.bf16.msra.mxu0 0
        %1350 = vmatprep.subr.bf16.mxu0 0
        %1351 = vmatpush1.bf16.msra.mxu0 0
        %1352 = vmatprep.subr.bf16.mxu0 0
        %1353 = vmatpush1.bf16.msra.mxu0 0
        %1354 = vmatprep.subr.bf16.mxu0 0
        %1355 = vmatpush1.bf16.msra.mxu0 0
        %1356 = vmatprep.subr.bf16.mxu0 0
        %1357 = vmatpush1.bf16.msra.mxu0 0
        %1358 = vmatprep.subr.bf16.mxu0 0
        %1359 = vmatpush1.bf16.msra.mxu0 0
        %1360 = vmatprep.subr.bf16.mxu0 0
        %1361 = vmatpush1.bf16.msra.mxu0 0
        %1362 = vmatprep.subr.bf16.mxu0 0
        %1363 = vmatpush1.bf16.msra.mxu0 0
        %1364 = vmatprep.subr.bf16.mxu0 0
        %1365 = vmatpush1.bf16.msra.mxu0 0
        %1366 = vmatprep.subr.bf16.mxu0 0
        %1367 = vmatpush1.bf16.msra.mxu0 0
        %1368 = vmatprep.subr.bf16.mxu0 0
        %1369 = vmatpush1.bf16.msra.mxu0 0
        %1370 = vmatprep.subr.bf16.mxu0 0
        %1371 = vmatpush1.bf16.msra.mxu0 0
        %1372 = vmatprep.mubr.bf16.mxu0 0
        %1373 = vmatmul.mubr.bf16.gmra.mrb[0].mxu0 %v1094
        %v1374 = vpop.f32.mrb[0].mxu0
        %v1375 = vadd.f32 %v984, %v1374
        %v1376 = vpop.f32.mrb[0].mxu0
        %v1377 = vpop.f32.mrb[0].mxu0
        %v1378 = vpop.f32.mrb[0].mxu0
        %1379 = vdwg.mxu0
        %v1380 = vadd.f32 %v1335, %v1375
        %v1381 = vxor.u32 %v1380, 2147483648
        %v1382 = vmul.f32 %v1381, 1.442695
        %v1383 = vpow.pop %v1382
        %v1384 = vadd.f32 %v1383, 1.0
        %v1385 = vrcp.pop %v1384
        %v1386 = vmul.f32 1.0, %v1385
        %1388 = vrot.lane.b32.xlu0 %v1375, 64
        %v1389 = vpop.permute.xlu0 %1388
        %v1391 = vmul.f32 %v1386, %v1389
        %1393 = vrot.lane.b32.xlu0 %v1391, 64
        %v1394 = vpop.permute.xlu0 %1393
        %v1396 = vadd.f32 %v1335, %v1394
        %v1397 = vtanh.pop %v1396
        %v1398 = vsub.f32 1.0, %v1386
        %1400 = vrot.lane.b32.xlu0 %v1397, 96
        %v1401 = vpop.permute.xlu0 %1400
        %v1403 = vmul.f32 %v1398, %v1401
        %v1404 = vmul.f32 %v1386, %v1070
        %v1405 = vadd.f32 %v1403, %v1404
        %v1406 = vpack.c.bf16 %v1405, %v1405
        %1408 = vrot.lane.b32.xlu0 %v1406, 96
        %v1409 = vpop.permute.xlu0 %1408
        %v1411 = vsel %vm663, %v1409, 0
        %1413 = vmatprep.subr.bf16.mxu0 0
        %1414 = vmatpush1.bf16.msra.mxu0 %v1089
        %1415 = vmatprep.subr.bf16.mxu0 0
        %1416 = vmatpush1.bf16.msra.mxu0 %v1090
        %1417 = vmatprep.subr.bf16.mxu0 0
        %1418 = vmatpush1.bf16.msra.mxu0 0
        %1419 = vmatprep.subr.bf16.mxu0 0
        %1420 = vmatpush1.bf16.msra.mxu0 0
        %1421 = vmatprep.subr.bf16.mxu0 0
        %1422 = vmatpush1.bf16.msra.mxu0 0
        %1423 = vmatprep.subr.bf16.mxu0 0
        %1424 = vmatpush1.bf16.msra.mxu0 0
        %1425 = vmatprep.subr.bf16.mxu0 0
        %1426 = vmatpush1.bf16.msra.mxu0 0
        %1427 = vmatprep.subr.bf16.mxu0 0
        %1428 = vmatpush1.bf16.msra.mxu0 0
        %1429 = vmatprep.subr.bf16.mxu0 0
        %1430 = vmatpush1.bf16.msra.mxu0 0
        %1431 = vmatprep.subr.bf16.mxu0 0
        %1432 = vmatpush1.bf16.msra.mxu0 0
        %1433 = vmatprep.subr.bf16.mxu0 0
        %1434 = vmatpush1.bf16.msra.mxu0 0
        %1435 = vmatprep.subr.bf16.mxu0 0
        %1436 = vmatpush1.bf16.msra.mxu0 0
        %1437 = vmatprep.subr.bf16.mxu0 0
        %1438 = vmatpush1.bf16.msra.mxu0 0
        %1439 = vmatprep.subr.bf16.mxu0 0
        %1440 = vmatpush1.bf16.msra.mxu0 0
        %1441 = vmatprep.subr.bf16.mxu0 0
        %1442 = vmatpush1.bf16.msra.mxu0 0
        %1443 = vmatprep.subr.bf16.mxu0 0
        %1444 = vmatpush1.bf16.msra.mxu0 0
        %1445 = vmatprep.mubr.bf16.mxu0 0
        %1446 = vmatmul.mubr.bf16.gmra.mrb[0].mxu0 %v1411
        %v1447 = vpop.f32.mrb[0].mxu0
        %v1448 = vadd.f32 %v1076, %v1447
        %v1449 = vpop.f32.mrb[0].mxu0
        %v1450 = vpop.f32.mrb[0].mxu0
        %v1451 = vpop.f32.mrb[0].mxu0
        %1452 = vdwg.mxu0
        %1453 = vmax.xlane.f32.xlu0 %v1448
        %v1454 = vpop.xlane.xlu0 %1453
        %v1455 = vsub.f32 %v1448, %v1454
        %v1456 = vmul.f32 %v1455, 1.442695
        %v1457 = vpow.pop %v1456
        %1458 = vadd.xlane.f32.xlu0 %v1457
        %v1459 = vpop.xlane.xlu0 %1458
        %v1460 = vlog2.pop %v1459
        %v1461 = vmul.f32 %v1460, 0.6931472
        %v1462 = vsub.f32 %v1455, %v1461
        %s1463 = scalar_lea.vmem %s587, 8 [#allocation3]
        %1464 = vst [vmem:[%s1463] sm:$0xff] %v1462
        %s1465 = scalar_lea.vmem %s543, 16 [#allocation2]
        %v1466 = vld [vmem:[%s1465] sm:$0xff]
        %v1467 = vpack.c.bf16 %v1466, %v1466
        %v1470 = vsel %vm663, %v1467, %v1406
        %v1471 = vsel %vm697, %v1470, 0
        %1473 = vmatprep.subr.bf16.mxu0 0
        %1474 = vmatpush1.bf16.msra.mxu0 %v689
        %1475 = vmatprep.subr.bf16.mxu0 0
        %1476 = vmatpush1.bf16.msra.mxu0 %v690
        %1477 = vmatprep.subr.bf16.mxu0 0
        %1478 = vmatpush1.bf16.msra.mxu0 %v691
        %1479 = vmatprep.subr.bf16.mxu0 0
        %1480 = vmatpush1.bf16.msra.mxu0 %v692
        %1481 = vmatprep.subr.bf16.mxu0 0
        %1482 = vmatpush1.bf16.msra.mxu0 0
        %1483 = vmatprep.subr.bf16.mxu0 0
        %1484 = vmatpush1.bf16.msra.mxu0 0
        %1485 = vmatprep.subr.bf16.mxu0 0
        %1486 = vmatpush1.bf16.msra.mxu0 0
        %1487 = vmatprep.subr.bf16.mxu0 0
        %1488 = vmatpush1.bf16.msra.mxu0 0
        %1489 = vmatprep.subr.bf16.mxu0 0
        %1490 = vmatpush1.bf16.msra.mxu0 0
        %1491 = vmatprep.subr.bf16.mxu0 0
        %1492 = vmatpush1.bf16.msra.mxu0 0
        %1493 = vmatprep.subr.bf16.mxu0 0
        %1494 = vmatpush1.bf16.msra.mxu0 0
        %1495 = vmatprep.subr.bf16.mxu0 0
        %1496 = vmatpush1.bf16.msra.mxu0 0
        %1497 = vmatprep.subr.bf16.mxu0 0
        %1498 = vmatpush1.bf16.msra.mxu0 0
        %1499 = vmatprep.subr.bf16.mxu0 0
        %1500 = vmatpush1.bf16.msra.mxu0 0
        %1501 = vmatprep.subr.bf16.mxu0 0
        %1502 = vmatpush1.bf16.msra.mxu0 0
        %1503 = vmatprep.subr.bf16.mxu0 0
        %1504 = vmatpush1.bf16.msra.mxu0 0
        %1505 = vmatprep.mubr.bf16.mxu0 0
        %1506 = vmatmul.mubr.bf16.gmra.mrb[0].mxu0 %v1471
        %v1507 = vpop.f32.mrb[0].mxu0
        %v1508 = vadd.f32 %v671, %v1507
        %v1509 = vpop.f32.mrb[0].mxu0
        %v1510 = vpop.f32.mrb[0].mxu0
        %v1511 = vpop.f32.mrb[0].mxu0
        %1512 = vdwg.mxu0
        %1513 = vmax.xlane.f32.xlu0 %v1508
        %v1514 = vpop.xlane.xlu0 %1513
        %v1515 = vsub.f32 %v1508, %v1514
        %v1516 = vmul.f32 %v1515, 1.442695
        %v1517 = vpow.pop %v1516
        %1518 = vadd.xlane.f32.xlu0 %v1517
        %v1519 = vpop.xlane.xlu0 %1518
        %v1520 = vrcp.pop %v1519
        %v1521 = vmul.f32 %v1517, %v1520
        %s1522 = scalar_lea.vmem %s601, 16 [#allocation7]
        %1523 = vst [vmem:[%s1522] sm:$0xff] %v1521
        %v1524 = vpack.c.bf16 %v1521, %v1521
        %1525 = vmatprep.subr.bf16.mxu0 0
        %1526 = vmatpush1.bf16.msra.mxu0 %v783
        %1527 = vmatprep.subr.bf16.mxu0 0
        %1528 = vmatpush1.bf16.msra.mxu0 %v784
        %1529 = vmatprep.subr.bf16.mxu0 0
        %1530 = vmatpush1.bf16.msra.mxu0 %v785
        %1531 = vmatprep.subr.bf16.mxu0 0
        %1532 = vmatpush1.bf16.msra.mxu0 %v786
        %1533 = vmatprep.subr.bf16.mxu0 0
        %1534 = vmatpush1.bf16.msra.mxu0 %v787
        %1535 = vmatprep.subr.bf16.mxu0 0
        %1536 = vmatpush1.bf16.msra.mxu0 %v788
        %1537 = vmatprep.subr.bf16.mxu0 0
        %1538 = vmatpush1.bf16.msra.mxu0 %v789
        %1539 = vmatprep.subr.bf16.mxu0 0
        %1540 = vmatpush1.bf16.msra.mxu0 %v790
        %1541 = vmatprep.subr.bf16.mxu0 0
        %1542 = vmatpush1.bf16.msra.mxu0 0
        %1543 = vmatprep.subr.bf16.mxu0 0
        %1544 = vmatpush1.bf16.msra.mxu0 0
        %1545 = vmatprep.subr.bf16.mxu0 0
        %1546 = vmatpush1.bf16.msra.mxu0 0
        %1547 = vmatprep.subr.bf16.mxu0 0
        %1548 = vmatpush1.bf16.msra.mxu0 0
        %1549 = vmatprep.subr.bf16.mxu0 0
        %1550 = vmatpush1.bf16.msra.mxu0 0
        %1551 = vmatprep.subr.bf16.mxu0 0
        %1552 = vmatpush1.bf16.msra.mxu0 0
        %1553 = vmatprep.subr.bf16.mxu0 0
        %1554 = vmatpush1.bf16.msra.mxu0 0
        %1555 = vmatprep.subr.bf16.mxu0 0
        %1556 = vmatpush1.bf16.msra.mxu0 0
        %1557 = vmatprep.mubr.bf16.mxu0 0
        %1558 = vmatmul.mubr.bf16.gmra.mrb[0].mxu0 %v1524
        %v1559 = vpop.f32.mrb[0].mxu0
        %v1560 = vadd.f32 0.0, %v1559
        %v1561 = vpop.f32.mrb[0].mxu0
        %v1562 = vpop.f32.mrb[0].mxu0
        %v1563 = vpop.f32.mrb[0].mxu0
        %1564 = vdwg.mxu0
        %v1565 = vpack.c.bf16 %v1560, %v1560
        %1567 = vrot.lane.b32.xlu0 %v1565, 32
        %v1568 = vpop.permute.xlu0 %1567
        %v1570 = vsel %vm663, %v1467, %v1568
        %v1571 = vsel %vm697, %v1570, 0
        %1573 = vmatprep.subr.bf16.mxu0 0
        %1574 = vmatpush1.bf16.msra.mxu0 %v867
        %1575 = vmatprep.subr.bf16.mxu0 0
        %1576 = vmatpush1.bf16.msra.mxu0 %v868
        %1577 = vmatprep.subr.bf16.mxu0 0
        %1578 = vmatpush1.bf16.msra.mxu0 %v869
        %1579 = vmatprep.subr.bf16.mxu0 0
        %1580 = vmatpush1.bf16.msra.mxu0 %v870
        %1581 = vmatprep.subr.bf16.mxu0 0
        %1582 = vmatpush1.bf16.msra.mxu0 0
        %1583 = vmatprep.subr.bf16.mxu0 0
        %1584 = vmatpush1.bf16.msra.mxu0 0
        %1585 = vmatprep.subr.bf16.mxu0 0
        %1586 = vmatpush1.bf16.msra.mxu0 0
        %1587 = vmatprep.subr.bf16.mxu0 0
        %1588 = vmatpush1.bf16.msra.mxu0 0
        %1589 = vmatprep.subr.bf16.mxu0 0
        %1590 = vmatpush1.bf16.msra.mxu0 0
        %1591 = vmatprep.subr.bf16.mxu0 0
        %1592 = vmatpush1.bf16.msra.mxu0 0
        %1593 = vmatprep.subr.bf16.mxu0 0
        %1594 = vmatpush1.bf16.msra.mxu0 0
        %1595 = vmatprep.subr.bf16.mxu0 0
        %1596 = vmatpush1.bf16.msra.mxu0 0
        %1597 = vmatprep.subr.bf16.mxu0 0
        %1598 = vmatpush1.bf16.msra.mxu0 0
        %1599 = vmatprep.subr.bf16.mxu0 0
        %1600 = vmatpush1.bf16.msra.mxu0 0
        %1601 = vmatprep.subr.bf16.mxu0 0
        %1602 = vmatpush1.bf16.msra.mxu0 0
        %1603 = vmatprep.subr.bf16.mxu0 0
        %1604 = vmatpush1.bf16.msra.mxu0 0
        %1605 = vmatprep.mubr.bf16.mxu0 0
        %1606 = vmatmul.mubr.bf16.gmra.mrb[0].mxu0 %v1571
        %v1607 = vpop.f32.mrb[0].mxu0
        %v1608 = vadd.f32 %v849, %v1607
        %v1609 = vpop.f32.mrb[0].mxu0
        %v1610 = vpop.f32.mrb[0].mxu0
        %v1611 = vpop.f32.mrb[0].mxu0
        %1612 = vdwg.mxu0
        %v1613 = vmax.f32 %v1608, 0.0
        %v1614 = vpack.c.bf16 %v1613, %v1613
        %v1616 = vsel %vm663, %v1614, 0
        %1618 = vmatprep.subr.bf16.mxu0 0
        %1619 = vmatpush1.bf16.msra.mxu0 %v933
        %1620 = vmatprep.subr.bf16.mxu0 0
        %1621 = vmatpush1.bf16.msra.mxu0 %v934
        %1622 = vmatprep.subr.bf16.mxu0 0
        %1623 = vmatpush1.bf16.msra.mxu0 0
        %1624 = vmatprep.subr.bf16.mxu0 0
        %1625 = vmatpush1.bf16.msra.mxu0 0
        %1626 = vmatprep.subr.bf16.mxu0 0
        %1627 = vmatpush1.bf16.msra.mxu0 0
        %1628 = vmatprep.subr.bf16.mxu0 0
        %1629 = vmatpush1.bf16.msra.mxu0 0
        %1630 = vmatprep.subr.bf16.mxu0 0
        %1631 = vmatpush1.bf16.msra.mxu0 0
        %1632 = vmatprep.subr.bf16.mxu0 0
        %1633 = vmatpush1.bf16.msra.mxu0 0
        %1634 = vmatprep.subr.bf16.mxu0 0
        %1635 = vmatpush1.bf16.msra.mxu0 0
        %1636 = vmatprep.subr.bf16.mxu0 0
        %1637 = vmatpush1.bf16.msra.mxu0 0
        %1638 = vmatprep.subr.bf16.mxu0 0
        %1639 = vmatpush1.bf16.msra.mxu0 0
        %1640 = vmatprep.subr.bf16.mxu0 0
        %1641 = vmatpush1.bf16.msra.mxu0 0
        %1642 = vmatprep.subr.bf16.mxu0 0
        %1643 = vmatpush1.bf16.msra.mxu0 0
        %1644 = vmatprep.subr.bf16.mxu0 0
        %1645 = vmatpush1.bf16.msra.mxu0 0
        %1646 = vmatprep.subr.bf16.mxu0 0
        %1647 = vmatpush1.bf16.msra.mxu0 0
        %1648 = vmatprep.subr.bf16.mxu0 0
        %1649 = vmatpush1.bf16.msra.mxu0 0
        %1650 = vmatprep.mubr.bf16.mxu0 0
        %1651 = vmatmul.mubr.bf16.gmra.mrb[0].mxu0 %v1616
        %v1652 = vpop.f32.mrb[0].mxu0
        %v1653 = vadd.f32 %v923, %v1652
        %v1654 = vpop.f32.mrb[0].mxu0
        %v1655 = vpop.f32.mrb[0].mxu0
        %v1656 = vpop.f32.mrb[0].mxu0
        %1657 = vdwg.mxu0
        %1658 = vmatprep.subr.bf16.mxu0 0
        %1659 = vmatpush1.bf16.msra.mxu0 %v994
        %1660 = vmatprep.subr.bf16.mxu0 0
        %1661 = vmatpush1.bf16.msra.mxu0 %v995
        %1662 = vmatprep.subr.bf16.mxu0 0
        %1663 = vmatpush1.bf16.msra.mxu0 0
        %1664 = vmatprep.subr.bf16.mxu0 0
        %1665 = vmatpush1.bf16.msra.mxu0 0
        %1666 = vmatprep.subr.bf16.mxu0 0
        %1667 = vmatpush1.bf16.msra.mxu0 0
        %1668 = vmatprep.subr.bf16.mxu0 0
        %1669 = vmatpush1.bf16.msra.mxu0 0
        %1670 = vmatprep.subr.bf16.mxu0 0
        %1671 = vmatpush1.bf16.msra.mxu0 0
        %1672 = vmatprep.subr.bf16.mxu0 0
        %1673 = vmatpush1.bf16.msra.mxu0 0
        %1674 = vmatprep.subr.bf16.mxu0 0
        %1675 = vmatpush1.bf16.msra.mxu0 0
        %1676 = vmatprep.subr.bf16.mxu0 0
        %1677 = vmatpush1.bf16.msra.mxu0 0
        %1678 = vmatprep.subr.bf16.mxu0 0
        %1679 = vmatpush1.bf16.msra.mxu0 0
        %1680 = vmatprep.subr.bf16.mxu0 0
        %1681 = vmatpush1.bf16.msra.mxu0 0
        %1682 = vmatprep.subr.bf16.mxu0 0
        %1683 = vmatpush1.bf16.msra.mxu0 0
        %1684 = vmatprep.subr.bf16.mxu0 0
        %1685 = vmatpush1.bf16.msra.mxu0 0
        %1686 = vmatprep.subr.bf16.mxu0 0
        %1687 = vmatpush1.bf16.msra.mxu0 0
        %1688 = vmatprep.subr.bf16.mxu0 0
        %1689 = vmatpush1.bf16.msra.mxu0 0
        %1690 = vmatprep.mubr.bf16.mxu0 0
        %1691 = vmatmul.mubr.bf16.gmra.mrb[0].mxu0 %v1411
        %v1692 = vpop.f32.mrb[0].mxu0
        %v1693 = vadd.f32 %v984, %v1692
        %v1694 = vpop.f32.mrb[0].mxu0
        %v1695 = vpop.f32.mrb[0].mxu0
        %v1696 = vpop.f32.mrb[0].mxu0
        %1697 = vdwg.mxu0
        %v1698 = vadd.f32 %v1653, %v1693
        %v1699 = vxor.u32 %v1698, 2147483648
        %v1700 = vmul.f32 %v1699, 1.442695
        %v1701 = vpow.pop %v1700
        %v1702 = vadd.f32 %v1701, 1.0
        %v1703 = vrcp.pop %v1702
        %v1704 = vmul.f32 1.0, %v1703
        %1706 = vrot.lane.b32.xlu0 %v1693, 64
        %v1707 = vpop.permute.xlu0 %1706
        %v1709 = vmul.f32 %v1704, %v1707
        %1711 = vrot.lane.b32.xlu0 %v1709, 64
        %v1712 = vpop.permute.xlu0 %1711
        %v1714 = vadd.f32 %v1653, %v1712
        %v1715 = vtanh.pop %v1714
        %v1716 = vsub.f32 1.0, %v1704
        %1718 = vrot.lane.b32.xlu0 %v1715, 96
        %v1719 = vpop.permute.xlu0 %1718
        %v1721 = vmul.f32 %v1716, %v1719
        %v1722 = vmul.f32 %v1704, %v1405
        %v1723 = vadd.f32 %v1721, %v1722
        %v1724 = vpack.c.bf16 %v1723, %v1723
        %1726 = vrot.lane.b32.xlu0 %v1724, 96
        %v1727 = vpop.permute.xlu0 %1726
        %v1729 = vsel %vm663, %v1727, 0
        %1731 = vmatprep.subr.bf16.mxu0 0
        %1732 = vmatpush1.bf16.msra.mxu0 %v1089
        %1733 = vmatprep.subr.bf16.mxu0 0
        %1734 = vmatpush1.bf16.msra.mxu0 %v1090
        %1735 = vmatprep.subr.bf16.mxu0 0
        %1736 = vmatpush1.bf16.msra.mxu0 0
        %1737 = vmatprep.subr.bf16.mxu0 0
        %1738 = vmatpush1.bf16.msra.mxu0 0
        %1739 = vmatprep.subr.bf16.mxu0 0
        %1740 = vmatpush1.bf16.msra.mxu0 0
        %1741 = vmatprep.subr.bf16.mxu0 0
        %1742 = vmatpush1.bf16.msra.mxu0 0
        %1743 = vmatprep.subr.bf16.mxu0 0
        %1744 = vmatpush1.bf16.msra.mxu0 0
        %1745 = vmatprep.subr.bf16.mxu0 0
        %1746 = vmatpush1.bf16.msra.mxu0 0
        %1747 = vmatprep.subr.bf16.mxu0 0
        %1748 = vmatpush1.bf16.msra.mxu0 0
        %1749 = vmatprep.subr.bf16.mxu0 0
        %1750 = vmatpush1.bf16.msra.mxu0 0
        %1751 = vmatprep.subr.bf16.mxu0 0
        %1752 = vmatpush1.bf16.msra.mxu0 0
        %1753 = vmatprep.subr.bf16.mxu0 0
        %1754 = vmatpush1.bf16.msra.mxu0 0
        %1755 = vmatprep.subr.bf16.mxu0 0
        %1756 = vmatpush1.bf16.msra.mxu0 0
        %1757 = vmatprep.subr.bf16.mxu0 0
        %1758 = vmatpush1.bf16.msra.mxu0 0
        %1759 = vmatprep.subr.bf16.mxu0 0
        %1760 = vmatpush1.bf16.msra.mxu0 0
        %1761 = vmatprep.subr.bf16.mxu0 0
        %1762 = vmatpush1.bf16.msra.mxu0 0
        %1763 = vmatprep.mubr.bf16.mxu0 0
        %1764 = vmatmul.mubr.bf16.gmra.mrb[0].mxu0 %v1729
        %v1765 = vpop.f32.mrb[0].mxu0
        %v1766 = vadd.f32 %v1076, %v1765
        %v1767 = vpop.f32.mrb[0].mxu0
        %v1768 = vpop.f32.mrb[0].mxu0
        %v1769 = vpop.f32.mrb[0].mxu0
        %1770 = vdwg.mxu0
        %1771 = vmax.xlane.f32.xlu0 %v1766
        %v1772 = vpop.xlane.xlu0 %1771
        %v1773 = vsub.f32 %v1766, %v1772
        %v1774 = vmul.f32 %v1773, 1.442695
        %v1775 = vpow.pop %v1774
        %1776 = vadd.xlane.f32.xlu0 %v1775
        %v1777 = vpop.xlane.xlu0 %1776
        %v1778 = vlog2.pop %v1777
        %v1779 = vmul.f32 %v1778, 0.6931472
        %v1780 = vsub.f32 %v1773, %v1779
        %s1781 = scalar_lea.vmem %s587, 16 [#allocation3]
        %1782 = vst [vmem:[%s1781] sm:$0xff] %v1780
        %s1783 = scalar_lea.vmem %s543, 24 [#allocation2]
        %v1784 = vld [vmem:[%s1783] sm:$0xff]
        %v1785 = vpack.c.bf16 %v1784, %v1784
        %v1788 = vsel %vm663, %v1785, %v1724
        %v1789 = vsel %vm697, %v1788, 0
        %1791 = vmatprep.subr.bf16.mxu0 0
        %1792 = vmatpush1.bf16.msra.mxu0 %v689
        %1793 = vmatprep.subr.bf16.mxu0 0
        %1794 = vmatpush1.bf16.msra.mxu0 %v690
        %1795 = vmatprep.subr.bf16.mxu0 0
        %1796 = vmatpush1.bf16.msra.mxu0 %v691
        %1797 = vmatprep.subr.bf16.mxu0 0
        %1798 = vmatpush1.bf16.msra.mxu0 %v692
        %1799 = vmatprep.subr.bf16.mxu0 0
        %1800 = vmatpush1.bf16.msra.mxu0 0
        %1801 = vmatprep.subr.bf16.mxu0 0
        %1802 = vmatpush1.bf16.msra.mxu0 0
        %1803 = vmatprep.subr.bf16.mxu0 0
        %1804 = vmatpush1.bf16.msra.mxu0 0
        %1805 = vmatprep.subr.bf16.mxu0 0
        %1806 = vmatpush1.bf16.msra.mxu0 0
        %1807 = vmatprep.subr.bf16.mxu0 0
        %1808 = vmatpush1.bf16.msra.mxu0 0
        %1809 = vmatprep.subr.bf16.mxu0 0
        %1810 = vmatpush1.bf16.msra.mxu0 0
        %1811 = vmatprep.subr.bf16.mxu0 0
        %1812 = vmatpush1.bf16.msra.mxu0 0
        %1813 = vmatprep.subr.bf16.mxu0 0
        %1814 = vmatpush1.bf16.msra.mxu0 0
        %1815 = vmatprep.subr.bf16.mxu0 0
        %1816 = vmatpush1.bf16.msra.mxu0 0
        %1817 = vmatprep.subr.bf16.mxu0 0
        %1818 = vmatpush1.bf16.msra.mxu0 0
        %1819 = vmatprep.subr.bf16.mxu0 0
        %1820 = vmatpush1.bf16.msra.mxu0 0
        %1821 = vmatprep.subr.bf16.mxu0 0
        %1822 = vmatpush1.bf16.msra.mxu0 0
        %1823 = vmatprep.mubr.bf16.mxu0 0
        %1824 = vmatmul.mubr.bf16.gmra.mrb[0].mxu0 %v1789
        %v1825 = vpop.f32.mrb[0].mxu0
        %v1826 = vadd.f32 %v671, %v1825
        %v1827 = vpop.f32.mrb[0].mxu0
        %v1828 = vpop.f32.mrb[0].mxu0
        %v1829 = vpop.f32.mrb[0].mxu0
        %1830 = vdwg.mxu0
        %1831 = vmax.xlane.f32.xlu0 %v1826
        %v1832 = vpop.xlane.xlu0 %1831
        %v1833 = vsub.f32 %v1826, %v1832
        %v1834 = vmul.f32 %v1833, 1.442695
        %v1835 = vpow.pop %v1834
        %1836 = vadd.xlane.f32.xlu0 %v1835
        %v1837 = vpop.xlane.xlu0 %1836
        %v1838 = vrcp.pop %v1837
        %v1839 = vmul.f32 %v1835, %v1838
        %s1840 = scalar_lea.vmem %s601, 24 [#allocation7]
        %1841 = vst [vmem:[%s1840] sm:$0xff] %v1839
        %v1842 = vpack.c.bf16 %v1839, %v1839
        %1843 = vmatprep.subr.bf16.mxu0 0
        %1844 = vmatpush1.bf16.msra.mxu0 %v783
        %1845 = vmatprep.subr.bf16.mxu0 0
        %1846 = vmatpush1.bf16.msra.mxu0 %v784
        %1847 = vmatprep.subr.bf16.mxu0 0
        %1848 = vmatpush1.bf16.msra.mxu0 %v785
        %1849 = vmatprep.subr.bf16.mxu0 0
        %1850 = vmatpush1.bf16.msra.mxu0 %v786
        %1851 = vmatprep.subr.bf16.mxu0 0
        %1852 = vmatpush1.bf16.msra.mxu0 %v787
        %1853 = vmatprep.subr.bf16.mxu0 0
        %1854 = vmatpush1.bf16.msra.mxu0 %v788
        %1855 = vmatprep.subr.bf16.mxu0 0
        %1856 = vmatpush1.bf16.msra.mxu0 %v789
        %1857 = vmatprep.subr.bf16.mxu0 0
        %1858 = vmatpush1.bf16.msra.mxu0 %v790
        %1859 = vmatprep.subr.bf16.mxu0 0
        %1860 = vmatpush1.bf16.msra.mxu0 0
        %1861 = vmatprep.subr.bf16.mxu0 0
        %1862 = vmatpush1.bf16.msra.mxu0 0
        %1863 = vmatprep.subr.bf16.mxu0 0
        %1864 = vmatpush1.bf16.msra.mxu0 0
        %1865 = vmatprep.subr.bf16.mxu0 0
        %1866 = vmatpush1.bf16.msra.mxu0 0
        %1867 = vmatprep.subr.bf16.mxu0 0
        %1868 = vmatpush1.bf16.msra.mxu0 0
        %1869 = vmatprep.subr.bf16.mxu0 0
        %1870 = vmatpush1.bf16.msra.mxu0 0
        %1871 = vmatprep.subr.bf16.mxu0 0
        %1872 = vmatpush1.bf16.msra.mxu0 0
        %1873 = vmatprep.subr.bf16.mxu0 0
        %1874 = vmatpush1.bf16.msra.mxu0 0
        %1875 = vmatprep.mubr.bf16.mxu0 0
        %1876 = vmatmul.mubr.bf16.gmra.mrb[0].mxu0 %v1842
        %v1877 = vpop.f32.mrb[0].mxu0
        %v1878 = vadd.f32 0.0, %v1877
        %v1879 = vpop.f32.mrb[0].mxu0
        %v1880 = vpop.f32.mrb[0].mxu0
        %v1881 = vpop.f32.mrb[0].mxu0
        %1882 = vdwg.mxu0
        %v1883 = vpack.c.bf16 %v1878, %v1878
        %1885 = vrot.lane.b32.xlu0 %v1883, 32
        %v1886 = vpop.permute.xlu0 %1885
        %v1888 = vsel %vm663, %v1785, %v1886
        %v1889 = vsel %vm697, %v1888, 0
        %1891 = vmatprep.subr.bf16.mxu0 0
        %1892 = vmatpush1.bf16.msra.mxu0 %v867
        %1893 = vmatprep.subr.bf16.mxu0 0
        %1894 = vmatpush1.bf16.msra.mxu0 %v868
        %1895 = vmatprep.subr.bf16.mxu0 0
        %1896 = vmatpush1.bf16.msra.mxu0 %v869
        %1897 = vmatprep.subr.bf16.mxu0 0
        %1898 = vmatpush1.bf16.msra.mxu0 %v870
        %1899 = vmatprep.subr.bf16.mxu0 0
        %1900 = vmatpush1.bf16.msra.mxu0 0
        %1901 = vmatprep.subr.bf16.mxu0 0
        %1902 = vmatpush1.bf16.msra.mxu0 0
        %1903 = vmatprep.subr.bf16.mxu0 0
        %1904 = vmatpush1.bf16.msra.mxu0 0
        %1905 = vmatprep.subr.bf16.mxu0 0
        %1906 = vmatpush1.bf16.msra.mxu0 0
        %1907 = vmatprep.subr.bf16.mxu0 0
        %1908 = vmatpush1.bf16.msra.mxu0 0
        %1909 = vmatprep.subr.bf16.mxu0 0
        %1910 = vmatpush1.bf16.msra.mxu0 0
        %1911 = vmatprep.subr.bf16.mxu0 0
        %1912 = vmatpush1.bf16.msra.mxu0 0
        %1913 = vmatprep.subr.bf16.mxu0 0
        %1914 = vmatpush1.bf16.msra.mxu0 0
        %1915 = vmatprep.subr.bf16.mxu0 0
        %1916 = vmatpush1.bf16.msra.mxu0 0
        %1917 = vmatprep.subr.bf16.mxu0 0
        %1918 = vmatpush1.bf16.msra.mxu0 0
        %1919 = vmatprep.subr.bf16.mxu0 0
        %1920 = vmatpush1.bf16.msra.mxu0 0
        %1921 = vmatprep.subr.bf16.mxu0 0
        %1922 = vmatpush1.bf16.msra.mxu0 0
        %1923 = vmatprep.mubr.bf16.mxu0 0
        %1924 = vmatmul.mubr.bf16.gmra.mrb[0].mxu0 %v1889
        %v1925 = vpop.f32.mrb[0].mxu0
        %v1926 = vadd.f32 %v849, %v1925
        %v1927 = vpop.f32.mrb[0].mxu0
        %v1928 = vpop.f32.mrb[0].mxu0
        %v1929 = vpop.f32.mrb[0].mxu0
        %1930 = vdwg.mxu0
        %v1931 = vmax.f32 %v1926, 0.0
        %v1932 = vpack.c.bf16 %v1931, %v1931
        %v1934 = vsel %vm663, %v1932, 0
        %1936 = vmatprep.subr.bf16.mxu0 0
        %1937 = vmatpush1.bf16.msra.mxu0 %v933
        %1938 = vmatprep.subr.bf16.mxu0 0
        %1939 = vmatpush1.bf16.msra.mxu0 %v934
        %1940 = vmatprep.subr.bf16.mxu0 0
        %1941 = vmatpush1.bf16.msra.mxu0 0
        %1942 = vmatprep.subr.bf16.mxu0 0
        %1943 = vmatpush1.bf16.msra.mxu0 0
        %1944 = vmatprep.subr.bf16.mxu0 0
        %1945 = vmatpush1.bf16.msra.mxu0 0
        %1946 = vmatprep.subr.bf16.mxu0 0
        %1947 = vmatpush1.bf16.msra.mxu0 0
        %1948 = vmatprep.subr.bf16.mxu0 0
        %1949 = vmatpush1.bf16.msra.mxu0 0
        %1950 = vmatprep.subr.bf16.mxu0 0
        %1951 = vmatpush1.bf16.msra.mxu0 0
        %1952 = vmatprep.subr.bf16.mxu0 0
        %1953 = vmatpush1.bf16.msra.mxu0 0
        %1954 = vmatprep.subr.bf16.mxu0 0
        %1955 = vmatpush1.bf16.msra.mxu0 0
        %1956 = vmatprep.subr.bf16.mxu0 0
        %1957 = vmatpush1.bf16.msra.mxu0 0
        %1958 = vmatprep.subr.bf16.mxu0 0
        %1959 = vmatpush1.bf16.msra.mxu0 0
        %1960 = vmatprep.subr.bf16.mxu0 0
        %1961 = vmatpush1.bf16.msra.mxu0 0
        %1962 = vmatprep.subr.bf16.mxu0 0
        %1963 = vmatpush1.bf16.msra.mxu0 0
        %1964 = vmatprep.subr.bf16.mxu0 0
        %1965 = vmatpush1.bf16.msra.mxu0 0
        %1966 = vmatprep.subr.bf16.mxu0 0
        %1967 = vmatpush1.bf16.msra.mxu0 0
        %1968 = vmatprep.mubr.bf16.mxu0 0
        %1969 = vmatmul.mubr.bf16.gmra.mrb[0].mxu0 %v1934
        %v1970 = vpop.f32.mrb[0].mxu0
        %v1971 = vadd.f32 %v923, %v1970
        %v1972 = vpop.f32.mrb[0].mxu0
        %v1973 = vpop.f32.mrb[0].mxu0
        %v1974 = vpop.f32.mrb[0].mxu0
        %1975 = vdwg.mxu0
        %1976 = vmatprep.subr.bf16.mxu0 0
        %1977 = vmatpush1.bf16.msra.mxu0 %v994
        %1978 = vmatprep.subr.bf16.mxu0 0
        %1979 = vmatpush1.bf16.msra.mxu0 %v995
        %1980 = vmatprep.subr.bf16.mxu0 0
        %1981 = vmatpush1.bf16.msra.mxu0 0
        %1982 = vmatprep.subr.bf16.mxu0 0
        %1983 = vmatpush1.bf16.msra.mxu0 0
        %1984 = vmatprep.subr.bf16.mxu0 0
        %1985 = vmatpush1.bf16.msra.mxu0 0
        %1986 = vmatprep.subr.bf16.mxu0 0
        %1987 = vmatpush1.bf16.msra.mxu0 0
        %1988 = vmatprep.subr.bf16.mxu0 0
        %1989 = vmatpush1.bf16.msra.mxu0 0
        %1990 = vmatprep.subr.bf16.mxu0 0
        %1991 = vmatpush1.bf16.msra.mxu0 0
        %1992 = vmatprep.subr.bf16.mxu0 0
        %1993 = vmatpush1.bf16.msra.mxu0 0
        %1994 = vmatprep.subr.bf16.mxu0 0
        %1995 = vmatpush1.bf16.msra.mxu0 0
        %1996 = vmatprep.subr.bf16.mxu0 0
        %1997 = vmatpush1.bf16.msra.mxu0 0
        %1998 = vmatprep.subr.bf16.mxu0 0
        %1999 = vmatpush1.bf16.msra.mxu0 0
        %2000 = vmatprep.subr.bf16.mxu0 0
        %2001 = vmatpush1.bf16.msra.mxu0 0
        %2002 = vmatprep.subr.bf16.mxu0 0
        %2003 = vmatpush1.bf16.msra.mxu0 0
        %2004 = vmatprep.subr.bf16.mxu0 0
        %2005 = vmatpush1.bf16.msra.mxu0 0
        %2006 = vmatprep.subr.bf16.mxu0 0
        %2007 = vmatpush1.bf16.msra.mxu0 0
        %2008 = vmatprep.mubr.bf16.mxu0 0
        %2009 = vmatmul.mubr.bf16.gmra.mrb[0].mxu0 %v1729
        %v2010 = vpop.f32.mrb[0].mxu0
        %v2011 = vadd.f32 %v984, %v2010
        %v2012 = vpop.f32.mrb[0].mxu0
        %v2013 = vpop.f32.mrb[0].mxu0
        %v2014 = vpop.f32.mrb[0].mxu0
        %2015 = vdwg.mxu0
        %v2016 = vadd.f32 %v1971, %v2011
        %v2017 = vxor.u32 %v2016, 2147483648
        %v2018 = vmul.f32 %v2017, 1.442695
        %v2019 = vpow.pop %v2018
        %v2020 = vadd.f32 %v2019, 1.0
        %v2021 = vrcp.pop %v2020
        %v2022 = vmul.f32 1.0, %v2021
        %2024 = vrot.lane.b32.xlu0 %v2011, 64
        %v2025 = vpop.permute.xlu0 %2024
        %v2027 = vmul.f32 %v2022, %v2025
        %2029 = vrot.lane.b32.xlu0 %v2027, 64
        %v2030 = vpop.permute.xlu0 %2029
        %v2032 = vadd.f32 %v1971, %v2030
        %v2033 = vtanh.pop %v2032
        %v2034 = vsub.f32 1.0, %v2022
        %2036 = vrot.lane.b32.xlu0 %v2033, 96
        %v2037 = vpop.permute.xlu0 %2036
        %v2039 = vmul.f32 %v2034, %v2037
        %v2040 = vmul.f32 %v2022, %v1723
        %v2041 = vadd.f32 %v2039, %v2040
        %v2042 = vpack.c.bf16 %v2041, %v2041
        %2044 = vrot.lane.b32.xlu0 %v2042, 96
        %v2045 = vpop.permute.xlu0 %2044
        %v2047 = vsel %vm663, %v2045, 0
        %2049 = vmatprep.subr.bf16.mxu0 0
        %2050 = vmatpush1.bf16.msra.mxu0 %v1089
        %2051 = vmatprep.subr.bf16.mxu0 0
        %2052 = vmatpush1.bf16.msra.mxu0 %v1090
        %2053 = vmatprep.subr.bf16.mxu0 0
        %2054 = vmatpush1.bf16.msra.mxu0 0
        %2055 = vmatprep.subr.bf16.mxu0 0
        %2056 = vmatpush1.bf16.msra.mxu0 0
        %2057 = vmatprep.subr.bf16.mxu0 0
        %2058 = vmatpush1.bf16.msra.mxu0 0
        %2059 = vmatprep.subr.bf16.mxu0 0
        %2060 = vmatpush1.bf16.msra.mxu0 0
        %2061 = vmatprep.subr.bf16.mxu0 0
        %2062 = vmatpush1.bf16.msra.mxu0 0
        %2063 = vmatprep.subr.bf16.mxu0 0
        %2064 = vmatpush1.bf16.msra.mxu0 0
        %2065 = vmatprep.subr.bf16.mxu0 0
        %2066 = vmatpush1.bf16.msra.mxu0 0
        %2067 = vmatprep.subr.bf16.mxu0 0
        %2068 = vmatpush1.bf16.msra.mxu0 0
        %2069 = vmatprep.subr.bf16.mxu0 0
        %2070 = vmatpush1.bf16.msra.mxu0 0
        %2071 = vmatprep.subr.bf16.mxu0 0
        %2072 = vmatpush1.bf16.msra.mxu0 0
        %2073 = vmatprep.subr.bf16.mxu0 0
        %2074 = vmatpush1.bf16.msra.mxu0 0
        %2075 = vmatprep.subr.bf16.mxu0 0
        %2076 = vmatpush1.bf16.msra.mxu0 0
        %2077 = vmatprep.subr.bf16.mxu0 0
        %2078 = vmatpush1.bf16.msra.mxu0 0
        %2079 = vmatprep.subr.bf16.mxu0 0
        %2080 = vmatpush1.bf16.msra.mxu0 0
        %2081 = vmatprep.mubr.bf16.mxu0 0
        %2082 = vmatmul.mubr.bf16.gmra.mrb[0].mxu0 %v2047
        %v2083 = vpop.f32.mrb[0].mxu0
        %v2084 = vadd.f32 %v1076, %v2083
        %v2085 = vpop.f32.mrb[0].mxu0
        %v2086 = vpop.f32.mrb[0].mxu0
        %v2087 = vpop.f32.mrb[0].mxu0
        %2088 = vdwg.mxu0
        %2089 = vmax.xlane.f32.xlu0 %v2084
        %v2090 = vpop.xlane.xlu0 %2089
        %v2091 = vsub.f32 %v2084, %v2090
        %v2092 = vmul.f32 %v2091, 1.442695
        %v2093 = vpow.pop %v2092
        %2094 = vadd.xlane.f32.xlu0 %v2093
        %v2095 = vpop.xlane.xlu0 %2094
        %v2096 = vlog2.pop %v2095
        %v2097 = vmul.f32 %v2096, 0.6931472
        %v2098 = vsub.f32 %v2091, %v2097
        %s2099 = scalar_lea.vmem %s587, 24 [#allocation3]
        %2100 = vst [vmem:[%s2099] sm:$0xff] %v2098
        %s2101 = scalar_lea.vmem %s543, 32 [#allocation2]
        %v2102 = vld [vmem:[%s2101] sm:$0xff]
        %v2103 = vpack.c.bf16 %v2102, %v2102
        %v2106 = vsel %vm663, %v2103, %v2042
        %v2107 = vsel %vm697, %v2106, 0
        %2109 = vmatprep.subr.bf16.mxu0 0
        %2110 = vmatpush1.bf16.msra.mxu0 %v689
        %2111 = vmatprep.subr.bf16.mxu0 0
        %2112 = vmatpush1.bf16.msra.mxu0 %v690
        %2113 = vmatprep.subr.bf16.mxu0 0
        %2114 = vmatpush1.bf16.msra.mxu0 %v691
        %2115 = vmatprep.subr.bf16.mxu0 0
        %2116 = vmatpush1.bf16.msra.mxu0 %v692
        %2117 = vmatprep.subr.bf16.mxu0 0
        %2118 = vmatpush1.bf16.msra.mxu0 0
        %2119 = vmatprep.subr.bf16.mxu0 0
        %2120 = vmatpush1.bf16.msra.mxu0 0
        %2121 = vmatprep.subr.bf16.mxu0 0
        %2122 = vmatpush1.bf16.msra.mxu0 0
        %2123 = vmatprep.subr.bf16.mxu0 0
        %2124 = vmatpush1.bf16.msra.mxu0 0
        %2125 = vmatprep.subr.bf16.mxu0 0
        %2126 = vmatpush1.bf16.msra.mxu0 0
        %2127 = vmatprep.subr.bf16.mxu0 0
        %2128 = vmatpush1.bf16.msra.mxu0 0
        %2129 = vmatprep.subr.bf16.mxu0 0
        %2130 = vmatpush1.bf16.msra.mxu0 0
        %2131 = vmatprep.subr.bf16.mxu0 0
        %2132 = vmatpush1.bf16.msra.mxu0 0
        %2133 = vmatprep.subr.bf16.mxu0 0
        %2134 = vmatpush1.bf16.msra.mxu0 0
        %2135 = vmatprep.subr.bf16.mxu0 0
        %2136 = vmatpush1.bf16.msra.mxu0 0
        %2137 = vmatprep.subr.bf16.mxu0 0
        %2138 = vmatpush1.bf16.msra.mxu0 0
        %2139 = vmatprep.subr.bf16.mxu0 0
        %2140 = vmatpush1.bf16.msra.mxu0 0
        %2141 = vmatprep.mubr.bf16.mxu0 0
        %2142 = vmatmul.mubr.bf16.gmra.mrb[0].mxu0 %v2107
        %v2143 = vpop.f32.mrb[0].mxu0
        %v2144 = vadd.f32 %v671, %v2143
        %v2145 = vpop.f32.mrb[0].mxu0
        %v2146 = vpop.f32.mrb[0].mxu0
        %v2147 = vpop.f32.mrb[0].mxu0
        %2148 = vdwg.mxu0
        %2149 = vmax.xlane.f32.xlu0 %v2144
        %v2150 = vpop.xlane.xlu0 %2149
        %v2151 = vsub.f32 %v2144, %v2150
        %v2152 = vmul.f32 %v2151, 1.442695
        %v2153 = vpow.pop %v2152
        %2154 = vadd.xlane.f32.xlu0 %v2153
        %v2155 = vpop.xlane.xlu0 %2154
        %v2156 = vrcp.pop %v2155
        %v2157 = vmul.f32 %v2153, %v2156
        %s2158 = scalar_lea.vmem %s601, 32 [#allocation7]
        %2159 = vst [vmem:[%s2158] sm:$0xff] %v2157
        %v2160 = vpack.c.bf16 %v2157, %v2157
        %2161 = vmatprep.subr.bf16.mxu0 0
        %2162 = vmatpush1.bf16.msra.mxu0 %v783
        %2163 = vmatprep.subr.bf16.mxu0 0
        %2164 = vmatpush1.bf16.msra.mxu0 %v784
        %2165 = vmatprep.subr.bf16.mxu0 0
        %2166 = vmatpush1.bf16.msra.mxu0 %v785
        %2167 = vmatprep.subr.bf16.mxu0 0
        %2168 = vmatpush1.bf16.msra.mxu0 %v786
        %2169 = vmatprep.subr.bf16.mxu0 0
        %2170 = vmatpush1.bf16.msra.mxu0 %v787
        %2171 = vmatprep.subr.bf16.mxu0 0
        %2172 = vmatpush1.bf16.msra.mxu0 %v788
        %2173 = vmatprep.subr.bf16.mxu0 0
        %2174 = vmatpush1.bf16.msra.mxu0 %v789
        %2175 = vmatprep.subr.bf16.mxu0 0
        %2176 = vmatpush1.bf16.msra.mxu0 %v790
        %2177 = vmatprep.subr.bf16.mxu0 0
        %2178 = vmatpush1.bf16.msra.mxu0 0
        %2179 = vmatprep.subr.bf16.mxu0 0
        %2180 = vmatpush1.bf16.msra.mxu0 0
        %2181 = vmatprep.subr.bf16.mxu0 0
        %2182 = vmatpush1.bf16.msra.mxu0 0
        %2183 = vmatprep.subr.bf16.mxu0 0
        %2184 = vmatpush1.bf16.msra.mxu0 0
        %2185 = vmatprep.subr.bf16.mxu0 0
        %2186 = vmatpush1.bf16.msra.mxu0 0
        %2187 = vmatprep.subr.bf16.mxu0 0
        %2188 = vmatpush1.bf16.msra.mxu0 0
        %2189 = vmatprep.subr.bf16.mxu0 0
        %2190 = vmatpush1.bf16.msra.mxu0 0
        %2191 = vmatprep.subr.bf16.mxu0 0
        %2192 = vmatpush1.bf16.msra.mxu0 0
        %2193 = vmatprep.mubr.bf16.mxu0 0
        %2194 = vmatmul.mubr.bf16.gmra.mrb[0].mxu0 %v2160
        %v2195 = vpop.f32.mrb[0].mxu0
        %v2196 = vadd.f32 0.0, %v2195
        %v2197 = vpop.f32.mrb[0].mxu0
        %v2198 = vpop.f32.mrb[0].mxu0
        %v2199 = vpop.f32.mrb[0].mxu0
        %2200 = vdwg.mxu0
        %v2201 = vpack.c.bf16 %v2196, %v2196
        %2203 = vrot.lane.b32.xlu0 %v2201, 32
        %v2204 = vpop.permute.xlu0 %2203
        %v2206 = vsel %vm663, %v2103, %v2204
        %v2207 = vsel %vm697, %v2206, 0
        %2209 = vmatprep.subr.bf16.mxu0 0
        %2210 = vmatpush1.bf16.msra.mxu0 %v867
        %2211 = vmatprep.subr.bf16.mxu0 0
        %2212 = vmatpush1.bf16.msra.mxu0 %v868
        %2213 = vmatprep.subr.bf16.mxu0 0
        %2214 = vmatpush1.bf16.msra.mxu0 %v869
        %2215 = vmatprep.subr.bf16.mxu0 0
        %2216 = vmatpush1.bf16.msra.mxu0 %v870
        %2217 = vmatprep.subr.bf16.mxu0 0
        %2218 = vmatpush1.bf16.msra.mxu0 0
        %2219 = vmatprep.subr.bf16.mxu0 0
        %2220 = vmatpush1.bf16.msra.mxu0 0
        %2221 = vmatprep.subr.bf16.mxu0 0
        %2222 = vmatpush1.bf16.msra.mxu0 0
        %2223 = vmatprep.subr.bf16.mxu0 0
        %2224 = vmatpush1.bf16.msra.mxu0 0
        %2225 = vmatprep.subr.bf16.mxu0 0
        %2226 = vmatpush1.bf16.msra.mxu0 0
        %2227 = vmatprep.subr.bf16.mxu0 0
        %2228 = vmatpush1.bf16.msra.mxu0 0
        %2229 = vmatprep.subr.bf16.mxu0 0
        %2230 = vmatpush1.bf16.msra.mxu0 0
        %2231 = vmatprep.subr.bf16.mxu0 0
        %2232 = vmatpush1.bf16.msra.mxu0 0
        %2233 = vmatprep.subr.bf16.mxu0 0
        %2234 = vmatpush1.bf16.msra.mxu0 0
        %2235 = vmatprep.subr.bf16.mxu0 0
        %2236 = vmatpush1.bf16.msra.mxu0 0
        %2237 = vmatprep.subr.bf16.mxu0 0
        %2238 = vmatpush1.bf16.msra.mxu0 0
        %2239 = vmatprep.subr.bf16.mxu0 0
        %2240 = vmatpush1.bf16.msra.mxu0 0
        %2241 = vmatprep.mubr.bf16.mxu0 0
        %2242 = vmatmul.mubr.bf16.gmra.mrb[0].mxu0 %v2207
        %v2243 = vpop.f32.mrb[0].mxu0
        %v2244 = vadd.f32 %v849, %v2243
        %v2245 = vpop.f32.mrb[0].mxu0
        %v2246 = vpop.f32.mrb[0].mxu0
        %v2247 = vpop.f32.mrb[0].mxu0
        %2248 = vdwg.mxu0
        %v2249 = vmax.f32 %v2244, 0.0
        %v2250 = vpack.c.bf16 %v2249, %v2249
        %v2252 = vsel %vm663, %v2250, 0
        %2254 = vmatprep.subr.bf16.mxu0 0
        %2255 = vmatpush1.bf16.msra.mxu0 %v933
        %2256 = vmatprep.subr.bf16.mxu0 0
        %2257 = vmatpush1.bf16.msra.mxu0 %v934
        %2258 = vmatprep.subr.bf16.mxu0 0
        %2259 = vmatpush1.bf16.msra.mxu0 0
        %2260 = vmatprep.subr.bf16.mxu0 0
        %2261 = vmatpush1.bf16.msra.mxu0 0
        %2262 = vmatprep.subr.bf16.mxu0 0
        %2263 = vmatpush1.bf16.msra.mxu0 0
        %2264 = vmatprep.subr.bf16.mxu0 0
        %2265 = vmatpush1.bf16.msra.mxu0 0
        %2266 = vmatprep.subr.bf16.mxu0 0
        %2267 = vmatpush1.bf16.msra.mxu0 0
        %2268 = vmatprep.subr.bf16.mxu0 0
        %2269 = vmatpush1.bf16.msra.mxu0 0
        %2270 = vmatprep.subr.bf16.mxu0 0
        %2271 = vmatpush1.bf16.msra.mxu0 0
        %2272 = vmatprep.subr.bf16.mxu0 0
        %2273 = vmatpush1.bf16.msra.mxu0 0
        %2274 = vmatprep.subr.bf16.mxu0 0
        %2275 = vmatpush1.bf16.msra.mxu0 0
        %2276 = vmatprep.subr.bf16.mxu0 0
        %2277 = vmatpush1.bf16.msra.mxu0 0
        %2278 = vmatprep.subr.bf16.mxu0 0
        %2279 = vmatpush1.bf16.msra.mxu0 0
        %2280 = vmatprep.subr.bf16.mxu0 0
        %2281 = vmatpush1.bf16.msra.mxu0 0
        %2282 = vmatprep.subr.bf16.mxu0 0
        %2283 = vmatpush1.bf16.msra.mxu0 0
        %2284 = vmatprep.subr.bf16.mxu0 0
        %2285 = vmatpush1.bf16.msra.mxu0 0
        %2286 = vmatprep.mubr.bf16.mxu0 0
        %2287 = vmatmul.mubr.bf16.gmra.mrb[0].mxu0 %v2252
        %v2288 = vpop.f32.mrb[0].mxu0
        %v2289 = vadd.f32 %v923, %v2288
        %v2290 = vpop.f32.mrb[0].mxu0
        %v2291 = vpop.f32.mrb[0].mxu0
        %v2292 = vpop.f32.mrb[0].mxu0
        %2293 = vdwg.mxu0
        %2294 = vmatprep.subr.bf16.mxu0 0
        %2295 = vmatpush1.bf16.msra.mxu0 %v994
        %2296 = vmatprep.subr.bf16.mxu0 0
        %2297 = vmatpush1.bf16.msra.mxu0 %v995
        %2298 = vmatprep.subr.bf16.mxu0 0
        %2299 = vmatpush1.bf16.msra.mxu0 0
        %2300 = vmatprep.subr.bf16.mxu0 0
        %2301 = vmatpush1.bf16.msra.mxu0 0
        %2302 = vmatprep.subr.bf16.mxu0 0
        %2303 = vmatpush1.bf16.msra.mxu0 0
        %2304 = vmatprep.subr.bf16.mxu0 0
        %2305 = vmatpush1.bf16.msra.mxu0 0
        %2306 = vmatprep.subr.bf16.mxu0 0
        %2307 = vmatpush1.bf16.msra.mxu0 0
        %2308 = vmatprep.subr.bf16.mxu0 0
        %2309 = vmatpush1.bf16.msra.mxu0 0
        %2310 = vmatprep.subr.bf16.mxu0 0
        %2311 = vmatpush1.bf16.msra.mxu0 0
        %2312 = vmatprep.subr.bf16.mxu0 0
        %2313 = vmatpush1.bf16.msra.mxu0 0
        %2314 = vmatprep.subr.bf16.mxu0 0
        %2315 = vmatpush1.bf16.msra.mxu0 0
        %2316 = vmatprep.subr.bf16.mxu0 0
        %2317 = vmatpush1.bf16.msra.mxu0 0
        %2318 = vmatprep.subr.bf16.mxu0 0
        %2319 = vmatpush1.bf16.msra.mxu0 0
        %2320 = vmatprep.subr.bf16.mxu0 0
        %2321 = vmatpush1.bf16.msra.mxu0 0
        %2322 = vmatprep.subr.bf16.mxu0 0
        %2323 = vmatpush1.bf16.msra.mxu0 0
        %2324 = vmatprep.subr.bf16.mxu0 0
        %2325 = vmatpush1.bf16.msra.mxu0 0
        %2326 = vmatprep.mubr.bf16.mxu0 0
        %2327 = vmatmul.mubr.bf16.gmra.mrb[0].mxu0 %v2047
        %v2328 = vpop.f32.mrb[0].mxu0
        %v2329 = vadd.f32 %v984, %v2328
        %v2330 = vpop.f32.mrb[0].mxu0
        %v2331 = vpop.f32.mrb[0].mxu0
        %v2332 = vpop.f32.mrb[0].mxu0
        %2333 = vdwg.mxu0
        %v2334 = vadd.f32 %v2289, %v2329
        %v2335 = vxor.u32 %v2334, 2147483648
        %v2336 = vmul.f32 %v2335, 1.442695
        %v2337 = vpow.pop %v2336
        %v2338 = vadd.f32 %v2337, 1.0
        %v2339 = vrcp.pop %v2338
        %v2340 = vmul.f32 1.0, %v2339
        %2342 = vrot.lane.b32.xlu0 %v2329, 64
        %v2343 = vpop.permute.xlu0 %2342
        %v2345 = vmul.f32 %v2340, %v2343
        %2347 = vrot.lane.b32.xlu0 %v2345, 64
        %v2348 = vpop.permute.xlu0 %2347
        %v2350 = vadd.f32 %v2289, %v2348
        %v2351 = vtanh.pop %v2350
        %v2352 = vsub.f32 1.0, %v2340
        %2354 = vrot.lane.b32.xlu0 %v2351, 96
        %v2355 = vpop.permute.xlu0 %2354
        %v2357 = vmul.f32 %v2352, %v2355
        %v2358 = vmul.f32 %v2340, %v2041
        %v2359 = vadd.f32 %v2357, %v2358
        %v2360 = vpack.c.bf16 %v2359, %v2359
        %2362 = vrot.lane.b32.xlu0 %v2360, 96
        %v2363 = vpop.permute.xlu0 %2362
        %v2365 = vsel %vm663, %v2363, 0
        %2367 = vmatprep.subr.bf16.mxu0 0
        %2368 = vmatpush1.bf16.msra.mxu0 %v1089
        %2369 = vmatprep.subr.bf16.mxu0 0
        %2370 = vmatpush1.bf16.msra.mxu0 %v1090
        %2371 = vmatprep.subr.bf16.mxu0 0
        %2372 = vmatpush1.bf16.msra.mxu0 0
        %2373 = vmatprep.subr.bf16.mxu0 0
        %2374 = vmatpush1.bf16.msra.mxu0 0
        %2375 = vmatprep.subr.bf16.mxu0 0
        %2376 = vmatpush1.bf16.msra.mxu0 0
        %2377 = vmatprep.subr.bf16.mxu0 0
        %2378 = vmatpush1.bf16.msra.mxu0 0
        %2379 = vmatprep.subr.bf16.mxu0 0
        %2380 = vmatpush1.bf16.msra.mxu0 0
        %2381 = vmatprep.subr.bf16.mxu0 0
        %2382 = vmatpush1.bf16.msra.mxu0 0
        %2383 = vmatprep.subr.bf16.mxu0 0
        %2384 = vmatpush1.bf16.msra.mxu0 0
        %2385 = vmatprep.subr.bf16.mxu0 0
        %2386 = vmatpush1.bf16.msra.mxu0 0
        %2387 = vmatprep.subr.bf16.mxu0 0
        %2388 = vmatpush1.bf16.msra.mxu0 0
        %2389 = vmatprep.subr.bf16.mxu0 0
        %2390 = vmatpush1.bf16.msra.mxu0 0
        %2391 = vmatprep.subr.bf16.mxu0 0
        %2392 = vmatpush1.bf16.msra.mxu0 0
        %2393 = vmatprep.subr.bf16.mxu0 0
        %2394 = vmatpush1.bf16.msra.mxu0 0
        %2395 = vmatprep.subr.bf16.mxu0 0
        %2396 = vmatpush1.bf16.msra.mxu0 0
        %2397 = vmatprep.subr.bf16.mxu0 0
        %2398 = vmatpush1.bf16.msra.mxu0 0
        %2399 = vmatprep.mubr.bf16.mxu0 0
        %2400 = vmatmul.mubr.bf16.gmra.mrb[0].mxu0 %v2365
        %v2401 = vpop.f32.mrb[0].mxu0
        %v2402 = vadd.f32 %v1076, %v2401
        %v2403 = vpop.f32.mrb[0].mxu0
        %v2404 = vpop.f32.mrb[0].mxu0
        %v2405 = vpop.f32.mrb[0].mxu0
        %2406 = vdwg.mxu0
        %2407 = vmax.xlane.f32.xlu0 %v2402
        %v2408 = vpop.xlane.xlu0 %2407
        %v2409 = vsub.f32 %v2402, %v2408
        %v2410 = vmul.f32 %v2409, 1.442695
        %v2411 = vpow.pop %v2410
        %2412 = vadd.xlane.f32.xlu0 %v2411
        %v2413 = vpop.xlane.xlu0 %2412
        %v2414 = vlog2.pop %v2413
        %v2415 = vmul.f32 %v2414, 0.6931472
        %v2416 = vsub.f32 %v2409, %v2415
        %s2417 = scalar_lea.vmem %s587, 32 [#allocation3]
        %2418 = vst [vmem:[%s2417] sm:$0xff] %v2416
        %s2419 = scalar_lea.vmem %s543, 40 [#allocation2]
        %v2420 = vld [vmem:[%s2419] sm:$0xff]
        %v2421 = vpack.c.bf16 %v2420, %v2420
        %v2424 = vsel %vm663, %v2421, %v2360
        %v2425 = vsel %vm697, %v2424, 0
        %2427 = vmatprep.subr.bf16.mxu0 0
        %2428 = vmatpush1.bf16.msra.mxu0 %v689
        %2429 = vmatprep.subr.bf16.mxu0 0
        %2430 = vmatpush1.bf16.msra.mxu0 %v690
        %2431 = vmatprep.subr.bf16.mxu0 0
        %2432 = vmatpush1.bf16.msra.mxu0 %v691
        %2433 = vmatprep.subr.bf16.mxu0 0
        %2434 = vmatpush1.bf16.msra.mxu0 %v692
        %2435 = vmatprep.subr.bf16.mxu0 0
        %2436 = vmatpush1.bf16.msra.mxu0 0
        %2437 = vmatprep.subr.bf16.mxu0 0
        %2438 = vmatpush1.bf16.msra.mxu0 0
        %2439 = vmatprep.subr.bf16.mxu0 0
        %2440 = vmatpush1.bf16.msra.mxu0 0
        %2441 = vmatprep.subr.bf16.mxu0 0
        %2442 = vmatpush1.bf16.msra.mxu0 0
        %2443 = vmatprep.subr.bf16.mxu0 0
        %2444 = vmatpush1.bf16.msra.mxu0 0
        %2445 = vmatprep.subr.bf16.mxu0 0
        %2446 = vmatpush1.bf16.msra.mxu0 0
        %2447 = vmatprep.subr.bf16.mxu0 0
        %2448 = vmatpush1.bf16.msra.mxu0 0
        %2449 = vmatprep.subr.bf16.mxu0 0
        %2450 = vmatpush1.bf16.msra.mxu0 0
        %2451 = vmatprep.subr.bf16.mxu0 0
        %2452 = vmatpush1.bf16.msra.mxu0 0
        %2453 = vmatprep.subr.bf16.mxu0 0
        %2454 = vmatpush1.bf16.msra.mxu0 0
        %2455 = vmatprep.subr.bf16.mxu0 0
        %2456 = vmatpush1.bf16.msra.mxu0 0
        %2457 = vmatprep.subr.bf16.mxu0 0
        %2458 = vmatpush1.bf16.msra.mxu0 0
        %2459 = vmatprep.mubr.bf16.mxu0 0
        %2460 = vmatmul.mubr.bf16.gmra.mrb[0].mxu0 %v2425
        %v2461 = vpop.f32.mrb[0].mxu0
        %v2462 = vadd.f32 %v671, %v2461
        %v2463 = vpop.f32.mrb[0].mxu0
        %v2464 = vpop.f32.mrb[0].mxu0
        %v2465 = vpop.f32.mrb[0].mxu0
        %2466 = vdwg.mxu0
        %2467 = vmax.xlane.f32.xlu0 %v2462
        %v2468 = vpop.xlane.xlu0 %2467
        %v2469 = vsub.f32 %v2462, %v2468
        %v2470 = vmul.f32 %v2469, 1.442695
        %v2471 = vpow.pop %v2470
        %2472 = vadd.xlane.f32.xlu0 %v2471
        %v2473 = vpop.xlane.xlu0 %2472
        %v2474 = vrcp.pop %v2473
        %v2475 = vmul.f32 %v2471, %v2474
        %s2476 = scalar_lea.vmem %s601, 40 [#allocation7]
        %2477 = vst [vmem:[%s2476] sm:$0xff] %v2475
        %v2478 = vpack.c.bf16 %v2475, %v2475
        %2479 = vmatprep.subr.bf16.mxu0 0
        %2480 = vmatpush1.bf16.msra.mxu0 %v783
        %2481 = vmatprep.subr.bf16.mxu0 0
        %2482 = vmatpush1.bf16.msra.mxu0 %v784
        %2483 = vmatprep.subr.bf16.mxu0 0
        %2484 = vmatpush1.bf16.msra.mxu0 %v785
        %2485 = vmatprep.subr.bf16.mxu0 0
        %2486 = vmatpush1.bf16.msra.mxu0 %v786
        %2487 = vmatprep.subr.bf16.mxu0 0
        %2488 = vmatpush1.bf16.msra.mxu0 %v787
        %2489 = vmatprep.subr.bf16.mxu0 0
        %2490 = vmatpush1.bf16.msra.mxu0 %v788
        %2491 = vmatprep.subr.bf16.mxu0 0
        %2492 = vmatpush1.bf16.msra.mxu0 %v789
        %2493 = vmatprep.subr.bf16.mxu0 0
        %2494 = vmatpush1.bf16.msra.mxu0 %v790
        %2495 = vmatprep.subr.bf16.mxu0 0
        %2496 = vmatpush1.bf16.msra.mxu0 0
        %2497 = vmatprep.subr.bf16.mxu0 0
        %2498 = vmatpush1.bf16.msra.mxu0 0
        %2499 = vmatprep.subr.bf16.mxu0 0
        %2500 = vmatpush1.bf16.msra.mxu0 0
        %2501 = vmatprep.subr.bf16.mxu0 0
        %2502 = vmatpush1.bf16.msra.mxu0 0
        %2503 = vmatprep.subr.bf16.mxu0 0
        %2504 = vmatpush1.bf16.msra.mxu0 0
        %2505 = vmatprep.subr.bf16.mxu0 0
        %2506 = vmatpush1.bf16.msra.mxu0 0
        %2507 = vmatprep.subr.bf16.mxu0 0
        %2508 = vmatpush1.bf16.msra.mxu0 0
        %2509 = vmatprep.subr.bf16.mxu0 0
        %2510 = vmatpush1.bf16.msra.mxu0 0
        %2511 = vmatprep.mubr.bf16.mxu0 0
        %2512 = vmatmul.mubr.bf16.gmra.mrb[0].mxu0 %v2478
        %v2513 = vpop.f32.mrb[0].mxu0
        %v2514 = vadd.f32 0.0, %v2513
        %v2515 = vpop.f32.mrb[0].mxu0
        %v2516 = vpop.f32.mrb[0].mxu0
        %v2517 = vpop.f32.mrb[0].mxu0
        %2518 = vdwg.mxu0
        %v2519 = vpack.c.bf16 %v2514, %v2514
        %2521 = vrot.lane.b32.xlu0 %v2519, 32
        %v2522 = vpop.permute.xlu0 %2521
        %v2524 = vsel %vm663, %v2421, %v2522
        %v2525 = vsel %vm697, %v2524, 0
        %2527 = vmatprep.subr.bf16.mxu0 0
        %2528 = vmatpush1.bf16.msra.mxu0 %v867
        %2529 = vmatprep.subr.bf16.mxu0 0
        %2530 = vmatpush1.bf16.msra.mxu0 %v868
        %2531 = vmatprep.subr.bf16.mxu0 0
        %2532 = vmatpush1.bf16.msra.mxu0 %v869
        %2533 = vmatprep.subr.bf16.mxu0 0
        %2534 = vmatpush1.bf16.msra.mxu0 %v870
        %2535 = vmatprep.subr.bf16.mxu0 0
        %2536 = vmatpush1.bf16.msra.mxu0 0
        %2537 = vmatprep.subr.bf16.mxu0 0
        %2538 = vmatpush1.bf16.msra.mxu0 0
        %2539 = vmatprep.subr.bf16.mxu0 0
        %2540 = vmatpush1.bf16.msra.mxu0 0
        %2541 = vmatprep.subr.bf16.mxu0 0
        %2542 = vmatpush1.bf16.msra.mxu0 0
        %2543 = vmatprep.subr.bf16.mxu0 0
        %2544 = vmatpush1.bf16.msra.mxu0 0
        %2545 = vmatprep.subr.bf16.mxu0 0
        %2546 = vmatpush1.bf16.msra.mxu0 0
        %2547 = vmatprep.subr.bf16.mxu0 0
        %2548 = vmatpush1.bf16.msra.mxu0 0
        %2549 = vmatprep.subr.bf16.mxu0 0
        %2550 = vmatpush1.bf16.msra.mxu0 0
        %2551 = vmatprep.subr.bf16.mxu0 0
        %2552 = vmatpush1.bf16.msra.mxu0 0
        %2553 = vmatprep.subr.bf16.mxu0 0
        %2554 = vmatpush1.bf16.msra.mxu0 0
        %2555 = vmatprep.subr.bf16.mxu0 0
        %2556 = vmatpush1.bf16.msra.mxu0 0
        %2557 = vmatprep.subr.bf16.mxu0 0
        %2558 = vmatpush1.bf16.msra.mxu0 0
        %2559 = vmatprep.mubr.bf16.mxu0 0
        %2560 = vmatmul.mubr.bf16.gmra.mrb[0].mxu0 %v2525
        %v2561 = vpop.f32.mrb[0].mxu0
        %v2562 = vadd.f32 %v849, %v2561
        %v2563 = vpop.f32.mrb[0].mxu0
        %v2564 = vpop.f32.mrb[0].mxu0
        %v2565 = vpop.f32.mrb[0].mxu0
        %2566 = vdwg.mxu0
        %v2567 = vmax.f32 %v2562, 0.0
        %v2568 = vpack.c.bf16 %v2567, %v2567
        %v2570 = vsel %vm663, %v2568, 0
        %2572 = vmatprep.subr.bf16.mxu0 0
        %2573 = vmatpush1.bf16.msra.mxu0 %v933
        %2574 = vmatprep.subr.bf16.mxu0 0
        %2575 = vmatpush1.bf16.msra.mxu0 %v934
        %2576 = vmatprep.subr.bf16.mxu0 0
        %2577 = vmatpush1.bf16.msra.mxu0 0
        %2578 = vmatprep.subr.bf16.mxu0 0
        %2579 = vmatpush1.bf16.msra.mxu0 0
        %2580 = vmatprep.subr.bf16.mxu0 0
        %2581 = vmatpush1.bf16.msra.mxu0 0
        %2582 = vmatprep.subr.bf16.mxu0 0
        %2583 = vmatpush1.bf16.msra.mxu0 0
        %2584 = vmatprep.subr.bf16.mxu0 0
        %2585 = vmatpush1.bf16.msra.mxu0 0
        %2586 = vmatprep.subr.bf16.mxu0 0
        %2587 = vmatpush1.bf16.msra.mxu0 0
        %2588 = vmatprep.subr.bf16.mxu0 0
        %2589 = vmatpush1.bf16.msra.mxu0 0
        %2590 = vmatprep.subr.bf16.mxu0 0
        %2591 = vmatpush1.bf16.msra.mxu0 0
        %2592 = vmatprep.subr.bf16.mxu0 0
        %2593 = vmatpush1.bf16.msra.mxu0 0
        %2594 = vmatprep.subr.bf16.mxu0 0
        %2595 = vmatpush1.bf16.msra.mxu0 0
        %2596 = vmatprep.subr.bf16.mxu0 0
        %2597 = vmatpush1.bf16.msra.mxu0 0
        %2598 = vmatprep.subr.bf16.mxu0 0
        %2599 = vmatpush1.bf16.msra.mxu0 0
        %2600 = vmatprep.subr.bf16.mxu0 0
        %2601 = vmatpush1.bf16.msra.mxu0 0
        %2602 = vmatprep.subr.bf16.mxu0 0
        %2603 = vmatpush1.bf16.msra.mxu0 0
        %2604 = vmatprep.mubr.bf16.mxu0 0
        %2605 = vmatmul.mubr.bf16.gmra.mrb[0].mxu0 %v2570
        %v2606 = vpop.f32.mrb[0].mxu0
        %v2607 = vadd.f32 %v923, %v2606
        %v2608 = vpop.f32.mrb[0].mxu0
        %v2609 = vpop.f32.mrb[0].mxu0
        %v2610 = vpop.f32.mrb[0].mxu0
        %2611 = vdwg.mxu0
        %2612 = vmatprep.subr.bf16.mxu0 0
        %2613 = vmatpush1.bf16.msra.mxu0 %v994
        %2614 = vmatprep.subr.bf16.mxu0 0
        %2615 = vmatpush1.bf16.msra.mxu0 %v995
        %2616 = vmatprep.subr.bf16.mxu0 0
        %2617 = vmatpush1.bf16.msra.mxu0 0
        %2618 = vmatprep.subr.bf16.mxu0 0
        %2619 = vmatpush1.bf16.msra.mxu0 0
        %2620 = vmatprep.subr.bf16.mxu0 0
        %2621 = vmatpush1.bf16.msra.mxu0 0
        %2622 = vmatprep.subr.bf16.mxu0 0
        %2623 = vmatpush1.bf16.msra.mxu0 0
        %2624 = vmatprep.subr.bf16.mxu0 0
        %2625 = vmatpush1.bf16.msra.mxu0 0
        %2626 = vmatprep.subr.bf16.mxu0 0
        %2627 = vmatpush1.bf16.msra.mxu0 0
        %2628 = vmatprep.subr.bf16.mxu0 0
        %2629 = vmatpush1.bf16.msra.mxu0 0
        %2630 = vmatprep.subr.bf16.mxu0 0
        %2631 = vmatpush1.bf16.msra.mxu0 0
        %2632 = vmatprep.subr.bf16.mxu0 0
        %2633 = vmatpush1.bf16.msra.mxu0 0
        %2634 = vmatprep.subr.bf16.mxu0 0
        %2635 = vmatpush1.bf16.msra.mxu0 0
        %2636 = vmatprep.subr.bf16.mxu0 0
        %2637 = vmatpush1.bf16.msra.mxu0 0
        %2638 = vmatprep.subr.bf16.mxu0 0
        %2639 = vmatpush1.bf16.msra.mxu0 0
        %2640 = vmatprep.subr.bf16.mxu0 0
        %2641 = vmatpush1.bf16.msra.mxu0 0
        %2642 = vmatprep.subr.bf16.mxu0 0
        %2643 = vmatpush1.bf16.msra.mxu0 0
        %2644 = vmatprep.mubr.bf16.mxu0 0
        %2645 = vmatmul.mubr.bf16.gmra.mrb[0].mxu0 %v2365
        %v2646 = vpop.f32.mrb[0].mxu0
        %v2647 = vadd.f32 %v984, %v2646
        %v2648 = vpop.f32.mrb[0].mxu0
        %v2649 = vpop.f32.mrb[0].mxu0
        %v2650 = vpop.f32.mrb[0].mxu0
        %2651 = vdwg.mxu0
        %v2652 = vadd.f32 %v2607, %v2647
        %v2653 = vxor.u32 %v2652, 2147483648
        %v2654 = vmul.f32 %v2653, 1.442695
        %v2655 = vpow.pop %v2654
        %v2656 = vadd.f32 %v2655, 1.0
        %v2657 = vrcp.pop %v2656
        %v2658 = vmul.f32 1.0, %v2657
        %2660 = vrot.lane.b32.xlu0 %v2647, 64
        %v2661 = vpop.permute.xlu0 %2660
        %v2663 = vmul.f32 %v2658, %v2661
        %2665 = vrot.lane.b32.xlu0 %v2663, 64
        %v2666 = vpop.permute.xlu0 %2665
        %v2668 = vadd.f32 %v2607, %v2666
        %v2669 = vtanh.pop %v2668
        %v2670 = vsub.f32 1.0, %v2658
        %2672 = vrot.lane.b32.xlu0 %v2669, 96
        %v2673 = vpop.permute.xlu0 %2672
        %v2675 = vmul.f32 %v2670, %v2673
        %v2676 = vmul.f32 %v2658, %v2359
        %v2677 = vadd.f32 %v2675, %v2676
        %v2678 = vpack.c.bf16 %v2677, %v2677
        %2680 = vrot.lane.b32.xlu0 %v2678, 96
        %v2681 = vpop.permute.xlu0 %2680
        %v2683 = vsel %vm663, %v2681, 0
        %2685 = vmatprep.subr.bf16.mxu0 0
        %2686 = vmatpush1.bf16.msra.mxu0 %v1089
        %2687 = vmatprep.subr.bf16.mxu0 0
        %2688 = vmatpush1.bf16.msra.mxu0 %v1090
        %2689 = vmatprep.subr.bf16.mxu0 0
        %2690 = vmatpush1.bf16.msra.mxu0 0
        %2691 = vmatprep.subr.bf16.mxu0 0
        %2692 = vmatpush1.bf16.msra.mxu0 0
        %2693 = vmatprep.subr.bf16.mxu0 0
        %2694 = vmatpush1.bf16.msra.mxu0 0
        %2695 = vmatprep.subr.bf16.mxu0 0
        %2696 = vmatpush1.bf16.msra.mxu0 0
        %2697 = vmatprep.subr.bf16.mxu0 0
        %2698 = vmatpush1.bf16.msra.mxu0 0
        %2699 = vmatprep.subr.bf16.mxu0 0
        %2700 = vmatpush1.bf16.msra.mxu0 0
        %2701 = vmatprep.subr.bf16.mxu0 0
        %2702 = vmatpush1.bf16.msra.mxu0 0
        %2703 = vmatprep.subr.bf16.mxu0 0
        %2704 = vmatpush1.bf16.msra.mxu0 0
        %2705 = vmatprep.subr.bf16.mxu0 0
        %2706 = vmatpush1.bf16.msra.mxu0 0
        %2707 = vmatprep.subr.bf16.mxu0 0
        %2708 = vmatpush1.bf16.msra.mxu0 0
        %2709 = vmatprep.subr.bf16.mxu0 0
        %2710 = vmatpush1.bf16.msra.mxu0 0
        %2711 = vmatprep.subr.bf16.mxu0 0
        %2712 = vmatpush1.bf16.msra.mxu0 0
        %2713 = vmatprep.subr.bf16.mxu0 0
        %2714 = vmatpush1.bf16.msra.mxu0 0
        %2715 = vmatprep.subr.bf16.mxu0 0
        %2716 = vmatpush1.bf16.msra.mxu0 0
        %2717 = vmatprep.mubr.bf16.mxu0 0
        %2718 = vmatmul.mubr.bf16.gmra.mrb[0].mxu0 %v2683
        %v2719 = vpop.f32.mrb[0].mxu0
        %v2720 = vadd.f32 %v1076, %v2719
        %v2721 = vpop.f32.mrb[0].mxu0
        %v2722 = vpop.f32.mrb[0].mxu0
        %v2723 = vpop.f32.mrb[0].mxu0
        %2724 = vdwg.mxu0
        %2725 = vmax.xlane.f32.xlu0 %v2720
        %v2726 = vpop.xlane.xlu0 %2725
        %v2727 = vsub.f32 %v2720, %v2726
        %v2728 = vmul.f32 %v2727, 1.442695
        %v2729 = vpow.pop %v2728
        %2730 = vadd.xlane.f32.xlu0 %v2729
        %v2731 = vpop.xlane.xlu0 %2730
        %v2732 = vlog2.pop %v2731
        %v2733 = vmul.f32 %v2732, 0.6931472
        %v2734 = vsub.f32 %v2727, %v2733
        %s2735 = scalar_lea.vmem %s587, 40 [#allocation3]
        %2736 = vst [vmem:[%s2735] sm:$0xff] %v2734
        %s2737 = scalar_lea.vmem %s543, 48 [#allocation2]
        %v2738 = vld [vmem:[%s2737] sm:$0xff]
        %v2739 = vpack.c.bf16 %v2738, %v2738
        %v2742 = vsel %vm663, %v2739, %v2678
        %v2743 = vsel %vm697, %v2742, 0
        %2745 = vmatprep.subr.bf16.mxu0 0
        %2746 = vmatpush1.bf16.msra.mxu0 %v689
        %2747 = vmatprep.subr.bf16.mxu0 0
        %2748 = vmatpush1.bf16.msra.mxu0 %v690
        %2749 = vmatprep.subr.bf16.mxu0 0
        %2750 = vmatpush1.bf16.msra.mxu0 %v691
        %2751 = vmatprep.subr.bf16.mxu0 0
        %2752 = vmatpush1.bf16.msra.mxu0 %v692
        %2753 = vmatprep.subr.bf16.mxu0 0
        %2754 = vmatpush1.bf16.msra.mxu0 0
        %2755 = vmatprep.subr.bf16.mxu0 0
        %2756 = vmatpush1.bf16.msra.mxu0 0
        %2757 = vmatprep.subr.bf16.mxu0 0
        %2758 = vmatpush1.bf16.msra.mxu0 0
        %2759 = vmatprep.subr.bf16.mxu0 0
        %2760 = vmatpush1.bf16.msra.mxu0 0
        %2761 = vmatprep.subr.bf16.mxu0 0
        %2762 = vmatpush1.bf16.msra.mxu0 0
        %2763 = vmatprep.subr.bf16.mxu0 0
        %2764 = vmatpush1.bf16.msra.mxu0 0
        %2765 = vmatprep.subr.bf16.mxu0 0
        %2766 = vmatpush1.bf16.msra.mxu0 0
        %2767 = vmatprep.subr.bf16.mxu0 0
        %2768 = vmatpush1.bf16.msra.mxu0 0
        %2769 = vmatprep.subr.bf16.mxu0 0
        %2770 = vmatpush1.bf16.msra.mxu0 0
        %2771 = vmatprep.subr.bf16.mxu0 0
        %2772 = vmatpush1.bf16.msra.mxu0 0
        %2773 = vmatprep.subr.bf16.mxu0 0
        %2774 = vmatpush1.bf16.msra.mxu0 0
        %2775 = vmatprep.subr.bf16.mxu0 0
        %2776 = vmatpush1.bf16.msra.mxu0 0
        %2777 = vmatprep.mubr.bf16.mxu0 0
        %2778 = vmatmul.mubr.bf16.gmra.mrb[0].mxu0 %v2743
        %v2779 = vpop.f32.mrb[0].mxu0
        %v2780 = vadd.f32 %v671, %v2779
        %v2781 = vpop.f32.mrb[0].mxu0
        %v2782 = vpop.f32.mrb[0].mxu0
        %v2783 = vpop.f32.mrb[0].mxu0
        %2784 = vdwg.mxu0
        %2785 = vmax.xlane.f32.xlu0 %v2780
        %v2786 = vpop.xlane.xlu0 %2785
        %v2787 = vsub.f32 %v2780, %v2786
        %v2788 = vmul.f32 %v2787, 1.442695
        %v2789 = vpow.pop %v2788
        %2790 = vadd.xlane.f32.xlu0 %v2789
        %v2791 = vpop.xlane.xlu0 %2790
        %v2792 = vrcp.pop %v2791
        %v2793 = vmul.f32 %v2789, %v2792
        %s2794 = scalar_lea.vmem %s601, 48 [#allocation7]
        %2795 = vst [vmem:[%s2794] sm:$0xff] %v2793
        %v2796 = vpack.c.bf16 %v2793, %v2793
        %2797 = vmatprep.subr.bf16.mxu0 0
        %2798 = vmatpush1.bf16.msra.mxu0 %v783
        %2799 = vmatprep.subr.bf16.mxu0 0
        %2800 = vmatpush1.bf16.msra.mxu0 %v784
        %2801 = vmatprep.subr.bf16.mxu0 0
        %2802 = vmatpush1.bf16.msra.mxu0 %v785
        %2803 = vmatprep.subr.bf16.mxu0 0
        %2804 = vmatpush1.bf16.msra.mxu0 %v786
        %2805 = vmatprep.subr.bf16.mxu0 0
        %2806 = vmatpush1.bf16.msra.mxu0 %v787
        %2807 = vmatprep.subr.bf16.mxu0 0
        %2808 = vmatpush1.bf16.msra.mxu0 %v788
        %2809 = vmatprep.subr.bf16.mxu0 0
        %2810 = vmatpush1.bf16.msra.mxu0 %v789
        %2811 = vmatprep.subr.bf16.mxu0 0
        %2812 = vmatpush1.bf16.msra.mxu0 %v790
        %2813 = vmatprep.subr.bf16.mxu0 0
        %2814 = vmatpush1.bf16.msra.mxu0 0
        %2815 = vmatprep.subr.bf16.mxu0 0
        %2816 = vmatpush1.bf16.msra.mxu0 0
        %2817 = vmatprep.subr.bf16.mxu0 0
        %2818 = vmatpush1.bf16.msra.mxu0 0
        %2819 = vmatprep.subr.bf16.mxu0 0
        %2820 = vmatpush1.bf16.msra.mxu0 0
        %2821 = vmatprep.subr.bf16.mxu0 0
        %2822 = vmatpush1.bf16.msra.mxu0 0
        %2823 = vmatprep.subr.bf16.mxu0 0
        %2824 = vmatpush1.bf16.msra.mxu0 0
        %2825 = vmatprep.subr.bf16.mxu0 0
        %2826 = vmatpush1.bf16.msra.mxu0 0
        %2827 = vmatprep.subr.bf16.mxu0 0
        %2828 = vmatpush1.bf16.msra.mxu0 0
        %2829 = vmatprep.mubr.bf16.mxu0 0
        %2830 = vmatmul.mubr.bf16.gmra.mrb[0].mxu0 %v2796
        %v2831 = vpop.f32.mrb[0].mxu0
        %v2832 = vadd.f32 0.0, %v2831
        %v2833 = vpop.f32.mrb[0].mxu0
        %v2834 = vpop.f32.mrb[0].mxu0
        %v2835 = vpop.f32.mrb[0].mxu0
        %2836 = vdwg.mxu0
        %v2837 = vpack.c.bf16 %v2832, %v2832
        %2839 = vrot.lane.b32.xlu0 %v2837, 32
        %v2840 = vpop.permute.xlu0 %2839
        %v2842 = vsel %vm663, %v2739, %v2840
        %v2843 = vsel %vm697, %v2842, 0
        %2845 = vmatprep.subr.bf16.mxu0 0
        %2846 = vmatpush1.bf16.msra.mxu0 %v867
        %2847 = vmatprep.subr.bf16.mxu0 0
        %2848 = vmatpush1.bf16.msra.mxu0 %v868
        %2849 = vmatprep.subr.bf16.mxu0 0
        %2850 = vmatpush1.bf16.msra.mxu0 %v869
        %2851 = vmatprep.subr.bf16.mxu0 0
        %2852 = vmatpush1.bf16.msra.mxu0 %v870
        %2853 = vmatprep.subr.bf16.mxu0 0
        %2854 = vmatpush1.bf16.msra.mxu0 0
        %2855 = vmatprep.subr.bf16.mxu0 0
        %2856 = vmatpush1.bf16.msra.mxu0 0
        %2857 = vmatprep.subr.bf16.mxu0 0
        %2858 = vmatpush1.bf16.msra.mxu0 0
        %2859 = vmatprep.subr.bf16.mxu0 0
        %2860 = vmatpush1.bf16.msra.mxu0 0
        %2861 = vmatprep.subr.bf16.mxu0 0
        %2862 = vmatpush1.bf16.msra.mxu0 0
        %2863 = vmatprep.subr.bf16.mxu0 0
        %2864 = vmatpush1.bf16.msra.mxu0 0
        %2865 = vmatprep.subr.bf16.mxu0 0
        %2866 = vmatpush1.bf16.msra.mxu0 0
        %2867 = vmatprep.subr.bf16.mxu0 0
        %2868 = vmatpush1.bf16.msra.mxu0 0
        %2869 = vmatprep.subr.bf16.mxu0 0
        %2870 = vmatpush1.bf16.msra.mxu0 0
        %2871 = vmatprep.subr.bf16.mxu0 0
        %2872 = vmatpush1.bf16.msra.mxu0 0
        %2873 = vmatprep.subr.bf16.mxu0 0
        %2874 = vmatpush1.bf16.msra.mxu0 0
        %2875 = vmatprep.subr.bf16.mxu0 0
        %2876 = vmatpush1.bf16.msra.mxu0 0
        %2877 = vmatprep.mubr.bf16.mxu0 0
        %2878 = vmatmul.mubr.bf16.gmra.mrb[0].mxu0 %v2843
        %v2879 = vpop.f32.mrb[0].mxu0
        %v2880 = vadd.f32 %v849, %v2879
        %v2881 = vpop.f32.mrb[0].mxu0
        %v2882 = vpop.f32.mrb[0].mxu0
        %v2883 = vpop.f32.mrb[0].mxu0
        %2884 = vdwg.mxu0
        %v2885 = vmax.f32 %v2880, 0.0
        %v2886 = vpack.c.bf16 %v2885, %v2885
        %v2888 = vsel %vm663, %v2886, 0
        %2890 = vmatprep.subr.bf16.mxu0 0
        %2891 = vmatpush1.bf16.msra.mxu0 %v933
        %2892 = vmatprep.subr.bf16.mxu0 0
        %2893 = vmatpush1.bf16.msra.mxu0 %v934
        %2894 = vmatprep.subr.bf16.mxu0 0
        %2895 = vmatpush1.bf16.msra.mxu0 0
        %2896 = vmatprep.subr.bf16.mxu0 0
        %2897 = vmatpush1.bf16.msra.mxu0 0
        %2898 = vmatprep.subr.bf16.mxu0 0
        %2899 = vmatpush1.bf16.msra.mxu0 0
        %2900 = vmatprep.subr.bf16.mxu0 0
        %2901 = vmatpush1.bf16.msra.mxu0 0
        %2902 = vmatprep.subr.bf16.mxu0 0
        %2903 = vmatpush1.bf16.msra.mxu0 0
        %2904 = vmatprep.subr.bf16.mxu0 0
        %2905 = vmatpush1.bf16.msra.mxu0 0
        %2906 = vmatprep.subr.bf16.mxu0 0
        %2907 = vmatpush1.bf16.msra.mxu0 0
        %2908 = vmatprep.subr.bf16.mxu0 0
        %2909 = vmatpush1.bf16.msra.mxu0 0
        %2910 = vmatprep.subr.bf16.mxu0 0
        %2911 = vmatpush1.bf16.msra.mxu0 0
        %2912 = vmatprep.subr.bf16.mxu0 0
        %2913 = vmatpush1.bf16.msra.mxu0 0
        %2914 = vmatprep.subr.bf16.mxu0 0
        %2915 = vmatpush1.bf16.msra.mxu0 0
        %2916 = vmatprep.subr.bf16.mxu0 0
        %2917 = vmatpush1.bf16.msra.mxu0 0
        %2918 = vmatprep.subr.bf16.mxu0 0
        %2919 = vmatpush1.bf16.msra.mxu0 0
        %2920 = vmatprep.subr.bf16.mxu0 0
        %2921 = vmatpush1.bf16.msra.mxu0 0
        %2922 = vmatprep.mubr.bf16.mxu0 0
        %2923 = vmatmul.mubr.bf16.gmra.mrb[0].mxu0 %v2888
        %v2924 = vpop.f32.mrb[0].mxu0
        %v2925 = vadd.f32 %v923, %v2924
        %v2926 = vpop.f32.mrb[0].mxu0
        %v2927 = vpop.f32.mrb[0].mxu0
        %v2928 = vpop.f32.mrb[0].mxu0
        %2929 = vdwg.mxu0
        %2930 = vmatprep.subr.bf16.mxu0 0
        %2931 = vmatpush1.bf16.msra.mxu0 %v994
        %2932 = vmatprep.subr.bf16.mxu0 0
        %2933 = vmatpush1.bf16.msra.mxu0 %v995
        %2934 = vmatprep.subr.bf16.mxu0 0
        %2935 = vmatpush1.bf16.msra.mxu0 0
        %2936 = vmatprep.subr.bf16.mxu0 0
        %2937 = vmatpush1.bf16.msra.mxu0 0
        %2938 = vmatprep.subr.bf16.mxu0 0
        %2939 = vmatpush1.bf16.msra.mxu0 0
        %2940 = vmatprep.subr.bf16.mxu0 0
        %2941 = vmatpush1.bf16.msra.mxu0 0
        %2942 = vmatprep.subr.bf16.mxu0 0
        %2943 = vmatpush1.bf16.msra.mxu0 0
        %2944 = vmatprep.subr.bf16.mxu0 0
        %2945 = vmatpush1.bf16.msra.mxu0 0
        %2946 = vmatprep.subr.bf16.mxu0 0
        %2947 = vmatpush1.bf16.msra.mxu0 0
        %2948 = vmatprep.subr.bf16.mxu0 0
        %2949 = vmatpush1.bf16.msra.mxu0 0
        %2950 = vmatprep.subr.bf16.mxu0 0
        %2951 = vmatpush1.bf16.msra.mxu0 0
        %2952 = vmatprep.subr.bf16.mxu0 0
        %2953 = vmatpush1.bf16.msra.mxu0 0
        %2954 = vmatprep.subr.bf16.mxu0 0
        %2955 = vmatpush1.bf16.msra.mxu0 0
        %2956 = vmatprep.subr.bf16.mxu0 0
        %2957 = vmatpush1.bf16.msra.mxu0 0
        %2958 = vmatprep.subr.bf16.mxu0 0
        %2959 = vmatpush1.bf16.msra.mxu0 0
        %2960 = vmatprep.subr.bf16.mxu0 0
        %2961 = vmatpush1.bf16.msra.mxu0 0
        %2962 = vmatprep.mubr.bf16.mxu0 0
        %2963 = vmatmul.mubr.bf16.gmra.mrb[0].mxu0 %v2683
        %v2964 = vpop.f32.mrb[0].mxu0
        %v2965 = vadd.f32 %v984, %v2964
        %v2966 = vpop.f32.mrb[0].mxu0
        %v2967 = vpop.f32.mrb[0].mxu0
        %v2968 = vpop.f32.mrb[0].mxu0
        %2969 = vdwg.mxu0
        %v2970 = vadd.f32 %v2925, %v2965
        %v2971 = vxor.u32 %v2970, 2147483648
        %v2972 = vmul.f32 %v2971, 1.442695
        %v2973 = vpow.pop %v2972
        %v2974 = vadd.f32 %v2973, 1.0
        %v2975 = vrcp.pop %v2974
        %v2976 = vmul.f32 1.0, %v2975
        %2978 = vrot.lane.b32.xlu0 %v2965, 64
        %v2979 = vpop.permute.xlu0 %2978
        %v2981 = vmul.f32 %v2976, %v2979
        %2983 = vrot.lane.b32.xlu0 %v2981, 64
        %v2984 = vpop.permute.xlu0 %2983
        %v2986 = vadd.f32 %v2925, %v2984
        %v2987 = vtanh.pop %v2986
        %v2988 = vsub.f32 1.0, %v2976
        %2990 = vrot.lane.b32.xlu0 %v2987, 96
        %v2991 = vpop.permute.xlu0 %2990
        %v2993 = vmul.f32 %v2988, %v2991
        %v2994 = vmul.f32 %v2976, %v2677
        %v2995 = vadd.f32 %v2993, %v2994
        %v2996 = vpack.c.bf16 %v2995, %v2995
        %2998 = vrot.lane.b32.xlu0 %v2996, 96
        %v2999 = vpop.permute.xlu0 %2998
        %v3001 = vsel %vm663, %v2999, 0
        %3003 = vmatprep.subr.bf16.mxu0 0
        %3004 = vmatpush1.bf16.msra.mxu0 %v1089
        %3005 = vmatprep.subr.bf16.mxu0 0
        %3006 = vmatpush1.bf16.msra.mxu0 %v1090
        %3007 = vmatprep.subr.bf16.mxu0 0
        %3008 = vmatpush1.bf16.msra.mxu0 0
        %3009 = vmatprep.subr.bf16.mxu0 0
        %3010 = vmatpush1.bf16.msra.mxu0 0
        %3011 = vmatprep.subr.bf16.mxu0 0
        %3012 = vmatpush1.bf16.msra.mxu0 0
        %3013 = vmatprep.subr.bf16.mxu0 0
        %3014 = vmatpush1.bf16.msra.mxu0 0
        %3015 = vmatprep.subr.bf16.mxu0 0
        %3016 = vmatpush1.bf16.msra.mxu0 0
        %3017 = vmatprep.subr.bf16.mxu0 0
        %3018 = vmatpush1.bf16.msra.mxu0 0
        %3019 = vmatprep.subr.bf16.mxu0 0
        %3020 = vmatpush1.bf16.msra.mxu0 0
        %3021 = vmatprep.subr.bf16.mxu0 0
        %3022 = vmatpush1.bf16.msra.mxu0 0
        %3023 = vmatprep.subr.bf16.mxu0 0
        %3024 = vmatpush1.bf16.msra.mxu0 0
        %3025 = vmatprep.subr.bf16.mxu0 0
        %3026 = vmatpush1.bf16.msra.mxu0 0
        %3027 = vmatprep.subr.bf16.mxu0 0
        %3028 = vmatpush1.bf16.msra.mxu0 0
        %3029 = vmatprep.subr.bf16.mxu0 0
        %3030 = vmatpush1.bf16.msra.mxu0 0
        %3031 = vmatprep.subr.bf16.mxu0 0
        %3032 = vmatpush1.bf16.msra.mxu0 0
        %3033 = vmatprep.subr.bf16.mxu0 0
        %3034 = vmatpush1.bf16.msra.mxu0 0
        %3035 = vmatprep.mubr.bf16.mxu0 0
        %3036 = vmatmul.mubr.bf16.gmra.mrb[0].mxu0 %v3001
        %v3037 = vpop.f32.mrb[0].mxu0
        %v3038 = vadd.f32 %v1076, %v3037
        %v3039 = vpop.f32.mrb[0].mxu0
        %v3040 = vpop.f32.mrb[0].mxu0
        %v3041 = vpop.f32.mrb[0].mxu0
        %3042 = vdwg.mxu0
        %3043 = vmax.xlane.f32.xlu0 %v3038
        %v3044 = vpop.xlane.xlu0 %3043
        %v3045 = vsub.f32 %v3038, %v3044
        %v3046 = vmul.f32 %v3045, 1.442695
        %v3047 = vpow.pop %v3046
        %3048 = vadd.xlane.f32.xlu0 %v3047
        %v3049 = vpop.xlane.xlu0 %3048
        %v3050 = vlog2.pop %v3049
        %v3051 = vmul.f32 %v3050, 0.6931472
        %v3052 = vsub.f32 %v3045, %v3051
        %s3053 = scalar_lea.vmem %s587, 48 [#allocation3]
        %3054 = vst [vmem:[%s3053] sm:$0xff] %v3052
        %s3055 = scalar_lea.vmem %s543, 56 [#allocation2]
        %v3056 = vld [vmem:[%s3055] sm:$0xff]
        %v3057 = vpack.c.bf16 %v3056, %v3056
        %v3060 = vsel %vm663, %v3057, %v2996
        %v3061 = vsel %vm697, %v3060, 0
        %3063 = vmatprep.subr.bf16.mxu0 0
        %3064 = vmatpush1.bf16.msra.mxu0 %v689
        %3065 = vmatprep.subr.bf16.mxu0 0
        %3066 = vmatpush1.bf16.msra.mxu0 %v690
        %3067 = vmatprep.subr.bf16.mxu0 0
        %3068 = vmatpush1.bf16.msra.mxu0 %v691
        %3069 = vmatprep.subr.bf16.mxu0 0
        %3070 = vmatpush1.bf16.msra.mxu0 %v692
        %3071 = vmatprep.subr.bf16.mxu0 0
        %3072 = vmatpush1.bf16.msra.mxu0 0
        %3073 = vmatprep.subr.bf16.mxu0 0
        %3074 = vmatpush1.bf16.msra.mxu0 0
        %3075 = vmatprep.subr.bf16.mxu0 0
        %3076 = vmatpush1.bf16.msra.mxu0 0
        %3077 = vmatprep.subr.bf16.mxu0 0
        %3078 = vmatpush1.bf16.msra.mxu0 0
        %3079 = vmatprep.subr.bf16.mxu0 0
        %3080 = vmatpush1.bf16.msra.mxu0 0
        %3081 = vmatprep.subr.bf16.mxu0 0
        %3082 = vmatpush1.bf16.msra.mxu0 0
        %3083 = vmatprep.subr.bf16.mxu0 0
        %3084 = vmatpush1.bf16.msra.mxu0 0
        %3085 = vmatprep.subr.bf16.mxu0 0
        %3086 = vmatpush1.bf16.msra.mxu0 0
        %3087 = vmatprep.subr.bf16.mxu0 0
        %3088 = vmatpush1.bf16.msra.mxu0 0
        %3089 = vmatprep.subr.bf16.mxu0 0
        %3090 = vmatpush1.bf16.msra.mxu0 0
        %3091 = vmatprep.subr.bf16.mxu0 0
        %3092 = vmatpush1.bf16.msra.mxu0 0
        %3093 = vmatprep.subr.bf16.mxu0 0
        %3094 = vmatpush1.bf16.msra.mxu0 0
        %3095 = vmatprep.mubr.bf16.mxu0 0
        %3096 = vmatmul.mubr.bf16.gmra.mrb[0].mxu0 %v3061
        %v3097 = vpop.f32.mrb[0].mxu0
        %v3098 = vadd.f32 %v671, %v3097
        %v3099 = vpop.f32.mrb[0].mxu0
        %v3100 = vpop.f32.mrb[0].mxu0
        %v3101 = vpop.f32.mrb[0].mxu0
        %3102 = vdwg.mxu0
        %3103 = vmax.xlane.f32.xlu0 %v3098
        %v3104 = vpop.xlane.xlu0 %3103
        %v3105 = vsub.f32 %v3098, %v3104
        %v3106 = vmul.f32 %v3105, 1.442695
        %v3107 = vpow.pop %v3106
        %3108 = vadd.xlane.f32.xlu0 %v3107
        %v3109 = vpop.xlane.xlu0 %3108
        %v3110 = vrcp.pop %v3109
        %v3111 = vmul.f32 %v3107, %v3110
        %s3112 = scalar_lea.vmem %s601, 56 [#allocation7]
        %3113 = vst [vmem:[%s3112] sm:$0xff] %v3111
        %v3114 = vpack.c.bf16 %v3111, %v3111
        %3115 = vmatprep.subr.bf16.mxu0 0
        %3116 = vmatpush1.bf16.msra.mxu0 %v783
        %3117 = vmatprep.subr.bf16.mxu0 0
        %3118 = vmatpush1.bf16.msra.mxu0 %v784
        %3119 = vmatprep.subr.bf16.mxu0 0
        %3120 = vmatpush1.bf16.msra.mxu0 %v785
        %3121 = vmatprep.subr.bf16.mxu0 0
        %3122 = vmatpush1.bf16.msra.mxu0 %v786
        %3123 = vmatprep.subr.bf16.mxu0 0
        %3124 = vmatpush1.bf16.msra.mxu0 %v787
        %3125 = vmatprep.subr.bf16.mxu0 0
        %3126 = vmatpush1.bf16.msra.mxu0 %v788
        %3127 = vmatprep.subr.bf16.mxu0 0
        %3128 = vmatpush1.bf16.msra.mxu0 %v789
        %3129 = vmatprep.subr.bf16.mxu0 0
        %3130 = vmatpush1.bf16.msra.mxu0 %v790
        %3131 = vmatprep.subr.bf16.mxu0 0
        %3132 = vmatpush1.bf16.msra.mxu0 0
        %3133 = vmatprep.subr.bf16.mxu0 0
        %3134 = vmatpush1.bf16.msra.mxu0 0
        %3135 = vmatprep.subr.bf16.mxu0 0
        %3136 = vmatpush1.bf16.msra.mxu0 0
        %3137 = vmatprep.subr.bf16.mxu0 0
        %3138 = vmatpush1.bf16.msra.mxu0 0
        %3139 = vmatprep.subr.bf16.mxu0 0
        %3140 = vmatpush1.bf16.msra.mxu0 0
        %3141 = vmatprep.subr.bf16.mxu0 0
        %3142 = vmatpush1.bf16.msra.mxu0 0
        %3143 = vmatprep.subr.bf16.mxu0 0
        %3144 = vmatpush1.bf16.msra.mxu0 0
        %3145 = vmatprep.subr.bf16.mxu0 0
        %3146 = vmatpush1.bf16.msra.mxu0 0
        %3147 = vmatprep.mubr.bf16.mxu0 0
        %3148 = vmatmul.mubr.bf16.gmra.mrb[0].mxu0 %v3114
        %v3149 = vpop.f32.mrb[0].mxu0
        %v3150 = vadd.f32 0.0, %v3149
        %v3151 = vpop.f32.mrb[0].mxu0
        %v3152 = vpop.f32.mrb[0].mxu0
        %v3153 = vpop.f32.mrb[0].mxu0
        %3154 = vdwg.mxu0
        %v3155 = vpack.c.bf16 %v3150, %v3150
        %3157 = vrot.lane.b32.xlu0 %v3155, 32
        %v3158 = vpop.permute.xlu0 %3157
        %v3160 = vsel %vm663, %v3057, %v3158
        %v3161 = vsel %vm697, %v3160, 0
        %3163 = vmatprep.subr.bf16.mxu0 0
        %3164 = vmatpush1.bf16.msra.mxu0 %v867
        %3165 = vmatprep.subr.bf16.mxu0 0
        %3166 = vmatpush1.bf16.msra.mxu0 %v868
        %3167 = vmatprep.subr.bf16.mxu0 0
        %3168 = vmatpush1.bf16.msra.mxu0 %v869
        %3169 = vmatprep.subr.bf16.mxu0 0
        %3170 = vmatpush1.bf16.msra.mxu0 %v870
        %3171 = vmatprep.subr.bf16.mxu0 0
        %3172 = vmatpush1.bf16.msra.mxu0 0
        %3173 = vmatprep.subr.bf16.mxu0 0
        %3174 = vmatpush1.bf16.msra.mxu0 0
        %3175 = vmatprep.subr.bf16.mxu0 0
        %3176 = vmatpush1.bf16.msra.mxu0 0
        %3177 = vmatprep.subr.bf16.mxu0 0
        %3178 = vmatpush1.bf16.msra.mxu0 0
        %3179 = vmatprep.subr.bf16.mxu0 0
        %3180 = vmatpush1.bf16.msra.mxu0 0
        %3181 = vmatprep.subr.bf16.mxu0 0
        %3182 = vmatpush1.bf16.msra.mxu0 0
        %3183 = vmatprep.subr.bf16.mxu0 0
        %3184 = vmatpush1.bf16.msra.mxu0 0
        %3185 = vmatprep.subr.bf16.mxu0 0
        %3186 = vmatpush1.bf16.msra.mxu0 0
        %3187 = vmatprep.subr.bf16.mxu0 0
        %3188 = vmatpush1.bf16.msra.mxu0 0
        %3189 = vmatprep.subr.bf16.mxu0 0
        %3190 = vmatpush1.bf16.msra.mxu0 0
        %3191 = vmatprep.subr.bf16.mxu0 0
        %3192 = vmatpush1.bf16.msra.mxu0 0
        %3193 = vmatprep.subr.bf16.mxu0 0
        %3194 = vmatpush1.bf16.msra.mxu0 0
        %3195 = vmatprep.mubr.bf16.mxu0 0
        %3196 = vmatmul.mubr.bf16.gmra.mrb[0].mxu0 %v3161
        %v3197 = vpop.f32.mrb[0].mxu0
        %v3198 = vadd.f32 %v849, %v3197
        %v3199 = vpop.f32.mrb[0].mxu0
        %v3200 = vpop.f32.mrb[0].mxu0
        %v3201 = vpop.f32.mrb[0].mxu0
        %3202 = vdwg.mxu0
        %v3203 = vmax.f32 %v3198, 0.0
        %v3204 = vpack.c.bf16 %v3203, %v3203
        %v3206 = vsel %vm663, %v3204, 0
        %3208 = vmatprep.subr.bf16.mxu0 0
        %3209 = vmatpush1.bf16.msra.mxu0 %v933
        %3210 = vmatprep.subr.bf16.mxu0 0
        %3211 = vmatpush1.bf16.msra.mxu0 %v934
        %3212 = vmatprep.subr.bf16.mxu0 0
        %3213 = vmatpush1.bf16.msra.mxu0 0
        %3214 = vmatprep.subr.bf16.mxu0 0
        %3215 = vmatpush1.bf16.msra.mxu0 0
        %3216 = vmatprep.subr.bf16.mxu0 0
        %3217 = vmatpush1.bf16.msra.mxu0 0
        %3218 = vmatprep.subr.bf16.mxu0 0
        %3219 = vmatpush1.bf16.msra.mxu0 0
        %3220 = vmatprep.subr.bf16.mxu0 0
        %3221 = vmatpush1.bf16.msra.mxu0 0
        %3222 = vmatprep.subr.bf16.mxu0 0
        %3223 = vmatpush1.bf16.msra.mxu0 0
        %3224 = vmatprep.subr.bf16.mxu0 0
        %3225 = vmatpush1.bf16.msra.mxu0 0
        %3226 = vmatprep.subr.bf16.mxu0 0
        %3227 = vmatpush1.bf16.msra.mxu0 0
        %3228 = vmatprep.subr.bf16.mxu0 0
        %3229 = vmatpush1.bf16.msra.mxu0 0
        %3230 = vmatprep.subr.bf16.mxu0 0
        %3231 = vmatpush1.bf16.msra.mxu0 0
        %3232 = vmatprep.subr.bf16.mxu0 0
        %3233 = vmatpush1.bf16.msra.mxu0 0
        %3234 = vmatprep.subr.bf16.mxu0 0
        %3235 = vmatpush1.bf16.msra.mxu0 0
        %3236 = vmatprep.subr.bf16.mxu0 0
        %3237 = vmatpush1.bf16.msra.mxu0 0
        %3238 = vmatprep.subr.bf16.mxu0 0
        %3239 = vmatpush1.bf16.msra.mxu0 0
        %3240 = vmatprep.mubr.bf16.mxu0 0
        %3241 = vmatmul.mubr.bf16.gmra.mrb[0].mxu0 %v3206
        %v3242 = vpop.f32.mrb[0].mxu0
        %v3243 = vadd.f32 %v923, %v3242
        %v3244 = vpop.f32.mrb[0].mxu0
        %v3245 = vpop.f32.mrb[0].mxu0
        %v3246 = vpop.f32.mrb[0].mxu0
        %3247 = vdwg.mxu0
        %3248 = vmatprep.subr.bf16.mxu0 0
        %3249 = vmatpush1.bf16.msra.mxu0 %v994
        %3250 = vmatprep.subr.bf16.mxu0 0
        %3251 = vmatpush1.bf16.msra.mxu0 %v995
        %3252 = vmatprep.subr.bf16.mxu0 0
        %3253 = vmatpush1.bf16.msra.mxu0 0
        %3254 = vmatprep.subr.bf16.mxu0 0
        %3255 = vmatpush1.bf16.msra.mxu0 0
        %3256 = vmatprep.subr.bf16.mxu0 0
        %3257 = vmatpush1.bf16.msra.mxu0 0
        %3258 = vmatprep.subr.bf16.mxu0 0
        %3259 = vmatpush1.bf16.msra.mxu0 0
        %3260 = vmatprep.subr.bf16.mxu0 0
        %3261 = vmatpush1.bf16.msra.mxu0 0
        %3262 = vmatprep.subr.bf16.mxu0 0
        %3263 = vmatpush1.bf16.msra.mxu0 0
        %3264 = vmatprep.subr.bf16.mxu0 0
        %3265 = vmatpush1.bf16.msra.mxu0 0
        %3266 = vmatprep.subr.bf16.mxu0 0
        %3267 = vmatpush1.bf16.msra.mxu0 0
        %3268 = vmatprep.subr.bf16.mxu0 0
        %3269 = vmatpush1.bf16.msra.mxu0 0
        %3270 = vmatprep.subr.bf16.mxu0 0
        %3271 = vmatpush1.bf16.msra.mxu0 0
        %3272 = vmatprep.subr.bf16.mxu0 0
        %3273 = vmatpush1.bf16.msra.mxu0 0
        %3274 = vmatprep.subr.bf16.mxu0 0
        %3275 = vmatpush1.bf16.msra.mxu0 0
        %3276 = vmatprep.subr.bf16.mxu0 0
        %3277 = vmatpush1.bf16.msra.mxu0 0
        %3278 = vmatprep.subr.bf16.mxu0 0
        %3279 = vmatpush1.bf16.msra.mxu0 0
        %3280 = vmatprep.mubr.bf16.mxu0 0
        %3281 = vmatmul.mubr.bf16.gmra.mrb[0].mxu0 %v3001
        %v3282 = vpop.f32.mrb[0].mxu0
        %v3283 = vadd.f32 %v984, %v3282
        %v3284 = vpop.f32.mrb[0].mxu0
        %v3285 = vpop.f32.mrb[0].mxu0
        %v3286 = vpop.f32.mrb[0].mxu0
        %3287 = vdwg.mxu0
        %v3288 = vadd.f32 %v3243, %v3283
        %v3289 = vxor.u32 %v3288, 2147483648
        %v3290 = vmul.f32 %v3289, 1.442695
        %v3291 = vpow.pop %v3290
        %v3292 = vadd.f32 %v3291, 1.0
        %v3293 = vrcp.pop %v3292
        %v3294 = vmul.f32 1.0, %v3293
        %3296 = vrot.lane.b32.xlu0 %v3283, 64
        %v3297 = vpop.permute.xlu0 %3296
        %v3299 = vmul.f32 %v3294, %v3297
        %3301 = vrot.lane.b32.xlu0 %v3299, 64
        %v3302 = vpop.permute.xlu0 %3301
        %v3304 = vadd.f32 %v3243, %v3302
        %v3305 = vtanh.pop %v3304
        %v3306 = vsub.f32 1.0, %v3294
        %3308 = vrot.lane.b32.xlu0 %v3305, 96
        %v3309 = vpop.permute.xlu0 %3308
        %v3311 = vmul.f32 %v3306, %v3309
        %v3312 = vmul.f32 %v3294, %v2995
        %v3313 = vadd.f32 %v3311, %v3312
        %v3314 = vpack.c.bf16 %v3313, %v3313
        %3316 = vrot.lane.b32.xlu0 %v3314, 96
        %v3317 = vpop.permute.xlu0 %3316
        %v3319 = vsel %vm663, %v3317, 0
        %3321 = vmatprep.subr.bf16.mxu0 0
        %3322 = vmatpush1.bf16.msra.mxu0 %v1089
        %3323 = vmatprep.subr.bf16.mxu0 0
        %3324 = vmatpush1.bf16.msra.mxu0 %v1090
        %3325 = vmatprep.subr.bf16.mxu0 0
        %3326 = vmatpush1.bf16.msra.mxu0 0
        %3327 = vmatprep.subr.bf16.mxu0 0
        %3328 = vmatpush1.bf16.msra.mxu0 0
        %3329 = vmatprep.subr.bf16.mxu0 0
        %3330 = vmatpush1.bf16.msra.mxu0 0
        %3331 = vmatprep.subr.bf16.mxu0 0
        %3332 = vmatpush1.bf16.msra.mxu0 0
        %3333 = vmatprep.subr.bf16.mxu0 0
        %3334 = vmatpush1.bf16.msra.mxu0 0
        %3335 = vmatprep.subr.bf16.mxu0 0
        %3336 = vmatpush1.bf16.msra.mxu0 0
        %3337 = vmatprep.subr.bf16.mxu0 0
        %3338 = vmatpush1.bf16.msra.mxu0 0
        %3339 = vmatprep.subr.bf16.mxu0 0
        %3340 = vmatpush1.bf16.msra.mxu0 0
        %3341 = vmatprep.subr.bf16.mxu0 0
        %3342 = vmatpush1.bf16.msra.mxu0 0
        %3343 = vmatprep.subr.bf16.mxu0 0
        %3344 = vmatpush1.bf16.msra.mxu0 0
        %3345 = vmatprep.subr.bf16.mxu0 0
        %3346 = vmatpush1.bf16.msra.mxu0 0
        %3347 = vmatprep.subr.bf16.mxu0 0
        %3348 = vmatpush1.bf16.msra.mxu0 0
        %3349 = vmatprep.subr.bf16.mxu0 0
        %3350 = vmatpush1.bf16.msra.mxu0 0
        %3351 = vmatprep.subr.bf16.mxu0 0
        %3352 = vmatpush1.bf16.msra.mxu0 0
        %3353 = vmatprep.mubr.bf16.mxu0 0
        %3354 = vmatmul.mubr.bf16.gmra.mrb[0].mxu0 %v3319
        %v3355 = vpop.f32.mrb[0].mxu0
        %v3356 = vadd.f32 %v1076, %v3355
        %v3357 = vpop.f32.mrb[0].mxu0
        %v3358 = vpop.f32.mrb[0].mxu0
        %v3359 = vpop.f32.mrb[0].mxu0
        %3360 = vdwg.mxu0
        %3361 = vmax.xlane.f32.xlu0 %v3356
        %v3362 = vpop.xlane.xlu0 %3361
        %v3363 = vsub.f32 %v3356, %v3362
        %v3364 = vmul.f32 %v3363, 1.442695
        %v3365 = vpow.pop %v3364
        %3366 = vadd.xlane.f32.xlu0 %v3365
        %v3367 = vpop.xlane.xlu0 %3366
        %v3368 = vlog2.pop %v3367
        %v3369 = vmul.f32 %v3368, 0.6931472
        %v3370 = vsub.f32 %v3363, %v3369
        %s3371 = scalar_lea.vmem %s587, 56 [#allocation3]
        %3372 = vst [vmem:[%s3371] sm:$0xff] %v3370
        %s3373 = scalar_lea.vmem %s543, 64 [#allocation2]
        %v3374 = vld [vmem:[%s3373] sm:$0xff]
        %v3375 = vpack.c.bf16 %v3374, %v3374
        %v3378 = vsel %vm663, %v3375, %v3314
        %v3379 = vsel %vm697, %v3378, 0
        %3381 = vmatprep.subr.bf16.mxu0 0
        %3382 = vmatpush1.bf16.msra.mxu0 %v689
        %3383 = vmatprep.subr.bf16.mxu0 0
        %3384 = vmatpush1.bf16.msra.mxu0 %v690
        %3385 = vmatprep.subr.bf16.mxu0 0
        %3386 = vmatpush1.bf16.msra.mxu0 %v691
        %3387 = vmatprep.subr.bf16.mxu0 0
        %3388 = vmatpush1.bf16.msra.mxu0 %v692
        %3389 = vmatprep.subr.bf16.mxu0 0
        %3390 = vmatpush1.bf16.msra.mxu0 0
        %3391 = vmatprep.subr.bf16.mxu0 0
        %3392 = vmatpush1.bf16.msra.mxu0 0
        %3393 = vmatprep.subr.bf16.mxu0 0
        %3394 = vmatpush1.bf16.msra.mxu0 0
        %3395 = vmatprep.subr.bf16.mxu0 0
        %3396 = vmatpush1.bf16.msra.mxu0 0
        %3397 = vmatprep.subr.bf16.mxu0 0
        %3398 = vmatpush1.bf16.msra.mxu0 0
        %3399 = vmatprep.subr.bf16.mxu0 0
        %3400 = vmatpush1.bf16.msra.mxu0 0
        %3401 = vmatprep.subr.bf16.mxu0 0
        %3402 = vmatpush1.bf16.msra.mxu0 0
        %3403 = vmatprep.subr.bf16.mxu0 0
        %3404 = vmatpush1.bf16.msra.mxu0 0
        %3405 = vmatprep.subr.bf16.mxu0 0
        %3406 = vmatpush1.bf16.msra.mxu0 0
        %3407 = vmatprep.subr.bf16.mxu0 0
        %3408 = vmatpush1.bf16.msra.mxu0 0
        %3409 = vmatprep.subr.bf16.mxu0 0
        %3410 = vmatpush1.bf16.msra.mxu0 0
        %3411 = vmatprep.subr.bf16.mxu0 0
        %3412 = vmatpush1.bf16.msra.mxu0 0
        %3413 = vmatprep.mubr.bf16.mxu0 0
        %3414 = vmatmul.mubr.bf16.gmra.mrb[0].mxu0 %v3379
        %v3415 = vpop.f32.mrb[0].mxu0
        %v3416 = vadd.f32 %v671, %v3415
        %v3417 = vpop.f32.mrb[0].mxu0
        %v3418 = vpop.f32.mrb[0].mxu0
        %v3419 = vpop.f32.mrb[0].mxu0
        %3420 = vdwg.mxu0
        %3421 = vmax.xlane.f32.xlu0 %v3416
        %v3422 = vpop.xlane.xlu0 %3421
        %v3423 = vsub.f32 %v3416, %v3422
        %v3424 = vmul.f32 %v3423, 1.442695
        %v3425 = vpow.pop %v3424
        %3426 = vadd.xlane.f32.xlu0 %v3425
        %v3427 = vpop.xlane.xlu0 %3426
        %v3428 = vrcp.pop %v3427
        %v3429 = vmul.f32 %v3425, %v3428
        %s3430 = scalar_lea.vmem %s601, 64 [#allocation7]
        %3431 = vst [vmem:[%s3430] sm:$0xff] %v3429
        %v3432 = vpack.c.bf16 %v3429, %v3429
        %3433 = vmatprep.subr.bf16.mxu0 0
        %3434 = vmatpush1.bf16.msra.mxu0 %v783
        %3435 = vmatprep.subr.bf16.mxu0 0
        %3436 = vmatpush1.bf16.msra.mxu0 %v784
        %3437 = vmatprep.subr.bf16.mxu0 0
        %3438 = vmatpush1.bf16.msra.mxu0 %v785
        %3439 = vmatprep.subr.bf16.mxu0 0
        %3440 = vmatpush1.bf16.msra.mxu0 %v786
        %3441 = vmatprep.subr.bf16.mxu0 0
        %3442 = vmatpush1.bf16.msra.mxu0 %v787
        %3443 = vmatprep.subr.bf16.mxu0 0
        %3444 = vmatpush1.bf16.msra.mxu0 %v788
        %3445 = vmatprep.subr.bf16.mxu0 0
        %3446 = vmatpush1.bf16.msra.mxu0 %v789
        %3447 = vmatprep.subr.bf16.mxu0 0
        %3448 = vmatpush1.bf16.msra.mxu0 %v790
        %3449 = vmatprep.subr.bf16.mxu0 0
        %3450 = vmatpush1.bf16.msra.mxu0 0
        %3451 = vmatprep.subr.bf16.mxu0 0
        %3452 = vmatpush1.bf16.msra.mxu0 0
        %3453 = vmatprep.subr.bf16.mxu0 0
        %3454 = vmatpush1.bf16.msra.mxu0 0
        %3455 = vmatprep.subr.bf16.mxu0 0
        %3456 = vmatpush1.bf16.msra.mxu0 0
        %3457 = vmatprep.subr.bf16.mxu0 0
        %3458 = vmatpush1.bf16.msra.mxu0 0
        %3459 = vmatprep.subr.bf16.mxu0 0
        %3460 = vmatpush1.bf16.msra.mxu0 0
        %3461 = vmatprep.subr.bf16.mxu0 0
        %3462 = vmatpush1.bf16.msra.mxu0 0
        %3463 = vmatprep.subr.bf16.mxu0 0
        %3464 = vmatpush1.bf16.msra.mxu0 0
        %3465 = vmatprep.mubr.bf16.mxu0 0
        %3466 = vmatmul.mubr.bf16.gmra.mrb[0].mxu0 %v3432
        %v3467 = vpop.f32.mrb[0].mxu0
        %v3468 = vadd.f32 0.0, %v3467
        %v3469 = vpop.f32.mrb[0].mxu0
        %v3470 = vpop.f32.mrb[0].mxu0
        %v3471 = vpop.f32.mrb[0].mxu0
        %3472 = vdwg.mxu0
        %v3473 = vpack.c.bf16 %v3468, %v3468
        %3475 = vrot.lane.b32.xlu0 %v3473, 32
        %v3476 = vpop.permute.xlu0 %3475
        %v3478 = vsel %vm663, %v3375, %v3476
        %v3479 = vsel %vm697, %v3478, 0
        %3481 = vmatprep.subr.bf16.mxu0 0
        %3482 = vmatpush1.bf16.msra.mxu0 %v867
        %3483 = vmatprep.subr.bf16.mxu0 0
        %3484 = vmatpush1.bf16.msra.mxu0 %v868
        %3485 = vmatprep.subr.bf16.mxu0 0
        %3486 = vmatpush1.bf16.msra.mxu0 %v869
        %3487 = vmatprep.subr.bf16.mxu0 0
        %3488 = vmatpush1.bf16.msra.mxu0 %v870
        %3489 = vmatprep.subr.bf16.mxu0 0
        %3490 = vmatpush1.bf16.msra.mxu0 0
        %3491 = vmatprep.subr.bf16.mxu0 0
        %3492 = vmatpush1.bf16.msra.mxu0 0
        %3493 = vmatprep.subr.bf16.mxu0 0
        %3494 = vmatpush1.bf16.msra.mxu0 0
        %3495 = vmatprep.subr.bf16.mxu0 0
        %3496 = vmatpush1.bf16.msra.mxu0 0
        %3497 = vmatprep.subr.bf16.mxu0 0
        %3498 = vmatpush1.bf16.msra.mxu0 0
        %3499 = vmatprep.subr.bf16.mxu0 0
        %3500 = vmatpush1.bf16.msra.mxu0 0
        %3501 = vmatprep.subr.bf16.mxu0 0
        %3502 = vmatpush1.bf16.msra.mxu0 0
        %3503 = vmatprep.subr.bf16.mxu0 0
        %3504 = vmatpush1.bf16.msra.mxu0 0
        %3505 = vmatprep.subr.bf16.mxu0 0
        %3506 = vmatpush1.bf16.msra.mxu0 0
        %3507 = vmatprep.subr.bf16.mxu0 0
        %3508 = vmatpush1.bf16.msra.mxu0 0
        %3509 = vmatprep.subr.bf16.mxu0 0
        %3510 = vmatpush1.bf16.msra.mxu0 0
        %3511 = vmatprep.subr.bf16.mxu0 0
        %3512 = vmatpush1.bf16.msra.mxu0 0
        %3513 = vmatprep.mubr.bf16.mxu0 0
        %3514 = vmatmul.mubr.bf16.gmra.mrb[0].mxu0 %v3479
        %v3515 = vpop.f32.mrb[0].mxu0
        %v3516 = vadd.f32 %v849, %v3515
        %v3517 = vpop.f32.mrb[0].mxu0
        %v3518 = vpop.f32.mrb[0].mxu0
        %v3519 = vpop.f32.mrb[0].mxu0
        %3520 = vdwg.mxu0
        %v3521 = vmax.f32 %v3516, 0.0
        %v3522 = vpack.c.bf16 %v3521, %v3521
        %v3524 = vsel %vm663, %v3522, 0
        %3526 = vmatprep.subr.bf16.mxu0 0
        %3527 = vmatpush1.bf16.msra.mxu0 %v933
        %3528 = vmatprep.subr.bf16.mxu0 0
        %3529 = vmatpush1.bf16.msra.mxu0 %v934
        %3530 = vmatprep.subr.bf16.mxu0 0
        %3531 = vmatpush1.bf16.msra.mxu0 0
        %3532 = vmatprep.subr.bf16.mxu0 0
        %3533 = vmatpush1.bf16.msra.mxu0 0
        %3534 = vmatprep.subr.bf16.mxu0 0
        %3535 = vmatpush1.bf16.msra.mxu0 0
        %3536 = vmatprep.subr.bf16.mxu0 0
        %3537 = vmatpush1.bf16.msra.mxu0 0
        %3538 = vmatprep.subr.bf16.mxu0 0
        %3539 = vmatpush1.bf16.msra.mxu0 0
        %3540 = vmatprep.subr.bf16.mxu0 0
        %3541 = vmatpush1.bf16.msra.mxu0 0
        %3542 = vmatprep.subr.bf16.mxu0 0
        %3543 = vmatpush1.bf16.msra.mxu0 0
        %3544 = vmatprep.subr.bf16.mxu0 0
        %3545 = vmatpush1.bf16.msra.mxu0 0
        %3546 = vmatprep.subr.bf16.mxu0 0
        %3547 = vmatpush1.bf16.msra.mxu0 0
        %3548 = vmatprep.subr.bf16.mxu0 0
        %3549 = vmatpush1.bf16.msra.mxu0 0
        %3550 = vmatprep.subr.bf16.mxu0 0
        %3551 = vmatpush1.bf16.msra.mxu0 0
        %3552 = vmatprep.subr.bf16.mxu0 0
        %3553 = vmatpush1.bf16.msra.mxu0 0
        %3554 = vmatprep.subr.bf16.mxu0 0
        %3555 = vmatpush1.bf16.msra.mxu0 0
        %3556 = vmatprep.subr.bf16.mxu0 0
        %3557 = vmatpush1.bf16.msra.mxu0 0
        %3558 = vmatprep.mubr.bf16.mxu0 0
        %3559 = vmatmul.mubr.bf16.gmra.mrb[0].mxu0 %v3524
        %v3560 = vpop.f32.mrb[0].mxu0
        %v3561 = vadd.f32 %v923, %v3560
        %v3562 = vpop.f32.mrb[0].mxu0
        %v3563 = vpop.f32.mrb[0].mxu0
        %v3564 = vpop.f32.mrb[0].mxu0
        %3565 = vdwg.mxu0
        %3566 = vmatprep.subr.bf16.mxu0 0
        %3567 = vmatpush1.bf16.msra.mxu0 %v994
        %3568 = vmatprep.subr.bf16.mxu0 0
        %3569 = vmatpush1.bf16.msra.mxu0 %v995
        %3570 = vmatprep.subr.bf16.mxu0 0
        %3571 = vmatpush1.bf16.msra.mxu0 0
        %3572 = vmatprep.subr.bf16.mxu0 0
        %3573 = vmatpush1.bf16.msra.mxu0 0
        %3574 = vmatprep.subr.bf16.mxu0 0
        %3575 = vmatpush1.bf16.msra.mxu0 0
        %3576 = vmatprep.subr.bf16.mxu0 0
        %3577 = vmatpush1.bf16.msra.mxu0 0
        %3578 = vmatprep.subr.bf16.mxu0 0
        %3579 = vmatpush1.bf16.msra.mxu0 0
        %3580 = vmatprep.subr.bf16.mxu0 0
        %3581 = vmatpush1.bf16.msra.mxu0 0
        %3582 = vmatprep.subr.bf16.mxu0 0
        %3583 = vmatpush1.bf16.msra.mxu0 0
        %3584 = vmatprep.subr.bf16.mxu0 0
        %3585 = vmatpush1.bf16.msra.mxu0 0
        %3586 = vmatprep.subr.bf16.mxu0 0
        %3587 = vmatpush1.bf16.msra.mxu0 0
        %3588 = vmatprep.subr.bf16.mxu0 0
        %3589 = vmatpush1.bf16.msra.mxu0 0
        %3590 = vmatprep.subr.bf16.mxu0 0
        %3591 = vmatpush1.bf16.msra.mxu0 0
        %3592 = vmatprep.subr.bf16.mxu0 0
        %3593 = vmatpush1.bf16.msra.mxu0 0
        %3594 = vmatprep.subr.bf16.mxu0 0
        %3595 = vmatpush1.bf16.msra.mxu0 0
        %3596 = vmatprep.subr.bf16.mxu0 0
        %3597 = vmatpush1.bf16.msra.mxu0 0
        %3598 = vmatprep.mubr.bf16.mxu0 0
        %3599 = vmatmul.mubr.bf16.gmra.mrb[0].mxu0 %v3319
        %v3600 = vpop.f32.mrb[0].mxu0
        %v3601 = vadd.f32 %v984, %v3600
        %v3602 = vpop.f32.mrb[0].mxu0
        %v3603 = vpop.f32.mrb[0].mxu0
        %v3604 = vpop.f32.mrb[0].mxu0
        %3605 = vdwg.mxu0
        %v3606 = vadd.f32 %v3561, %v3601
        %v3607 = vxor.u32 %v3606, 2147483648
        %v3608 = vmul.f32 %v3607, 1.442695
        %v3609 = vpow.pop %v3608
        %v3610 = vadd.f32 %v3609, 1.0
        %v3611 = vrcp.pop %v3610
        %v3612 = vmul.f32 1.0, %v3611
        %3614 = vrot.lane.b32.xlu0 %v3601, 64
        %v3615 = vpop.permute.xlu0 %3614
        %v3617 = vmul.f32 %v3612, %v3615
        %3619 = vrot.lane.b32.xlu0 %v3617, 64
        %v3620 = vpop.permute.xlu0 %3619
        %v3622 = vadd.f32 %v3561, %v3620
        %v3623 = vtanh.pop %v3622
        %v3624 = vsub.f32 1.0, %v3612
        %3626 = vrot.lane.b32.xlu0 %v3623, 96
        %v3627 = vpop.permute.xlu0 %3626
        %v3629 = vmul.f32 %v3624, %v3627
        %v3630 = vmul.f32 %v3612, %v3313
        %v3631 = vadd.f32 %v3629, %v3630
        %v3632 = vpack.c.bf16 %v3631, %v3631
        %3634 = vrot.lane.b32.xlu0 %v3632, 96
        %v3635 = vpop.permute.xlu0 %3634
        %v3637 = vsel %vm663, %v3635, 0
        %3639 = vmatprep.subr.bf16.mxu0 0
        %3640 = vmatpush1.bf16.msra.mxu0 %v1089
        %3641 = vmatprep.subr.bf16.mxu0 0
        %3642 = vmatpush1.bf16.msra.mxu0 %v1090
        %3643 = vmatprep.subr.bf16.mxu0 0
        %3644 = vmatpush1.bf16.msra.mxu0 0
        %3645 = vmatprep.subr.bf16.mxu0 0
        %3646 = vmatpush1.bf16.msra.mxu0 0
        %3647 = vmatprep.subr.bf16.mxu0 0
        %3648 = vmatpush1.bf16.msra.mxu0 0
        %3649 = vmatprep.subr.bf16.mxu0 0
        %3650 = vmatpush1.bf16.msra.mxu0 0
        %3651 = vmatprep.subr.bf16.mxu0 0
        %3652 = vmatpush1.bf16.msra.mxu0 0
        %3653 = vmatprep.subr.bf16.mxu0 0
        %3654 = vmatpush1.bf16.msra.mxu0 0
        %3655 = vmatprep.subr.bf16.mxu0 0
        %3656 = vmatpush1.bf16.msra.mxu0 0
        %3657 = vmatprep.subr.bf16.mxu0 0
        %3658 = vmatpush1.bf16.msra.mxu0 0
        %3659 = vmatprep.subr.bf16.mxu0 0
        %3660 = vmatpush1.bf16.msra.mxu0 0
        %3661 = vmatprep.subr.bf16.mxu0 0
        %3662 = vmatpush1.bf16.msra.mxu0 0
        %3663 = vmatprep.subr.bf16.mxu0 0
        %3664 = vmatpush1.bf16.msra.mxu0 0
        %3665 = vmatprep.subr.bf16.mxu0 0
        %3666 = vmatpush1.bf16.msra.mxu0 0
        %3667 = vmatprep.subr.bf16.mxu0 0
        %3668 = vmatpush1.bf16.msra.mxu0 0
        %3669 = vmatprep.subr.bf16.mxu0 0
        %3670 = vmatpush1.bf16.msra.mxu0 0
        %3671 = vmatprep.mubr.bf16.mxu0 0
        %3672 = vmatmul.mubr.bf16.gmra.mrb[0].mxu0 %v3637
        %v3673 = vpop.f32.mrb[0].mxu0
        %v3674 = vadd.f32 %v1076, %v3673
        %v3675 = vpop.f32.mrb[0].mxu0
        %v3676 = vpop.f32.mrb[0].mxu0
        %v3677 = vpop.f32.mrb[0].mxu0
        %3678 = vdwg.mxu0
        %3679 = vmax.xlane.f32.xlu0 %v3674
        %v3680 = vpop.xlane.xlu0 %3679
        %v3681 = vsub.f32 %v3674, %v3680
        %v3682 = vmul.f32 %v3681, 1.442695
        %v3683 = vpow.pop %v3682
        %3684 = vadd.xlane.f32.xlu0 %v3683
        %v3685 = vpop.xlane.xlu0 %3684
        %v3686 = vlog2.pop %v3685
        %v3687 = vmul.f32 %v3686, 0.6931472
        %v3688 = vsub.f32 %v3681, %v3687
        %s3689 = scalar_lea.vmem %s587, 64 [#allocation3]
        %3690 = vst [vmem:[%s3689] sm:$0xff] %v3688
        %s3691 = scalar_lea.vmem %s543, 72 [#allocation2]
        %v3692 = vld [vmem:[%s3691] sm:$0xff]
        %v3693 = vpack.c.bf16 %v3692, %v3692
        %v3696 = vsel %vm663, %v3693, %v3632
        %v3697 = vsel %vm697, %v3696, 0
        %3699 = vmatprep.subr.bf16.mxu0 0
        %3700 = vmatpush1.bf16.msra.mxu0 %v689
        %3701 = vmatprep.subr.bf16.mxu0 0
        %3702 = vmatpush1.bf16.msra.mxu0 %v690
        %3703 = vmatprep.subr.bf16.mxu0 0
        %3704 = vmatpush1.bf16.msra.mxu0 %v691
        %3705 = vmatprep.subr.bf16.mxu0 0
        %3706 = vmatpush1.bf16.msra.mxu0 %v692
        %3707 = vmatprep.subr.bf16.mxu0 0
        %3708 = vmatpush1.bf16.msra.mxu0 0
        %3709 = vmatprep.subr.bf16.mxu0 0
        %3710 = vmatpush1.bf16.msra.mxu0 0
        %3711 = vmatprep.subr.bf16.mxu0 0
        %3712 = vmatpush1.bf16.msra.mxu0 0
        %3713 = vmatprep.subr.bf16.mxu0 0
        %3714 = vmatpush1.bf16.msra.mxu0 0
        %3715 = vmatprep.subr.bf16.mxu0 0
        %3716 = vmatpush1.bf16.msra.mxu0 0
        %3717 = vmatprep.subr.bf16.mxu0 0
        %3718 = vmatpush1.bf16.msra.mxu0 0
        %3719 = vmatprep.subr.bf16.mxu0 0
        %3720 = vmatpush1.bf16.msra.mxu0 0
        %3721 = vmatprep.subr.bf16.mxu0 0
        %3722 = vmatpush1.bf16.msra.mxu0 0
        %3723 = vmatprep.subr.bf16.mxu0 0
        %3724 = vmatpush1.bf16.msra.mxu0 0
        %3725 = vmatprep.subr.bf16.mxu0 0
        %3726 = vmatpush1.bf16.msra.mxu0 0
        %3727 = vmatprep.subr.bf16.mxu0 0
        %3728 = vmatpush1.bf16.msra.mxu0 0
        %3729 = vmatprep.subr.bf16.mxu0 0
        %3730 = vmatpush1.bf16.msra.mxu0 0
        %3731 = vmatprep.mubr.bf16.mxu0 0
        %3732 = vmatmul.mubr.bf16.gmra.mrb[0].mxu0 %v3697
        %v3733 = vpop.f32.mrb[0].mxu0
        %v3734 = vadd.f32 %v671, %v3733
        %v3735 = vpop.f32.mrb[0].mxu0
        %v3736 = vpop.f32.mrb[0].mxu0
        %v3737 = vpop.f32.mrb[0].mxu0
        %3738 = vdwg.mxu0
        %3739 = vmax.xlane.f32.xlu0 %v3734
        %v3740 = vpop.xlane.xlu0 %3739
        %v3741 = vsub.f32 %v3734, %v3740
        %v3742 = vmul.f32 %v3741, 1.442695
        %v3743 = vpow.pop %v3742
        %3744 = vadd.xlane.f32.xlu0 %v3743
        %v3745 = vpop.xlane.xlu0 %3744
        %v3746 = vrcp.pop %v3745
        %v3747 = vmul.f32 %v3743, %v3746
        %s3748 = scalar_lea.vmem %s601, 72 [#allocation7]
        %3749 = vst [vmem:[%s3748] sm:$0xff] %v3747
        %v3750 = vpack.c.bf16 %v3747, %v3747
        %3751 = vmatprep.subr.bf16.mxu0 0
        %3752 = vmatpush1.bf16.msra.mxu0 %v783
        %3753 = vmatprep.subr.bf16.mxu0 0
        %3754 = vmatpush1.bf16.msra.mxu0 %v784
        %3755 = vmatprep.subr.bf16.mxu0 0
        %3756 = vmatpush1.bf16.msra.mxu0 %v785
        %3757 = vmatprep.subr.bf16.mxu0 0
        %3758 = vmatpush1.bf16.msra.mxu0 %v786
        %3759 = vmatprep.subr.bf16.mxu0 0
        %3760 = vmatpush1.bf16.msra.mxu0 %v787
        %3761 = vmatprep.subr.bf16.mxu0 0
        %3762 = vmatpush1.bf16.msra.mxu0 %v788
        %3763 = vmatprep.subr.bf16.mxu0 0
        %3764 = vmatpush1.bf16.msra.mxu0 %v789
        %3765 = vmatprep.subr.bf16.mxu0 0
        %3766 = vmatpush1.bf16.msra.mxu0 %v790
        %3767 = vmatprep.subr.bf16.mxu0 0
        %3768 = vmatpush1.bf16.msra.mxu0 0
        %3769 = vmatprep.subr.bf16.mxu0 0
        %3770 = vmatpush1.bf16.msra.mxu0 0
        %3771 = vmatprep.subr.bf16.mxu0 0
        %3772 = vmatpush1.bf16.msra.mxu0 0
        %3773 = vmatprep.subr.bf16.mxu0 0
        %3774 = vmatpush1.bf16.msra.mxu0 0
        %3775 = vmatprep.subr.bf16.mxu0 0
        %3776 = vmatpush1.bf16.msra.mxu0 0
        %3777 = vmatprep.subr.bf16.mxu0 0
        %3778 = vmatpush1.bf16.msra.mxu0 0
        %3779 = vmatprep.subr.bf16.mxu0 0
        %3780 = vmatpush1.bf16.msra.mxu0 0
        %3781 = vmatprep.subr.bf16.mxu0 0
        %3782 = vmatpush1.bf16.msra.mxu0 0
        %3783 = vmatprep.mubr.bf16.mxu0 0
        %3784 = vmatmul.mubr.bf16.gmra.mrb[0].mxu0 %v3750
        %v3785 = vpop.f32.mrb[0].mxu0
        %v3786 = vadd.f32 0.0, %v3785
        %v3787 = vpop.f32.mrb[0].mxu0
        %v3788 = vpop.f32.mrb[0].mxu0
        %v3789 = vpop.f32.mrb[0].mxu0
        %3790 = vdwg.mxu0
        %v3791 = vpack.c.bf16 %v3786, %v3786
        %3793 = vrot.lane.b32.xlu0 %v3791, 32
        %v3794 = vpop.permute.xlu0 %3793
        %v3796 = vsel %vm663, %v3693, %v3794
        %v3797 = vsel %vm697, %v3796, 0
        %3799 = vmatprep.subr.bf16.mxu0 0
        %3800 = vmatpush1.bf16.msra.mxu0 %v867
        %3801 = vmatprep.subr.bf16.mxu0 0
        %3802 = vmatpush1.bf16.msra.mxu0 %v868
        %3803 = vmatprep.subr.bf16.mxu0 0
        %3804 = vmatpush1.bf16.msra.mxu0 %v869
        %3805 = vmatprep.subr.bf16.mxu0 0
        %3806 = vmatpush1.bf16.msra.mxu0 %v870
        %3807 = vmatprep.subr.bf16.mxu0 0
        %3808 = vmatpush1.bf16.msra.mxu0 0
        %3809 = vmatprep.subr.bf16.mxu0 0
        %3810 = vmatpush1.bf16.msra.mxu0 0
        %3811 = vmatprep.subr.bf16.mxu0 0
        %3812 = vmatpush1.bf16.msra.mxu0 0
        %3813 = vmatprep.subr.bf16.mxu0 0
        %3814 = vmatpush1.bf16.msra.mxu0 0
        %3815 = vmatprep.subr.bf16.mxu0 0
        %3816 = vmatpush1.bf16.msra.mxu0 0
        %3817 = vmatprep.subr.bf16.mxu0 0
        %3818 = vmatpush1.bf16.msra.mxu0 0
        %3819 = vmatprep.subr.bf16.mxu0 0
        %3820 = vmatpush1.bf16.msra.mxu0 0
        %3821 = vmatprep.subr.bf16.mxu0 0
        %3822 = vmatpush1.bf16.msra.mxu0 0
        %3823 = vmatprep.subr.bf16.mxu0 0
        %3824 = vmatpush1.bf16.msra.mxu0 0
        %3825 = vmatprep.subr.bf16.mxu0 0
        %3826 = vmatpush1.bf16.msra.mxu0 0
        %3827 = vmatprep.subr.bf16.mxu0 0
        %3828 = vmatpush1.bf16.msra.mxu0 0
        %3829 = vmatprep.subr.bf16.mxu0 0
        %3830 = vmatpush1.bf16.msra.mxu0 0
        %3831 = vmatprep.mubr.bf16.mxu0 0
        %3832 = vmatmul.mubr.bf16.gmra.mrb[0].mxu0 %v3797
        %v3833 = vpop.f32.mrb[0].mxu0
        %v3834 = vadd.f32 %v849, %v3833
        %v3835 = vpop.f32.mrb[0].mxu0
        %v3836 = vpop.f32.mrb[0].mxu0
        %v3837 = vpop.f32.mrb[0].mxu0
        %3838 = vdwg.mxu0
        %v3839 = vmax.f32 %v3834, 0.0
        %v3840 = vpack.c.bf16 %v3839, %v3839
        %v3842 = vsel %vm663, %v3840, 0
        %3844 = vmatprep.subr.bf16.mxu0 0
        %3845 = vmatpush1.bf16.msra.mxu0 %v933
        %3846 = vmatprep.subr.bf16.mxu0 0
        %3847 = vmatpush1.bf16.msra.mxu0 %v934
        %3848 = vmatprep.subr.bf16.mxu0 0
        %3849 = vmatpush1.bf16.msra.mxu0 0
        %3850 = vmatprep.subr.bf16.mxu0 0
        %3851 = vmatpush1.bf16.msra.mxu0 0
        %3852 = vmatprep.subr.bf16.mxu0 0
        %3853 = vmatpush1.bf16.msra.mxu0 0
        %3854 = vmatprep.subr.bf16.mxu0 0
        %3855 = vmatpush1.bf16.msra.mxu0 0
        %3856 = vmatprep.subr.bf16.mxu0 0
        %3857 = vmatpush1.bf16.msra.mxu0 0
        %3858 = vmatprep.subr.bf16.mxu0 0
        %3859 = vmatpush1.bf16.msra.mxu0 0
        %3860 = vmatprep.subr.bf16.mxu0 0
        %3861 = vmatpush1.bf16.msra.mxu0 0
        %3862 = vmatprep.subr.bf16.mxu0 0
        %3863 = vmatpush1.bf16.msra.mxu0 0
        %3864 = vmatprep.subr.bf16.mxu0 0
        %3865 = vmatpush1.bf16.msra.mxu0 0
        %3866 = vmatprep.subr.bf16.mxu0 0
        %3867 = vmatpush1.bf16.msra.mxu0 0
        %3868 = vmatprep.subr.bf16.mxu0 0
        %3869 = vmatpush1.bf16.msra.mxu0 0
        %3870 = vmatprep.subr.bf16.mxu0 0
        %3871 = vmatpush1.bf16.msra.mxu0 0
        %3872 = vmatprep.subr.bf16.mxu0 0
        %3873 = vmatpush1.bf16.msra.mxu0 0
        %3874 = vmatprep.subr.bf16.mxu0 0
        %3875 = vmatpush1.bf16.msra.mxu0 0
        %3876 = vmatprep.mubr.bf16.mxu0 0
        %3877 = vmatmul.mubr.bf16.gmra.mrb[0].mxu0 %v3842
        %v3878 = vpop.f32.mrb[0].mxu0
        %v3879 = vadd.f32 %v923, %v3878
        %v3880 = vpop.f32.mrb[0].mxu0
        %v3881 = vpop.f32.mrb[0].mxu0
        %v3882 = vpop.f32.mrb[0].mxu0
        %3883 = vdwg.mxu0
        %3884 = vmatprep.subr.bf16.mxu0 0
        %3885 = vmatpush1.bf16.msra.mxu0 %v994
        %3886 = vmatprep.subr.bf16.mxu0 0
        %3887 = vmatpush1.bf16.msra.mxu0 %v995
        %3888 = vmatprep.subr.bf16.mxu0 0
        %3889 = vmatpush1.bf16.msra.mxu0 0
        %3890 = vmatprep.subr.bf16.mxu0 0
        %3891 = vmatpush1.bf16.msra.mxu0 0
        %3892 = vmatprep.subr.bf16.mxu0 0
        %3893 = vmatpush1.bf16.msra.mxu0 0
        %3894 = vmatprep.subr.bf16.mxu0 0
        %3895 = vmatpush1.bf16.msra.mxu0 0
        %3896 = vmatprep.subr.bf16.mxu0 0
        %3897 = vmatpush1.bf16.msra.mxu0 0
        %3898 = vmatprep.subr.bf16.mxu0 0
        %3899 = vmatpush1.bf16.msra.mxu0 0
        %3900 = vmatprep.subr.bf16.mxu0 0
        %3901 = vmatpush1.bf16.msra.mxu0 0
        %3902 = vmatprep.subr.bf16.mxu0 0
        %3903 = vmatpush1.bf16.msra.mxu0 0
        %3904 = vmatprep.subr.bf16.mxu0 0
        %3905 = vmatpush1.bf16.msra.mxu0 0
        %3906 = vmatprep.subr.bf16.mxu0 0
        %3907 = vmatpush1.bf16.msra.mxu0 0
        %3908 = vmatprep.subr.bf16.mxu0 0
        %3909 = vmatpush1.bf16.msra.mxu0 0
        %3910 = vmatprep.subr.bf16.mxu0 0
        %3911 = vmatpush1.bf16.msra.mxu0 0
        %3912 = vmatprep.subr.bf16.mxu0 0
        %3913 = vmatpush1.bf16.msra.mxu0 0
        %3914 = vmatprep.subr.bf16.mxu0 0
        %3915 = vmatpush1.bf16.msra.mxu0 0
        %3916 = vmatprep.mubr.bf16.mxu0 0
        %3917 = vmatmul.mubr.bf16.gmra.mrb[0].mxu0 %v3637
        %v3918 = vpop.f32.mrb[0].mxu0
        %v3919 = vadd.f32 %v984, %v3918
        %v3920 = vpop.f32.mrb[0].mxu0
        %v3921 = vpop.f32.mrb[0].mxu0
        %v3922 = vpop.f32.mrb[0].mxu0
        %3923 = vdwg.mxu0
        %v3924 = vadd.f32 %v3879, %v3919
        %v3925 = vxor.u32 %v3924, 2147483648
        %v3926 = vmul.f32 %v3925, 1.442695
        %v3927 = vpow.pop %v3926
        %v3928 = vadd.f32 %v3927, 1.0
        %v3929 = vrcp.pop %v3928
        %v3930 = vmul.f32 1.0, %v3929
        %3932 = vrot.lane.b32.xlu0 %v3919, 64
        %v3933 = vpop.permute.xlu0 %3932
        %v3935 = vmul.f32 %v3930, %v3933
        %3937 = vrot.lane.b32.xlu0 %v3935, 64
        %v3938 = vpop.permute.xlu0 %3937
        %v3940 = vadd.f32 %v3879, %v3938
        %v3941 = vtanh.pop %v3940
        %v3942 = vsub.f32 1.0, %v3930
        %3944 = vrot.lane.b32.xlu0 %v3941, 96
        %v3945 = vpop.permute.xlu0 %3944
        %v3947 = vmul.f32 %v3942, %v3945
        %v3948 = vmul.f32 %v3930, %v3631
        %v3949 = vadd.f32 %v3947, %v3948
        %v3950 = vpack.c.bf16 %v3949, %v3949
        %3952 = vrot.lane.b32.xlu0 %v3950, 96
        %v3953 = vpop.permute.xlu0 %3952
        %v3955 = vsel %vm663, %v3953, 0
        %3957 = vmatprep.subr.bf16.mxu0 0
        %3958 = vmatpush1.bf16.msra.mxu0 %v1089
        %3959 = vmatprep.subr.bf16.mxu0 0
        %3960 = vmatpush1.bf16.msra.mxu0 %v1090
        %3961 = vmatprep.subr.bf16.mxu0 0
        %3962 = vmatpush1.bf16.msra.mxu0 0
        %3963 = vmatprep.subr.bf16.mxu0 0
        %3964 = vmatpush1.bf16.msra.mxu0 0
        %3965 = vmatprep.subr.bf16.mxu0 0
        %3966 = vmatpush1.bf16.msra.mxu0 0
        %3967 = vmatprep.subr.bf16.mxu0 0
        %3968 = vmatpush1.bf16.msra.mxu0 0
        %3969 = vmatprep.subr.bf16.mxu0 0
        %3970 = vmatpush1.bf16.msra.mxu0 0
        %3971 = vmatprep.subr.bf16.mxu0 0
        %3972 = vmatpush1.bf16.msra.mxu0 0
        %3973 = vmatprep.subr.bf16.mxu0 0
        %3974 = vmatpush1.bf16.msra.mxu0 0
        %3975 = vmatprep.subr.bf16.mxu0 0
        %3976 = vmatpush1.bf16.msra.mxu0 0
        %3977 = vmatprep.subr.bf16.mxu0 0
        %3978 = vmatpush1.bf16.msra.mxu0 0
        %3979 = vmatprep.subr.bf16.mxu0 0
        %3980 = vmatpush1.bf16.msra.mxu0 0
        %3981 = vmatprep.subr.bf16.mxu0 0
        %3982 = vmatpush1.bf16.msra.mxu0 0
        %3983 = vmatprep.subr.bf16.mxu0 0
        %3984 = vmatpush1.bf16.msra.mxu0 0
        %3985 = vmatprep.subr.bf16.mxu0 0
        %3986 = vmatpush1.bf16.msra.mxu0 0
        %3987 = vmatprep.subr.bf16.mxu0 0
        %3988 = vmatpush1.bf16.msra.mxu0 0
        %3989 = vmatprep.mubr.bf16.mxu0 0
        %3990 = vmatmul.mubr.bf16.gmra.mrb[0].mxu0 %v3955
        %v3991 = vpop.f32.mrb[0].mxu0
        %v3992 = vadd.f32 %v1076, %v3991
        %v3993 = vpop.f32.mrb[0].mxu0
        %v3994 = vpop.f32.mrb[0].mxu0
        %v3995 = vpop.f32.mrb[0].mxu0
        %3996 = vdwg.mxu0
        %3997 = vmax.xlane.f32.xlu0 %v3992
        %v3998 = vpop.xlane.xlu0 %3997
        %v3999 = vsub.f32 %v3992, %v3998
        %v4000 = vmul.f32 %v3999, 1.442695
        %v4001 = vpow.pop %v4000
        %4002 = vadd.xlane.f32.xlu0 %v4001
        %v4003 = vpop.xlane.xlu0 %4002
        %v4004 = vlog2.pop %v4003
        %v4005 = vmul.f32 %v4004, 0.6931472
        %v4006 = vsub.f32 %v3999, %v4005
        %s4007 = scalar_lea.vmem %s587, 72 [#allocation3]
        %4008 = vst [vmem:[%s4007] sm:$0xff] %v4006
        %s4009 = scalar_lea.vmem %s543, 80 [#allocation2]
        %v4010 = vld [vmem:[%s4009] sm:$0xff]
        %v4011 = vpack.c.bf16 %v4010, %v4010
        %v4014 = vsel %vm663, %v4011, %v3950
        %v4015 = vsel %vm697, %v4014, 0
        %4017 = vmatprep.subr.bf16.mxu0 0
        %4018 = vmatpush1.bf16.msra.mxu0 %v689
        %4019 = vmatprep.subr.bf16.mxu0 0
        %4020 = vmatpush1.bf16.msra.mxu0 %v690
        %4021 = vmatprep.subr.bf16.mxu0 0
        %4022 = vmatpush1.bf16.msra.mxu0 %v691
        %4023 = vmatprep.subr.bf16.mxu0 0
        %4024 = vmatpush1.bf16.msra.mxu0 %v692
        %4025 = vmatprep.subr.bf16.mxu0 0
        %4026 = vmatpush1.bf16.msra.mxu0 0
        %4027 = vmatprep.subr.bf16.mxu0 0
        %4028 = vmatpush1.bf16.msra.mxu0 0
        %4029 = vmatprep.subr.bf16.mxu0 0
        %4030 = vmatpush1.bf16.msra.mxu0 0
        %4031 = vmatprep.subr.bf16.mxu0 0
        %4032 = vmatpush1.bf16.msra.mxu0 0
        %4033 = vmatprep.subr.bf16.mxu0 0
        %4034 = vmatpush1.bf16.msra.mxu0 0
        %4035 = vmatprep.subr.bf16.mxu0 0
        %4036 = vmatpush1.bf16.msra.mxu0 0
        %4037 = vmatprep.subr.bf16.mxu0 0
        %4038 = vmatpush1.bf16.msra.mxu0 0
        %4039 = vmatprep.subr.bf16.mxu0 0
        %4040 = vmatpush1.bf16.msra.mxu0 0
        %4041 = vmatprep.subr.bf16.mxu0 0
        %4042 = vmatpush1.bf16.msra.mxu0 0
        %4043 = vmatprep.subr.bf16.mxu0 0
        %4044 = vmatpush1.bf16.msra.mxu0 0
        %4045 = vmatprep.subr.bf16.mxu0 0
        %4046 = vmatpush1.bf16.msra.mxu0 0
        %4047 = vmatprep.subr.bf16.mxu0 0
        %4048 = vmatpush1.bf16.msra.mxu0 0
        %4049 = vmatprep.mubr.bf16.mxu0 0
        %4050 = vmatmul.mubr.bf16.gmra.mrb[0].mxu0 %v4015
        %v4051 = vpop.f32.mrb[0].mxu0
        %v4052 = vadd.f32 %v671, %v4051
        %v4053 = vpop.f32.mrb[0].mxu0
        %v4054 = vpop.f32.mrb[0].mxu0
        %v4055 = vpop.f32.mrb[0].mxu0
        %4056 = vdwg.mxu0
        %4057 = vmax.xlane.f32.xlu0 %v4052
        %v4058 = vpop.xlane.xlu0 %4057
        %v4059 = vsub.f32 %v4052, %v4058
        %v4060 = vmul.f32 %v4059, 1.442695
        %v4061 = vpow.pop %v4060
        %4062 = vadd.xlane.f32.xlu0 %v4061
        %v4063 = vpop.xlane.xlu0 %4062
        %v4064 = vrcp.pop %v4063
        %v4065 = vmul.f32 %v4061, %v4064
        %s4066 = scalar_lea.vmem %s601, 80 [#allocation7]
        %4067 = vst [vmem:[%s4066] sm:$0xff] %v4065
        %v4068 = vpack.c.bf16 %v4065, %v4065
        %4069 = vmatprep.subr.bf16.mxu0 0
        %4070 = vmatpush1.bf16.msra.mxu0 %v783
        %4071 = vmatprep.subr.bf16.mxu0 0
        %4072 = vmatpush1.bf16.msra.mxu0 %v784
        %4073 = vmatprep.subr.bf16.mxu0 0
        %4074 = vmatpush1.bf16.msra.mxu0 %v785
        %4075 = vmatprep.subr.bf16.mxu0 0
        %4076 = vmatpush1.bf16.msra.mxu0 %v786
        %4077 = vmatprep.subr.bf16.mxu0 0
        %4078 = vmatpush1.bf16.msra.mxu0 %v787
        %4079 = vmatprep.subr.bf16.mxu0 0
        %4080 = vmatpush1.bf16.msra.mxu0 %v788
        %4081 = vmatprep.subr.bf16.mxu0 0
        %4082 = vmatpush1.bf16.msra.mxu0 %v789
        %4083 = vmatprep.subr.bf16.mxu0 0
        %4084 = vmatpush1.bf16.msra.mxu0 %v790
        %4085 = vmatprep.subr.bf16.mxu0 0
        %4086 = vmatpush1.bf16.msra.mxu0 0
        %4087 = vmatprep.subr.bf16.mxu0 0
        %4088 = vmatpush1.bf16.msra.mxu0 0
        %4089 = vmatprep.subr.bf16.mxu0 0
        %4090 = vmatpush1.bf16.msra.mxu0 0
        %4091 = vmatprep.subr.bf16.mxu0 0
        %4092 = vmatpush1.bf16.msra.mxu0 0
        %4093 = vmatprep.subr.bf16.mxu0 0
        %4094 = vmatpush1.bf16.msra.mxu0 0
        %4095 = vmatprep.subr.bf16.mxu0 0
        %4096 = vmatpush1.bf16.msra.mxu0 0
        %4097 = vmatprep.subr.bf16.mxu0 0
        %4098 = vmatpush1.bf16.msra.mxu0 0
        %4099 = vmatprep.subr.bf16.mxu0 0
        %4100 = vmatpush1.bf16.msra.mxu0 0
        %4101 = vmatprep.mubr.bf16.mxu0 0
        %4102 = vmatmul.mubr.bf16.gmra.mrb[0].mxu0 %v4068
        %v4103 = vpop.f32.mrb[0].mxu0
        %v4104 = vadd.f32 0.0, %v4103
        %v4105 = vpop.f32.mrb[0].mxu0
        %v4106 = vpop.f32.mrb[0].mxu0
        %v4107 = vpop.f32.mrb[0].mxu0
        %4108 = vdwg.mxu0
        %v4109 = vpack.c.bf16 %v4104, %v4104
        %4111 = vrot.lane.b32.xlu0 %v4109, 32
        %v4112 = vpop.permute.xlu0 %4111
        %v4114 = vsel %vm663, %v4011, %v4112
        %v4115 = vsel %vm697, %v4114, 0
        %4117 = vmatprep.subr.bf16.mxu0 0
        %4118 = vmatpush1.bf16.msra.mxu0 %v867
        %4119 = vmatprep.subr.bf16.mxu0 0
        %4120 = vmatpush1.bf16.msra.mxu0 %v868
        %4121 = vmatprep.subr.bf16.mxu0 0
        %4122 = vmatpush1.bf16.msra.mxu0 %v869
        %4123 = vmatprep.subr.bf16.mxu0 0
        %4124 = vmatpush1.bf16.msra.mxu0 %v870
        %4125 = vmatprep.subr.bf16.mxu0 0
        %4126 = vmatpush1.bf16.msra.mxu0 0
        %4127 = vmatprep.subr.bf16.mxu0 0
        %4128 = vmatpush1.bf16.msra.mxu0 0
        %4129 = vmatprep.subr.bf16.mxu0 0
        %4130 = vmatpush1.bf16.msra.mxu0 0
        %4131 = vmatprep.subr.bf16.mxu0 0
        %4132 = vmatpush1.bf16.msra.mxu0 0
        %4133 = vmatprep.subr.bf16.mxu0 0
        %4134 = vmatpush1.bf16.msra.mxu0 0
        %4135 = vmatprep.subr.bf16.mxu0 0
        %4136 = vmatpush1.bf16.msra.mxu0 0
        %4137 = vmatprep.subr.bf16.mxu0 0
        %4138 = vmatpush1.bf16.msra.mxu0 0
        %4139 = vmatprep.subr.bf16.mxu0 0
        %4140 = vmatpush1.bf16.msra.mxu0 0
        %4141 = vmatprep.subr.bf16.mxu0 0
        %4142 = vmatpush1.bf16.msra.mxu0 0
        %4143 = vmatprep.subr.bf16.mxu0 0
        %4144 = vmatpush1.bf16.msra.mxu0 0
        %4145 = vmatprep.subr.bf16.mxu0 0
        %4146 = vmatpush1.bf16.msra.mxu0 0
        %4147 = vmatprep.subr.bf16.mxu0 0
        %4148 = vmatpush1.bf16.msra.mxu0 0
        %4149 = vmatprep.mubr.bf16.mxu0 0
        %4150 = vmatmul.mubr.bf16.gmra.mrb[0].mxu0 %v4115
        %v4151 = vpop.f32.mrb[0].mxu0
        %v4152 = vadd.f32 %v849, %v4151
        %v4153 = vpop.f32.mrb[0].mxu0
        %v4154 = vpop.f32.mrb[0].mxu0
        %v4155 = vpop.f32.mrb[0].mxu0
        %4156 = vdwg.mxu0
        %v4157 = vmax.f32 %v4152, 0.0
        %v4158 = vpack.c.bf16 %v4157, %v4157
        %v4160 = vsel %vm663, %v4158, 0
        %4162 = vmatprep.subr.bf16.mxu0 0
        %4163 = vmatpush1.bf16.msra.mxu0 %v933
        %4164 = vmatprep.subr.bf16.mxu0 0
        %4165 = vmatpush1.bf16.msra.mxu0 %v934
        %4166 = vmatprep.subr.bf16.mxu0 0
        %4167 = vmatpush1.bf16.msra.mxu0 0
        %4168 = vmatprep.subr.bf16.mxu0 0
        %4169 = vmatpush1.bf16.msra.mxu0 0
        %4170 = vmatprep.subr.bf16.mxu0 0
        %4171 = vmatpush1.bf16.msra.mxu0 0
        %4172 = vmatprep.subr.bf16.mxu0 0
        %4173 = vmatpush1.bf16.msra.mxu0 0
        %4174 = vmatprep.subr.bf16.mxu0 0
        %4175 = vmatpush1.bf16.msra.mxu0 0
        %4176 = vmatprep.subr.bf16.mxu0 0
        %4177 = vmatpush1.bf16.msra.mxu0 0
        %4178 = vmatprep.subr.bf16.mxu0 0
        %4179 = vmatpush1.bf16.msra.mxu0 0
        %4180 = vmatprep.subr.bf16.mxu0 0
        %4181 = vmatpush1.bf16.msra.mxu0 0
        %4182 = vmatprep.subr.bf16.mxu0 0
        %4183 = vmatpush1.bf16.msra.mxu0 0
        %4184 = vmatprep.subr.bf16.mxu0 0
        %4185 = vmatpush1.bf16.msra.mxu0 0
        %4186 = vmatprep.subr.bf16.mxu0 0
        %4187 = vmatpush1.bf16.msra.mxu0 0
        %4188 = vmatprep.subr.bf16.mxu0 0
        %4189 = vmatpush1.bf16.msra.mxu0 0
        %4190 = vmatprep.subr.bf16.mxu0 0
        %4191 = vmatpush1.bf16.msra.mxu0 0
        %4192 = vmatprep.subr.bf16.mxu0 0
        %4193 = vmatpush1.bf16.msra.mxu0 0
        %4194 = vmatprep.mubr.bf16.mxu0 0
        %4195 = vmatmul.mubr.bf16.gmra.mrb[0].mxu0 %v4160
        %v4196 = vpop.f32.mrb[0].mxu0
        %v4197 = vadd.f32 %v923, %v4196
        %v4198 = vpop.f32.mrb[0].mxu0
        %v4199 = vpop.f32.mrb[0].mxu0
        %v4200 = vpop.f32.mrb[0].mxu0
        %4201 = vdwg.mxu0
        %4202 = vmatprep.subr.bf16.mxu0 0
        %4203 = vmatpush1.bf16.msra.mxu0 %v994
        %4204 = vmatprep.subr.bf16.mxu0 0
        %4205 = vmatpush1.bf16.msra.mxu0 %v995
        %4206 = vmatprep.subr.bf16.mxu0 0
        %4207 = vmatpush1.bf16.msra.mxu0 0
        %4208 = vmatprep.subr.bf16.mxu0 0
        %4209 = vmatpush1.bf16.msra.mxu0 0
        %4210 = vmatprep.subr.bf16.mxu0 0
        %4211 = vmatpush1.bf16.msra.mxu0 0
        %4212 = vmatprep.subr.bf16.mxu0 0
        %4213 = vmatpush1.bf16.msra.mxu0 0
        %4214 = vmatprep.subr.bf16.mxu0 0
        %4215 = vmatpush1.bf16.msra.mxu0 0
        %4216 = vmatprep.subr.bf16.mxu0 0
        %4217 = vmatpush1.bf16.msra.mxu0 0
        %4218 = vmatprep.subr.bf16.mxu0 0
        %4219 = vmatpush1.bf16.msra.mxu0 0
        %4220 = vmatprep.subr.bf16.mxu0 0
        %4221 = vmatpush1.bf16.msra.mxu0 0
        %4222 = vmatprep.subr.bf16.mxu0 0
        %4223 = vmatpush1.bf16.msra.mxu0 0
        %4224 = vmatprep.subr.bf16.mxu0 0
        %4225 = vmatpush1.bf16.msra.mxu0 0
        %4226 = vmatprep.subr.bf16.mxu0 0
        %4227 = vmatpush1.bf16.msra.mxu0 0
        %4228 = vmatprep.subr.bf16.mxu0 0
        %4229 = vmatpush1.bf16.msra.mxu0 0
        %4230 = vmatprep.subr.bf16.mxu0 0
        %4231 = vmatpush1.bf16.msra.mxu0 0
        %4232 = vmatprep.subr.bf16.mxu0 0
        %4233 = vmatpush1.bf16.msra.mxu0 0
        %4234 = vmatprep.mubr.bf16.mxu0 0
        %4235 = vmatmul.mubr.bf16.gmra.mrb[0].mxu0 %v3955
        %v4236 = vpop.f32.mrb[0].mxu0
        %v4237 = vadd.f32 %v984, %v4236
        %v4238 = vpop.f32.mrb[0].mxu0
        %v4239 = vpop.f32.mrb[0].mxu0
        %v4240 = vpop.f32.mrb[0].mxu0
        %4241 = vdwg.mxu0
        %v4242 = vadd.f32 %v4197, %v4237
        %v4243 = vxor.u32 %v4242, 2147483648
        %v4244 = vmul.f32 %v4243, 1.442695
        %v4245 = vpow.pop %v4244
        %v4246 = vadd.f32 %v4245, 1.0
        %v4247 = vrcp.pop %v4246
        %v4248 = vmul.f32 1.0, %v4247
        %4250 = vrot.lane.b32.xlu0 %v4237, 64
        %v4251 = vpop.permute.xlu0 %4250
        %v4253 = vmul.f32 %v4248, %v4251
        %4255 = vrot.lane.b32.xlu0 %v4253, 64
        %v4256 = vpop.permute.xlu0 %4255
        %v4258 = vadd.f32 %v4197, %v4256
        %v4259 = vtanh.pop %v4258
        %v4260 = vsub.f32 1.0, %v4248
        %4262 = vrot.lane.b32.xlu0 %v4259, 96
        %v4263 = vpop.permute.xlu0 %4262
        %v4265 = vmul.f32 %v4260, %v4263
        %v4266 = vmul.f32 %v4248, %v3949
        %v4267 = vadd.f32 %v4265, %v4266
        %v4268 = vpack.c.bf16 %v4267, %v4267
        %4270 = vrot.lane.b32.xlu0 %v4268, 96
        %v4271 = vpop.permute.xlu0 %4270
        %v4273 = vsel %vm663, %v4271, 0
        %4275 = vmatprep.subr.bf16.mxu0 0
        %4276 = vmatpush1.bf16.msra.mxu0 %v1089
        %4277 = vmatprep.subr.bf16.mxu0 0
        %4278 = vmatpush1.bf16.msra.mxu0 %v1090
        %4279 = vmatprep.subr.bf16.mxu0 0
        %4280 = vmatpush1.bf16.msra.mxu0 0
        %4281 = vmatprep.subr.bf16.mxu0 0
        %4282 = vmatpush1.bf16.msra.mxu0 0
        %4283 = vmatprep.subr.bf16.mxu0 0
        %4284 = vmatpush1.bf16.msra.mxu0 0
        %4285 = vmatprep.subr.bf16.mxu0 0
        %4286 = vmatpush1.bf16.msra.mxu0 0
        %4287 = vmatprep.subr.bf16.mxu0 0
        %4288 = vmatpush1.bf16.msra.mxu0 0
        %4289 = vmatprep.subr.bf16.mxu0 0
        %4290 = vmatpush1.bf16.msra.mxu0 0
        %4291 = vmatprep.subr.bf16.mxu0 0
        %4292 = vmatpush1.bf16.msra.mxu0 0
        %4293 = vmatprep.subr.bf16.mxu0 0
        %4294 = vmatpush1.bf16.msra.mxu0 0
        %4295 = vmatprep.subr.bf16.mxu0 0
        %4296 = vmatpush1.bf16.msra.mxu0 0
        %4297 = vmatprep.subr.bf16.mxu0 0
        %4298 = vmatpush1.bf16.msra.mxu0 0
        %4299 = vmatprep.subr.bf16.mxu0 0
        %4300 = vmatpush1.bf16.msra.mxu0 0
        %4301 = vmatprep.subr.bf16.mxu0 0
        %4302 = vmatpush1.bf16.msra.mxu0 0
        %4303 = vmatprep.subr.bf16.mxu0 0
        %4304 = vmatpush1.bf16.msra.mxu0 0
        %4305 = vmatprep.subr.bf16.mxu0 0
        %4306 = vmatpush1.bf16.msra.mxu0 0
        %4307 = vmatprep.mubr.bf16.mxu0 0
        %4308 = vmatmul.mubr.bf16.gmra.mrb[0].mxu0 %v4273
        %v4309 = vpop.f32.mrb[0].mxu0
        %v4310 = vadd.f32 %v1076, %v4309
        %v4311 = vpop.f32.mrb[0].mxu0
        %v4312 = vpop.f32.mrb[0].mxu0
        %v4313 = vpop.f32.mrb[0].mxu0
        %4314 = vdwg.mxu0
        %4315 = vmax.xlane.f32.xlu0 %v4310
        %v4316 = vpop.xlane.xlu0 %4315
        %v4317 = vsub.f32 %v4310, %v4316
        %v4318 = vmul.f32 %v4317, 1.442695
        %v4319 = vpow.pop %v4318
        %4320 = vadd.xlane.f32.xlu0 %v4319
        %v4321 = vpop.xlane.xlu0 %4320
        %v4322 = vlog2.pop %v4321
        %v4323 = vmul.f32 %v4322, 0.6931472
        %v4324 = vsub.f32 %v4317, %v4323
        %s4325 = scalar_lea.vmem %s587, 80 [#allocation3]
        %4326 = vst [vmem:[%s4325] sm:$0xff] %v4324
        %s4327 = scalar_lea.vmem %s543, 88 [#allocation2]
        %v4328 = vld [vmem:[%s4327] sm:$0xff]
        %v4329 = vpack.c.bf16 %v4328, %v4328
        %v4332 = vsel %vm663, %v4329, %v4268
        %v4333 = vsel %vm697, %v4332, 0
        %4335 = vmatprep.subr.bf16.mxu0 0
        %4336 = vmatpush1.bf16.msra.mxu0 %v689
        %4337 = vmatprep.subr.bf16.mxu0 0
        %4338 = vmatpush1.bf16.msra.mxu0 %v690
        %4339 = vmatprep.subr.bf16.mxu0 0
        %4340 = vmatpush1.bf16.msra.mxu0 %v691
        %4341 = vmatprep.subr.bf16.mxu0 0
        %4342 = vmatpush1.bf16.msra.mxu0 %v692
        %4343 = vmatprep.subr.bf16.mxu0 0
        %4344 = vmatpush1.bf16.msra.mxu0 0
        %4345 = vmatprep.subr.bf16.mxu0 0
        %4346 = vmatpush1.bf16.msra.mxu0 0
        %4347 = vmatprep.subr.bf16.mxu0 0
        %4348 = vmatpush1.bf16.msra.mxu0 0
        %4349 = vmatprep.subr.bf16.mxu0 0
        %4350 = vmatpush1.bf16.msra.mxu0 0
        %4351 = vmatprep.subr.bf16.mxu0 0
        %4352 = vmatpush1.bf16.msra.mxu0 0
        %4353 = vmatprep.subr.bf16.mxu0 0
        %4354 = vmatpush1.bf16.msra.mxu0 0
        %4355 = vmatprep.subr.bf16.mxu0 0
        %4356 = vmatpush1.bf16.msra.mxu0 0
        %4357 = vmatprep.subr.bf16.mxu0 0
        %4358 = vmatpush1.bf16.msra.mxu0 0
        %4359 = vmatprep.subr.bf16.mxu0 0
        %4360 = vmatpush1.bf16.msra.mxu0 0
        %4361 = vmatprep.subr.bf16.mxu0 0
        %4362 = vmatpush1.bf16.msra.mxu0 0
        %4363 = vmatprep.subr.bf16.mxu0 0
        %4364 = vmatpush1.bf16.msra.mxu0 0
        %4365 = vmatprep.subr.bf16.mxu0 0
        %4366 = vmatpush1.bf16.msra.mxu0 0
        %4367 = vmatprep.mubr.bf16.mxu0 0
        %4368 = vmatmul.mubr.bf16.gmra.mrb[0].mxu0 %v4333
        %v4369 = vpop.f32.mrb[0].mxu0
        %v4370 = vadd.f32 %v671, %v4369
        %v4371 = vpop.f32.mrb[0].mxu0
        %v4372 = vpop.f32.mrb[0].mxu0
        %v4373 = vpop.f32.mrb[0].mxu0
        %4374 = vdwg.mxu0
        %4375 = vmax.xlane.f32.xlu0 %v4370
        %v4376 = vpop.xlane.xlu0 %4375
        %v4377 = vsub.f32 %v4370, %v4376
        %v4378 = vmul.f32 %v4377, 1.442695
        %v4379 = vpow.pop %v4378
        %4380 = vadd.xlane.f32.xlu0 %v4379
        %v4381 = vpop.xlane.xlu0 %4380
        %v4382 = vrcp.pop %v4381
        %v4383 = vmul.f32 %v4379, %v4382
        %s4384 = scalar_lea.vmem %s601, 88 [#allocation7]
        %4385 = vst [vmem:[%s4384] sm:$0xff] %v4383
        %v4386 = vpack.c.bf16 %v4383, %v4383
        %4387 = vmatprep.subr.bf16.mxu0 0
        %4388 = vmatpush1.bf16.msra.mxu0 %v783
        %4389 = vmatprep.subr.bf16.mxu0 0
        %4390 = vmatpush1.bf16.msra.mxu0 %v784
        %4391 = vmatprep.subr.bf16.mxu0 0
        %4392 = vmatpush1.bf16.msra.mxu0 %v785
        %4393 = vmatprep.subr.bf16.mxu0 0
        %4394 = vmatpush1.bf16.msra.mxu0 %v786
        %4395 = vmatprep.subr.bf16.mxu0 0
        %4396 = vmatpush1.bf16.msra.mxu0 %v787
        %4397 = vmatprep.subr.bf16.mxu0 0
        %4398 = vmatpush1.bf16.msra.mxu0 %v788
        %4399 = vmatprep.subr.bf16.mxu0 0
        %4400 = vmatpush1.bf16.msra.mxu0 %v789
        %4401 = vmatprep.subr.bf16.mxu0 0
        %4402 = vmatpush1.bf16.msra.mxu0 %v790
        %4403 = vmatprep.subr.bf16.mxu0 0
        %4404 = vmatpush1.bf16.msra.mxu0 0
        %4405 = vmatprep.subr.bf16.mxu0 0
        %4406 = vmatpush1.bf16.msra.mxu0 0
        %4407 = vmatprep.subr.bf16.mxu0 0
        %4408 = vmatpush1.bf16.msra.mxu0 0
        %4409 = vmatprep.subr.bf16.mxu0 0
        %4410 = vmatpush1.bf16.msra.mxu0 0
        %4411 = vmatprep.subr.bf16.mxu0 0
        %4412 = vmatpush1.bf16.msra.mxu0 0
        %4413 = vmatprep.subr.bf16.mxu0 0
        %4414 = vmatpush1.bf16.msra.mxu0 0
        %4415 = vmatprep.subr.bf16.mxu0 0
        %4416 = vmatpush1.bf16.msra.mxu0 0
        %4417 = vmatprep.subr.bf16.mxu0 0
        %4418 = vmatpush1.bf16.msra.mxu0 0
        %4419 = vmatprep.mubr.bf16.mxu0 0
        %4420 = vmatmul.mubr.bf16.gmra.mrb[0].mxu0 %v4386
        %v4421 = vpop.f32.mrb[0].mxu0
        %v4422 = vadd.f32 0.0, %v4421
        %v4423 = vpop.f32.mrb[0].mxu0
        %v4424 = vpop.f32.mrb[0].mxu0
        %v4425 = vpop.f32.mrb[0].mxu0
        %4426 = vdwg.mxu0
        %v4427 = vpack.c.bf16 %v4422, %v4422
        %4429 = vrot.lane.b32.xlu0 %v4427, 32
        %v4430 = vpop.permute.xlu0 %4429
        %v4432 = vsel %vm663, %v4329, %v4430
        %v4433 = vsel %vm697, %v4432, 0
        %4435 = vmatprep.subr.bf16.mxu0 0
        %4436 = vmatpush1.bf16.msra.mxu0 %v867
        %4437 = vmatprep.subr.bf16.mxu0 0
        %4438 = vmatpush1.bf16.msra.mxu0 %v868
        %4439 = vmatprep.subr.bf16.mxu0 0
        %4440 = vmatpush1.bf16.msra.mxu0 %v869
        %4441 = vmatprep.subr.bf16.mxu0 0
        %4442 = vmatpush1.bf16.msra.mxu0 %v870
        %4443 = vmatprep.subr.bf16.mxu0 0
        %4444 = vmatpush1.bf16.msra.mxu0 0
        %4445 = vmatprep.subr.bf16.mxu0 0
        %4446 = vmatpush1.bf16.msra.mxu0 0
        %4447 = vmatprep.subr.bf16.mxu0 0
        %4448 = vmatpush1.bf16.msra.mxu0 0
        %4449 = vmatprep.subr.bf16.mxu0 0
        %4450 = vmatpush1.bf16.msra.mxu0 0
        %4451 = vmatprep.subr.bf16.mxu0 0
        %4452 = vmatpush1.bf16.msra.mxu0 0
        %4453 = vmatprep.subr.bf16.mxu0 0
        %4454 = vmatpush1.bf16.msra.mxu0 0
        %4455 = vmatprep.subr.bf16.mxu0 0
        %4456 = vmatpush1.bf16.msra.mxu0 0
        %4457 = vmatprep.subr.bf16.mxu0 0
        %4458 = vmatpush1.bf16.msra.mxu0 0
        %4459 = vmatprep.subr.bf16.mxu0 0
        %4460 = vmatpush1.bf16.msra.mxu0 0
        %4461 = vmatprep.subr.bf16.mxu0 0
        %4462 = vmatpush1.bf16.msra.mxu0 0
        %4463 = vmatprep.subr.bf16.mxu0 0
        %4464 = vmatpush1.bf16.msra.mxu0 0
        %4465 = vmatprep.subr.bf16.mxu0 0
        %4466 = vmatpush1.bf16.msra.mxu0 0
        %4467 = vmatprep.mubr.bf16.mxu0 0
        %4468 = vmatmul.mubr.bf16.gmra.mrb[0].mxu0 %v4433
        %v4469 = vpop.f32.mrb[0].mxu0
        %v4470 = vadd.f32 %v849, %v4469
        %v4471 = vpop.f32.mrb[0].mxu0
        %v4472 = vpop.f32.mrb[0].mxu0
        %v4473 = vpop.f32.mrb[0].mxu0
        %4474 = vdwg.mxu0
        %v4475 = vmax.f32 %v4470, 0.0
        %v4476 = vpack.c.bf16 %v4475, %v4475
        %v4478 = vsel %vm663, %v4476, 0
        %4480 = vmatprep.subr.bf16.mxu0 0
        %4481 = vmatpush1.bf16.msra.mxu0 %v933
        %4482 = vmatprep.subr.bf16.mxu0 0
        %4483 = vmatpush1.bf16.msra.mxu0 %v934
        %4484 = vmatprep.subr.bf16.mxu0 0
        %4485 = vmatpush1.bf16.msra.mxu0 0
        %4486 = vmatprep.subr.bf16.mxu0 0
        %4487 = vmatpush1.bf16.msra.mxu0 0
        %4488 = vmatprep.subr.bf16.mxu0 0
        %4489 = vmatpush1.bf16.msra.mxu0 0
        %4490 = vmatprep.subr.bf16.mxu0 0
        %4491 = vmatpush1.bf16.msra.mxu0 0
        %4492 = vmatprep.subr.bf16.mxu0 0
        %4493 = vmatpush1.bf16.msra.mxu0 0
        %4494 = vmatprep.subr.bf16.mxu0 0
        %4495 = vmatpush1.bf16.msra.mxu0 0
        %4496 = vmatprep.subr.bf16.mxu0 0
        %4497 = vmatpush1.bf16.msra.mxu0 0
        %4498 = vmatprep.subr.bf16.mxu0 0
        %4499 = vmatpush1.bf16.msra.mxu0 0
        %4500 = vmatprep.subr.bf16.mxu0 0
        %4501 = vmatpush1.bf16.msra.mxu0 0
        %4502 = vmatprep.subr.bf16.mxu0 0
        %4503 = vmatpush1.bf16.msra.mxu0 0
        %4504 = vmatprep.subr.bf16.mxu0 0
        %4505 = vmatpush1.bf16.msra.mxu0 0
        %4506 = vmatprep.subr.bf16.mxu0 0
        %4507 = vmatpush1.bf16.msra.mxu0 0
        %4508 = vmatprep.subr.bf16.mxu0 0
        %4509 = vmatpush1.bf16.msra.mxu0 0
        %4510 = vmatprep.subr.bf16.mxu0 0
        %4511 = vmatpush1.bf16.msra.mxu0 0
        %4512 = vmatprep.mubr.bf16.mxu0 0
        %4513 = vmatmul.mubr.bf16.gmra.mrb[0].mxu0 %v4478
        %v4514 = vpop.f32.mrb[0].mxu0
        %v4515 = vadd.f32 %v923, %v4514
        %v4516 = vpop.f32.mrb[0].mxu0
        %v4517 = vpop.f32.mrb[0].mxu0
        %v4518 = vpop.f32.mrb[0].mxu0
        %4519 = vdwg.mxu0
        %4520 = vmatprep.subr.bf16.mxu0 0
        %4521 = vmatpush1.bf16.msra.mxu0 %v994
        %4522 = vmatprep.subr.bf16.mxu0 0
        %4523 = vmatpush1.bf16.msra.mxu0 %v995
        %4524 = vmatprep.subr.bf16.mxu0 0
        %4525 = vmatpush1.bf16.msra.mxu0 0
        %4526 = vmatprep.subr.bf16.mxu0 0
        %4527 = vmatpush1.bf16.msra.mxu0 0
        %4528 = vmatprep.subr.bf16.mxu0 0
        %4529 = vmatpush1.bf16.msra.mxu0 0
        %4530 = vmatprep.subr.bf16.mxu0 0
        %4531 = vmatpush1.bf16.msra.mxu0 0
        %4532 = vmatprep.subr.bf16.mxu0 0
        %4533 = vmatpush1.bf16.msra.mxu0 0
        %4534 = vmatprep.subr.bf16.mxu0 0
        %4535 = vmatpush1.bf16.msra.mxu0 0
        %4536 = vmatprep.subr.bf16.mxu0 0
        %4537 = vmatpush1.bf16.msra.mxu0 0
        %4538 = vmatprep.subr.bf16.mxu0 0
        %4539 = vmatpush1.bf16.msra.mxu0 0
        %4540 = vmatprep.subr.bf16.mxu0 0
        %4541 = vmatpush1.bf16.msra.mxu0 0
        %4542 = vmatprep.subr.bf16.mxu0 0
        %4543 = vmatpush1.bf16.msra.mxu0 0
        %4544 = vmatprep.subr.bf16.mxu0 0
        %4545 = vmatpush1.bf16.msra.mxu0 0
        %4546 = vmatprep.subr.bf16.mxu0 0
        %4547 = vmatpush1.bf16.msra.mxu0 0
        %4548 = vmatprep.subr.bf16.mxu0 0
        %4549 = vmatpush1.bf16.msra.mxu0 0
        %4550 = vmatprep.subr.bf16.mxu0 0
        %4551 = vmatpush1.bf16.msra.mxu0 0
        %4552 = vmatprep.mubr.bf16.mxu0 0
        %4553 = vmatmul.mubr.bf16.gmra.mrb[0].mxu0 %v4273
        %v4554 = vpop.f32.mrb[0].mxu0
        %v4555 = vadd.f32 %v984, %v4554
        %v4556 = vpop.f32.mrb[0].mxu0
        %v4557 = vpop.f32.mrb[0].mxu0
        %v4558 = vpop.f32.mrb[0].mxu0
        %4559 = vdwg.mxu0
        %v4560 = vadd.f32 %v4515, %v4555
        %v4561 = vxor.u32 %v4560, 2147483648
        %v4562 = vmul.f32 %v4561, 1.442695
        %v4563 = vpow.pop %v4562
        %v4564 = vadd.f32 %v4563, 1.0
        %v4565 = vrcp.pop %v4564
        %v4566 = vmul.f32 1.0, %v4565
        %4568 = vrot.lane.b32.xlu0 %v4555, 64
        %v4569 = vpop.permute.xlu0 %4568
        %v4571 = vmul.f32 %v4566, %v4569
        %4573 = vrot.lane.b32.xlu0 %v4571, 64
        %v4574 = vpop.permute.xlu0 %4573
        %v4576 = vadd.f32 %v4515, %v4574
        %v4577 = vtanh.pop %v4576
        %v4578 = vsub.f32 1.0, %v4566
        %4580 = vrot.lane.b32.xlu0 %v4577, 96
        %v4581 = vpop.permute.xlu0 %4580
        %v4583 = vmul.f32 %v4578, %v4581
        %v4584 = vmul.f32 %v4566, %v4267
        %v4585 = vadd.f32 %v4583, %v4584
        %v4586 = vpack.c.bf16 %v4585, %v4585
        %4588 = vrot.lane.b32.xlu0 %v4586, 96
        %v4589 = vpop.permute.xlu0 %4588
        %v4591 = vsel %vm663, %v4589, 0
        %4593 = vmatprep.subr.bf16.mxu0 0
        %4594 = vmatpush1.bf16.msra.mxu0 %v1089
        %4595 = vmatprep.subr.bf16.mxu0 0
        %4596 = vmatpush1.bf16.msra.mxu0 %v1090
        %4597 = vmatprep.subr.bf16.mxu0 0
        %4598 = vmatpush1.bf16.msra.mxu0 0
        %4599 = vmatprep.subr.bf16.mxu0 0
        %4600 = vmatpush1.bf16.msra.mxu0 0
        %4601 = vmatprep.subr.bf16.mxu0 0
        %4602 = vmatpush1.bf16.msra.mxu0 0
        %4603 = vmatprep.subr.bf16.mxu0 0
        %4604 = vmatpush1.bf16.msra.mxu0 0
        %4605 = vmatprep.subr.bf16.mxu0 0
        %4606 = vmatpush1.bf16.msra.mxu0 0
        %4607 = vmatprep.subr.bf16.mxu0 0
        %4608 = vmatpush1.bf16.msra.mxu0 0
        %4609 = vmatprep.subr.bf16.mxu0 0
        %4610 = vmatpush1.bf16.msra.mxu0 0
        %4611 = vmatprep.subr.bf16.mxu0 0
        %4612 = vmatpush1.bf16.msra.mxu0 0
        %4613 = vmatprep.subr.bf16.mxu0 0
        %4614 = vmatpush1.bf16.msra.mxu0 0
        %4615 = vmatprep.subr.bf16.mxu0 0
        %4616 = vmatpush1.bf16.msra.mxu0 0
        %4617 = vmatprep.subr.bf16.mxu0 0
        %4618 = vmatpush1.bf16.msra.mxu0 0
        %4619 = vmatprep.subr.bf16.mxu0 0
        %4620 = vmatpush1.bf16.msra.mxu0 0
        %4621 = vmatprep.subr.bf16.mxu0 0
        %4622 = vmatpush1.bf16.msra.mxu0 0
        %4623 = vmatprep.subr.bf16.mxu0 0
        %4624 = vmatpush1.bf16.msra.mxu0 0
        %4625 = vmatprep.mubr.bf16.mxu0 0
        %4626 = vmatmul.mubr.bf16.gmra.mrb[0].mxu0 %v4591
        %v4627 = vpop.f32.mrb[0].mxu0
        %v4628 = vadd.f32 %v1076, %v4627
        %v4629 = vpop.f32.mrb[0].mxu0
        %v4630 = vpop.f32.mrb[0].mxu0
        %v4631 = vpop.f32.mrb[0].mxu0
        %4632 = vdwg.mxu0
        %4633 = vmax.xlane.f32.xlu0 %v4628
        %v4634 = vpop.xlane.xlu0 %4633
        %v4635 = vsub.f32 %v4628, %v4634
        %v4636 = vmul.f32 %v4635, 1.442695
        %v4637 = vpow.pop %v4636
        %4638 = vadd.xlane.f32.xlu0 %v4637
        %v4639 = vpop.xlane.xlu0 %4638
        %v4640 = vlog2.pop %v4639
        %v4641 = vmul.f32 %v4640, 0.6931472
        %v4642 = vsub.f32 %v4635, %v4641
        %s4643 = scalar_lea.vmem %s587, 88 [#allocation3]
        %4644 = vst [vmem:[%s4643] sm:$0xff] %v4642
        %4646 = vrot.lane.b32.xlu0 %v4585, 96
        %v4647 = vpop.permute.xlu0 %4646
        %4649 = vst.msk [vmem:[%s594] sm:$0xff] %vm663, %v4647
        %s4650 = sand.u32 %s324, 1
        %s4651 = scalar_lea.sflag [#allocation4], %s4650
        %s4652 = sand.u32 %s324, 1
        %s4653 = smul.addr %s4652, 96
        %s4654 = scalar_lea.vmem [#allocation3], %s4653
        %s4655 = sand.u32 %s33, 1
        %s4656 = scalar_lea.sflag [#allocation6], %s4655
        %s4657 = sand.u32 %s350, 1
        %s4658 = smul.addr %s4657, 8
        %s4659 = scalar_lea.vmem [#allocation5], %s4658
        %s4660 = sand.u32 %s33, 1
        %s4661 = scalar_lea.sflag [#allocation6], %s4660
        %s4662 = sand.u32 %s376, 1
        %s4663 = smul.addr %s4662, 96
        %s4664 = scalar_lea.vmem [#allocation7], %s4663
        // Predicated region
        $region111: #{attn_decoder_decode.1} parent=105 // pred_check
          %p4665 = pneg %p334
        $region112: #{attn_decoder_decode.1} parent=105 // pred_check_branch
          %4667 = sbr.rel (%p4665) target = $region114
        $region113: #{attn_decoder_decode.1} parent=105 // pred_region
          %s4669 = ssub.s32 1536, 1536
          %4670 = vsyncadd %s4651, %s4669
          %s4671 = smul.addr %s33, 128
          %s4672 = scalar_lea.hbm %s13, %s4671
          %s4673 = sshll.u32 %s4654, 4
          %s4674 = int_to_ptr.vmem [resolvable:$true] %s4673
          %4679 = dma.vmem_to_hbm [thread:$0]  %s4674, 1536, %s4672, %s4651, 128, 256, 8
        $region114: #{attn_decoder_decode.1} parent=105 // pred_fallthru
          _
        // Predicated region
        $region115: #{attn_decoder_decode.1} parent=105 // pred_check
          %p4680 = pneg %p360
        $region116: #{attn_decoder_decode.1} parent=105 // pred_check_branch
          %4682 = sbr.rel (%p4680) target = $region118
        $region117: #{attn_decoder_decode.1} parent=105 // pred_region
          %s4684 = ssub.s32 128, 128
          %4685 = vsyncadd %s4656, %s4684
          %s4686 = smul.addr %s33, 128
          %s4687 = scalar_lea.hbm %s14, %s4686
          %s4689 = sshll.u32 %s4659, 4
          %s4690 = int_to_ptr.vmem [resolvable:$true] %s4689
          %4692 = dma.vmem_to_hbm [thread:$0]  %s4690, 128, %s4687, %s4656
        $region118: #{attn_decoder_decode.1} parent=105 // pred_fallthru
          _
        // Predicated region
        $region119: #{attn_decoder_decode.1} parent=105 // pred_check
          %p4693 = pneg %p386
        $region120: #{attn_decoder_decode.1} parent=105 // pred_check_branch
          %4695 = sbr.rel (%p4693) target = $region122
        $region121: #{attn_decoder_decode.1} parent=105 // pred_region
          %s4697 = ssub.s32 1536, 1536
          %4698 = vsyncadd %s4661, %s4697
          %s4699 = smul.addr %s33, 128
          %s4700 = scalar_lea.hbm %s15, %s4699
          %s4701 = sshll.u32 %s4664, 4
          %s4702 = int_to_ptr.vmem [resolvable:$true] %s4701
          %4707 = dma.vmem_to_hbm [thread:$0]  %s4702, 1536, %s4700, %s4661, 128, 256, 8
        $region122: #{attn_decoder_decode.1} parent=105 // pred_fallthru
          _
      $region106: #{attn_decoder_decode.1} parent=5 // pred_fallthru
        _
      %p4708 = scmp.le.s32.totalorder 2, %s28
      // Predicated region
      $region123: #{attn_decoder_decode.1} parent=5 // pred_check
        %p4709 = pneg %p4708
      $region124: #{attn_decoder_decode.1} parent=5 // pred_check_branch
        %4711 = sbr.rel (%p4709) target = $region126
      $region125: #{attn_decoder_decode.1} parent=5 // pred_region
        %s4712 = ssub.s32 %s28, 2
        // Predicated region
        $region127: #{attn_decoder_decode.1} parent=125 // pred_check
          %p4713 = pneg %p340
        $region128: #{attn_decoder_decode.1} parent=125 // pred_check_branch
          %4715 = sbr.rel (%p4713) target = $region130
        $region129: #{attn_decoder_decode.1} parent=125 // pred_region
          %s4716 = sand.u32 %s325, 1
          %s4717 = scalar_lea.sflag [#allocation4], %s4716
          %s4718 = sand.u32 %s325, 1
          %s4719 = smul.addr %s4718, 96
          %s4720 = scalar_lea.vmem [#allocation3], %s4719
          %4721 = dma.done %s4717, 1536
        $region130: #{attn_decoder_decode.1} parent=125 // pred_fallthru
          _
        // Predicated region
        $region131: #{attn_decoder_decode.1} parent=125 // pred_check
          %p4722 = pneg %p366
        $region132: #{attn_decoder_decode.1} parent=125 // pred_check_branch
          %4724 = sbr.rel (%p4722) target = $region134
        $region133: #{attn_decoder_decode.1} parent=125 // pred_region
          %s4725 = sand.u32 %s34, 1
          %s4726 = scalar_lea.sflag [#allocation6], %s4725
          %s4727 = sand.u32 %s351, 1
          %s4728 = smul.addr %s4727, 8
          %s4729 = scalar_lea.vmem [#allocation5], %s4728
          %4730 = dma.done %s4726, 128
        $region134: #{attn_decoder_decode.1} parent=125 // pred_fallthru
          _
        // Predicated region
        $region135: #{attn_decoder_decode.1} parent=125 // pred_check
          %p4731 = pneg %p392
        $region136: #{attn_decoder_decode.1} parent=125 // pred_check_branch
          %4733 = sbr.rel (%p4731) target = $region138
        $region137: #{attn_decoder_decode.1} parent=125 // pred_region
          %s4734 = sand.u32 %s34, 1
          %s4735 = scalar_lea.sflag [#allocation6], %s4734
          %s4736 = sand.u32 %s377, 1
          %s4737 = smul.addr %s4736, 96
          %s4738 = scalar_lea.vmem [#allocation7], %s4737
          %4739 = dma.done %s4735, 1536
        $region138: #{attn_decoder_decode.1} parent=125 // pred_fallthru
          _
      $region126: #{attn_decoder_decode.1} parent=5 // pred_fallthru
        _
    $region6: #{attn_decoder_decode.1} parent=1 // loop_footer
      %s32 = sadd.s32 1, %s28
    $region7: #{attn_decoder_decode.1} parent=1 // loop_footer_branch
      %27 = sbr.rel target = $region3
    $region8: #{attn_decoder_decode.1} parent=1 // loop_exit
      _
    %4740 = vsyncpa [#allocation4], 1
    %s4741 = scalar_lea.sflag [#allocation4], 1
    %4742 = vsyncpa %s4741, 1
    %4743 = vsyncpa [#allocation6], 1
    %s4744 = scalar_lea.sflag [#allocation6], 1
    %4745 = vsyncpa %s4744, 1

</llo_original>
